<compile_context>
chip_gen: v7x
topology: tpu7x:2x2x1
jax: 0.10.0
libtpu: 0.0.40
codegen_flags: <defaults>
</compile_context>

<pallas_src>
import functools

import jax
import jax.numpy as jnp
from jax.experimental import pallas as pl
from jax.experimental.pallas import tpu as pltpu


# -----------------------------------------------------------------------------
# Tile pickers (block dims must be divisible by 8 or equal the full dim).
# -----------------------------------------------------------------------------
def _pick_point_tile(n, cap=512):
    for t in (512, 256, 128, 64, 32, 16, 8):
        if t <= cap and n % t == 0:
            return t
    return n  # fall back to a single full-N block


def _pick_batch_tile(b):
    for t in (256, 128, 64, 32, 16, 8):
        if b % t == 0:
            return t
    return b


# -----------------------------------------------------------------------------
# Kernel 1: shared point-wise MLP (three 1x1 convs, BN folded) fused with the
# global max-pool over points.  Grid = (B, N_tiles); batch is "parallel",
# the point-tile axis is a reduction ("arbitrary") with a running max kept in
# a VMEM scratch.  Used for STNkd(3) and the PointNetfeat backbone.
# -----------------------------------------------------------------------------
def _pointwise_mlp_max_kernel(x_ref, t_ref,
                              w1_ref, c1_ref,
                              w2_ref, c2_ref,
                              w3_ref, c3_ref,
                              out_ref, acc_ref,
                              *, apply_transform, final_relu):
    n = pl.program_id(1)

    x = x_ref[0].astype(jnp.bfloat16)                         # (tn, Cin)

    w1 = w1_ref[...]                                          # (Cin, 64) bf16
    if apply_transform:
        # torch.bmm(x^T, trans) folded into conv1:  x @ (T @ W1)
        w1 = jnp.dot(t_ref[0].astype(jnp.bfloat16), w1,
                     preferred_element_type=jnp.float32).astype(jnp.bfloat16)

    # conv1 (1x1) + folded BN + ReLU
    y = jnp.dot(x, w1, preferred_element_type=jnp.float32) + c1_ref[...]
    y = jnp.maximum(y, 0.0)
    # conv2 (1x1) + folded BN + ReLU
    y = jnp.dot(y.astype(jnp.bfloat16), w2_ref[...],
                preferred_element_type=jnp.float32) + c2_ref[...]
    y = jnp.maximum(y, 0.0)
    # conv3 (1x1) + folded BN (+ ReLU only inside the STN)
    y = jnp.dot(y.astype(jnp.bfloat16), w3_ref[...],
                preferred_element_type=jnp.float32) + c3_ref[...]
    if final_relu:
        y = jnp.maximum(y, 0.0)

    # torch.max(x, 2): running per-channel max over point tiles.
    tile_max = jnp.max(y, axis=0, keepdims=True)              # (1, Cout)

    @pl.when(n == 0)
    def _init():
        acc_ref[...] = tile_max

    @pl.when(n != 0)
    def _accum():
        acc_ref[...] = jnp.maximum(acc_ref[...], tile_max)

    @pl.when(n == pl.num_programs(1) - 1)
    def _finalize():
        out_ref[...] = acc_ref[...][None]                     # (1, 1, Cout)


def pointwise_mlp_max(x_bnc, trans, layers, *, apply_transform, final_relu):
    B, N, Cin = x_bnc.shape
    (w1, c1), (w2, c2), (w3, c3) = layers
    Cout = w3.shape[1]
    tn = _pick_point_tile(N)
    n_tiles = N // tn

    def rep(arr):  # weight replicated across the grid (constant block index)
        nd = arr.ndim
        return pl.BlockSpec(arr.shape, lambda b, n, _nd=nd: (0,) * _nd)

    kernel = functools.partial(_pointwise_mlp_max_kernel,
                               apply_transform=apply_transform,
                               final_relu=final_relu)
    out = pl.pallas_call(
        kernel,
        out_shape=jax.ShapeDtypeStruct((B, 1, Cout), jnp.float32),
        grid=(B, n_tiles),
        in_specs=[
            pl.BlockSpec((1, tn, Cin), lambda b, n: (b, n, 0)),
            pl.BlockSpec((1, 3, 3), lambda b, n: (b, 0, 0)),
            rep(w1), rep(c1), rep(w2), rep(c2), rep(w3), rep(c3),
        ],
        out_specs=pl.BlockSpec((1, 1, Cout), lambda b, n: (b, 0, 0)),
        scratch_shapes=[pltpu.VMEM((1, Cout), jnp.float32)],
        compiler_params=pltpu.CompilerParams(
            dimension_semantics=("parallel", "arbitrary"),
            vmem_limit_bytes=32 * 1024 * 1024),
    )(x_bnc, trans, w1, c1, w2, c2, w3, c3)
    return out[:, 0, :]                                       # (B, Cout)


# -----------------------------------------------------------------------------
# Kernel 2: dense head  relu(bn(fc1)) -> relu(bn(fc2)) -> fc3, BN folded.
# Grid tiles the batch rows ("parallel"); weights replicated.
# Used for the STN regression head (1024->512->256->9) and the classifier
# head (1024->512->256->k).
# -----------------------------------------------------------------------------
def _head_mlp_kernel(x_ref,
                     w1_ref, c1_ref,
                     w2_ref, c2_ref,
                     w3_ref, b3_ref,
                     out_ref):
    y = jnp.dot(x_ref[...].astype(jnp.bfloat16), w1_ref[...],
                preferred_element_type=jnp.float32) + c1_ref[...]
    y = jnp.maximum(y, 0.0)
    y = jnp.dot(y.astype(jnp.bfloat16), w2_ref[...],
                preferred_element_type=jnp.float32) + c2_ref[...]
    # TODO(synk): nn.Dropout(p=0.3) is identity in inference mode; stochastic
    # training-mode dropout is not implemented here.
    y = jnp.maximum(y, 0.0)
    out_ref[...] = (jnp.dot(y.astype(jnp.bfloat16), w3_ref[...],
                            preferred_element_type=jnp.float32) + b3_ref[...])


def head_mlp(x, layers):
    B, Din = x.shape
    (w1, c1), (w2, c2), (w3, b3) = layers
    out_dim = w3.shape[1]
    tb = _pick_batch_tile(B)

    def rep(arr):
        nd = arr.ndim
        return pl.BlockSpec(arr.shape, lambda i, _nd=nd: (0,) * _nd)

    return pl.pallas_call(
        _head_mlp_kernel,
        out_shape=jax.ShapeDtypeStruct((B, out_dim), jnp.float32),
        grid=(B // tb,),
        in_specs=[pl.BlockSpec((tb, Din), lambda i: (i, 0)),
                  rep(w1), rep(c1), rep(w2), rep(c2), rep(w3), rep(b3)],
        out_specs=pl.BlockSpec((tb, out_dim), lambda i: (i, 0)),
        compiler_params=pltpu.CompilerParams(
            dimension_semantics=("parallel",)),
    )(x, w1, c1, w2, c2, w3, b3)


# -----------------------------------------------------------------------------
# Deterministic parameter construction (shapes follow the nn.Module __init__).
# Weights stored pre-transposed as (Cin, Cout); BN folded; weights pre-cast to
# bf16, shifts/biases kept in f32.
# -----------------------------------------------------------------------------
def _init_linear(key, in_dim, out_dim):
    kw, kb = jax.random.split(key)
    bound = 1.0 / jnp.sqrt(jnp.float32(in_dim))
    w = jax.random.uniform(kw, (in_dim, out_dim), jnp.float32, -bound, bound)
    b = jax.random.uniform(kb, (1, out_dim), jnp.float32, -bound, bound)
    return w, b


def _init_bn(key, dim, eps=1e-5):
    kg, kb, km, kv = jax.random.split(key, 4)
    gamma = 1.0 + 0.05 * jax.random.normal(kg, (1, dim), jnp.float32)
    beta = 0.05 * jax.random.normal(kb, (1, dim), jnp.float32)
    running_mean = 0.05 * jax.random.normal(km, (1, dim), jnp.float32)
    running_var = 1.0 + 0.1 * jax.random.uniform(kv, (1, dim), jnp.float32)
    scale = gamma / jnp.sqrt(running_var + eps)
    shift = beta - running_mean * scale
    return scale, shift


def init_params(key, k_cls):
    keys = iter(jax.random.split(key, 64))
    nk = lambda: next(keys)

    def layer_bn(cin, cout):
        w, b = _init_linear(nk(), cin, cout)
        s, h = _init_bn(nk(), cout)
        w_f = (w * s).astype(jnp.bfloat16)        # fold BN scale into W
        shift = b * s + h                         # fold bias + BN shift (f32)
        return (w_f, shift)

    def layer_plain(cin, cout):
        w, b = _init_linear(nk(), cin, cout)
        return (w.astype(jnp.bfloat16), b)

    stn = {
        "conv": (layer_bn(3, 64), layer_bn(64, 128), layer_bn(128, 1024)),
        "head": (layer_bn(1024, 512), layer_bn(512, 256), layer_plain(256, 9)),
    }
    feat = {
        "conv": (layer_bn(3, 64), layer_bn(64, 128), layer_bn(128, 1024)),
    }
    cls = (layer_bn(1024, 512), layer_bn(512, 256), layer_plain(256, k_cls))
    return {"stn": stn, "feat": feat, "cls": cls}


# -----------------------------------------------------------------------------
# PointNetCls.forward  (global_feat=True, feature_transform=False)
# -----------------------------------------------------------------------------
def pointnet_cls_forward(x_ncw, params):
    """x_ncw: (B, 3, N) float32 in PyTorch NCW layout."""
    B, _, N = x_ncw.shape
    x = jnp.transpose(x_ncw, (0, 2, 1))                       # (B, N, 3)

    # --- STNkd(3): predict 3x3 input transform -------------------------------
    stn = params["stn"]
    ident3 = jnp.broadcast_to(jnp.eye(3, dtype=jnp.float32), (B, 3, 3))
    g = pointwise_mlp_max(x, ident3, stn["conv"],
                          apply_transform=False, final_relu=True)    # (B, 1024)
    trans = head_mlp(g, stn["head"])                                  # (B, 9)
    trans = trans + jnp.eye(3, dtype=jnp.float32).reshape(1, 9)
    trans = trans.reshape(B, 3, 3)

    # --- PointNetfeat: bmm(x, trans) folded into conv1, MLP + global max -----
    gf = pointwise_mlp_max(x, trans, params["feat"]["conv"],
                           apply_transform=True, final_relu=False)    # (B, 1024)

    # --- classification head (spec returns raw fc3 output, no log_softmax) ---
    logits = head_mlp(gf, params["cls"])                              # (B, k)
    trans_feat = None  # feature_transform=False
    return logits, trans, trans_feat


if __name__ == "__main__":
    key = jax.random.PRNGKey(0)
    kp, kx = jax.random.split(key)
    B, N, k_cls = 2, 64, 5

    params = init_params(kp, k_cls)
    x = jax.random.normal(kx, (B, 3, N), jnp.float32)

    fwd = jax.jit(pointnet_cls_forward)
    logits, trans, trans_feat = fwd(x, params)
    jax.block_until_ready((logits, trans))

    assert logits.shape == (B, k_cls)
    assert trans.shape == (B, 3, 3)
    assert trans_feat is None
    print("KERNEL_OK")
</pallas_src>

<mosaic_0001>
module attributes {stable_mosaic.version = 11 : i64} {
  func.func @_head_mlp_kernel(%arg0: i32, %arg1: memref<2x1024xf32, #tpu.memory_space<vmem>>, %arg2: memref<1024x512xbf16, #tpu.memory_space<vmem>>, %arg3: memref<1x512xf32, #tpu.memory_space<vmem>>, %arg4: memref<512x256xbf16, #tpu.memory_space<vmem>>, %arg5: memref<1x256xf32, #tpu.memory_space<vmem>>, %arg6: memref<256x9xbf16, #tpu.memory_space<vmem>>, %arg7: memref<1x9xf32, #tpu.memory_space<vmem>>, %arg8: memref<2x9xf32, #tpu.memory_space<vmem>>) attributes {dimension_semantics = [#tpu.dimension_semantics<parallel>], iteration_bounds = array<i64: 1>, scalar_prefetch = 0 : i64, scratch_operands = 0 : i64, tpu.core_type = #tpu.core_type<tc>, window_params = [{transform_indices = @transform_0, window_bounds = array<i64: 2, 1024>}, {pipeline_mode = #tpu.pipeline_mode<synchronous>, transform_indices = @transform_1, window_bounds = array<i64: 1024, 512>}, {pipeline_mode = #tpu.pipeline_mode<synchronous>, transform_indices = @transform_2, window_bounds = array<i64: 1, 512>}, {pipeline_mode = #tpu.pipeline_mode<synchronous>, transform_indices = @transform_3, window_bounds = array<i64: 512, 256>}, {pipeline_mode = #tpu.pipeline_mode<synchronous>, transform_indices = @transform_4, window_bounds = array<i64: 1, 256>}, {pipeline_mode = #tpu.pipeline_mode<synchronous>, transform_indices = @transform_5, window_bounds = array<i64: 256, 9>}, {pipeline_mode = #tpu.pipeline_mode<synchronous>, transform_indices = @transform_6, window_bounds = array<i64: 1, 9>}, {transform_indices = @transform_7, window_bounds = array<i64: 2, 9>}]} {
    %c0 = arith.constant 0 : index
    %c0_0 = arith.constant 0 : index
    %0 = vector.load %arg1[%c0, %c0_0] : memref<2x1024xf32, #tpu.memory_space<vmem>>, vector<2x1024xf32>
    %1 = arith.truncf %0 : vector<2x1024xf32> to vector<2x1024xbf16>
    %c0_1 = arith.constant 0 : index
    %c0_2 = arith.constant 0 : index
    %2 = vector.load %arg2[%c0_1, %c0_2] : memref<1024x512xbf16, #tpu.memory_space<vmem>>, vector<1024x512xbf16>
    %cst = arith.constant dense<0.000000e+00> : vector<2x512xf32>
    %3 = tpu.matmul %1, %2, %cst {dimension_numbers = #tpu.dot_dimension_numbers<[1], [0], [0], [1], [0, 0, 1, 1], [], []>} : vector<2x1024xbf16>, vector<1024x512xbf16>, vector<2x512xf32> -> vector<2x512xf32>
    %c0_3 = arith.constant 0 : index
    %c0_4 = arith.constant 0 : index
    %4 = vector.load %arg3[%c0_3, %c0_4] : memref<1x512xf32, #tpu.memory_space<vmem>>, vector<1x512xf32>
    %5 = vector.broadcast %4 : vector<1x512xf32> to vector<2x512xf32>
    %6 = arith.addf %3, %5 : vector<2x512xf32>
    %cst_5 = arith.constant 0.000000e+00 : f32
    %7 = vector.broadcast %cst_5 : f32 to vector<2x512xf32>
    %8 = arith.maximumf %6, %7 : vector<2x512xf32>
    %9 = arith.truncf %8 : vector<2x512xf32> to vector<2x512xbf16>
    %c0_6 = arith.constant 0 : index
    %c0_7 = arith.constant 0 : index
    %10 = vector.load %arg4[%c0_6, %c0_7] : memref<512x256xbf16, #tpu.memory_space<vmem>>, vector<512x256xbf16>
    %cst_8 = arith.constant dense<0.000000e+00> : vector<2x256xf32>
    %11 = tpu.matmul %9, %10, %cst_8 {dimension_numbers = #tpu.dot_dimension_numbers<[1], [0], [0], [1], [0, 0, 1, 1], [], []>} : vector<2x512xbf16>, vector<512x256xbf16>, vector<2x256xf32> -> vector<2x256xf32>
    %c0_9 = arith.constant 0 : index
    %c0_10 = arith.constant 0 : index
    %12 = vector.load %arg5[%c0_9, %c0_10] : memref<1x256xf32, #tpu.memory_space<vmem>>, vector<1x256xf32>
    %13 = vector.broadcast %12 : vector<1x256xf32> to vector<2x256xf32>
    %14 = arith.addf %11, %13 : vector<2x256xf32>
    %cst_11 = arith.constant 0.000000e+00 : f32
    %15 = vector.broadcast %cst_11 : f32 to vector<2x256xf32>
    %16 = arith.maximumf %14, %15 : vector<2x256xf32>
    %17 = arith.truncf %16 : vector<2x256xf32> to vector<2x256xbf16>
    %c0_12 = arith.constant 0 : index
    %c0_13 = arith.constant 0 : index
    %18 = vector.load %arg6[%c0_12, %c0_13] : memref<256x9xbf16, #tpu.memory_space<vmem>>, vector<256x9xbf16>
    %cst_14 = arith.constant dense<0.000000e+00> : vector<2x9xf32>
    %19 = tpu.matmul %17, %18, %cst_14 {dimension_numbers = #tpu.dot_dimension_numbers<[1], [0], [0], [1], [0, 0, 1, 1], [], []>} : vector<2x256xbf16>, vector<256x9xbf16>, vector<2x9xf32> -> vector<2x9xf32>
    %c0_15 = arith.constant 0 : index
    %c0_16 = arith.constant 0 : index
    %20 = vector.load %arg7[%c0_15, %c0_16] : memref<1x9xf32, #tpu.memory_space<vmem>>, vector<1x9xf32>
    %21 = vector.broadcast %20 : vector<1x9xf32> to vector<2x9xf32>
    %22 = arith.addf %19, %21 : vector<2x9xf32>
    %c0_17 = arith.constant 0 : index
    %c0_18 = arith.constant 0 : index
    %23 = vector.load %arg8[%c0_17, %c0_18] : memref<2x9xf32, #tpu.memory_space<vmem>>, vector<2x9xf32>
    tpu.vector_store %arg8[%c0_17, %c0_18], %22 {strides = array<i32>} : memref<2x9xf32, #tpu.memory_space<vmem>>, vector<2x9xf32>,
    return
  }
  func.func @transform_0(%arg0: i32) -> (i32, i32) {
    %c0_i32 = arith.constant 0 : i32
    %c0_i32_0 = arith.constant 0 : i32
    return %arg0, %c0_i32 : i32, i32
  }
  func.func @transform_1(%arg0: i32) -> (i32, i32) {
    %c0_i32 = arith.constant 0 : i32
    %c0_i32_0 = arith.constant 0 : i32
    %c0_i32_1 = arith.constant 0 : i32
    return %c0_i32, %c0_i32_0 : i32, i32
  }
  func.func @transform_2(%arg0: i32) -> (i32, i32) {
    %c0_i32 = arith.constant 0 : i32
    %c0_i32_0 = arith.constant 0 : i32
    %c0_i32_1 = arith.constant 0 : i32
    return %c0_i32, %c0_i32_0 : i32, i32
  }
  func.func @transform_3(%arg0: i32) -> (i32, i32) {
    %c0_i32 = arith.constant 0 : i32
    %c0_i32_0 = arith.constant 0 : i32
    %c0_i32_1 = arith.constant 0 : i32
    return %c0_i32, %c0_i32_0 : i32, i32
  }
  func.func @transform_4(%arg0: i32) -> (i32, i32) {
    %c0_i32 = arith.constant 0 : i32
    %c0_i32_0 = arith.constant 0 : i32
    %c0_i32_1 = arith.constant 0 : i32
    return %c0_i32, %c0_i32_0 : i32, i32
  }
  func.func @transform_5(%arg0: i32) -> (i32, i32) {
    %c0_i32 = arith.constant 0 : i32
    %c0_i32_0 = arith.constant 0 : i32
    %c0_i32_1 = arith.constant 0 : i32
    return %c0_i32, %c0_i32_0 : i32, i32
  }
  func.func @transform_6(%arg0: i32) -> (i32, i32) {
    %c0_i32 = arith.constant 0 : i32
    %c0_i32_0 = arith.constant 0 : i32
    %c0_i32_1 = arith.constant 0 : i32
    return %c0_i32, %c0_i32_0 : i32, i32
  }
  func.func @transform_7(%arg0: i32) -> (i32, i32) {
    %c0_i32 = arith.constant 0 : i32
    %c0_i32_0 = arith.constant 0 : i32
    return %arg0, %c0_i32 : i32, i32
  }
}

module attributes {stable_mosaic.version = 11 : i64} {
  func.func @_pointwise_mlp_max_kernel(%arg0: i32, %arg1: i32, %arg2: memref<1x64x3xf32, #tpu.memory_space<vmem>>, %arg3: memref<1x3x3xf32, #tpu.memory_space<vmem>>, %arg4: memref<3x64xbf16, #tpu.memory_space<vmem>>, %arg5: memref<1x64xf32, #tpu.memory_space<vmem>>, %arg6: memref<64x128xbf16, #tpu.memory_space<vmem>>, %arg7: memref<1x128xf32, #tpu.memory_space<vmem>>, %arg8: memref<128x1024xbf16, #tpu.memory_space<vmem>>, %arg9: memref<1x1024xf32, #tpu.memory_space<vmem>>, %arg10: memref<1x1x1024xf32, #tpu.memory_space<vmem>>, %arg11: memref<1x1024xf32, #tpu.memory_space<vmem>>) attributes {dimension_semantics = [#tpu.dimension_semantics<parallel>, #tpu.dimension_semantics<arbitrary>], iteration_bounds = array<i64: 2, 1>, scalar_prefetch = 0 : i64, scratch_operands = 1 : i64, tpu.core_type = #tpu.core_type<tc>, window_params = [{transform_indices = @transform_0, window_bounds = array<i64: 1, 64, 3>}, {transform_indices = @transform_1, window_bounds = array<i64: 1, 3, 3>}, {pipeline_mode = #tpu.pipeline_mode<synchronous>, transform_indices = @transform_2, window_bounds = array<i64: 3, 64>}, {pipeline_mode = #tpu.pipeline_mode<synchronous>, transform_indices = @transform_3, window_bounds = array<i64: 1, 64>}, {pipeline_mode = #tpu.pipeline_mode<synchronous>, transform_indices = @transform_4, window_bounds = array<i64: 64, 128>}, {pipeline_mode = #tpu.pipeline_mode<synchronous>, transform_indices = @transform_5, window_bounds = array<i64: 1, 128>}, {pipeline_mode = #tpu.pipeline_mode<synchronous>, transform_indices = @transform_6, window_bounds = array<i64: 128, 1024>}, {pipeline_mode = #tpu.pipeline_mode<synchronous>, transform_indices = @transform_7, window_bounds = array<i64: 1, 1024>}, {transform_indices = @transform_8, window_bounds = array<i64: 1, 1, 1024>}]} {
    %c0 = arith.constant 0 : index
    %c0_0 = arith.constant 0 : index
    %c0_1 = arith.constant 0 : index
    %0 = vector.load %arg2[%c0, %c0_0, %c0_1] : memref<1x64x3xf32, #tpu.memory_space<vmem>>, vector<1x64x3xf32>
    %1 = vector.shape_cast %0 : vector<1x64x3xf32> to vector<64x3xf32>
    %2 = arith.truncf %1 : vector<64x3xf32> to vector<64x3xbf16>
    %c0_2 = arith.constant 0 : index
    %c0_3 = arith.constant 0 : index
    %3 = vector.load %arg4[%c0_2, %c0_3] : memref<3x64xbf16, #tpu.memory_space<vmem>>, vector<3x64xbf16>
    %cst = arith.constant dense<0.000000e+00> : vector<64x64xf32>
    %4 = tpu.matmul %2, %3, %cst {dimension_numbers = #tpu.dot_dimension_numbers<[1], [0], [0], [1], [0, 0, 1, 1], [], []>} : vector<64x3xbf16>, vector<3x64xbf16>, vector<64x64xf32> -> vector<64x64xf32>
    %c0_4 = arith.constant 0 : index
    %c0_5 = arith.constant 0 : index
    %5 = vector.load %arg5[%c0_4, %c0_5] : memref<1x64xf32, #tpu.memory_space<vmem>>, vector<1x64xf32>
    %6 = vector.broadcast %5 : vector<1x64xf32> to vector<64x64xf32>
    %7 = arith.addf %4, %6 : vector<64x64xf32>
    %cst_6 = arith.constant 0.000000e+00 : f32
    %8 = vector.broadcast %cst_6 : f32 to vector<64x64xf32>
    %9 = arith.maximumf %7, %8 : vector<64x64xf32>
    %10 = arith.truncf %9 : vector<64x64xf32> to vector<64x64xbf16>
    %c0_7 = arith.constant 0 : index
    %c0_8 = arith.constant 0 : index
    %11 = vector.load %arg6[%c0_7, %c0_8] : memref<64x128xbf16, #tpu.memory_space<vmem>>, vector<64x128xbf16>
    %cst_9 = arith.constant dense<0.000000e+00> : vector<64x128xf32>
    %12 = tpu.matmul %10, %11, %cst_9 {dimension_numbers = #tpu.dot_dimension_numbers<[1], [0], [0], [1], [0, 0, 1, 1], [], []>} : vector<64x64xbf16>, vector<64x128xbf16>, vector<64x128xf32> -> vector<64x128xf32>
    %c0_10 = arith.constant 0 : index
    %c0_11 = arith.constant 0 : index
    %13 = vector.load %arg7[%c0_10, %c0_11] : memref<1x128xf32, #tpu.memory_space<vmem>>, vector<1x128xf32>
    %14 = vector.broadcast %13 : vector<1x128xf32> to vector<64x128xf32>
    %15 = arith.addf %12, %14 : vector<64x128xf32>
    %cst_12 = arith.constant 0.000000e+00 : f32
    %16 = vector.broadcast %cst_12 : f32 to vector<64x128xf32>
    %17 = arith.maximumf %15, %16 : vector<64x128xf32>
    %18 = arith.truncf %17 : vector<64x128xf32> to vector<64x128xbf16>
    %c0_13 = arith.constant 0 : index
    %c0_14 = arith.constant 0 : index
    %19 = vector.load %arg8[%c0_13, %c0_14] : memref<128x1024xbf16, #tpu.memory_space<vmem>>, vector<128x1024xbf16>
    %cst_15 = arith.constant dense<0.000000e+00> : vector<64x1024xf32>
    %20 = tpu.matmul %18, %19, %cst_15 {dimension_numbers = #tpu.dot_dimension_numbers<[1], [0], [0], [1], [0, 0, 1, 1], [], []>} : vector<64x128xbf16>, vector<128x1024xbf16>, vector<64x1024xf32> -> vector<64x1024xf32>
    %c0_16 = arith.constant 0 : index
    %c0_17 = arith.constant 0 : index
    %21 = vector.load %arg9[%c0_16, %c0_17] : memref<1x1024xf32, #tpu.memory_space<vmem>>, vector<1x1024xf32>
    %22 = vector.broadcast %21 : vector<1x1024xf32> to vector<64x1024xf32>
    %23 = arith.addf %20, %22 : vector<64x1024xf32>
    %cst_18 = arith.constant 0.000000e+00 : f32
    %24 = vector.broadcast %cst_18 : f32 to vector<64x1024xf32>
    %25 = arith.maximumf %23, %24 : vector<64x1024xf32>
    %cst_19 = arith.constant dense<0xFF800000> : vector<1024xf32>
    %26 = vector.multi_reduction <maximumf>, %25, %cst_19 [0] : vector<64x1024xf32> to vector<1024xf32>
    %27 = vector.shape_cast %26 : vector<1024xf32> to vector<1x1024xf32>
    %c0_i32 = arith.constant 0 : i32
    %28 = arith.cmpi eq, %arg1, %c0_i32 : i32
    %29 = arith.extui %28 : i1 to i32
    %c0_i32_20 = arith.constant 0 : i32
    %30 = arith.cmpi ne, %29, %c0_i32_20 : i32
    scf.if %30 {
      %c0_25 = arith.constant 0 : index
      %c0_26 = arith.constant 0 : index
      %37 = vector.load %arg11[%c0_25, %c0_26] : memref<1x1024xf32, #tpu.memory_space<vmem>>, vector<1x1024xf32>
      tpu.vector_store %arg11[%c0_25, %c0_26], %27 {strides = array<i32>} : memref<1x1024xf32, #tpu.memory_space<vmem>>, vector<1x1024xf32>,
    } else {
    }
    %c0_i32_21 = arith.constant 0 : i32
    %31 = arith.cmpi ne, %arg1, %c0_i32_21 : i32
    %32 = arith.extui %31 : i1 to i32
    %c0_i32_22 = arith.constant 0 : i32
    %33 = arith.cmpi ne, %32, %c0_i32_22 : i32
    scf.if %33 {
      %c0_25 = arith.constant 0 : index
      %c0_26 = arith.constant 0 : index
      %37 = vector.load %arg11[%c0_25, %c0_26] : memref<1x1024xf32, #tpu.memory_space<vmem>>, vector<1x1024xf32>
      %38 = arith.maximumf %37, %27 : vector<1x1024xf32>
      %c0_27 = arith.constant 0 : index
      %c0_28 = arith.constant 0 : index
      %39 = vector.load %arg11[%c0_27, %c0_28] : memref<1x1024xf32, #tpu.memory_space<vmem>>, vector<1x1024xf32>
      tpu.vector_store %arg11[%c0_27, %c0_28], %38 {strides = array<i32>} : memref<1x1024xf32, #tpu.memory_space<vmem>>, vector<1x1024xf32>,
    } else {
    }
    %c0_i32_23 = arith.constant 0 : i32
    %34 = arith.cmpi eq, %arg1, %c0_i32_23 : i32
    %35 = arith.extui %34 : i1 to i32
    %c0_i32_24 = arith.constant 0 : i32
    %36 = arith.cmpi ne, %35, %c0_i32_24 : i32
    scf.if %36 {
      %c0_25 = arith.constant 0 : index
      %c0_26 = arith.constant 0 : index
      %37 = vector.load %arg11[%c0_25, %c0_26] : memref<1x1024xf32, #tpu.memory_space<vmem>>, vector<1x1024xf32>
      %38 = vector.shape_cast %37 : vector<1x1024xf32> to vector<1x1x1024xf32>
      %c0_27 = arith.constant 0 : index
      %c0_28 = arith.constant 0 : index
      %c0_29 = arith.constant 0 : index
      %39 = vector.load %arg10[%c0_27, %c0_28, %c0_29] : memref<1x1x1024xf32, #tpu.memory_space<vmem>>, vector<1x1x1024xf32>
      tpu.vector_store %arg10[%c0_27, %c0_28, %c0_29], %38 {strides = array<i32>} : memref<1x1x1024xf32, #tpu.memory_space<vmem>>, vector<1x1x1024xf32>,
    } else {
    }
    return
  }
  func.func @transform_0(%arg0: i32, %arg1: i32) -> (i32, i32, i32) {
    %c0_i32 = arith.constant 0 : i32
    %c0_i32_0 = arith.constant 0 : i32
    return %arg0, %arg1, %c0_i32 : i32, i32, i32
  }
  func.func @transform_1(%arg0: i32, %arg1: i32) -> (i32, i32, i32) {
    %c0_i32 = arith.constant 0 : i32
    %c0_i32_0 = arith.constant 0 : i32
    %c0_i32_1 = arith.constant 0 : i32
    return %arg0, %c0_i32, %c0_i32_0 : i32, i32, i32
  }
  func.func @transform_2(%arg0: i32, %arg1: i32) -> (i32, i32) {
    %c0_i32 = arith.constant 0 : i32
    %c0_i32_0 = arith.constant 0 : i32
    %c0_i32_1 = arith.constant 0 : i32
    return %c0_i32, %c0_i32_0 : i32, i32
  }
  func.func @transform_3(%arg0: i32, %arg1: i32) -> (i32, i32) {
    %c0_i32 = arith.constant 0 : i32
    %c0_i32_0 = arith.constant 0 : i32
    %c0_i32_1 = arith.constant 0 : i32
    return %c0_i32, %c0_i32_0 : i32, i32
  }
  func.func @transform_4(%arg0: i32, %arg1: i32) -> (i32, i32) {
    %c0_i32 = arith.constant 0 : i32
    %c0_i32_0 = arith.constant 0 : i32
    %c0_i32_1 = arith.constant 0 : i32
    return %c0_i32, %c0_i32_0 : i32, i32
  }
  func.func @transform_5(%arg0: i32, %arg1: i32) -> (i32, i32) {
    %c0_i32 = arith.constant 0 : i32
    %c0_i32_0 = arith.constant 0 : i32
    %c0_i32_1 = arith.constant 0 : i32
    return %c0_i32, %c0_i32_0 : i32, i32
  }
  func.func @transform_6(%arg0: i32, %arg1: i32) -> (i32, i32) {
    %c0_i32 = arith.constant 0 : i32
    %c0_i32_0 = arith.constant 0 : i32
    %c0_i32_1 = arith.constant 0 : i32
    return %c0_i32, %c0_i32_0 : i32, i32
  }
  func.func @transform_7(%arg0: i32, %arg1: i32) -> (i32, i32) {
    %c0_i32 = arith.constant 0 : i32
    %c0_i32_0 = arith.constant 0 : i32
    %c0_i32_1 = arith.constant 0 : i32
    return %c0_i32, %c0_i32_0 : i32, i32
  }
  func.func @transform_8(%arg0: i32, %arg1: i32) -> (i32, i32, i32) {
    %c0_i32 = arith.constant 0 : i32
    %c0_i32_0 = arith.constant 0 : i32
    %c0_i32_1 = arith.constant 0 : i32
    return %arg0, %c0_i32, %c0_i32_0 : i32, i32, i32
  }
}

module attributes {stable_mosaic.version = 11 : i64} {
  func.func @_pointwise_mlp_max_kernel(%arg0: i32, %arg1: i32, %arg2: memref<1x64x3xf32, #tpu.memory_space<vmem>>, %arg3: memref<1x3x3xf32, #tpu.memory_space<vmem>>, %arg4: memref<3x64xbf16, #tpu.memory_space<vmem>>, %arg5: memref<1x64xf32, #tpu.memory_space<vmem>>, %arg6: memref<64x128xbf16, #tpu.memory_space<vmem>>, %arg7: memref<1x128xf32, #tpu.memory_space<vmem>>, %arg8: memref<128x1024xbf16, #tpu.memory_space<vmem>>, %arg9: memref<1x1024xf32, #tpu.memory_space<vmem>>, %arg10: memref<1x1x1024xf32, #tpu.memory_space<vmem>>, %arg11: memref<1x1024xf32, #tpu.memory_space<vmem>>) attributes {dimension_semantics = [#tpu.dimension_semantics<parallel>, #tpu.dimension_semantics<arbitrary>], iteration_bounds = array<i64: 2, 1>, scalar_prefetch = 0 : i64, scratch_operands = 1 : i64, tpu.core_type = #tpu.core_type<tc>, window_params = [{transform_indices = @transform_0, window_bounds = array<i64: 1, 64, 3>}, {transform_indices = @transform_1, window_bounds = array<i64: 1, 3, 3>}, {pipeline_mode = #tpu.pipeline_mode<synchronous>, transform_indices = @transform_2, window_bounds = array<i64: 3, 64>}, {pipeline_mode = #tpu.pipeline_mode<synchronous>, transform_indices = @transform_3, window_bounds = array<i64: 1, 64>}, {pipeline_mode = #tpu.pipeline_mode<synchronous>, transform_indices = @transform_4, window_bounds = array<i64: 64, 128>}, {pipeline_mode = #tpu.pipeline_mode<synchronous>, transform_indices = @transform_5, window_bounds = array<i64: 1, 128>}, {pipeline_mode = #tpu.pipeline_mode<synchronous>, transform_indices = @transform_6, window_bounds = array<i64: 128, 1024>}, {pipeline_mode = #tpu.pipeline_mode<synchronous>, transform_indices = @transform_7, window_bounds = array<i64: 1, 1024>}, {transform_indices = @transform_8, window_bounds = array<i64: 1, 1, 1024>}]} {
    %c0 = arith.constant 0 : index
    %c0_0 = arith.constant 0 : index
    %c0_1 = arith.constant 0 : index
    %0 = vector.load %arg2[%c0, %c0_0, %c0_1] : memref<1x64x3xf32, #tpu.memory_space<vmem>>, vector<1x64x3xf32>
    %1 = vector.shape_cast %0 : vector<1x64x3xf32> to vector<64x3xf32>
    %2 = arith.truncf %1 : vector<64x3xf32> to vector<64x3xbf16>
    %c0_2 = arith.constant 0 : index
    %c0_3 = arith.constant 0 : index
    %3 = vector.load %arg4[%c0_2, %c0_3] : memref<3x64xbf16, #tpu.memory_space<vmem>>, vector<3x64xbf16>
    %c0_4 = arith.constant 0 : index
    %c0_5 = arith.constant 0 : index
    %c0_6 = arith.constant 0 : index
    %4 = vector.load %arg3[%c0_4, %c0_5, %c0_6] : memref<1x3x3xf32, #tpu.memory_space<vmem>>, vector<1x3x3xf32>
    %5 = vector.shape_cast %4 : vector<1x3x3xf32> to vector<3x3xf32>
    %6 = arith.truncf %5 : vector<3x3xf32> to vector<3x3xbf16>
    %cst = arith.constant dense<0.000000e+00> : vector<3x64xf32>
    %7 = tpu.matmul %6, %3, %cst {dimension_numbers = #tpu.dot_dimension_numbers<[1], [0], [0], [1], [0, 0, 1, 1], [], []>} : vector<3x3xbf16>, vector<3x64xbf16>, vector<3x64xf32> -> vector<3x64xf32>
    %8 = arith.truncf %7 : vector<3x64xf32> to vector<3x64xbf16>
    %cst_7 = arith.constant dense<0.000000e+00> : vector<64x64xf32>
    %9 = tpu.matmul %2, %8, %cst_7 {dimension_numbers = #tpu.dot_dimension_numbers<[1], [0], [0], [1], [0, 0, 1, 1], [], []>} : vector<64x3xbf16>, vector<3x64xbf16>, vector<64x64xf32> -> vector<64x64xf32>
    %c0_8 = arith.constant 0 : index
    %c0_9 = arith.constant 0 : index
    %10 = vector.load %arg5[%c0_8, %c0_9] : memref<1x64xf32, #tpu.memory_space<vmem>>, vector<1x64xf32>
    %11 = vector.broadcast %10 : vector<1x64xf32> to vector<64x64xf32>
    %12 = arith.addf %9, %11 : vector<64x64xf32>
    %cst_10 = arith.constant 0.000000e+00 : f32
    %13 = vector.broadcast %cst_10 : f32 to vector<64x64xf32>
    %14 = arith.maximumf %12, %13 : vector<64x64xf32>
    %15 = arith.truncf %14 : vector<64x64xf32> to vector<64x64xbf16>
    %c0_11 = arith.constant 0 : index
    %c0_12 = arith.constant 0 : index
    %16 = vector.load %arg6[%c0_11, %c0_12] : memref<64x128xbf16, #tpu.memory_space<vmem>>, vector<64x128xbf16>
    %cst_13 = arith.constant dense<0.000000e+00> : vector<64x128xf32>
    %17 = tpu.matmul %15, %16, %cst_13 {dimension_numbers = #tpu.dot_dimension_numbers<[1], [0], [0], [1], [0, 0, 1, 1], [], []>} : vector<64x64xbf16>, vector<64x128xbf16>, vector<64x128xf32> -> vector<64x128xf32>
    %c0_14 = arith.constant 0 : index
    %c0_15 = arith.constant 0 : index
    %18 = vector.load %arg7[%c0_14, %c0_15] : memref<1x128xf32, #tpu.memory_space<vmem>>, vector<1x128xf32>
    %19 = vector.broadcast %18 : vector<1x128xf32> to vector<64x128xf32>
    %20 = arith.addf %17, %19 : vector<64x128xf32>
    %cst_16 = arith.constant 0.000000e+00 : f32
    %21 = vector.broadcast %cst_16 : f32 to vector<64x128xf32>
    %22 = arith.maximumf %20, %21 : vector<64x128xf32>
    %23 = arith.truncf %22 : vector<64x128xf32> to vector<64x128xbf16>
    %c0_17 = arith.constant 0 : index
    %c0_18 = arith.constant 0 : index
    %24 = vector.load %arg8[%c0_17, %c0_18] : memref<128x1024xbf16, #tpu.memory_space<vmem>>, vector<128x1024xbf16>
    %cst_19 = arith.constant dense<0.000000e+00> : vector<64x1024xf32>
    %25 = tpu.matmul %23, %24, %cst_19 {dimension_numbers = #tpu.dot_dimension_numbers<[1], [0], [0], [1], [0, 0, 1, 1], [], []>} : vector<64x128xbf16>, vector<128x1024xbf16>, vector<64x1024xf32> -> vector<64x1024xf32>
    %c0_20 = arith.constant 0 : index
    %c0_21 = arith.constant 0 : index
    %26 = vector.load %arg9[%c0_20, %c0_21] : memref<1x1024xf32, #tpu.memory_space<vmem>>, vector<1x1024xf32>
    %27 = vector.broadcast %26 : vector<1x1024xf32> to vector<64x1024xf32>
    %28 = arith.addf %25, %27 : vector<64x1024xf32>
    %cst_22 = arith.constant dense<0xFF800000> : vector<1024xf32>
    %29 = vector.multi_reduction <maximumf>, %28, %cst_22 [0] : vector<64x1024xf32> to vector<1024xf32>
    %30 = vector.shape_cast %29 : vector<1024xf32> to vector<1x1024xf32>
    %c0_i32 = arith.constant 0 : i32
    %31 = arith.cmpi eq, %arg1, %c0_i32 : i32
    %32 = arith.extui %31 : i1 to i32
    %c0_i32_23 = arith.constant 0 : i32
    %33 = arith.cmpi ne, %32, %c0_i32_23 : i32
    scf.if %33 {
      %c0_28 = arith.constant 0 : index
      %c0_29 = arith.constant 0 : index
      %40 = vector.load %arg11[%c0_28, %c0_29] : memref<1x1024xf32, #tpu.memory_space<vmem>>, vector<1x1024xf32>
      tpu.vector_store %arg11[%c0_28, %c0_29], %30 {strides = array<i32>} : memref<1x1024xf32, #tpu.memory_space<vmem>>, vector<1x1024xf32>,
    } else {
    }
    %c0_i32_24 = arith.constant 0 : i32
    %34 = arith.cmpi ne, %arg1, %c0_i32_24 : i32
    %35 = arith.extui %34 : i1 to i32
    %c0_i32_25 = arith.constant 0 : i32
    %36 = arith.cmpi ne, %35, %c0_i32_25 : i32
    scf.if %36 {
      %c0_28 = arith.constant 0 : index
      %c0_29 = arith.constant 0 : index
      %40 = vector.load %arg11[%c0_28, %c0_29] : memref<1x1024xf32, #tpu.memory_space<vmem>>, vector<1x1024xf32>
      %41 = arith.maximumf %40, %30 : vector<1x1024xf32>
      %c0_30 = arith.constant 0 : index
      %c0_31 = arith.constant 0 : index
      %42 = vector.load %arg11[%c0_30, %c0_31] : memref<1x1024xf32, #tpu.memory_space<vmem>>, vector<1x1024xf32>
      tpu.vector_store %arg11[%c0_30, %c0_31], %41 {strides = array<i32>} : memref<1x1024xf32, #tpu.memory_space<vmem>>, vector<1x1024xf32>,
    } else {
    }
    %c0_i32_26 = arith.constant 0 : i32
    %37 = arith.cmpi eq, %arg1, %c0_i32_26 : i32
    %38 = arith.extui %37 : i1 to i32
    %c0_i32_27 = arith.constant 0 : i32
    %39 = arith.cmpi ne, %38, %c0_i32_27 : i32
    scf.if %39 {
      %c0_28 = arith.constant 0 : index
      %c0_29 = arith.constant 0 : index
      %40 = vector.load %arg11[%c0_28, %c0_29] : memref<1x1024xf32, #tpu.memory_space<vmem>>, vector<1x1024xf32>
      %41 = vector.shape_cast %40 : vector<1x1024xf32> to vector<1x1x1024xf32>
      %c0_30 = arith.constant 0 : index
      %c0_31 = arith.constant 0 : index
      %c0_32 = arith.constant 0 : index
      %42 = vector.load %arg10[%c0_30, %c0_31, %c0_32] : memref<1x1x1024xf32, #tpu.memory_space<vmem>>, vector<1x1x1024xf32>
      tpu.vector_store %arg10[%c0_30, %c0_31, %c0_32], %41 {strides = array<i32>} : memref<1x1x1024xf32, #tpu.memory_space<vmem>>, vector<1x1x1024xf32>,
    } else {
    }
    return
  }
  func.func @transform_0(%arg0: i32, %arg1: i32) -> (i32, i32, i32) {
    %c0_i32 = arith.constant 0 : i32
    %c0_i32_0 = arith.constant 0 : i32
    return %arg0, %arg1, %c0_i32 : i32, i32, i32
  }
  func.func @transform_1(%arg0: i32, %arg1: i32) -> (i32, i32, i32) {
    %c0_i32 = arith.constant 0 : i32
    %c0_i32_0 = arith.constant 0 : i32
    %c0_i32_1 = arith.constant 0 : i32
    return %arg0, %c0_i32, %c0_i32_0 : i32, i32, i32
  }
  func.func @transform_2(%arg0: i32, %arg1: i32) -> (i32, i32) {
    %c0_i32 = arith.constant 0 : i32
    %c0_i32_0 = arith.constant 0 : i32
    %c0_i32_1 = arith.constant 0 : i32
    return %c0_i32, %c0_i32_0 : i32, i32
  }
  func.func @transform_3(%arg0: i32, %arg1: i32) -> (i32, i32) {
    %c0_i32 = arith.constant 0 : i32
    %c0_i32_0 = arith.constant 0 : i32
    %c0_i32_1 = arith.constant 0 : i32
    return %c0_i32, %c0_i32_0 : i32, i32
  }
  func.func @transform_4(%arg0: i32, %arg1: i32) -> (i32, i32) {
    %c0_i32 = arith.constant 0 : i32
    %c0_i32_0 = arith.constant 0 : i32
    %c0_i32_1 = arith.constant 0 : i32
    return %c0_i32, %c0_i32_0 : i32, i32
  }
  func.func @transform_5(%arg0: i32, %arg1: i32) -> (i32, i32) {
    %c0_i32 = arith.constant 0 : i32
    %c0_i32_0 = arith.constant 0 : i32
    %c0_i32_1 = arith.constant 0 : i32
    return %c0_i32, %c0_i32_0 : i32, i32
  }
  func.func @transform_6(%arg0: i32, %arg1: i32) -> (i32, i32) {
    %c0_i32 = arith.constant 0 : i32
    %c0_i32_0 = arith.constant 0 : i32
    %c0_i32_1 = arith.constant 0 : i32
    return %c0_i32, %c0_i32_0 : i32, i32
  }
  func.func @transform_7(%arg0: i32, %arg1: i32) -> (i32, i32) {
    %c0_i32 = arith.constant 0 : i32
    %c0_i32_0 = arith.constant 0 : i32
    %c0_i32_1 = arith.constant 0 : i32
    return %c0_i32, %c0_i32_0 : i32, i32
  }
  func.func @transform_8(%arg0: i32, %arg1: i32) -> (i32, i32, i32) {
    %c0_i32 = arith.constant 0 : i32
    %c0_i32_0 = arith.constant 0 : i32
    %c0_i32_1 = arith.constant 0 : i32
    return %arg0, %c0_i32, %c0_i32_0 : i32, i32, i32
  }
}

module attributes {stable_mosaic.version = 11 : i64} {
  func.func @_head_mlp_kernel(%arg0: i32, %arg1: memref<2x1024xf32, #tpu.memory_space<vmem>>, %arg2: memref<1024x512xbf16, #tpu.memory_space<vmem>>, %arg3: memref<1x512xf32, #tpu.memory_space<vmem>>, %arg4: memref<512x256xbf16, #tpu.memory_space<vmem>>, %arg5: memref<1x256xf32, #tpu.memory_space<vmem>>, %arg6: memref<256x5xbf16, #tpu.memory_space<vmem>>, %arg7: memref<1x5xf32, #tpu.memory_space<vmem>>, %arg8: memref<2x5xf32, #tpu.memory_space<vmem>>) attributes {dimension_semantics = [#tpu.dimension_semantics<parallel>], iteration_bounds = array<i64: 1>, scalar_prefetch = 0 : i64, scratch_operands = 0 : i64, tpu.core_type = #tpu.core_type<tc>, window_params = [{transform_indices = @transform_0, window_bounds = array<i64: 2, 1024>}, {pipeline_mode = #tpu.pipeline_mode<synchronous>, transform_indices = @transform_1, window_bounds = array<i64: 1024, 512>}, {pipeline_mode = #tpu.pipeline_mode<synchronous>, transform_indices = @transform_2, window_bounds = array<i64: 1, 512>}, {pipeline_mode = #tpu.pipeline_mode<synchronous>, transform_indices = @transform_3, window_bounds = array<i64: 512, 256>}, {pipeline_mode = #tpu.pipeline_mode<synchronous>, transform_indices = @transform_4, window_bounds = array<i64: 1, 256>}, {pipeline_mode = #tpu.pipeline_mode<synchronous>, transform_indices = @transform_5, window_bounds = array<i64: 256, 5>}, {pipeline_mode = #tpu.pipeline_mode<synchronous>, transform_indices = @transform_6, window_bounds = array<i64: 1, 5>}, {transform_indices = @transform_7, window_bounds = array<i64: 2, 5>}]} {
    %c0 = arith.constant 0 : index
    %c0_0 = arith.constant 0 : index
    %0 = vector.load %arg1[%c0, %c0_0] : memref<2x1024xf32, #tpu.memory_space<vmem>>, vector<2x1024xf32>
    %1 = arith.truncf %0 : vector<2x1024xf32> to vector<2x1024xbf16>
    %c0_1 = arith.constant 0 : index
    %c0_2 = arith.constant 0 : index
    %2 = vector.load %arg2[%c0_1, %c0_2] : memref<1024x512xbf16, #tpu.memory_space<vmem>>, vector<1024x512xbf16>
    %cst = arith.constant dense<0.000000e+00> : vector<2x512xf32>
    %3 = tpu.matmul %1, %2, %cst {dimension_numbers = #tpu.dot_dimension_numbers<[1], [0], [0], [1], [0, 0, 1, 1], [], []>} : vector<2x1024xbf16>, vector<1024x512xbf16>, vector<2x512xf32> -> vector<2x512xf32>
    %c0_3 = arith.constant 0 : index
    %c0_4 = arith.constant 0 : index
    %4 = vector.load %arg3[%c0_3, %c0_4] : memref<1x512xf32, #tpu.memory_space<vmem>>, vector<1x512xf32>
    %5 = vector.broadcast %4 : vector<1x512xf32> to vector<2x512xf32>
    %6 = arith.addf %3, %5 : vector<2x512xf32>
    %cst_5 = arith.constant 0.000000e+00 : f32
    %7 = vector.broadcast %cst_5 : f32 to vector<2x512xf32>
    %8 = arith.maximumf %6, %7 : vector<2x512xf32>
    %9 = arith.truncf %8 : vector<2x512xf32> to vector<2x512xbf16>
    %c0_6 = arith.constant 0 : index
    %c0_7 = arith.constant 0 : index
    %10 = vector.load %arg4[%c0_6, %c0_7] : memref<512x256xbf16, #tpu.memory_space<vmem>>, vector<512x256xbf16>
    %cst_8 = arith.constant dense<0.000000e+00> : vector<2x256xf32>
    %11 = tpu.matmul %9, %10, %cst_8 {dimension_numbers = #tpu.dot_dimension_numbers<[1], [0], [0], [1], [0, 0, 1, 1], [], []>} : vector<2x512xbf16>, vector<512x256xbf16>, vector<2x256xf32> -> vector<2x256xf32>
    %c0_9 = arith.constant 0 : index
    %c0_10 = arith.constant 0 : index
    %12 = vector.load %arg5[%c0_9, %c0_10] : memref<1x256xf32, #tpu.memory_space<vmem>>, vector<1x256xf32>
    %13 = vector.broadcast %12 : vector<1x256xf32> to vector<2x256xf32>
    %14 = arith.addf %11, %13 : vector<2x256xf32>
    %cst_11 = arith.constant 0.000000e+00 : f32
    %15 = vector.broadcast %cst_11 : f32 to vector<2x256xf32>
    %16 = arith.maximumf %14, %15 : vector<2x256xf32>
    %17 = arith.truncf %16 : vector<2x256xf32> to vector<2x256xbf16>
    %c0_12 = arith.constant 0 : index
    %c0_13 = arith.constant 0 : index
    %18 = vector.load %arg6[%c0_12, %c0_13] : memref<256x5xbf16, #tpu.memory_space<vmem>>, vector<256x5xbf16>
    %cst_14 = arith.constant dense<0.000000e+00> : vector<2x5xf32>
    %19 = tpu.matmul %17, %18, %cst_14 {dimension_numbers = #tpu.dot_dimension_numbers<[1], [0], [0], [1], [0, 0, 1, 1], [], []>} : vector<2x256xbf16>, vector<256x5xbf16>, vector<2x5xf32> -> vector<2x5xf32>
    %c0_15 = arith.constant 0 : index
    %c0_16 = arith.constant 0 : index
    %20 = vector.load %arg7[%c0_15, %c0_16] : memref<1x5xf32, #tpu.memory_space<vmem>>, vector<1x5xf32>
    %21 = vector.broadcast %20 : vector<1x5xf32> to vector<2x5xf32>
    %22 = arith.addf %19, %21 : vector<2x5xf32>
    %c0_17 = arith.constant 0 : index
    %c0_18 = arith.constant 0 : index
    %23 = vector.load %arg8[%c0_17, %c0_18] : memref<2x5xf32, #tpu.memory_space<vmem>>, vector<2x5xf32>
    tpu.vector_store %arg8[%c0_17, %c0_18], %22 {strides = array<i32>} : memref<2x5xf32, #tpu.memory_space<vmem>>, vector<2x5xf32>,
    return
  }
  func.func @transform_0(%arg0: i32) -> (i32, i32) {
    %c0_i32 = arith.constant 0 : i32
    %c0_i32_0 = arith.constant 0 : i32
    return %arg0, %c0_i32 : i32, i32
  }
  func.func @transform_1(%arg0: i32) -> (i32, i32) {
    %c0_i32 = arith.constant 0 : i32
    %c0_i32_0 = arith.constant 0 : i32
    %c0_i32_1 = arith.constant 0 : i32
    return %c0_i32, %c0_i32_0 : i32, i32
  }
  func.func @transform_2(%arg0: i32) -> (i32, i32) {
    %c0_i32 = arith.constant 0 : i32
    %c0_i32_0 = arith.constant 0 : i32
    %c0_i32_1 = arith.constant 0 : i32
    return %c0_i32, %c0_i32_0 : i32, i32
  }
  func.func @transform_3(%arg0: i32) -> (i32, i32) {
    %c0_i32 = arith.constant 0 : i32
    %c0_i32_0 = arith.constant 0 : i32
    %c0_i32_1 = arith.constant 0 : i32
    return %c0_i32, %c0_i32_0 : i32, i32
  }
  func.func @transform_4(%arg0: i32) -> (i32, i32) {
    %c0_i32 = arith.constant 0 : i32
    %c0_i32_0 = arith.constant 0 : i32
    %c0_i32_1 = arith.constant 0 : i32
    return %c0_i32, %c0_i32_0 : i32, i32
  }
  func.func @transform_5(%arg0: i32) -> (i32, i32) {
    %c0_i32 = arith.constant 0 : i32
    %c0_i32_0 = arith.constant 0 : i32
    %c0_i32_1 = arith.constant 0 : i32
    return %c0_i32, %c0_i32_0 : i32, i32
  }
  func.func @transform_6(%arg0: i32) -> (i32, i32) {
    %c0_i32 = arith.constant 0 : i32
    %c0_i32_0 = arith.constant 0 : i32
    %c0_i32_1 = arith.constant 0 : i32
    return %c0_i32, %c0_i32_0 : i32, i32
  }
  func.func @transform_7(%arg0: i32) -> (i32, i32) {
    %c0_i32 = arith.constant 0 : i32
    %c0_i32_0 = arith.constant 0 : i32
    return %arg0, %c0_i32 : i32, i32
  }
}

</mosaic_0001>

<llo_original>
// kernel: pointnet_cls_forward.6
$region0: #{pointnet_cls_forward.6}
  #allocation0 [shape = 'u32[]', space=smem, size = 0x4, offset = 0x4, fixed_abs, tag = 'smem constant byte address 0x4 - core index']
  #allocation1 [shape = 'u32[144,128]{1,0:T(1,128)}', space=vmem, size = 0x12000, scoped, tag = 'internal scratch']
  #allocation2 [shape = 'f32[1,1024]{1,0:T(1,128)}', space=vmem, size = 0x1000, scoped, tag = 'scratch operand']
  %s0 = inlined_call_operand.vmem [shape: f32[2,64,3], index: 0, kind: input, shape index: {}]
  %s1 = inlined_call_operand.vmem [shape: f32[2,3,3], index: 1, kind: input, shape index: {}]
  %s2 = inlined_call_operand.vmem [shape: bf16[3,64], index: 2, kind: input, shape index: {}]
  %s3 = inlined_call_operand.vmem [shape: f32[1,64], index: 3, kind: input, shape index: {}]
  %s4 = inlined_call_operand.vmem [shape: bf16[64,128], index: 4, kind: input, shape index: {}]
  %s5 = inlined_call_operand.vmem [shape: f32[1,128], index: 5, kind: input, shape index: {}]
  %s6 = inlined_call_operand.vmem [shape: bf16[128,1024], index: 6, kind: input, shape index: {}]
  %s7 = inlined_call_operand.vmem [shape: f32[1,1024], index: 7, kind: input, shape index: {}]
  %s8 = inlined_call_operand.vmem [shape: f32[2,1,1024], index: 8, kind: output, shape index: {}]
  %s9 = sld [smem:[#allocation0]]
  $region77: #{pointnet_cls_forward.6} parent=0
    _
  %s11 = ssub.s32 1, %s9
  %s12 = scalar_select 0, %s11, %s9
  loop: start=0, step=1, limit=4
  $region2: #{pointnet_cls_forward.6} parent=0 // loop_pre_header
    _
  $region3: #{pointnet_cls_forward.6} parent=0 // loop_header
    %s14 = sphi 0, %s18
    %p15 = scmp.ge.s32.totalorder %s14, 4
    %s21 = sphi 0, %s33
    %s22 = sphi 0, %s29
    %s23 = sphi 0, %s21
    %s24 = sphi 0, %s22
    %s25 = sphi 0, %s23
    %s26 = sphi 0, %s24
    %s38 = sphi 0, %s40
    %s41 = sphi 0, %s38
    %s42 = sphi 0, %s41
    %s58 = sphi 0, %s42
    %s64 = sphi 0, %s66
    %s67 = sphi 0, %s64
    %s68 = sphi 0, %s67
    %s84 = sphi 0, %s68
    %s88 = sphi 0, %s88
    %s90 = sphi 0, %s88
    %s91 = sphi 0, %s90
    %s105 = sphi 0, %s91
    %s109 = sphi 0, %s109
    %s111 = sphi 0, %s109
    %s112 = sphi 0, %s111
    %s126 = sphi 0, %s112
    %s130 = sphi 0, %s130
    %s132 = sphi 0, %s130
    %s133 = sphi 0, %s132
    %s147 = sphi 0, %s133
    %s151 = sphi 0, %s151
    %s153 = sphi 0, %s151
    %s154 = sphi 0, %s153
    %s168 = sphi 0, %s154
    %s172 = sphi 0, %s172
    %s174 = sphi 0, %s172
    %s175 = sphi 0, %s174
    %s189 = sphi 0, %s175
    %s193 = sphi 0, %s193
    %s195 = sphi 0, %s193
    %s196 = sphi 0, %s195
    %s210 = sphi 0, %s196
    %s216 = sphi 0, %s218
    %s219 = sphi 0, %s216
    %s220 = sphi 0, %s219
    %s236 = sphi 0, %s220
  $region4: #{pointnet_cls_forward.6} parent=0 // loop_header_branch
    %17 = sbr.rel (%p15) target = $region8
  $region5: #{pointnet_cls_forward.6} parent=0 // loop_body
    %s19 = ssub.s32 %s14, 1
    %s20 = ssub.s32 %s14, 2
    %s27 = sadd.s32 1, %s22
    %p28 = scmp.ge.s32.totalorder %s27, 1
    %s29 = scalar_select %p28, 0, %s27
    %s30 = sadd.s32 1, %s21
    %s31 = scalar_select %p28, %s30, %s21
    %p32 = scmp.ge.s32.totalorder %s31, 2
    %s33 = scalar_select %p32, 0, %s31
    %s34 = ssub.s32 %s21, %s33
    %s35 = ssub.s32 %s22, %s29
    %s36 = sor.u32 %s34, %s35
    %p37 = scmp.eq.s32.totalorder %s36, 0
    %s39 = sadd.s32 %s38, 1
    %s40 = scalar_select %p37, %s38, %s39
    %p43 = pneg %p37
    %p44 = scmp.eq.s32.totalorder %s14, 1
    %p45 = por %p43, %p44
    %p46 = scmp.ne.s32.totalorder %s38, %s41
    %p47 = scmp.eq.s32.totalorder %s14, 0
    %p48 = por %p46, %p47
    %p49 = scmp.ne.s32.totalorder %s38, %s41
    %p50 = scmp.eq.s32.totalorder %s19, 1
    %p51 = por %p49, %p50
    %p52 = scmp.ne.s32.totalorder %s41, %s42
    %p53 = scmp.eq.s32.totalorder %s19, 0
    %p54 = por %p52, %p53
    %p55 = scmp.ne.s32.totalorder %s41, %s42
    %p56 = scmp.eq.s32.totalorder %s20, 1
    %p57 = por %p55, %p56
    %p59 = scmp.ne.s32.totalorder %s42, %s58
    %p60 = scmp.eq.s32.totalorder %s20, 0
    %p61 = por %p59, %p60
    %s62 = ssub.s32 %s21, %s33
    %p63 = scmp.eq.s32.totalorder %s62, 0
    %s65 = sadd.s32 %s64, 1
    %s66 = scalar_select %p63, %s64, %s65
    %p69 = pneg %p63
    %p70 = scmp.eq.s32.totalorder %s14, 1
    %p71 = por %p69, %p70
    %p72 = scmp.ne.s32.totalorder %s64, %s67
    %p73 = scmp.eq.s32.totalorder %s14, 0
    %p74 = por %p72, %p73
    %p75 = scmp.ne.s32.totalorder %s64, %s67
    %p76 = scmp.eq.s32.totalorder %s19, 1
    %p77 = por %p75, %p76
    %p78 = scmp.ne.s32.totalorder %s67, %s68
    %p79 = scmp.eq.s32.totalorder %s19, 0
    %p80 = por %p78, %p79
    %p81 = scmp.ne.s32.totalorder %s67, %s68
    %p82 = scmp.eq.s32.totalorder %s20, 1
    %p83 = por %p81, %p82
    %p85 = scmp.ne.s32.totalorder %s68, %s84
    %p86 = scmp.eq.s32.totalorder %s20, 0
    %p87 = por %p85, %p86
    %s89 = sadd.s32 %s88, 1
    %p92 = scmp.eq.s32.totalorder %s14, 1
    %p93 = scmp.ne.s32.totalorder %s88, %s90
    %p94 = scmp.eq.s32.totalorder %s14, 0
    %p95 = por %p93, %p94
    %p96 = scmp.ne.s32.totalorder %s88, %s90
    %p97 = scmp.eq.s32.totalorder %s19, 1
    %p98 = por %p96, %p97
    %p99 = scmp.ne.s32.totalorder %s90, %s91
    %p100 = scmp.eq.s32.totalorder %s19, 0
    %p101 = por %p99, %p100
    %p102 = scmp.ne.s32.totalorder %s90, %s91
    %p103 = scmp.eq.s32.totalorder %s20, 1
    %p104 = por %p102, %p103
    %p106 = scmp.ne.s32.totalorder %s91, %s105
    %p107 = scmp.eq.s32.totalorder %s20, 0
    %p108 = por %p106, %p107
    %s110 = sadd.s32 %s109, 1
    %p113 = scmp.eq.s32.totalorder %s14, 1
    %p114 = scmp.ne.s32.totalorder %s109, %s111
    %p115 = scmp.eq.s32.totalorder %s14, 0
    %p116 = por %p114, %p115
    %p117 = scmp.ne.s32.totalorder %s109, %s111
    %p118 = scmp.eq.s32.totalorder %s19, 1
    %p119 = por %p117, %p118
    %p120 = scmp.ne.s32.totalorder %s111, %s112
    %p121 = scmp.eq.s32.totalorder %s19, 0
    %p122 = por %p120, %p121
    %p123 = scmp.ne.s32.totalorder %s111, %s112
    %p124 = scmp.eq.s32.totalorder %s20, 1
    %p125 = por %p123, %p124
    %p127 = scmp.ne.s32.totalorder %s112, %s126
    %p128 = scmp.eq.s32.totalorder %s20, 0
    %p129 = por %p127, %p128
    %s131 = sadd.s32 %s130, 1
    %p134 = scmp.eq.s32.totalorder %s14, 1
    %p135 = scmp.ne.s32.totalorder %s130, %s132
    %p136 = scmp.eq.s32.totalorder %s14, 0
    %p137 = por %p135, %p136
    %p138 = scmp.ne.s32.totalorder %s130, %s132
    %p139 = scmp.eq.s32.totalorder %s19, 1
    %p140 = por %p138, %p139
    %p141 = scmp.ne.s32.totalorder %s132, %s133
    %p142 = scmp.eq.s32.totalorder %s19, 0
    %p143 = por %p141, %p142
    %p144 = scmp.ne.s32.totalorder %s132, %s133
    %p145 = scmp.eq.s32.totalorder %s20, 1
    %p146 = por %p144, %p145
    %p148 = scmp.ne.s32.totalorder %s133, %s147
    %p149 = scmp.eq.s32.totalorder %s20, 0
    %p150 = por %p148, %p149
    %s152 = sadd.s32 %s151, 1
    %p155 = scmp.eq.s32.totalorder %s14, 1
    %p156 = scmp.ne.s32.totalorder %s151, %s153
    %p157 = scmp.eq.s32.totalorder %s14, 0
    %p158 = por %p156, %p157
    %p159 = scmp.ne.s32.totalorder %s151, %s153
    %p160 = scmp.eq.s32.totalorder %s19, 1
    %p161 = por %p159, %p160
    %p162 = scmp.ne.s32.totalorder %s153, %s154
    %p163 = scmp.eq.s32.totalorder %s19, 0
    %p164 = por %p162, %p163
    %p165 = scmp.ne.s32.totalorder %s153, %s154
    %p166 = scmp.eq.s32.totalorder %s20, 1
    %p167 = por %p165, %p166
    %p169 = scmp.ne.s32.totalorder %s154, %s168
    %p170 = scmp.eq.s32.totalorder %s20, 0
    %p171 = por %p169, %p170
    %s173 = sadd.s32 %s172, 1
    %p176 = scmp.eq.s32.totalorder %s14, 1
    %p177 = scmp.ne.s32.totalorder %s172, %s174
    %p178 = scmp.eq.s32.totalorder %s14, 0
    %p179 = por %p177, %p178
    %p180 = scmp.ne.s32.totalorder %s172, %s174
    %p181 = scmp.eq.s32.totalorder %s19, 1
    %p182 = por %p180, %p181
    %p183 = scmp.ne.s32.totalorder %s174, %s175
    %p184 = scmp.eq.s32.totalorder %s19, 0
    %p185 = por %p183, %p184
    %p186 = scmp.ne.s32.totalorder %s174, %s175
    %p187 = scmp.eq.s32.totalorder %s20, 1
    %p188 = por %p186, %p187
    %p190 = scmp.ne.s32.totalorder %s175, %s189
    %p191 = scmp.eq.s32.totalorder %s20, 0
    %p192 = por %p190, %p191
    %s194 = sadd.s32 %s193, 1
    %p197 = scmp.eq.s32.totalorder %s14, 1
    %p198 = scmp.ne.s32.totalorder %s193, %s195
    %p199 = scmp.eq.s32.totalorder %s14, 0
    %p200 = por %p198, %p199
    %p201 = scmp.ne.s32.totalorder %s193, %s195
    %p202 = scmp.eq.s32.totalorder %s19, 1
    %p203 = por %p201, %p202
    %p204 = scmp.ne.s32.totalorder %s195, %s196
    %p205 = scmp.eq.s32.totalorder %s19, 0
    %p206 = por %p204, %p205
    %p207 = scmp.ne.s32.totalorder %s195, %s196
    %p208 = scmp.eq.s32.totalorder %s20, 1
    %p209 = por %p207, %p208
    %p211 = scmp.ne.s32.totalorder %s196, %s210
    %p212 = scmp.eq.s32.totalorder %s20, 0
    %p213 = por %p211, %p212
    %s214 = ssub.s32 %s21, %s33
    %p215 = scmp.eq.s32.totalorder %s214, 0
    %s217 = sadd.s32 %s216, 1
    %s218 = scalar_select %p215, %s216, %s217
    %p221 = pneg %p215
    %p222 = scmp.eq.s32.totalorder %s14, 1
    %p223 = por %p221, %p222
    %p224 = scmp.ne.s32.totalorder %s216, %s219
    %p225 = scmp.eq.s32.totalorder %s14, 0
    %p226 = por %p224, %p225
    %p227 = scmp.ne.s32.totalorder %s216, %s219
    %p228 = scmp.eq.s32.totalorder %s19, 1
    %p229 = por %p227, %p228
    %p230 = scmp.ne.s32.totalorder %s219, %s220
    %p231 = scmp.eq.s32.totalorder %s19, 0
    %p232 = por %p230, %p231
    %p233 = scmp.ne.s32.totalorder %s219, %s220
    %p234 = scmp.eq.s32.totalorder %s20, 1
    %p235 = por %p233, %p234
    %p237 = scmp.ne.s32.totalorder %s220, %s236
    %p238 = scmp.eq.s32.totalorder %s20, 0
    %p239 = por %p237, %p238
    %p240 = scmp.le.s32.totalorder 1, %s14
    %p241 = scmp.lt.s32.totalorder %s14, 3
    %p242 = pnand %p240, %p241
    %p243 = pneg %p242
    // Predicated region
    $region9: #{pointnet_cls_forward.6} parent=5 // pred_check
      _
    $region10: #{pointnet_cls_forward.6} parent=5 // pred_check_branch
      %245 = sbr.rel (%p242) target = $region12
    $region11: #{pointnet_cls_forward.6} parent=5 // pred_region
      %s246 = ssub.s32 %s14, 1
      // Predicated region
      $region13: #{pointnet_cls_forward.6} parent=11 // pred_check
        %p247 = pneg %p101
      $region14: #{pointnet_cls_forward.6} parent=11 // pred_check_branch
        %249 = sbr.rel (%p247) target = $region16
      $region15: #{pointnet_cls_forward.6} parent=11 // pred_region
        _
      $region16: #{pointnet_cls_forward.6} parent=11 // pred_fallthru
        _
      // Predicated region
      $region17: #{pointnet_cls_forward.6} parent=11 // pred_check
        %p250 = pneg %p122
      $region18: #{pointnet_cls_forward.6} parent=11 // pred_check_branch
        %252 = sbr.rel (%p250) target = $region20
      $region19: #{pointnet_cls_forward.6} parent=11 // pred_region
        _
      $region20: #{pointnet_cls_forward.6} parent=11 // pred_fallthru
        _
      // Predicated region
      $region21: #{pointnet_cls_forward.6} parent=11 // pred_check
        %p253 = pneg %p143
      $region22: #{pointnet_cls_forward.6} parent=11 // pred_check_branch
        %255 = sbr.rel (%p253) target = $region24
      $region23: #{pointnet_cls_forward.6} parent=11 // pred_region
        _
      $region24: #{pointnet_cls_forward.6} parent=11 // pred_fallthru
        _
      // Predicated region
      $region25: #{pointnet_cls_forward.6} parent=11 // pred_check
        %p256 = pneg %p164
      $region26: #{pointnet_cls_forward.6} parent=11 // pred_check_branch
        %258 = sbr.rel (%p256) target = $region28
      $region27: #{pointnet_cls_forward.6} parent=11 // pred_region
        _
      $region28: #{pointnet_cls_forward.6} parent=11 // pred_fallthru
        _
      // Predicated region
      $region29: #{pointnet_cls_forward.6} parent=11 // pred_check
        %p259 = pneg %p185
      $region30: #{pointnet_cls_forward.6} parent=11 // pred_check_branch
        %261 = sbr.rel (%p259) target = $region32
      $region31: #{pointnet_cls_forward.6} parent=11 // pred_region
        _
      $region32: #{pointnet_cls_forward.6} parent=11 // pred_fallthru
        _
      // Predicated region
      $region33: #{pointnet_cls_forward.6} parent=11 // pred_check
        %p262 = pneg %p206
      $region34: #{pointnet_cls_forward.6} parent=11 // pred_check_branch
        %264 = sbr.rel (%p262) target = $region36
      $region35: #{pointnet_cls_forward.6} parent=11 // pred_region
        _
      $region36: #{pointnet_cls_forward.6} parent=11 // pred_fallthru
        _
    $region12: #{pointnet_cls_forward.6} parent=5 // pred_fallthru
      _
    %p265 = scmp.lt.s32.totalorder %s14, 2
    // Predicated region
    $region37: #{pointnet_cls_forward.6} parent=5 // pred_check
      %p266 = pneg %p265
    $region38: #{pointnet_cls_forward.6} parent=5 // pred_check_branch
      %268 = sbr.rel (%p266) target = $region40
    $region39: #{pointnet_cls_forward.6} parent=5 // pred_region
      // Predicated region
      $region41: #{pointnet_cls_forward.6} parent=39 // pred_check
        %p269 = pneg %p48
      $region42: #{pointnet_cls_forward.6} parent=39 // pred_check_branch
        %271 = sbr.rel (%p269) target = $region44
      $region43: #{pointnet_cls_forward.6} parent=39 // pred_region
        %s272 = smul.u32 8, %s22
        %p273 = scmp.lt.s32.totalorder %s21, 1
        %s274 = scalar_select %p273, %s21, 1
        %p275 = scmp.lt.s32.totalorder %s272, 7
        %s276 = scalar_select %p275, %s272, 7
        %s277 = smul.addr %s274, 8
        %s278 = sadd.s32 %s276, %s277
        %s279 = smul.addr %s278, 8
        %s280 = scalar_lea.vmem %s0, %s279
        %s281 = smul.u32 8, %s22
      $region44: #{pointnet_cls_forward.6} parent=39 // pred_fallthru
        _
      // Predicated region
      $region45: #{pointnet_cls_forward.6} parent=39 // pred_check
        %p282 = pneg %p74
      $region46: #{pointnet_cls_forward.6} parent=39 // pred_check_branch
        %284 = sbr.rel (%p282) target = $region48
      $region47: #{pointnet_cls_forward.6} parent=39 // pred_region
        %p285 = scmp.lt.s32.totalorder %s21, 1
        %s286 = scalar_select %p285, %s21, 1
        %s287 = smul.addr %s286, 4
        %s288 = scalar_lea.vmem %s1, %s287
      $region48: #{pointnet_cls_forward.6} parent=39 // pred_fallthru
        _
    $region40: #{pointnet_cls_forward.6} parent=5 // pred_fallthru
      _
    %p289 = scmp.le.s32.totalorder 1, %s14
    %p290 = scmp.lt.s32.totalorder %s14, 3
    %p291 = pnand %p289, %p290
    %p292 = pneg %p291
    // Predicated region
    $region49: #{pointnet_cls_forward.6} parent=5 // pred_check
      _
    $region50: #{pointnet_cls_forward.6} parent=5 // pred_check_branch
      %294 = sbr.rel (%p291) target = $region52
    $region51: #{pointnet_cls_forward.6} parent=5 // pred_region
      %s295 = ssub.s32 %s14, 1
      %s296 = smul.u32 8, %s24
      %p297 = scmp.lt.s32.totalorder %s23, 1
      %s298 = scalar_select %p297, %s23, 1
      %p299 = scmp.lt.s32.totalorder %s296, 7
      %s300 = scalar_select %p299, %s296, 7
      %s301 = smul.addr %s298, 8
      %s302 = sadd.s32 %s300, %s301
      %s303 = smul.addr %s302, 8
      %s304 = scalar_lea.vmem %s0, %s303
      %p305 = pneg %p54
      %p306 = pneg %p51
      %p307 = scmp.lt.s32.totalorder %s23, 1
      %s308 = scalar_select %p307, %s23, 1
      %s309 = smul.addr %s308, 4
      %s310 = scalar_lea.vmem %s1, %s309
      %p311 = pneg %p80
      %p312 = pneg %p77
      %p313 = pneg %p101
      %p314 = pneg %p98
      %p315 = pneg %p122
      %p316 = pneg %p119
      %p317 = pneg %p143
      %p318 = pneg %p140
      %p319 = pneg %p164
      %p320 = pneg %p161
      %p321 = pneg %p185
      %p322 = pneg %p182
      %p323 = pneg %p206
      %p324 = pneg %p203
      %p325 = pneg %p232
      %p326 = pneg %p229
      %p327 = scmp.lt.s32.totalorder %s23, 1
      %s328 = scalar_select %p327, %s23, 1
      %s329 = smul.addr %s328, 8
      %s330 = scalar_lea.vmem %s8, %s329
      %s331 = smul.u32 8, %s24
      %p332 = scmp.lt.s32.totalorder %s23, 1
      %s333 = scalar_select %p332, %s23, 1
      %p334 = scmp.lt.s32.totalorder %s331, 7
      %s335 = scalar_select %p334, %s331, 7
      %s336 = smul.addr %s333, 8
      %s337 = sadd.s32 %s335, %s336
      %s338 = smul.addr %s337, 8
      %s339 = scalar_lea.vmem %s0, %s338
      %s340 = smul.u32 8, %s24
      %p341 = scmp.lt.s32.totalorder %s23, 1
      %s342 = scalar_select %p341, %s23, 1
      %s343 = smul.addr %s342, 4
      %s344 = scalar_lea.vmem %s1, %s343
      %p345 = scmp.lt.s32.totalorder %s23, 1
      %s346 = scalar_select %p345, %s23, 1
      %s347 = smul.addr %s346, 8
      %s348 = scalar_lea.vmem %s8, %s347
      %v350 = vld [vmem:[%s339] sm:$0xff]
      %v351 = vld [vmem:[%s339 + $0x8] sm:$0xff]
      %v352 = vld [vmem:[%s339 + $0x10] sm:$0xff]
      %v353 = vld [vmem:[%s339 + $0x18] sm:$0xff]
      %v354 = vld [vmem:[%s339 + $0x20] sm:$0xff]
      %v355 = vld [vmem:[%s339 + $0x28] sm:$0xff]
      %v356 = vld [vmem:[%s339 + $0x30] sm:$0xff]
      %v357 = vld [vmem:[%s339 + $0x38] sm:$0xff]
      %v358 = vpack.c.bf16 %v351, %v350
      %v359 = vpack.c.bf16 %v353, %v352
      %v360 = vpack.c.bf16 %v355, %v354
      %v361 = vpack.c.bf16 %v357, %v356
      %v362 = vld [vmem:[%s2] sm:$0x3]
      %v363 = vld [vmem:[%s344] sm:$0x7]
      %v364 = vpack.c.bf16 %v363, %v363
      %vm365 = vcmask 23552
      %v367 = vsel %vm365, %v364, 0
      %vm369 = vcmask 1040384
      %vm370 = vcmask 1041408
      %v371 = vsel %vm369, 4294967295, 65535
      %v372 = vsel %vm370, %v371, 0
      %v374 = vand.u32 %v362, %v372
      %376 = vmatprep.subr.bf16.mxu0 0
      %377 = vmatpush1.bf16.msra.mxu0 %v374
      %378 = vmatprep.subr.bf16.mxu0 0
      %379 = vmatpush1.bf16.msra.mxu0 0
      %380 = vmatprep.subr.bf16.mxu0 0
      %381 = vmatpush1.bf16.msra.mxu0 0
      %382 = vmatprep.subr.bf16.mxu0 0
      %383 = vmatpush1.bf16.msra.mxu0 0
      %384 = vmatprep.subr.bf16.mxu0 0
      %385 = vmatpush1.bf16.msra.mxu0 0
      %386 = vmatprep.subr.bf16.mxu0 0
      %387 = vmatpush1.bf16.msra.mxu0 0
      %388 = vmatprep.subr.bf16.mxu0 0
      %389 = vmatpush1.bf16.msra.mxu0 0
      %390 = vmatprep.subr.bf16.mxu0 0
      %391 = vmatpush1.bf16.msra.mxu0 0
      %392 = vmatprep.subr.bf16.mxu0 0
      %393 = vmatpush1.bf16.msra.mxu0 0
      %394 = vmatprep.subr.bf16.mxu0 0
      %395 = vmatpush1.bf16.msra.mxu0 0
      %396 = vmatprep.subr.bf16.mxu0 0
      %397 = vmatpush1.bf16.msra.mxu0 0
      %398 = vmatprep.subr.bf16.mxu0 0
      %399 = vmatpush1.bf16.msra.mxu0 0
      %400 = vmatprep.subr.bf16.mxu0 0
      %401 = vmatpush1.bf16.msra.mxu0 0
      %402 = vmatprep.subr.bf16.mxu0 0
      %403 = vmatpush1.bf16.msra.mxu0 0
      %404 = vmatprep.subr.bf16.mxu0 0
      %405 = vmatpush1.bf16.msra.mxu0 0
      %406 = vmatprep.subr.bf16.mxu0 0
      %407 = vmatpush1.bf16.msra.mxu0 0
      %408 = vmatprep.mubr.bf16.mxu0 0
      %409 = vmatmul.mubr.bf16.gmra.mrb[0].mxu0 %v367
      %v410 = vpop.f32.mrb[0].mxu0
      %v411 = vadd.f32 0.0, %v410
      %v412 = vpop.f32.mrb[0].mxu0
      %v413 = vpop.f32.mrb[0].mxu0
      %v414 = vpop.f32.mrb[0].mxu0
      %415 = vdwg.mxu0
      %v416 = vpack.c.bf16 %v411, %v411
      %v417 = vld [vmem:[%s3] sm:$0x1]
      %v419 = vlaneseq
      %v420 = vshrl.u32 %v419, 7
      %v421 = vsub.s32 0, %v420
      %v422 = vrot.slane %v417, %v421
      %v425 = vsel %vm365, %v358, 0
      %v428 = vsel %vm365, %v359, 0
      %v431 = vsel %vm365, %v360, 0
      %v434 = vsel %vm365, %v361, 0
      %v437 = vand.u32 %v416, %v372
      %439 = vmatprep.subr.bf16.mxu0 0
      %440 = vmatpush1.bf16.msra.mxu0 %v437
      %441 = vmatprep.subr.bf16.mxu0 0
      %442 = vmatpush1.bf16.msra.mxu0 0
      %443 = vmatprep.subr.bf16.mxu0 0
      %444 = vmatpush1.bf16.msra.mxu0 0
      %445 = vmatprep.subr.bf16.mxu0 0
      %446 = vmatpush1.bf16.msra.mxu0 0
      %447 = vmatprep.subr.bf16.mxu0 0
      %448 = vmatpush1.bf16.msra.mxu0 0
      %449 = vmatprep.subr.bf16.mxu0 0
      %450 = vmatpush1.bf16.msra.mxu0 0
      %451 = vmatprep.subr.bf16.mxu0 0
      %452 = vmatpush1.bf16.msra.mxu0 0
      %453 = vmatprep.subr.bf16.mxu0 0
      %454 = vmatpush1.bf16.msra.mxu0 0
      %455 = vmatprep.subr.bf16.mxu0 0
      %456 = vmatpush1.bf16.msra.mxu0 0
      %457 = vmatprep.subr.bf16.mxu0 0
      %458 = vmatpush1.bf16.msra.mxu0 0
      %459 = vmatprep.subr.bf16.mxu0 0
      %460 = vmatpush1.bf16.msra.mxu0 0
      %461 = vmatprep.subr.bf16.mxu0 0
      %462 = vmatpush1.bf16.msra.mxu0 0
      %463 = vmatprep.subr.bf16.mxu0 0
      %464 = vmatpush1.bf16.msra.mxu0 0
      %465 = vmatprep.subr.bf16.mxu0 0
      %466 = vmatpush1.bf16.msra.mxu0 0
      %467 = vmatprep.subr.bf16.mxu0 0
      %468 = vmatpush1.bf16.msra.mxu0 0
      %469 = vmatprep.subr.bf16.mxu0 0
      %470 = vmatpush1.bf16.msra.mxu0 0
      %471 = vmatprep.mubr.bf16.mxu0 0
      %472 = vmatmul.mubr.bf16.gmra.mrb[0].mxu0 %v425
      %v473 = vpop.f32.mrb[0].mxu0
      %v474 = vadd.f32 %v422, %v473
      %v475 = vpop.f32.mrb[0].mxu0
      %v476 = vpop.f32.mrb[0].mxu0
      %v477 = vadd.f32 %v422, %v476
      %v478 = vpop.f32.mrb[0].mxu0
      %479 = vmatprep.mubr.bf16.mxu0 0
      %480 = vmatmul.mubr.bf16.gmra.mrb[0].mxu0 %v428
      %v481 = vpop.f32.mrb[0].mxu0
      %v482 = vadd.f32 %v422, %v481
      %v483 = vpop.f32.mrb[0].mxu0
      %v484 = vpop.f32.mrb[0].mxu0
      %v485 = vadd.f32 %v422, %v484
      %v486 = vpop.f32.mrb[0].mxu0
      %487 = vmatprep.mubr.bf16.mxu0 0
      %488 = vmatmul.mubr.bf16.gmra.mrb[0].mxu0 %v431
      %v489 = vpop.f32.mrb[0].mxu0
      %v490 = vadd.f32 %v422, %v489
      %v491 = vpop.f32.mrb[0].mxu0
      %v492 = vpop.f32.mrb[0].mxu0
      %v493 = vadd.f32 %v422, %v492
      %v494 = vpop.f32.mrb[0].mxu0
      %495 = vmatprep.mubr.bf16.mxu0 0
      %496 = vmatmul.mubr.bf16.gmra.mrb[0].mxu0 %v434
      %v497 = vpop.f32.mrb[0].mxu0
      %v498 = vadd.f32 %v422, %v497
      %v499 = vpop.f32.mrb[0].mxu0
      %v500 = vpop.f32.mrb[0].mxu0
      %v501 = vadd.f32 %v422, %v500
      %v502 = vpop.f32.mrb[0].mxu0
      %503 = vdwg.mxu0
      %v504 = vmax.f32 %v474, 0.0
      %v505 = vmax.f32 %v477, 0.0
      %v506 = vmax.f32 %v482, 0.0
      %v507 = vmax.f32 %v485, 0.0
      %v508 = vmax.f32 %v490, 0.0
      %v509 = vmax.f32 %v493, 0.0
      %v510 = vmax.f32 %v498, 0.0
      %v511 = vmax.f32 %v501, 0.0
      %v512 = vpack.c.bf16 %v505, %v504
      %v513 = vpack.c.bf16 %v507, %v506
      %v514 = vpack.c.bf16 %v509, %v508
      %v515 = vpack.c.bf16 %v511, %v510
      %v516 = vld [vmem:[%s4] sm:$0xf]
      %v517 = vld [vmem:[%s4 + $0x4] sm:$0xf]
      %v518 = vld [vmem:[%s4 + $0x8] sm:$0xf]
      %v519 = vld [vmem:[%s4 + $0xc] sm:$0xf]
      %v520 = vld [vmem:[%s4 + $0x10] sm:$0xf]
      %v521 = vld [vmem:[%s4 + $0x14] sm:$0xf]
      %v522 = vld [vmem:[%s4 + $0x18] sm:$0xf]
      %v523 = vld [vmem:[%s4 + $0x1c] sm:$0xf]
      %v524 = vld [vmem:[%s5] sm:$0x1]
      %v526 = vlaneseq
      %v527 = vshrl.u32 %v526, 7
      %v528 = vsub.s32 0, %v527
      %v529 = vrot.slane %v524, %v528
      %v539 = vunpack.c.l.b16 %v516
      %v540 = vunpack.c.l.b16 %v517
      %v541 = vunpack.c.l.b16 %v518
      %v542 = vunpack.c.l.b16 %v519
      %v543 = vunpack.c.l.b16 %v520
      %v544 = vunpack.c.l.b16 %v521
      %v545 = vunpack.c.l.b16 %v522
      %v546 = vunpack.c.l.b16 %v523
      %v547 = vpack.c.b16 %v540, %v539
      %v548 = vpack.c.b16 %v542, %v541
      %v549 = vpack.c.b16 %v544, %v543
      %v550 = vpack.c.b16 %v546, %v545
      %vm555 = vcmask 523264
      %v557 = vsel %vm555, %v512, 0
      %v560 = vsel %vm555, %v513, 0
      %v563 = vsel %vm555, %v514, 0
      %v566 = vsel %vm555, %v515, 0
      %568 = vmatprep.subr.bf16.mxu0 0
      %569 = vmatpush1.bf16.msra.mxu0 %v547
      %570 = vmatprep.subr.bf16.mxu0 0
      %571 = vmatpush1.bf16.msra.mxu0 %v548
      %572 = vmatprep.subr.bf16.mxu0 0
      %573 = vmatpush1.bf16.msra.mxu0 %v549
      %574 = vmatprep.subr.bf16.mxu0 0
      %575 = vmatpush1.bf16.msra.mxu0 %v550
      %576 = vmatprep.subr.bf16.mxu0 0
      %577 = vmatpush1.bf16.msra.mxu0 0
      %578 = vmatprep.subr.bf16.mxu0 0
      %579 = vmatpush1.bf16.msra.mxu0 0
      %580 = vmatprep.subr.bf16.mxu0 0
      %581 = vmatpush1.bf16.msra.mxu0 0
      %582 = vmatprep.subr.bf16.mxu0 0
      %583 = vmatpush1.bf16.msra.mxu0 0
      %584 = vmatprep.subr.bf16.mxu0 0
      %585 = vmatpush1.bf16.msra.mxu0 0
      %586 = vmatprep.subr.bf16.mxu0 0
      %587 = vmatpush1.bf16.msra.mxu0 0
      %588 = vmatprep.subr.bf16.mxu0 0
      %589 = vmatpush1.bf16.msra.mxu0 0
      %590 = vmatprep.subr.bf16.mxu0 0
      %591 = vmatpush1.bf16.msra.mxu0 0
      %592 = vmatprep.subr.bf16.mxu0 0
      %593 = vmatpush1.bf16.msra.mxu0 0
      %594 = vmatprep.subr.bf16.mxu0 0
      %595 = vmatpush1.bf16.msra.mxu0 0
      %596 = vmatprep.subr.bf16.mxu0 0
      %597 = vmatpush1.bf16.msra.mxu0 0
      %598 = vmatprep.subr.bf16.mxu0 0
      %599 = vmatpush1.bf16.msra.mxu0 0
      %600 = vmatprep.mubr.bf16.mxu0 0
      %601 = vmatmul.mubr.bf16.gmra.mrb[0].mxu0 %v557
      %v602 = vpop.f32.mrb[0].mxu0
      %v603 = vadd.f32 %v529, %v602
      %v604 = vpop.f32.mrb[0].mxu0
      %v605 = vpop.f32.mrb[0].mxu0
      %v606 = vadd.f32 %v529, %v605
      %v607 = vpop.f32.mrb[0].mxu0
      %608 = vmatprep.mubr.bf16.mxu0 0
      %609 = vmatmul.mubr.bf16.gmra.mrb[0].mxu0 %v560
      %v610 = vpop.f32.mrb[0].mxu0
      %v611 = vadd.f32 %v529, %v610
      %v612 = vpop.f32.mrb[0].mxu0
      %v613 = vpop.f32.mrb[0].mxu0
      %v614 = vadd.f32 %v529, %v613
      %v615 = vpop.f32.mrb[0].mxu0
      %616 = vmatprep.mubr.bf16.mxu0 0
      %617 = vmatmul.mubr.bf16.gmra.mrb[0].mxu0 %v563
      %v618 = vpop.f32.mrb[0].mxu0
      %v619 = vadd.f32 %v529, %v618
      %v620 = vpop.f32.mrb[0].mxu0
      %v621 = vpop.f32.mrb[0].mxu0
      %v622 = vadd.f32 %v529, %v621
      %v623 = vpop.f32.mrb[0].mxu0
      %624 = vmatprep.mubr.bf16.mxu0 0
      %625 = vmatmul.mubr.bf16.gmra.mrb[0].mxu0 %v566
      %v626 = vpop.f32.mrb[0].mxu0
      %v627 = vadd.f32 %v529, %v626
      %v628 = vpop.f32.mrb[0].mxu0
      %v629 = vpop.f32.mrb[0].mxu0
      %v630 = vadd.f32 %v529, %v629
      %v631 = vpop.f32.mrb[0].mxu0
      %632 = vdwg.mxu0
      %v633 = vmax.f32 %v603, 0.0
      %v634 = vmax.f32 %v606, 0.0
      %v635 = vmax.f32 %v611, 0.0
      %v636 = vmax.f32 %v614, 0.0
      %v637 = vmax.f32 %v619, 0.0
      %v638 = vmax.f32 %v622, 0.0
      %v639 = vmax.f32 %v627, 0.0
      %v640 = vmax.f32 %v630, 0.0
      %v641 = vpack.c.bf16 %v634, %v633
      %v642 = vpack.c.bf16 %v636, %v635
      %v643 = vpack.c.bf16 %v638, %v637
      %v644 = vpack.c.bf16 %v640, %v639
      %v645 = vld [vmem:[%s6] sm:$0xff]
      %v646 = vld [vmem:[%s6 + $0x8] sm:$0xff]
      %v647 = vld [vmem:[%s6 + $0x10] sm:$0xff]
      %v648 = vld [vmem:[%s6 + $0x18] sm:$0xff]
      %v649 = vld [vmem:[%s6 + $0x20] sm:$0xff]
      %v650 = vld [vmem:[%s6 + $0x28] sm:$0xff]
      %v651 = vld [vmem:[%s6 + $0x30] sm:$0xff]
      %v652 = vld [vmem:[%s6 + $0x38] sm:$0xff]
      %v653 = vld [vmem:[%s6 + $0x40] sm:$0xff]
      %v654 = vld [vmem:[%s6 + $0x48] sm:$0xff]
      %v655 = vld [vmem:[%s6 + $0x50] sm:$0xff]
      %v656 = vld [vmem:[%s6 + $0x58] sm:$0xff]
      %v657 = vld [vmem:[%s6 + $0x60] sm:$0xff]
      %v658 = vld [vmem:[%s6 + $0x68] sm:$0xff]
      %v659 = vld [vmem:[%s6 + $0x70] sm:$0xff]
      %v660 = vld [vmem:[%s6 + $0x78] sm:$0xff]
      %v661 = vld [vmem:[%s6 + $0x80] sm:$0xff]
      %v662 = vld [vmem:[%s6 + $0x88] sm:$0xff]
      %v663 = vld [vmem:[%s6 + $0x90] sm:$0xff]
      %v664 = vld [vmem:[%s6 + $0x98] sm:$0xff]
      %v665 = vld [vmem:[%s6 + $0xa0] sm:$0xff]
      %v666 = vld [vmem:[%s6 + $0xa8] sm:$0xff]
      %v667 = vld [vmem:[%s6 + $0xb0] sm:$0xff]
      %v668 = vld [vmem:[%s6 + $0xb8] sm:$0xff]
      %v669 = vld [vmem:[%s6 + $0xc0] sm:$0xff]
      %v670 = vld [vmem:[%s6 + $0xc8] sm:$0xff]
      %v671 = vld [vmem:[%s6 + $0xd0] sm:$0xff]
      %v672 = vld [vmem:[%s6 + $0xd8] sm:$0xff]
      %v673 = vld [vmem:[%s6 + $0xe0] sm:$0xff]
      %v674 = vld [vmem:[%s6 + $0xe8] sm:$0xff]
      %v675 = vld [vmem:[%s6 + $0xf0] sm:$0xff]
      %v676 = vld [vmem:[%s6 + $0xf8] sm:$0xff]
      %v677 = vld [vmem:[%s6 + $0x100] sm:$0xff]
      %v678 = vld [vmem:[%s6 + $0x108] sm:$0xff]
      %v679 = vld [vmem:[%s6 + $0x110] sm:$0xff]
      %v680 = vld [vmem:[%s6 + $0x118] sm:$0xff]
      %v681 = vld [vmem:[%s6 + $0x120] sm:$0xff]
      %v682 = vld [vmem:[%s6 + $0x128] sm:$0xff]
      %v683 = vld [vmem:[%s6 + $0x130] sm:$0xff]
      %v684 = vld [vmem:[%s6 + $0x138] sm:$0xff]
      %v685 = vld [vmem:[%s6 + $0x140] sm:$0xff]
      %v686 = vld [vmem:[%s6 + $0x148] sm:$0xff]
      %v687 = vld [vmem:[%s6 + $0x150] sm:$0xff]
      %v688 = vld [vmem:[%s6 + $0x158] sm:$0xff]
      %v689 = vld [vmem:[%s6 + $0x160] sm:$0xff]
      %v690 = vld [vmem:[%s6 + $0x168] sm:$0xff]
      %v691 = vld [vmem:[%s6 + $0x170] sm:$0xff]
      %v692 = vld [vmem:[%s6 + $0x178] sm:$0xff]
      %v693 = vld [vmem:[%s6 + $0x180] sm:$0xff]
      %v694 = vld [vmem:[%s6 + $0x188] sm:$0xff]
      %v695 = vld [vmem:[%s6 + $0x190] sm:$0xff]
      %v696 = vld [vmem:[%s6 + $0x198] sm:$0xff]
      %v697 = vld [vmem:[%s6 + $0x1a0] sm:$0xff]
      %v698 = vld [vmem:[%s6 + $0x1a8] sm:$0xff]
      %v699 = vld [vmem:[%s6 + $0x1b0] sm:$0xff]
      %v700 = vld [vmem:[%s6 + $0x1b8] sm:$0xff]
      %v701 = vld [vmem:[%s6 + $0x1c0] sm:$0xff]
      %v702 = vld [vmem:[%s6 + $0x1c8] sm:$0xff]
      %v703 = vld [vmem:[%s6 + $0x1d0] sm:$0xff]
      %v704 = vld [vmem:[%s6 + $0x1d8] sm:$0xff]
      %v705 = vld [vmem:[%s6 + $0x1e0] sm:$0xff]
      %v706 = vld [vmem:[%s6 + $0x1e8] sm:$0xff]
      %v707 = vld [vmem:[%s6 + $0x1f0] sm:$0xff]
      %v708 = vld [vmem:[%s6 + $0x1f8] sm:$0xff]
      %v709 = vld [vmem:[%s7] sm:$0xff]
      %v711 = vlaneseq
      %v712 = vshrl.u32 %v711, 7
      %v713 = vsub.s32 0, %v712
      %v714 = vrot.slane %v709, %v713
      %v715 = vlaneseq
      %v716 = vshrl.u32 %v715, 7
      %v717 = vsub.s32 1, %v716
      %v718 = vrot.slane %v709, %v717
      %v719 = vlaneseq
      %v720 = vshrl.u32 %v719, 7
      %v721 = vsub.s32 2, %v720
      %v722 = vrot.slane %v709, %v721
      %v723 = vlaneseq
      %v724 = vshrl.u32 %v723, 7
      %v725 = vsub.s32 3, %v724
      %v726 = vrot.slane %v709, %v725
      %v727 = vlaneseq
      %v728 = vshrl.u32 %v727, 7
      %v729 = vsub.s32 4, %v728
      %v730 = vrot.slane %v709, %v729
      %v731 = vlaneseq
      %v732 = vshrl.u32 %v731, 7
      %v733 = vsub.s32 5, %v732
      %v734 = vrot.slane %v709, %v733
      %v735 = vlaneseq
      %v736 = vshrl.u32 %v735, 7
      %v737 = vsub.s32 6, %v736
      %v738 = vrot.slane %v709, %v737
      %v739 = vlaneseq
      %v740 = vshrl.u32 %v739, 7
      %v741 = vsub.s32 7, %v740
      %v742 = vrot.slane %v709, %v741
      %v815 = vunpack.c.l.b16 %v645
      %v816 = vunpack.c.h.b16 %v645
      %v817 = vunpack.c.l.b16 %v646
      %v818 = vunpack.c.h.b16 %v646
      %v819 = vunpack.c.l.b16 %v647
      %v820 = vunpack.c.h.b16 %v647
      %v821 = vunpack.c.l.b16 %v648
      %v822 = vunpack.c.h.b16 %v648
      %v823 = vunpack.c.l.b16 %v649
      %v824 = vunpack.c.h.b16 %v649
      %v825 = vunpack.c.l.b16 %v650
      %v826 = vunpack.c.h.b16 %v650
      %v827 = vunpack.c.l.b16 %v651
      %v828 = vunpack.c.h.b16 %v651
      %v829 = vunpack.c.l.b16 %v652
      %v830 = vunpack.c.h.b16 %v652
      %v831 = vunpack.c.l.b16 %v653
      %v832 = vunpack.c.h.b16 %v653
      %v833 = vunpack.c.l.b16 %v654
      %v834 = vunpack.c.h.b16 %v654
      %v835 = vunpack.c.l.b16 %v655
      %v836 = vunpack.c.h.b16 %v655
      %v837 = vunpack.c.l.b16 %v656
      %v838 = vunpack.c.h.b16 %v656
      %v839 = vunpack.c.l.b16 %v657
      %v840 = vunpack.c.h.b16 %v657
      %v841 = vunpack.c.l.b16 %v658
      %v842 = vunpack.c.h.b16 %v658
      %v843 = vunpack.c.l.b16 %v659
      %v844 = vunpack.c.h.b16 %v659
      %v845 = vunpack.c.l.b16 %v660
      %v846 = vunpack.c.h.b16 %v660
      %v847 = vunpack.c.l.b16 %v661
      %v848 = vunpack.c.h.b16 %v661
      %v849 = vunpack.c.l.b16 %v662
      %v850 = vunpack.c.h.b16 %v662
      %v851 = vunpack.c.l.b16 %v663
      %v852 = vunpack.c.h.b16 %v663
      %v853 = vunpack.c.l.b16 %v664
      %v854 = vunpack.c.h.b16 %v664
      %v855 = vunpack.c.l.b16 %v665
      %v856 = vunpack.c.h.b16 %v665
      %v857 = vunpack.c.l.b16 %v666
      %v858 = vunpack.c.h.b16 %v666
      %v859 = vunpack.c.l.b16 %v667
      %v860 = vunpack.c.h.b16 %v667
      %v861 = vunpack.c.l.b16 %v668
      %v862 = vunpack.c.h.b16 %v668
      %v863 = vunpack.c.l.b16 %v669
      %v864 = vunpack.c.h.b16 %v669
      %v865 = vunpack.c.l.b16 %v670
      %v866 = vunpack.c.h.b16 %v670
      %v867 = vunpack.c.l.b16 %v671
      %v868 = vunpack.c.h.b16 %v671
      %v869 = vunpack.c.l.b16 %v672
      %v870 = vunpack.c.h.b16 %v672
      %v871 = vunpack.c.l.b16 %v673
      %v872 = vunpack.c.h.b16 %v673
      %v873 = vunpack.c.l.b16 %v674
      %v874 = vunpack.c.h.b16 %v674
      %v875 = vunpack.c.l.b16 %v675
      %v876 = vunpack.c.h.b16 %v675
      %v877 = vunpack.c.l.b16 %v676
      %v878 = vunpack.c.h.b16 %v676
      %v879 = vunpack.c.l.b16 %v677
      %v880 = vunpack.c.h.b16 %v677
      %v881 = vunpack.c.l.b16 %v678
      %v882 = vunpack.c.h.b16 %v678
      %v883 = vunpack.c.l.b16 %v679
      %v884 = vunpack.c.h.b16 %v679
      %v885 = vunpack.c.l.b16 %v680
      %v886 = vunpack.c.h.b16 %v680
      %v887 = vunpack.c.l.b16 %v681
      %v888 = vunpack.c.h.b16 %v681
      %v889 = vunpack.c.l.b16 %v682
      %v890 = vunpack.c.h.b16 %v682
      %v891 = vunpack.c.l.b16 %v683
      %v892 = vunpack.c.h.b16 %v683
      %v893 = vunpack.c.l.b16 %v684
      %v894 = vunpack.c.h.b16 %v684
      %v895 = vunpack.c.l.b16 %v685
      %v896 = vunpack.c.h.b16 %v685
      %v897 = vunpack.c.l.b16 %v686
      %v898 = vunpack.c.h.b16 %v686
      %v899 = vunpack.c.l.b16 %v687
      %v900 = vunpack.c.h.b16 %v687
      %v901 = vunpack.c.l.b16 %v688
      %v902 = vunpack.c.h.b16 %v688
      %v903 = vunpack.c.l.b16 %v689
      %v904 = vunpack.c.h.b16 %v689
      %v905 = vunpack.c.l.b16 %v690
      %v906 = vunpack.c.h.b16 %v690
      %v907 = vunpack.c.l.b16 %v691
      %v908 = vunpack.c.h.b16 %v691
      %v909 = vunpack.c.l.b16 %v692
      %v910 = vunpack.c.h.b16 %v692
      %v911 = vunpack.c.l.b16 %v693
      %v912 = vunpack.c.h.b16 %v693
      %v913 = vunpack.c.l.b16 %v694
      %v914 = vunpack.c.h.b16 %v694
      %v915 = vunpack.c.l.b16 %v695
      %v916 = vunpack.c.h.b16 %v695
      %v917 = vunpack.c.l.b16 %v696
      %v918 = vunpack.c.h.b16 %v696
      %v919 = vunpack.c.l.b16 %v697
      %v920 = vunpack.c.h.b16 %v697
      %v921 = vunpack.c.l.b16 %v698
      %v922 = vunpack.c.h.b16 %v698
      %v923 = vunpack.c.l.b16 %v699
      %v924 = vunpack.c.h.b16 %v699
      %v925 = vunpack.c.l.b16 %v700
      %v926 = vunpack.c.h.b16 %v700
      %v927 = vunpack.c.l.b16 %v701
      %v928 = vunpack.c.h.b16 %v701
      %v929 = vunpack.c.l.b16 %v702
      %v930 = vunpack.c.h.b16 %v702
      %v931 = vunpack.c.l.b16 %v703
      %v932 = vunpack.c.h.b16 %v703
      %v933 = vunpack.c.l.b16 %v704
      %v934 = vunpack.c.h.b16 %v704
      %v935 = vunpack.c.l.b16 %v705
      %v936 = vunpack.c.h.b16 %v705
      %v937 = vunpack.c.l.b16 %v706
      %v938 = vunpack.c.h.b16 %v706
      %v939 = vunpack.c.l.b16 %v707
      %v940 = vunpack.c.h.b16 %v707
      %v941 = vunpack.c.l.b16 %v708
      %v942 = vunpack.c.h.b16 %v708
      %v943 = vpack.c.b16 %v823, %v815
      %v944 = vpack.c.b16 %v824, %v816
      %v945 = vpack.c.b16 %v825, %v817
      %v946 = vpack.c.b16 %v826, %v818
      %v947 = vpack.c.b16 %v827, %v819
      %v948 = vpack.c.b16 %v828, %v820
      %v949 = vpack.c.b16 %v829, %v821
      %v950 = vpack.c.b16 %v830, %v822
      %v951 = vpack.c.b16 %v839, %v831
      %v952 = vpack.c.b16 %v840, %v832
      %v953 = vpack.c.b16 %v841, %v833
      %v954 = vpack.c.b16 %v842, %v834
      %v955 = vpack.c.b16 %v843, %v835
      %v956 = vpack.c.b16 %v844, %v836
      %v957 = vpack.c.b16 %v845, %v837
      %v958 = vpack.c.b16 %v846, %v838
      %v959 = vpack.c.b16 %v855, %v847
      %v960 = vpack.c.b16 %v856, %v848
      %v961 = vpack.c.b16 %v857, %v849
      %v962 = vpack.c.b16 %v858, %v850
      %v963 = vpack.c.b16 %v859, %v851
      %v964 = vpack.c.b16 %v860, %v852
      %v965 = vpack.c.b16 %v861, %v853
      %v966 = vpack.c.b16 %v862, %v854
      %v967 = vpack.c.b16 %v871, %v863
      %v968 = vpack.c.b16 %v872, %v864
      %v969 = vpack.c.b16 %v873, %v865
      %v970 = vpack.c.b16 %v874, %v866
      %v971 = vpack.c.b16 %v875, %v867
      %v972 = vpack.c.b16 %v876, %v868
      %v973 = vpack.c.b16 %v877, %v869
      %v974 = vpack.c.b16 %v878, %v870
      %v975 = vpack.c.b16 %v887, %v879
      %v976 = vpack.c.b16 %v888, %v880
      %v977 = vpack.c.b16 %v889, %v881
      %v978 = vpack.c.b16 %v890, %v882
      %v979 = vpack.c.b16 %v891, %v883
      %v980 = vpack.c.b16 %v892, %v884
      %v981 = vpack.c.b16 %v893, %v885
      %v982 = vpack.c.b16 %v894, %v886
      %v983 = vpack.c.b16 %v903, %v895
      %v984 = vpack.c.b16 %v904, %v896
      %v985 = vpack.c.b16 %v905, %v897
      %v986 = vpack.c.b16 %v906, %v898
      %v987 = vpack.c.b16 %v907, %v899
      %v988 = vpack.c.b16 %v908, %v900
      %v989 = vpack.c.b16 %v909, %v901
      %v990 = vpack.c.b16 %v910, %v902
      %v991 = vpack.c.b16 %v919, %v911
      %v992 = vpack.c.b16 %v920, %v912
      %v993 = vpack.c.b16 %v921, %v913
      %v994 = vpack.c.b16 %v922, %v914
      %v995 = vpack.c.b16 %v923, %v915
      %v996 = vpack.c.b16 %v924, %v916
      %v997 = vpack.c.b16 %v925, %v917
      %v998 = vpack.c.b16 %v926, %v918
      %v999 = vpack.c.b16 %v935, %v927
      %v1000 = vpack.c.b16 %v936, %v928
      %v1001 = vpack.c.b16 %v937, %v929
      %v1002 = vpack.c.b16 %v938, %v930
      %v1003 = vpack.c.b16 %v939, %v931
      %v1004 = vpack.c.b16 %v940, %v932
      %v1005 = vpack.c.b16 %v941, %v933
      %v1006 = vpack.c.b16 %v942, %v934
      %1071 = vmatprep.subr.bf16.mxu0 %v944
      %1072 = vmatpush1.bf16.msra.mxu0 %v943
      %1073 = vmatprep.subr.bf16.mxu0 %v952
      %1074 = vmatpush1.bf16.msra.mxu0 %v951
      %1075 = vmatprep.subr.bf16.mxu0 %v960
      %1076 = vmatpush1.bf16.msra.mxu0 %v959
      %1077 = vmatprep.subr.bf16.mxu0 %v968
      %1078 = vmatpush1.bf16.msra.mxu0 %v967
      %1079 = vmatprep.subr.bf16.mxu0 %v976
      %1080 = vmatpush1.bf16.msra.mxu0 %v975
      %1081 = vmatprep.subr.bf16.mxu0 %v984
      %1082 = vmatpush1.bf16.msra.mxu0 %v983
      %1083 = vmatprep.subr.bf16.mxu0 %v992
      %1084 = vmatpush1.bf16.msra.mxu0 %v991
      %1085 = vmatprep.subr.bf16.mxu0 %v1000
      %1086 = vmatpush1.bf16.msra.mxu0 %v999
      %1087 = vmatprep.subr.bf16.mxu0 0
      %1088 = vmatpush1.bf16.msra.mxu0 0
      %1089 = vmatprep.subr.bf16.mxu0 0
      %1090 = vmatpush1.bf16.msra.mxu0 0
      %1091 = vmatprep.subr.bf16.mxu0 0
      %1092 = vmatpush1.bf16.msra.mxu0 0
      %1093 = vmatprep.subr.bf16.mxu0 0
      %1094 = vmatpush1.bf16.msra.mxu0 0
      %1095 = vmatprep.subr.bf16.mxu0 0
      %1096 = vmatpush1.bf16.msra.mxu0 0
      %1097 = vmatprep.subr.bf16.mxu0 0
      %1098 = vmatpush1.bf16.msra.mxu0 0
      %1099 = vmatprep.subr.bf16.mxu0 0
      %1100 = vmatpush1.bf16.msra.mxu0 0
      %1101 = vmatprep.subr.bf16.mxu0 0
      %1102 = vmatpush1.bf16.msra.mxu0 0
      %1103 = vmatprep.mubr.bf16.mxu0 0
      %1104 = vmatmul.mubr.bf16.gmra.mrb[0].mxu0 %v641
      %v1105 = vpop.f32.mrb[0].mxu0
      %v1106 = vadd.f32 %v714, %v1105
      %v1107 = vpop.f32.mrb[0].mxu0
      %v1108 = vadd.f32 %v718, %v1107
      %v1109 = vpop.f32.mrb[0].mxu0
      %v1110 = vadd.f32 %v714, %v1109
      %v1111 = vpop.f32.mrb[0].mxu0
      %v1112 = vadd.f32 %v718, %v1111
      %1113 = vmatprep.mubr.bf16.mxu0 0
      %1114 = vmatmul.mubr.bf16.gmra.mrb[0].mxu0 %v642
      %v1115 = vpop.f32.mrb[0].mxu0
      %v1116 = vadd.f32 %v714, %v1115
      %v1117 = vpop.f32.mrb[0].mxu0
      %v1118 = vadd.f32 %v718, %v1117
      %v1119 = vpop.f32.mrb[0].mxu0
      %v1120 = vadd.f32 %v714, %v1119
      %v1121 = vpop.f32.mrb[0].mxu0
      %v1122 = vadd.f32 %v718, %v1121
      %1123 = vmatprep.mubr.bf16.mxu0 0
      %1124 = vmatmul.mubr.bf16.gmra.mrb[0].mxu0 %v643
      %v1125 = vpop.f32.mrb[0].mxu0
      %v1126 = vadd.f32 %v714, %v1125
      %v1127 = vpop.f32.mrb[0].mxu0
      %v1128 = vadd.f32 %v718, %v1127
      %v1129 = vpop.f32.mrb[0].mxu0
      %v1130 = vadd.f32 %v714, %v1129
      %v1131 = vpop.f32.mrb[0].mxu0
      %v1132 = vadd.f32 %v718, %v1131
      %1133 = vmatprep.mubr.bf16.mxu0 0
      %1134 = vmatmul.mubr.bf16.gmra.mrb[0].mxu0 %v644
      %v1135 = vpop.f32.mrb[0].mxu0
      %v1136 = vadd.f32 %v714, %v1135
      %v1137 = vpop.f32.mrb[0].mxu0
      %v1138 = vadd.f32 %v718, %v1137
      %v1139 = vpop.f32.mrb[0].mxu0
      %v1140 = vadd.f32 %v714, %v1139
      %v1141 = vpop.f32.mrb[0].mxu0
      %v1142 = vadd.f32 %v718, %v1141
      %1143 = vdwg.mxu0
      %1144 = vmatprep.subr.bf16.mxu0 %v946
      %1145 = vmatpush1.bf16.msra.mxu0 %v945
      %1146 = vmatprep.subr.bf16.mxu0 %v954
      %1147 = vmatpush1.bf16.msra.mxu0 %v953
      %1148 = vmatprep.subr.bf16.mxu0 %v962
      %1149 = vmatpush1.bf16.msra.mxu0 %v961
      %1150 = vmatprep.subr.bf16.mxu0 %v970
      %1151 = vmatpush1.bf16.msra.mxu0 %v969
      %1152 = vmatprep.subr.bf16.mxu0 %v978
      %1153 = vmatpush1.bf16.msra.mxu0 %v977
      %1154 = vmatprep.subr.bf16.mxu0 %v986
      %1155 = vmatpush1.bf16.msra.mxu0 %v985
      %1156 = vmatprep.subr.bf16.mxu0 %v994
      %1157 = vmatpush1.bf16.msra.mxu0 %v993
      %1158 = vmatprep.subr.bf16.mxu0 %v1002
      %1159 = vmatpush1.bf16.msra.mxu0 %v1001
      %1160 = vmatprep.subr.bf16.mxu0 0
      %1161 = vmatpush1.bf16.msra.mxu0 0
      %1162 = vmatprep.subr.bf16.mxu0 0
      %1163 = vmatpush1.bf16.msra.mxu0 0
      %1164 = vmatprep.subr.bf16.mxu0 0
      %1165 = vmatpush1.bf16.msra.mxu0 0
      %1166 = vmatprep.subr.bf16.mxu0 0
      %1167 = vmatpush1.bf16.msra.mxu0 0
      %1168 = vmatprep.subr.bf16.mxu0 0
      %1169 = vmatpush1.bf16.msra.mxu0 0
      %1170 = vmatprep.subr.bf16.mxu0 0
      %1171 = vmatpush1.bf16.msra.mxu0 0
      %1172 = vmatprep.subr.bf16.mxu0 0
      %1173 = vmatpush1.bf16.msra.mxu0 0
      %1174 = vmatprep.subr.bf16.mxu0 0
      %1175 = vmatpush1.bf16.msra.mxu0 0
      %1176 = vmatprep.mubr.bf16.mxu0 0
      %1177 = vmatmul.mubr.bf16.gmra.mrb[0].mxu0 %v641
      %v1178 = vpop.f32.mrb[0].mxu0
      %v1179 = vadd.f32 %v722, %v1178
      %v1180 = vpop.f32.mrb[0].mxu0
      %v1181 = vadd.f32 %v726, %v1180
      %v1182 = vpop.f32.mrb[0].mxu0
      %v1183 = vadd.f32 %v722, %v1182
      %v1184 = vpop.f32.mrb[0].mxu0
      %v1185 = vadd.f32 %v726, %v1184
      %1186 = vmatprep.mubr.bf16.mxu0 0
      %1187 = vmatmul.mubr.bf16.gmra.mrb[0].mxu0 %v642
      %v1188 = vpop.f32.mrb[0].mxu0
      %v1189 = vadd.f32 %v722, %v1188
      %v1190 = vpop.f32.mrb[0].mxu0
      %v1191 = vadd.f32 %v726, %v1190
      %v1192 = vpop.f32.mrb[0].mxu0
      %v1193 = vadd.f32 %v722, %v1192
      %v1194 = vpop.f32.mrb[0].mxu0
      %v1195 = vadd.f32 %v726, %v1194
      %1196 = vmatprep.mubr.bf16.mxu0 0
      %1197 = vmatmul.mubr.bf16.gmra.mrb[0].mxu0 %v643
      %v1198 = vpop.f32.mrb[0].mxu0
      %v1199 = vadd.f32 %v722, %v1198
      %v1200 = vpop.f32.mrb[0].mxu0
      %v1201 = vadd.f32 %v726, %v1200
      %v1202 = vpop.f32.mrb[0].mxu0
      %v1203 = vadd.f32 %v722, %v1202
      %v1204 = vpop.f32.mrb[0].mxu0
      %v1205 = vadd.f32 %v726, %v1204
      %1206 = vmatprep.mubr.bf16.mxu0 0
      %1207 = vmatmul.mubr.bf16.gmra.mrb[0].mxu0 %v644
      %v1208 = vpop.f32.mrb[0].mxu0
      %v1209 = vadd.f32 %v722, %v1208
      %v1210 = vpop.f32.mrb[0].mxu0
      %v1211 = vadd.f32 %v726, %v1210
      %v1212 = vpop.f32.mrb[0].mxu0
      %v1213 = vadd.f32 %v722, %v1212
      %v1214 = vpop.f32.mrb[0].mxu0
      %v1215 = vadd.f32 %v726, %v1214
      %1216 = vdwg.mxu0
      %1217 = vmatprep.subr.bf16.mxu0 %v948
      %1218 = vmatpush1.bf16.msra.mxu0 %v947
      %1219 = vmatprep.subr.bf16.mxu0 %v956
      %1220 = vmatpush1.bf16.msra.mxu0 %v955
      %1221 = vmatprep.subr.bf16.mxu0 %v964
      %1222 = vmatpush1.bf16.msra.mxu0 %v963
      %1223 = vmatprep.subr.bf16.mxu0 %v972
      %1224 = vmatpush1.bf16.msra.mxu0 %v971
      %1225 = vmatprep.subr.bf16.mxu0 %v980
      %1226 = vmatpush1.bf16.msra.mxu0 %v979
      %1227 = vmatprep.subr.bf16.mxu0 %v988
      %1228 = vmatpush1.bf16.msra.mxu0 %v987
      %1229 = vmatprep.subr.bf16.mxu0 %v996
      %1230 = vmatpush1.bf16.msra.mxu0 %v995
      %1231 = vmatprep.subr.bf16.mxu0 %v1004
      %1232 = vmatpush1.bf16.msra.mxu0 %v1003
      %1233 = vmatprep.subr.bf16.mxu0 0
      %1234 = vmatpush1.bf16.msra.mxu0 0
      %1235 = vmatprep.subr.bf16.mxu0 0
      %1236 = vmatpush1.bf16.msra.mxu0 0
      %1237 = vmatprep.subr.bf16.mxu0 0
      %1238 = vmatpush1.bf16.msra.mxu0 0
      %1239 = vmatprep.subr.bf16.mxu0 0
      %1240 = vmatpush1.bf16.msra.mxu0 0
      %1241 = vmatprep.subr.bf16.mxu0 0
      %1242 = vmatpush1.bf16.msra.mxu0 0
      %1243 = vmatprep.subr.bf16.mxu0 0
      %1244 = vmatpush1.bf16.msra.mxu0 0
      %1245 = vmatprep.subr.bf16.mxu0 0
      %1246 = vmatpush1.bf16.msra.mxu0 0
      %1247 = vmatprep.subr.bf16.mxu0 0
      %1248 = vmatpush1.bf16.msra.mxu0 0
      %1249 = vmatprep.mubr.bf16.mxu0 0
      %1250 = vmatmul.mubr.bf16.gmra.mrb[0].mxu0 %v641
      %v1251 = vpop.f32.mrb[0].mxu0
      %v1252 = vadd.f32 %v730, %v1251
      %v1253 = vpop.f32.mrb[0].mxu0
      %v1254 = vadd.f32 %v734, %v1253
      %v1255 = vpop.f32.mrb[0].mxu0
      %v1256 = vadd.f32 %v730, %v1255
      %v1257 = vpop.f32.mrb[0].mxu0
      %v1258 = vadd.f32 %v734, %v1257
      %1259 = vmatprep.mubr.bf16.mxu0 0
      %1260 = vmatmul.mubr.bf16.gmra.mrb[0].mxu0 %v642
      %v1261 = vpop.f32.mrb[0].mxu0
      %v1262 = vadd.f32 %v730, %v1261
      %v1263 = vpop.f32.mrb[0].mxu0
      %v1264 = vadd.f32 %v734, %v1263
      %v1265 = vpop.f32.mrb[0].mxu0
      %v1266 = vadd.f32 %v730, %v1265
      %v1267 = vpop.f32.mrb[0].mxu0
      %v1268 = vadd.f32 %v734, %v1267
      %1269 = vmatprep.mubr.bf16.mxu0 0
      %1270 = vmatmul.mubr.bf16.gmra.mrb[0].mxu0 %v643
      %v1271 = vpop.f32.mrb[0].mxu0
      %v1272 = vadd.f32 %v730, %v1271
      %v1273 = vpop.f32.mrb[0].mxu0
      %v1274 = vadd.f32 %v734, %v1273
      %v1275 = vpop.f32.mrb[0].mxu0
      %v1276 = vadd.f32 %v730, %v1275
      %v1277 = vpop.f32.mrb[0].mxu0
      %v1278 = vadd.f32 %v734, %v1277
      %1279 = vmatprep.mubr.bf16.mxu0 0
      %1280 = vmatmul.mubr.bf16.gmra.mrb[0].mxu0 %v644
      %v1281 = vpop.f32.mrb[0].mxu0
      %v1282 = vadd.f32 %v730, %v1281
      %v1283 = vpop.f32.mrb[0].mxu0
      %v1284 = vadd.f32 %v734, %v1283
      %v1285 = vpop.f32.mrb[0].mxu0
      %v1286 = vadd.f32 %v730, %v1285
      %v1287 = vpop.f32.mrb[0].mxu0
      %v1288 = vadd.f32 %v734, %v1287
      %1289 = vdwg.mxu0
      %1290 = vmatprep.subr.bf16.mxu0 %v950
      %1291 = vmatpush1.bf16.msra.mxu0 %v949
      %1292 = vmatprep.subr.bf16.mxu0 %v958
      %1293 = vmatpush1.bf16.msra.mxu0 %v957
      %1294 = vmatprep.subr.bf16.mxu0 %v966
      %1295 = vmatpush1.bf16.msra.mxu0 %v965
      %1296 = vmatprep.subr.bf16.mxu0 %v974
      %1297 = vmatpush1.bf16.msra.mxu0 %v973
      %1298 = vmatprep.subr.bf16.mxu0 %v982
      %1299 = vmatpush1.bf16.msra.mxu0 %v981
      %1300 = vmatprep.subr.bf16.mxu0 %v990
      %1301 = vmatpush1.bf16.msra.mxu0 %v989
      %1302 = vmatprep.subr.bf16.mxu0 %v998
      %1303 = vmatpush1.bf16.msra.mxu0 %v997
      %1304 = vmatprep.subr.bf16.mxu0 %v1006
      %1305 = vmatpush1.bf16.msra.mxu0 %v1005
      %1306 = vmatprep.subr.bf16.mxu0 0
      %1307 = vmatpush1.bf16.msra.mxu0 0
      %1308 = vmatprep.subr.bf16.mxu0 0
      %1309 = vmatpush1.bf16.msra.mxu0 0
      %1310 = vmatprep.subr.bf16.mxu0 0
      %1311 = vmatpush1.bf16.msra.mxu0 0
      %1312 = vmatprep.subr.bf16.mxu0 0
      %1313 = vmatpush1.bf16.msra.mxu0 0
      %1314 = vmatprep.subr.bf16.mxu0 0
      %1315 = vmatpush1.bf16.msra.mxu0 0
      %1316 = vmatprep.subr.bf16.mxu0 0
      %1317 = vmatpush1.bf16.msra.mxu0 0
      %1318 = vmatprep.subr.bf16.mxu0 0
      %1319 = vmatpush1.bf16.msra.mxu0 0
      %1320 = vmatprep.subr.bf16.mxu0 0
      %1321 = vmatpush1.bf16.msra.mxu0 0
      %1322 = vmatprep.mubr.bf16.mxu0 0
      %1323 = vmatmul.mubr.bf16.gmra.mrb[0].mxu0 %v641
      %v1324 = vpop.f32.mrb[0].mxu0
      %v1325 = vadd.f32 %v738, %v1324
      %v1326 = vpop.f32.mrb[0].mxu0
      %v1327 = vadd.f32 %v742, %v1326
      %v1328 = vpop.f32.mrb[0].mxu0
      %v1329 = vadd.f32 %v738, %v1328
      %v1330 = vpop.f32.mrb[0].mxu0
      %v1331 = vadd.f32 %v742, %v1330
      %1332 = vmatprep.mubr.bf16.mxu0 0
      %1333 = vmatmul.mubr.bf16.gmra.mrb[0].mxu0 %v642
      %v1334 = vpop.f32.mrb[0].mxu0
      %v1335 = vadd.f32 %v738, %v1334
      %v1336 = vpop.f32.mrb[0].mxu0
      %v1337 = vadd.f32 %v742, %v1336
      %v1338 = vpop.f32.mrb[0].mxu0
      %v1339 = vadd.f32 %v738, %v1338
      %v1340 = vpop.f32.mrb[0].mxu0
      %v1341 = vadd.f32 %v742, %v1340
      %1342 = vmatprep.mubr.bf16.mxu0 0
      %1343 = vmatmul.mubr.bf16.gmra.mrb[0].mxu0 %v643
      %v1344 = vpop.f32.mrb[0].mxu0
      %v1345 = vadd.f32 %v738, %v1344
      %v1346 = vpop.f32.mrb[0].mxu0
      %v1347 = vadd.f32 %v742, %v1346
      %v1348 = vpop.f32.mrb[0].mxu0
      %v1349 = vadd.f32 %v738, %v1348
      %v1350 = vpop.f32.mrb[0].mxu0
      %v1351 = vadd.f32 %v742, %v1350
      %1352 = vmatprep.mubr.bf16.mxu0 0
      %1353 = vmatmul.mubr.bf16.gmra.mrb[0].mxu0 %v644
      %v1354 = vpop.f32.mrb[0].mxu0
      %v1355 = vadd.f32 %v738, %v1354
      %v1356 = vpop.f32.mrb[0].mxu0
      %v1357 = vadd.f32 %v742, %v1356
      %v1358 = vpop.f32.mrb[0].mxu0
      %v1359 = vadd.f32 %v738, %v1358
      %v1360 = vpop.f32.mrb[0].mxu0
      %v1361 = vadd.f32 %v742, %v1360
      %1362 = vdwg.mxu0
      %v1363 = vmax.f32 %v1106, %v1110
      %v1364 = vmax.f32 %v1363, %v1116
      %v1365 = vmax.f32 %v1364, %v1120
      %v1366 = vmax.f32 %v1365, %v1126
      %v1367 = vmax.f32 %v1366, %v1130
      %v1368 = vmax.f32 %v1367, %v1136
      %v1369 = vmax.f32 %v1368, %v1140
      %v1370 = vrot.slane %v1369, 4
      %v1371 = vmax.f32 %v1369, %v1370
      %v1372 = vrot.slane %v1371, 2
      %v1373 = vmax.f32 %v1371, %v1372
      %v1374 = vrot.slane %v1373, 1
      %v1375 = vmax.f32 %v1373, %v1374
      %v1376 = vmax.f32 %v1108, %v1112
      %v1377 = vmax.f32 %v1376, %v1118
      %v1378 = vmax.f32 %v1377, %v1122
      %v1379 = vmax.f32 %v1378, %v1128
      %v1380 = vmax.f32 %v1379, %v1132
      %v1381 = vmax.f32 %v1380, %v1138
      %v1382 = vmax.f32 %v1381, %v1142
      %v1383 = vrot.slane %v1382, 4
      %v1384 = vmax.f32 %v1382, %v1383
      %v1385 = vrot.slane %v1384, 2
      %v1386 = vmax.f32 %v1384, %v1385
      %v1387 = vrot.slane %v1386, 1
      %v1388 = vmax.f32 %v1386, %v1387
      %v1389 = vmax.f32 %v1179, %v1183
      %v1390 = vmax.f32 %v1389, %v1189
      %v1391 = vmax.f32 %v1390, %v1193
      %v1392 = vmax.f32 %v1391, %v1199
      %v1393 = vmax.f32 %v1392, %v1203
      %v1394 = vmax.f32 %v1393, %v1209
      %v1395 = vmax.f32 %v1394, %v1213
      %v1396 = vrot.slane %v1395, 4
      %v1397 = vmax.f32 %v1395, %v1396
      %v1398 = vrot.slane %v1397, 2
      %v1399 = vmax.f32 %v1397, %v1398
      %v1400 = vrot.slane %v1399, 1
      %v1401 = vmax.f32 %v1399, %v1400
      %v1402 = vmax.f32 %v1181, %v1185
      %v1403 = vmax.f32 %v1402, %v1191
      %v1404 = vmax.f32 %v1403, %v1195
      %v1405 = vmax.f32 %v1404, %v1201
      %v1406 = vmax.f32 %v1405, %v1205
      %v1407 = vmax.f32 %v1406, %v1211
      %v1408 = vmax.f32 %v1407, %v1215
      %v1409 = vrot.slane %v1408, 4
      %v1410 = vmax.f32 %v1408, %v1409
      %v1411 = vrot.slane %v1410, 2
      %v1412 = vmax.f32 %v1410, %v1411
      %v1413 = vrot.slane %v1412, 1
      %v1414 = vmax.f32 %v1412, %v1413
      %v1415 = vmax.f32 %v1252, %v1256
      %v1416 = vmax.f32 %v1415, %v1262
      %v1417 = vmax.f32 %v1416, %v1266
      %v1418 = vmax.f32 %v1417, %v1272
      %v1419 = vmax.f32 %v1418, %v1276
      %v1420 = vmax.f32 %v1419, %v1282
      %v1421 = vmax.f32 %v1420, %v1286
      %v1422 = vrot.slane %v1421, 4
      %v1423 = vmax.f32 %v1421, %v1422
      %v1424 = vrot.slane %v1423, 2
      %v1425 = vmax.f32 %v1423, %v1424
      %v1426 = vrot.slane %v1425, 1
      %v1427 = vmax.f32 %v1425, %v1426
      %v1428 = vmax.f32 %v1254, %v1258
      %v1429 = vmax.f32 %v1428, %v1264
      %v1430 = vmax.f32 %v1429, %v1268
      %v1431 = vmax.f32 %v1430, %v1274
      %v1432 = vmax.f32 %v1431, %v1278
      %v1433 = vmax.f32 %v1432, %v1284
      %v1434 = vmax.f32 %v1433, %v1288
      %v1435 = vrot.slane %v1434, 4
      %v1436 = vmax.f32 %v1434, %v1435
      %v1437 = vrot.slane %v1436, 2
      %v1438 = vmax.f32 %v1436, %v1437
      %v1439 = vrot.slane %v1438, 1
      %v1440 = vmax.f32 %v1438, %v1439
      %v1441 = vmax.f32 %v1325, %v1329
      %v1442 = vmax.f32 %v1441, %v1335
      %v1443 = vmax.f32 %v1442, %v1339
      %v1444 = vmax.f32 %v1443, %v1345
      %v1445 = vmax.f32 %v1444, %v1349
      %v1446 = vmax.f32 %v1445, %v1355
      %v1447 = vmax.f32 %v1446, %v1359
      %v1448 = vrot.slane %v1447, 4
      %v1449 = vmax.f32 %v1447, %v1448
      %v1450 = vrot.slane %v1449, 2
      %v1451 = vmax.f32 %v1449, %v1450
      %v1452 = vrot.slane %v1451, 1
      %v1453 = vmax.f32 %v1451, %v1452
      %v1454 = vmax.f32 %v1327, %v1331
      %v1455 = vmax.f32 %v1454, %v1337
      %v1456 = vmax.f32 %v1455, %v1341
      %v1457 = vmax.f32 %v1456, %v1347
      %v1458 = vmax.f32 %v1457, %v1351
      %v1459 = vmax.f32 %v1458, %v1357
      %v1460 = vmax.f32 %v1459, %v1361
      %v1461 = vrot.slane %v1460, 4
      %v1462 = vmax.f32 %v1460, %v1461
      %v1463 = vrot.slane %v1462, 2
      %v1464 = vmax.f32 %v1462, %v1463
      %v1465 = vrot.slane %v1464, 1
      %v1466 = vmax.f32 %v1464, %v1465
      %p1467 = scmp.eq.s32.totalorder %s24, 0
      // Predicated region
      $region53: #{pointnet_cls_forward.6} parent=51 // pred_check
        %p1468 = pneg %p1467
      $region54: #{pointnet_cls_forward.6} parent=51 // pred_check_branch
        %1470 = sbr.rel (%p1468) target = $region56
      $region55: #{pointnet_cls_forward.6} parent=51 // pred_region
        %v1479 = vcombine.low %v1375, %v1388
        %v1480 = vcombine.low %v1401, %v1414
        %v1481 = vcombine.low %v1427, %v1440
        %v1482 = vcombine.low %v1453, %v1466
        %v1484 = vunpack.c.l.s4 1966171168
        %v1485 = vunpack.c.0.s8 %v1484
        %v1486 = vlaneseq
        %v1487 = vshrl.u32 %v1486, 7
        %v1488 = vsub.s32 %v1485, %v1487
        %v1489 = vrot.slane %v1479, %v1488
        %v1491 = vunpack.c.l.s4 1966171168
        %v1492 = vunpack.c.0.s8 %v1491
        %v1493 = vlaneseq
        %v1494 = vshrl.u32 %v1493, 7
        %v1495 = vsub.s32 %v1492, %v1494
        %v1496 = vrot.slane %v1480, %v1495
        %v1498 = vunpack.c.l.s4 1966171168
        %v1499 = vunpack.c.0.s8 %v1498
        %v1500 = vlaneseq
        %v1501 = vshrl.u32 %v1500, 7
        %v1502 = vsub.s32 %v1499, %v1501
        %v1503 = vrot.slane %v1481, %v1502
        %v1505 = vunpack.c.l.s4 1966171168
        %v1506 = vunpack.c.0.s8 %v1505
        %v1507 = vlaneseq
        %v1508 = vshrl.u32 %v1507, 7
        %v1509 = vsub.s32 %v1506, %v1508
        %v1510 = vrot.slane %v1482, %v1509
        %v1511 = vcombine.low %v1489, %v1496
        %v1512 = vcombine.low %v1503, %v1510
        %v1514 = vunpack.c.l.s4 1966171168
        %v1515 = vunpack.c.0.s8 %v1514
        %v1516 = vlaneseq
        %v1517 = vshrl.u32 %v1516, 7
        %v1518 = vsub.s32 %v1515, %v1517
        %v1519 = vrot.slane %v1511, %v1518
        %v1521 = vunpack.c.l.s4 1966171168
        %v1522 = vunpack.c.0.s8 %v1521
        %v1523 = vlaneseq
        %v1524 = vshrl.u32 %v1523, 7
        %v1525 = vsub.s32 %v1522, %v1524
        %v1526 = vrot.slane %v1512, %v1525
        %v1527 = vcombine.low %v1519, %v1526
        %1529 = vst [vmem:[#allocation2] sm:$0xff] %v1527
      $region56: #{pointnet_cls_forward.6} parent=51 // pred_fallthru
        _
      %p1530 = scmp.ne.s32.totalorder %s24, 0
      // Predicated region
      $region57: #{pointnet_cls_forward.6} parent=51 // pred_check
        %p1531 = pneg %p1530
      $region58: #{pointnet_cls_forward.6} parent=51 // pred_check_branch
        %1533 = sbr.rel (%p1531) target = $region60
      $region59: #{pointnet_cls_forward.6} parent=51 // pred_region
        %v1534 = vld [vmem:[#allocation2] sm:$0xff]
        %v1543 = vcombine.low %v1375, %v1388
        %v1544 = vcombine.low %v1401, %v1414
        %v1545 = vcombine.low %v1427, %v1440
        %v1546 = vcombine.low %v1453, %v1466
        %v1548 = vunpack.c.l.s4 1966171168
        %v1549 = vunpack.c.0.s8 %v1548
        %v1550 = vlaneseq
        %v1551 = vshrl.u32 %v1550, 7
        %v1552 = vsub.s32 %v1549, %v1551
        %v1553 = vrot.slane %v1543, %v1552
        %v1555 = vunpack.c.l.s4 1966171168
        %v1556 = vunpack.c.0.s8 %v1555
        %v1557 = vlaneseq
        %v1558 = vshrl.u32 %v1557, 7
        %v1559 = vsub.s32 %v1556, %v1558
        %v1560 = vrot.slane %v1544, %v1559
        %v1562 = vunpack.c.l.s4 1966171168
        %v1563 = vunpack.c.0.s8 %v1562
        %v1564 = vlaneseq
        %v1565 = vshrl.u32 %v1564, 7
        %v1566 = vsub.s32 %v1563, %v1565
        %v1567 = vrot.slane %v1545, %v1566
        %v1569 = vunpack.c.l.s4 1966171168
        %v1570 = vunpack.c.0.s8 %v1569
        %v1571 = vlaneseq
        %v1572 = vshrl.u32 %v1571, 7
        %v1573 = vsub.s32 %v1570, %v1572
        %v1574 = vrot.slane %v1546, %v1573
        %v1575 = vcombine.low %v1553, %v1560
        %v1576 = vcombine.low %v1567, %v1574
        %v1578 = vunpack.c.l.s4 1966171168
        %v1579 = vunpack.c.0.s8 %v1578
        %v1580 = vlaneseq
        %v1581 = vshrl.u32 %v1580, 7
        %v1582 = vsub.s32 %v1579, %v1581
        %v1583 = vrot.slane %v1575, %v1582
        %v1585 = vunpack.c.l.s4 1966171168
        %v1586 = vunpack.c.0.s8 %v1585
        %v1587 = vlaneseq
        %v1588 = vshrl.u32 %v1587, 7
        %v1589 = vsub.s32 %v1586, %v1588
        %v1590 = vrot.slane %v1576, %v1589
        %v1591 = vcombine.low %v1583, %v1590
        %v1593 = vmax.f32 %v1534, %v1591
        %1594 = vst [vmem:[#allocation2] sm:$0xff] %v1593
      $region60: #{pointnet_cls_forward.6} parent=51 // pred_fallthru
        _
      // Predicated region
      $region61: #{pointnet_cls_forward.6} parent=51 // pred_check
        %p1595 = pneg %p1467
      $region62: #{pointnet_cls_forward.6} parent=51 // pred_check_branch
        %1597 = sbr.rel (%p1595) target = $region64
      $region63: #{pointnet_cls_forward.6} parent=51 // pred_region
        %v1598 = vld [vmem:[#allocation2] sm:$0xff]
        %1599 = vst [vmem:[%s348] sm:$0xff] %v1598
      $region64: #{pointnet_cls_forward.6} parent=51 // pred_fallthru
        _
      %p1600 = scmp.lt.s32.totalorder %s23, 1
      %s1601 = scalar_select %p1600, %s23, 1
      %s1602 = smul.addr %s1601, 8
      %s1603 = scalar_lea.vmem %s8, %s1602
      // Predicated region
      $region65: #{pointnet_cls_forward.6} parent=51 // pred_check
        %p1604 = pneg %p229
      $region66: #{pointnet_cls_forward.6} parent=51 // pred_check_branch
        %1606 = sbr.rel (%p1604) target = $region68
      $region67: #{pointnet_cls_forward.6} parent=51 // pred_region
        _
      $region68: #{pointnet_cls_forward.6} parent=51 // pred_fallthru
        _
    $region52: #{pointnet_cls_forward.6} parent=5 // pred_fallthru
      _
    %p1607 = scmp.le.s32.totalorder 2, %s14
    // Predicated region
    $region69: #{pointnet_cls_forward.6} parent=5 // pred_check
      %p1608 = pneg %p1607
    $region70: #{pointnet_cls_forward.6} parent=5 // pred_check_branch
      %1610 = sbr.rel (%p1608) target = $region72
    $region71: #{pointnet_cls_forward.6} parent=5 // pred_region
      %s1611 = ssub.s32 %s14, 2
      // Predicated region
      $region73: #{pointnet_cls_forward.6} parent=71 // pred_check
        %p1612 = pneg %p235
      $region74: #{pointnet_cls_forward.6} parent=71 // pred_check_branch
        %1614 = sbr.rel (%p1612) target = $region76
      $region75: #{pointnet_cls_forward.6} parent=71 // pred_region
        %p1615 = scmp.lt.s32.totalorder %s25, 1
        %s1616 = scalar_select %p1615, %s25, 1
        %s1617 = smul.addr %s1616, 8
        %s1618 = scalar_lea.vmem %s8, %s1617
      $region76: #{pointnet_cls_forward.6} parent=71 // pred_fallthru
        _
    $region72: #{pointnet_cls_forward.6} parent=5 // pred_fallthru
      _
  $region6: #{pointnet_cls_forward.6} parent=0 // loop_footer
    %s18 = sadd.s32 1, %s14
  $region7: #{pointnet_cls_forward.6} parent=0 // loop_footer_branch
    %13 = sbr.rel target = $region3
  $region8: #{pointnet_cls_forward.6} parent=0 // loop_exit
    _

// kernel: pointnet_cls_forward.4
$region0: #{pointnet_cls_forward.4}
  #allocation0 [shape = 'u32[]', space=smem, size = 0x4, offset = 0x4, fixed_abs, tag = 'smem constant byte address 0x4 - core index']
  #allocation1 [shape = 'u32[144,128]{1,0:T(1,128)}', space=vmem, size = 0x12000, scoped, tag = 'internal scratch']
  #allocation2 [shape = 'f32[1,1024]{1,0:T(1,128)}', space=vmem, size = 0x1000, scoped, tag = 'scratch operand']
  %s0 = inlined_call_operand.vmem [shape: f32[2,64,3], index: 0, kind: input, shape index: {}]
  %s1 = inlined_call_operand.vmem [shape: f32[2,3,3], index: 1, kind: input, shape index: {}]
  %s2 = inlined_call_operand.vmem [shape: bf16[3,64], index: 2, kind: input, shape index: {}]
  %s3 = inlined_call_operand.vmem [shape: f32[1,64], index: 3, kind: input, shape index: {}]
  %s4 = inlined_call_operand.vmem [shape: bf16[64,128], index: 4, kind: input, shape index: {}]
  %s5 = inlined_call_operand.vmem [shape: f32[1,128], index: 5, kind: input, shape index: {}]
  %s6 = inlined_call_operand.hbm [shape: bf16[128,1024], index: 6, kind: input, shape index: {}]
  %s7 = inlined_call_operand.vmem [shape: f32[1,1024], index: 7, kind: input, shape index: {}]
  %s8 = inlined_call_operand.vmem [shape: f32[2,1,1024], index: 8, kind: output, shape index: {}]
  %s9 = sld [smem:[#allocation0]]
  $region81: #{pointnet_cls_forward.4} parent=0
    _
  %s11 = ssub.s32 1, %s9
  %s12 = scalar_select 0, %s11, %s9
  $region1: #{pointnet_cls_forward.4} parent=0
    #allocation3 [shape = 'u8[262144]{0}', space=vmem, size = 0x40000, scoped, tag = 'input window, operand 6, single buffered']
    #allocation4 [shape = 's32[2]{0}', space=sflag, size = 0x8, scoped, tag = 'scoped memory for pointnet_cls_forward.4']
    %13 = vsyncpa [#allocation4], 0
    loop: start=0, step=1, limit=4
    $region2: #{pointnet_cls_forward.4} parent=1 // loop_pre_header
      _
    $region3: #{pointnet_cls_forward.4} parent=1 // loop_header
      %s15 = sphi 0, %s19
      %p16 = scmp.ge.s32.totalorder %s15, 4
      %s22 = sphi 0, %s34
      %s23 = sphi 0, %s30
      %s24 = sphi 0, %s22
      %s25 = sphi 0, %s23
      %s26 = sphi 0, %s24
      %s27 = sphi 0, %s25
      %s39 = sphi 0, %s41
      %s42 = sphi 0, %s39
      %s43 = sphi 0, %s42
      %s59 = sphi 0, %s43
      %s65 = sphi 0, %s67
      %s68 = sphi 0, %s65
      %s69 = sphi 0, %s68
      %s85 = sphi 0, %s69
      %s89 = sphi 0, %s89
      %s91 = sphi 0, %s89
      %s92 = sphi 0, %s91
      %s106 = sphi 0, %s92
      %s110 = sphi 0, %s110
      %s112 = sphi 0, %s110
      %s113 = sphi 0, %s112
      %s127 = sphi 0, %s113
      %s131 = sphi 0, %s131
      %s133 = sphi 0, %s131
      %s134 = sphi 0, %s133
      %s148 = sphi 0, %s134
      %s152 = sphi 0, %s152
      %s154 = sphi 0, %s152
      %s155 = sphi 0, %s154
      %s169 = sphi 0, %s155
      %s173 = sphi 0, %s173
      %s175 = sphi 0, %s173
      %s176 = sphi 0, %s175
      %s190 = sphi 0, %s176
      %s194 = sphi 0, %s194
      %s196 = sphi 0, %s194
      %s197 = sphi 0, %s196
      %s211 = sphi 0, %s197
      %s217 = sphi 0, %s219
      %s220 = sphi 0, %s217
      %s221 = sphi 0, %s220
      %s237 = sphi 0, %s221
    $region4: #{pointnet_cls_forward.4} parent=1 // loop_header_branch
      %18 = sbr.rel (%p16) target = $region8
    $region5: #{pointnet_cls_forward.4} parent=1 // loop_body
      %s20 = ssub.s32 %s15, 1
      %s21 = ssub.s32 %s15, 2
      %s28 = sadd.s32 1, %s23
      %p29 = scmp.ge.s32.totalorder %s28, 1
      %s30 = scalar_select %p29, 0, %s28
      %s31 = sadd.s32 1, %s22
      %s32 = scalar_select %p29, %s31, %s22
      %p33 = scmp.ge.s32.totalorder %s32, 2
      %s34 = scalar_select %p33, 0, %s32
      %s35 = ssub.s32 %s22, %s34
      %s36 = ssub.s32 %s23, %s30
      %s37 = sor.u32 %s35, %s36
      %p38 = scmp.eq.s32.totalorder %s37, 0
      %s40 = sadd.s32 %s39, 1
      %s41 = scalar_select %p38, %s39, %s40
      %p44 = pneg %p38
      %p45 = scmp.eq.s32.totalorder %s15, 1
      %p46 = por %p44, %p45
      %p47 = scmp.ne.s32.totalorder %s39, %s42
      %p48 = scmp.eq.s32.totalorder %s15, 0
      %p49 = por %p47, %p48
      %p50 = scmp.ne.s32.totalorder %s39, %s42
      %p51 = scmp.eq.s32.totalorder %s20, 1
      %p52 = por %p50, %p51
      %p53 = scmp.ne.s32.totalorder %s42, %s43
      %p54 = scmp.eq.s32.totalorder %s20, 0
      %p55 = por %p53, %p54
      %p56 = scmp.ne.s32.totalorder %s42, %s43
      %p57 = scmp.eq.s32.totalorder %s21, 1
      %p58 = por %p56, %p57
      %p60 = scmp.ne.s32.totalorder %s43, %s59
      %p61 = scmp.eq.s32.totalorder %s21, 0
      %p62 = por %p60, %p61
      %s63 = ssub.s32 %s22, %s34
      %p64 = scmp.eq.s32.totalorder %s63, 0
      %s66 = sadd.s32 %s65, 1
      %s67 = scalar_select %p64, %s65, %s66
      %p70 = pneg %p64
      %p71 = scmp.eq.s32.totalorder %s15, 1
      %p72 = por %p70, %p71
      %p73 = scmp.ne.s32.totalorder %s65, %s68
      %p74 = scmp.eq.s32.totalorder %s15, 0
      %p75 = por %p73, %p74
      %p76 = scmp.ne.s32.totalorder %s65, %s68
      %p77 = scmp.eq.s32.totalorder %s20, 1
      %p78 = por %p76, %p77
      %p79 = scmp.ne.s32.totalorder %s68, %s69
      %p80 = scmp.eq.s32.totalorder %s20, 0
      %p81 = por %p79, %p80
      %p82 = scmp.ne.s32.totalorder %s68, %s69
      %p83 = scmp.eq.s32.totalorder %s21, 1
      %p84 = por %p82, %p83
      %p86 = scmp.ne.s32.totalorder %s69, %s85
      %p87 = scmp.eq.s32.totalorder %s21, 0
      %p88 = por %p86, %p87
      %s90 = sadd.s32 %s89, 1
      %p93 = scmp.eq.s32.totalorder %s15, 1
      %p94 = scmp.ne.s32.totalorder %s89, %s91
      %p95 = scmp.eq.s32.totalorder %s15, 0
      %p96 = por %p94, %p95
      %p97 = scmp.ne.s32.totalorder %s89, %s91
      %p98 = scmp.eq.s32.totalorder %s20, 1
      %p99 = por %p97, %p98
      %p100 = scmp.ne.s32.totalorder %s91, %s92
      %p101 = scmp.eq.s32.totalorder %s20, 0
      %p102 = por %p100, %p101
      %p103 = scmp.ne.s32.totalorder %s91, %s92
      %p104 = scmp.eq.s32.totalorder %s21, 1
      %p105 = por %p103, %p104
      %p107 = scmp.ne.s32.totalorder %s92, %s106
      %p108 = scmp.eq.s32.totalorder %s21, 0
      %p109 = por %p107, %p108
      %s111 = sadd.s32 %s110, 1
      %p114 = scmp.eq.s32.totalorder %s15, 1
      %p115 = scmp.ne.s32.totalorder %s110, %s112
      %p116 = scmp.eq.s32.totalorder %s15, 0
      %p117 = por %p115, %p116
      %p118 = scmp.ne.s32.totalorder %s110, %s112
      %p119 = scmp.eq.s32.totalorder %s20, 1
      %p120 = por %p118, %p119
      %p121 = scmp.ne.s32.totalorder %s112, %s113
      %p122 = scmp.eq.s32.totalorder %s20, 0
      %p123 = por %p121, %p122
      %p124 = scmp.ne.s32.totalorder %s112, %s113
      %p125 = scmp.eq.s32.totalorder %s21, 1
      %p126 = por %p124, %p125
      %p128 = scmp.ne.s32.totalorder %s113, %s127
      %p129 = scmp.eq.s32.totalorder %s21, 0
      %p130 = por %p128, %p129
      %s132 = sadd.s32 %s131, 1
      %p135 = scmp.eq.s32.totalorder %s15, 1
      %p136 = scmp.ne.s32.totalorder %s131, %s133
      %p137 = scmp.eq.s32.totalorder %s15, 0
      %p138 = por %p136, %p137
      %p139 = scmp.ne.s32.totalorder %s131, %s133
      %p140 = scmp.eq.s32.totalorder %s20, 1
      %p141 = por %p139, %p140
      %p142 = scmp.ne.s32.totalorder %s133, %s134
      %p143 = scmp.eq.s32.totalorder %s20, 0
      %p144 = por %p142, %p143
      %p145 = scmp.ne.s32.totalorder %s133, %s134
      %p146 = scmp.eq.s32.totalorder %s21, 1
      %p147 = por %p145, %p146
      %p149 = scmp.ne.s32.totalorder %s134, %s148
      %p150 = scmp.eq.s32.totalorder %s21, 0
      %p151 = por %p149, %p150
      %s153 = sadd.s32 %s152, 1
      %p156 = scmp.eq.s32.totalorder %s15, 1
      %p157 = scmp.ne.s32.totalorder %s152, %s154
      %p158 = scmp.eq.s32.totalorder %s15, 0
      %p159 = por %p157, %p158
      %p160 = scmp.ne.s32.totalorder %s152, %s154
      %p161 = scmp.eq.s32.totalorder %s20, 1
      %p162 = por %p160, %p161
      %p163 = scmp.ne.s32.totalorder %s154, %s155
      %p164 = scmp.eq.s32.totalorder %s20, 0
      %p165 = por %p163, %p164
      %p166 = scmp.ne.s32.totalorder %s154, %s155
      %p167 = scmp.eq.s32.totalorder %s21, 1
      %p168 = por %p166, %p167
      %p170 = scmp.ne.s32.totalorder %s155, %s169
      %p171 = scmp.eq.s32.totalorder %s21, 0
      %p172 = por %p170, %p171
      %s174 = sadd.s32 %s173, 1
      %p177 = scmp.eq.s32.totalorder %s15, 1
      %p178 = scmp.ne.s32.totalorder %s173, %s175
      %p179 = scmp.eq.s32.totalorder %s15, 0
      %p180 = por %p178, %p179
      %p181 = scmp.ne.s32.totalorder %s173, %s175
      %p182 = scmp.eq.s32.totalorder %s20, 1
      %p183 = por %p181, %p182
      %p184 = scmp.ne.s32.totalorder %s175, %s176
      %p185 = scmp.eq.s32.totalorder %s20, 0
      %p186 = por %p184, %p185
      %p187 = scmp.ne.s32.totalorder %s175, %s176
      %p188 = scmp.eq.s32.totalorder %s21, 1
      %p189 = por %p187, %p188
      %p191 = scmp.ne.s32.totalorder %s176, %s190
      %p192 = scmp.eq.s32.totalorder %s21, 0
      %p193 = por %p191, %p192
      %s195 = sadd.s32 %s194, 1
      %p198 = scmp.eq.s32.totalorder %s15, 1
      %p199 = scmp.ne.s32.totalorder %s194, %s196
      %p200 = scmp.eq.s32.totalorder %s15, 0
      %p201 = por %p199, %p200
      %p202 = scmp.ne.s32.totalorder %s194, %s196
      %p203 = scmp.eq.s32.totalorder %s20, 1
      %p204 = por %p202, %p203
      %p205 = scmp.ne.s32.totalorder %s196, %s197
      %p206 = scmp.eq.s32.totalorder %s20, 0
      %p207 = por %p205, %p206
      %p208 = scmp.ne.s32.totalorder %s196, %s197
      %p209 = scmp.eq.s32.totalorder %s21, 1
      %p210 = por %p208, %p209
      %p212 = scmp.ne.s32.totalorder %s197, %s211
      %p213 = scmp.eq.s32.totalorder %s21, 0
      %p214 = por %p212, %p213
      %s215 = ssub.s32 %s22, %s34
      %p216 = scmp.eq.s32.totalorder %s215, 0
      %s218 = sadd.s32 %s217, 1
      %s219 = scalar_select %p216, %s217, %s218
      %p222 = pneg %p216
      %p223 = scmp.eq.s32.totalorder %s15, 1
      %p224 = por %p222, %p223
      %p225 = scmp.ne.s32.totalorder %s217, %s220
      %p226 = scmp.eq.s32.totalorder %s15, 0
      %p227 = por %p225, %p226
      %p228 = scmp.ne.s32.totalorder %s217, %s220
      %p229 = scmp.eq.s32.totalorder %s20, 1
      %p230 = por %p228, %p229
      %p231 = scmp.ne.s32.totalorder %s220, %s221
      %p232 = scmp.eq.s32.totalorder %s20, 0
      %p233 = por %p231, %p232
      %p234 = scmp.ne.s32.totalorder %s220, %s221
      %p235 = scmp.eq.s32.totalorder %s21, 1
      %p236 = por %p234, %p235
      %p238 = scmp.ne.s32.totalorder %s221, %s237
      %p239 = scmp.eq.s32.totalorder %s21, 0
      %p240 = por %p238, %p239
      %p241 = scmp.le.s32.totalorder 1, %s15
      %p242 = scmp.lt.s32.totalorder %s15, 3
      %p243 = pnand %p241, %p242
      %p244 = pneg %p243
      // Predicated region
      $region9: #{pointnet_cls_forward.4} parent=5 // pred_check
        _
      $region10: #{pointnet_cls_forward.4} parent=5 // pred_check_branch
        %246 = sbr.rel (%p243) target = $region12
      $region11: #{pointnet_cls_forward.4} parent=5 // pred_region
        %s247 = ssub.s32 %s15, 1
        // Predicated region
        $region13: #{pointnet_cls_forward.4} parent=11 // pred_check
          %p248 = pneg %p102
        $region14: #{pointnet_cls_forward.4} parent=11 // pred_check_branch
          %250 = sbr.rel (%p248) target = $region16
        $region15: #{pointnet_cls_forward.4} parent=11 // pred_region
          _
        $region16: #{pointnet_cls_forward.4} parent=11 // pred_fallthru
          _
        // Predicated region
        $region17: #{pointnet_cls_forward.4} parent=11 // pred_check
          %p251 = pneg %p123
        $region18: #{pointnet_cls_forward.4} parent=11 // pred_check_branch
          %253 = sbr.rel (%p251) target = $region20
        $region19: #{pointnet_cls_forward.4} parent=11 // pred_region
          _
        $region20: #{pointnet_cls_forward.4} parent=11 // pred_fallthru
          _
        // Predicated region
        $region21: #{pointnet_cls_forward.4} parent=11 // pred_check
          %p254 = pneg %p144
        $region22: #{pointnet_cls_forward.4} parent=11 // pred_check_branch
          %256 = sbr.rel (%p254) target = $region24
        $region23: #{pointnet_cls_forward.4} parent=11 // pred_region
          _
        $region24: #{pointnet_cls_forward.4} parent=11 // pred_fallthru
          _
        // Predicated region
        $region25: #{pointnet_cls_forward.4} parent=11 // pred_check
          %p257 = pneg %p165
        $region26: #{pointnet_cls_forward.4} parent=11 // pred_check_branch
          %259 = sbr.rel (%p257) target = $region28
        $region27: #{pointnet_cls_forward.4} parent=11 // pred_region
          _
        $region28: #{pointnet_cls_forward.4} parent=11 // pred_fallthru
          _
        // Predicated region
        $region29: #{pointnet_cls_forward.4} parent=11 // pred_check
          %p260 = pneg %p186
        $region30: #{pointnet_cls_forward.4} parent=11 // pred_check_branch
          %262 = sbr.rel (%p260) target = $region32
        $region31: #{pointnet_cls_forward.4} parent=11 // pred_region
          %s264 = ssub.s32 8192, 8192
          %265 = vsyncadd [#allocation4], %s264
          %s266 = sshll.u32 [#allocation3], 4
          %s267 = int_to_ptr.vmem [resolvable:$true] %s266
          %272 = dma.hbm_to_vmem [thread:$0]  %s6, 8192, %s267, [#allocation4], 512, 512, 32
        $region32: #{pointnet_cls_forward.4} parent=11 // pred_fallthru
          _
        // Predicated region
        $region33: #{pointnet_cls_forward.4} parent=11 // pred_check
          %p273 = pneg %p207
        $region34: #{pointnet_cls_forward.4} parent=11 // pred_check_branch
          %275 = sbr.rel (%p273) target = $region36
        $region35: #{pointnet_cls_forward.4} parent=11 // pred_region
          _
        $region36: #{pointnet_cls_forward.4} parent=11 // pred_fallthru
          _
      $region12: #{pointnet_cls_forward.4} parent=5 // pred_fallthru
        _
      %p276 = scmp.lt.s32.totalorder %s15, 2
      // Predicated region
      $region37: #{pointnet_cls_forward.4} parent=5 // pred_check
        %p277 = pneg %p276
      $region38: #{pointnet_cls_forward.4} parent=5 // pred_check_branch
        %279 = sbr.rel (%p277) target = $region40
      $region39: #{pointnet_cls_forward.4} parent=5 // pred_region
        // Predicated region
        $region41: #{pointnet_cls_forward.4} parent=39 // pred_check
          %p280 = pneg %p49
        $region42: #{pointnet_cls_forward.4} parent=39 // pred_check_branch
          %282 = sbr.rel (%p280) target = $region44
        $region43: #{pointnet_cls_forward.4} parent=39 // pred_region
          %s283 = smul.u32 8, %s23
          %p284 = scmp.lt.s32.totalorder %s22, 1
          %s285 = scalar_select %p284, %s22, 1
          %p286 = scmp.lt.s32.totalorder %s283, 7
          %s287 = scalar_select %p286, %s283, 7
          %s288 = smul.addr %s285, 8
          %s289 = sadd.s32 %s287, %s288
          %s290 = smul.addr %s289, 8
          %s291 = scalar_lea.vmem %s0, %s290
          %s292 = smul.u32 8, %s23
        $region44: #{pointnet_cls_forward.4} parent=39 // pred_fallthru
          _
        // Predicated region
        $region45: #{pointnet_cls_forward.4} parent=39 // pred_check
          %p293 = pneg %p75
        $region46: #{pointnet_cls_forward.4} parent=39 // pred_check_branch
          %295 = sbr.rel (%p293) target = $region48
        $region47: #{pointnet_cls_forward.4} parent=39 // pred_region
          %p296 = scmp.lt.s32.totalorder %s22, 1
          %s297 = scalar_select %p296, %s22, 1
          %s298 = smul.addr %s297, 4
          %s299 = scalar_lea.vmem %s1, %s298
        $region48: #{pointnet_cls_forward.4} parent=39 // pred_fallthru
          _
      $region40: #{pointnet_cls_forward.4} parent=5 // pred_fallthru
        _
      %p300 = scmp.le.s32.totalorder 1, %s15
      %p301 = scmp.lt.s32.totalorder %s15, 3
      %p302 = pnand %p300, %p301
      %p303 = pneg %p302
      // Predicated region
      $region49: #{pointnet_cls_forward.4} parent=5 // pred_check
        _
      $region50: #{pointnet_cls_forward.4} parent=5 // pred_check_branch
        %305 = sbr.rel (%p302) target = $region52
      $region51: #{pointnet_cls_forward.4} parent=5 // pred_region
        %s306 = ssub.s32 %s15, 1
        // Predicated region
        $region53: #{pointnet_cls_forward.4} parent=51 // pred_check
          %p307 = pneg %p186
        $region54: #{pointnet_cls_forward.4} parent=51 // pred_check_branch
          %309 = sbr.rel (%p307) target = $region56
        $region55: #{pointnet_cls_forward.4} parent=51 // pred_region
          %310 = dma.done [#allocation4], 8192
        $region56: #{pointnet_cls_forward.4} parent=51 // pred_fallthru
          _
        %s311 = smul.u32 8, %s25
        %p312 = scmp.lt.s32.totalorder %s24, 1
        %s313 = scalar_select %p312, %s24, 1
        %p314 = scmp.lt.s32.totalorder %s311, 7
        %s315 = scalar_select %p314, %s311, 7
        %s316 = smul.addr %s313, 8
        %s317 = sadd.s32 %s315, %s316
        %s318 = smul.addr %s317, 8
        %s319 = scalar_lea.vmem %s0, %s318
        %p320 = pneg %p55
        %p321 = pneg %p52
        %p322 = scmp.lt.s32.totalorder %s24, 1
        %s323 = scalar_select %p322, %s24, 1
        %s324 = smul.addr %s323, 4
        %s325 = scalar_lea.vmem %s1, %s324
        %p326 = pneg %p81
        %p327 = pneg %p78
        %p328 = pneg %p102
        %p329 = pneg %p99
        %p330 = pneg %p123
        %p331 = pneg %p120
        %p332 = pneg %p144
        %p333 = pneg %p141
        %p334 = pneg %p165
        %p335 = pneg %p162
        %p336 = pneg %p186
        %p337 = pneg %p183
        %p338 = pneg %p207
        %p339 = pneg %p204
        %p340 = pneg %p233
        %p341 = pneg %p230
        %p342 = scmp.lt.s32.totalorder %s24, 1
        %s343 = scalar_select %p342, %s24, 1
        %s344 = smul.addr %s343, 8
        %s345 = scalar_lea.vmem %s8, %s344
        %s346 = smul.u32 8, %s25
        %p347 = scmp.lt.s32.totalorder %s24, 1
        %s348 = scalar_select %p347, %s24, 1
        %p349 = scmp.lt.s32.totalorder %s346, 7
        %s350 = scalar_select %p349, %s346, 7
        %s351 = smul.addr %s348, 8
        %s352 = sadd.s32 %s350, %s351
        %s353 = smul.addr %s352, 8
        %s354 = scalar_lea.vmem %s0, %s353
        %s355 = smul.u32 8, %s25
        %p356 = scmp.lt.s32.totalorder %s24, 1
        %s357 = scalar_select %p356, %s24, 1
        %s358 = smul.addr %s357, 4
        %s359 = scalar_lea.vmem %s1, %s358
        %p360 = scmp.lt.s32.totalorder %s24, 1
        %s361 = scalar_select %p360, %s24, 1
        %s362 = smul.addr %s361, 8
        %s363 = scalar_lea.vmem %s8, %s362
        %v365 = vld [vmem:[%s354] sm:$0xff]
        %v366 = vld [vmem:[%s354 + $0x8] sm:$0xff]
        %v367 = vld [vmem:[%s354 + $0x10] sm:$0xff]
        %v368 = vld [vmem:[%s354 + $0x18] sm:$0xff]
        %v369 = vld [vmem:[%s354 + $0x20] sm:$0xff]
        %v370 = vld [vmem:[%s354 + $0x28] sm:$0xff]
        %v371 = vld [vmem:[%s354 + $0x30] sm:$0xff]
        %v372 = vld [vmem:[%s354 + $0x38] sm:$0xff]
        %v373 = vpack.c.bf16 %v366, %v365
        %v374 = vpack.c.bf16 %v368, %v367
        %v375 = vpack.c.bf16 %v370, %v369
        %v376 = vpack.c.bf16 %v372, %v371
        %v377 = vld [vmem:[%s2] sm:$0x3]
        %v378 = vld [vmem:[%s3] sm:$0x1]
        %v380 = vlaneseq
        %v381 = vshrl.u32 %v380, 7
        %v382 = vsub.s32 0, %v381
        %v383 = vrot.slane %v378, %v382
        %vm385 = vcmask 23552
        %v387 = vsel %vm385, %v373, 0
        %v390 = vsel %vm385, %v374, 0
        %v393 = vsel %vm385, %v375, 0
        %v396 = vsel %vm385, %v376, 0
        %vm398 = vcmask 1040384
        %vm399 = vcmask 1041408
        %v400 = vsel %vm398, 4294967295, 65535
        %v401 = vsel %vm399, %v400, 0
        %v403 = vand.u32 %v377, %v401
        %405 = vmatprep.subr.bf16.mxu0 0
        %406 = vmatpush1.bf16.msra.mxu0 %v403
        %407 = vmatprep.subr.bf16.mxu0 0
        %408 = vmatpush1.bf16.msra.mxu0 0
        %409 = vmatprep.subr.bf16.mxu0 0
        %410 = vmatpush1.bf16.msra.mxu0 0
        %411 = vmatprep.subr.bf16.mxu0 0
        %412 = vmatpush1.bf16.msra.mxu0 0
        %413 = vmatprep.subr.bf16.mxu0 0
        %414 = vmatpush1.bf16.msra.mxu0 0
        %415 = vmatprep.subr.bf16.mxu0 0
        %416 = vmatpush1.bf16.msra.mxu0 0
        %417 = vmatprep.subr.bf16.mxu0 0
        %418 = vmatpush1.bf16.msra.mxu0 0
        %419 = vmatprep.subr.bf16.mxu0 0
        %420 = vmatpush1.bf16.msra.mxu0 0
        %421 = vmatprep.subr.bf16.mxu0 0
        %422 = vmatpush1.bf16.msra.mxu0 0
        %423 = vmatprep.subr.bf16.mxu0 0
        %424 = vmatpush1.bf16.msra.mxu0 0
        %425 = vmatprep.subr.bf16.mxu0 0
        %426 = vmatpush1.bf16.msra.mxu0 0
        %427 = vmatprep.subr.bf16.mxu0 0
        %428 = vmatpush1.bf16.msra.mxu0 0
        %429 = vmatprep.subr.bf16.mxu0 0
        %430 = vmatpush1.bf16.msra.mxu0 0
        %431 = vmatprep.subr.bf16.mxu0 0
        %432 = vmatpush1.bf16.msra.mxu0 0
        %433 = vmatprep.subr.bf16.mxu0 0
        %434 = vmatpush1.bf16.msra.mxu0 0
        %435 = vmatprep.subr.bf16.mxu0 0
        %436 = vmatpush1.bf16.msra.mxu0 0
        %437 = vmatprep.mubr.bf16.mxu0 0
        %438 = vmatmul.mubr.bf16.gmra.mrb[0].mxu0 %v387
        %v439 = vpop.f32.mrb[0].mxu0
        %v440 = vadd.f32 %v383, %v439
        %v441 = vpop.f32.mrb[0].mxu0
        %v442 = vpop.f32.mrb[0].mxu0
        %v443 = vadd.f32 %v383, %v442
        %v444 = vpop.f32.mrb[0].mxu0
        %445 = vmatprep.mubr.bf16.mxu0 0
        %446 = vmatmul.mubr.bf16.gmra.mrb[0].mxu0 %v390
        %v447 = vpop.f32.mrb[0].mxu0
        %v448 = vadd.f32 %v383, %v447
        %v449 = vpop.f32.mrb[0].mxu0
        %v450 = vpop.f32.mrb[0].mxu0
        %v451 = vadd.f32 %v383, %v450
        %v452 = vpop.f32.mrb[0].mxu0
        %453 = vmatprep.mubr.bf16.mxu0 0
        %454 = vmatmul.mubr.bf16.gmra.mrb[0].mxu0 %v393
        %v455 = vpop.f32.mrb[0].mxu0
        %v456 = vadd.f32 %v383, %v455
        %v457 = vpop.f32.mrb[0].mxu0
        %v458 = vpop.f32.mrb[0].mxu0
        %v459 = vadd.f32 %v383, %v458
        %v460 = vpop.f32.mrb[0].mxu0
        %461 = vmatprep.mubr.bf16.mxu0 0
        %462 = vmatmul.mubr.bf16.gmra.mrb[0].mxu0 %v396
        %v463 = vpop.f32.mrb[0].mxu0
        %v464 = vadd.f32 %v383, %v463
        %v465 = vpop.f32.mrb[0].mxu0
        %v466 = vpop.f32.mrb[0].mxu0
        %v467 = vadd.f32 %v383, %v466
        %v468 = vpop.f32.mrb[0].mxu0
        %469 = vdwg.mxu0
        %v470 = vmax.f32 %v440, 0.0
        %v471 = vmax.f32 %v443, 0.0
        %v472 = vmax.f32 %v448, 0.0
        %v473 = vmax.f32 %v451, 0.0
        %v474 = vmax.f32 %v456, 0.0
        %v475 = vmax.f32 %v459, 0.0
        %v476 = vmax.f32 %v464, 0.0
        %v477 = vmax.f32 %v467, 0.0
        %v478 = vpack.c.bf16 %v471, %v470
        %v479 = vpack.c.bf16 %v473, %v472
        %v480 = vpack.c.bf16 %v475, %v474
        %v481 = vpack.c.bf16 %v477, %v476
        %v482 = vld [vmem:[%s4] sm:$0xf]
        %v483 = vld [vmem:[%s4 + $0x4] sm:$0xf]
        %v484 = vld [vmem:[%s4 + $0x8] sm:$0xf]
        %v485 = vld [vmem:[%s4 + $0xc] sm:$0xf]
        %v486 = vld [vmem:[%s4 + $0x10] sm:$0xf]
        %v487 = vld [vmem:[%s4 + $0x14] sm:$0xf]
        %v488 = vld [vmem:[%s4 + $0x18] sm:$0xf]
        %v489 = vld [vmem:[%s4 + $0x1c] sm:$0xf]
        %v490 = vld [vmem:[%s5] sm:$0x1]
        %v492 = vlaneseq
        %v493 = vshrl.u32 %v492, 7
        %v494 = vsub.s32 0, %v493
        %v495 = vrot.slane %v490, %v494
        %v505 = vunpack.c.l.b16 %v482
        %v506 = vunpack.c.l.b16 %v483
        %v507 = vunpack.c.l.b16 %v484
        %v508 = vunpack.c.l.b16 %v485
        %v509 = vunpack.c.l.b16 %v486
        %v510 = vunpack.c.l.b16 %v487
        %v511 = vunpack.c.l.b16 %v488
        %v512 = vunpack.c.l.b16 %v489
        %v513 = vpack.c.b16 %v506, %v505
        %v514 = vpack.c.b16 %v508, %v507
        %v515 = vpack.c.b16 %v510, %v509
        %v516 = vpack.c.b16 %v512, %v511
        %vm521 = vcmask 523264
        %v523 = vsel %vm521, %v478, 0
        %v526 = vsel %vm521, %v479, 0
        %v529 = vsel %vm521, %v480, 0
        %v532 = vsel %vm521, %v481, 0
        %534 = vmatprep.subr.bf16.mxu0 0
        %535 = vmatpush1.bf16.msra.mxu0 %v513
        %536 = vmatprep.subr.bf16.mxu0 0
        %537 = vmatpush1.bf16.msra.mxu0 %v514
        %538 = vmatprep.subr.bf16.mxu0 0
        %539 = vmatpush1.bf16.msra.mxu0 %v515
        %540 = vmatprep.subr.bf16.mxu0 0
        %541 = vmatpush1.bf16.msra.mxu0 %v516
        %542 = vmatprep.subr.bf16.mxu0 0
        %543 = vmatpush1.bf16.msra.mxu0 0
        %544 = vmatprep.subr.bf16.mxu0 0
        %545 = vmatpush1.bf16.msra.mxu0 0
        %546 = vmatprep.subr.bf16.mxu0 0
        %547 = vmatpush1.bf16.msra.mxu0 0
        %548 = vmatprep.subr.bf16.mxu0 0
        %549 = vmatpush1.bf16.msra.mxu0 0
        %550 = vmatprep.subr.bf16.mxu0 0
        %551 = vmatpush1.bf16.msra.mxu0 0
        %552 = vmatprep.subr.bf16.mxu0 0
        %553 = vmatpush1.bf16.msra.mxu0 0
        %554 = vmatprep.subr.bf16.mxu0 0
        %555 = vmatpush1.bf16.msra.mxu0 0
        %556 = vmatprep.subr.bf16.mxu0 0
        %557 = vmatpush1.bf16.msra.mxu0 0
        %558 = vmatprep.subr.bf16.mxu0 0
        %559 = vmatpush1.bf16.msra.mxu0 0
        %560 = vmatprep.subr.bf16.mxu0 0
        %561 = vmatpush1.bf16.msra.mxu0 0
        %562 = vmatprep.subr.bf16.mxu0 0
        %563 = vmatpush1.bf16.msra.mxu0 0
        %564 = vmatprep.subr.bf16.mxu0 0
        %565 = vmatpush1.bf16.msra.mxu0 0
        %566 = vmatprep.mubr.bf16.mxu0 0
        %567 = vmatmul.mubr.bf16.gmra.mrb[0].mxu0 %v523
        %v568 = vpop.f32.mrb[0].mxu0
        %v569 = vadd.f32 %v495, %v568
        %v570 = vpop.f32.mrb[0].mxu0
        %v571 = vpop.f32.mrb[0].mxu0
        %v572 = vadd.f32 %v495, %v571
        %v573 = vpop.f32.mrb[0].mxu0
        %574 = vmatprep.mubr.bf16.mxu0 0
        %575 = vmatmul.mubr.bf16.gmra.mrb[0].mxu0 %v526
        %v576 = vpop.f32.mrb[0].mxu0
        %v577 = vadd.f32 %v495, %v576
        %v578 = vpop.f32.mrb[0].mxu0
        %v579 = vpop.f32.mrb[0].mxu0
        %v580 = vadd.f32 %v495, %v579
        %v581 = vpop.f32.mrb[0].mxu0
        %582 = vmatprep.mubr.bf16.mxu0 0
        %583 = vmatmul.mubr.bf16.gmra.mrb[0].mxu0 %v529
        %v584 = vpop.f32.mrb[0].mxu0
        %v585 = vadd.f32 %v495, %v584
        %v586 = vpop.f32.mrb[0].mxu0
        %v587 = vpop.f32.mrb[0].mxu0
        %v588 = vadd.f32 %v495, %v587
        %v589 = vpop.f32.mrb[0].mxu0
        %590 = vmatprep.mubr.bf16.mxu0 0
        %591 = vmatmul.mubr.bf16.gmra.mrb[0].mxu0 %v532
        %v592 = vpop.f32.mrb[0].mxu0
        %v593 = vadd.f32 %v495, %v592
        %v594 = vpop.f32.mrb[0].mxu0
        %v595 = vpop.f32.mrb[0].mxu0
        %v596 = vadd.f32 %v495, %v595
        %v597 = vpop.f32.mrb[0].mxu0
        %598 = vdwg.mxu0
        %v599 = vmax.f32 %v569, 0.0
        %v600 = vmax.f32 %v572, 0.0
        %v601 = vmax.f32 %v577, 0.0
        %v602 = vmax.f32 %v580, 0.0
        %v603 = vmax.f32 %v585, 0.0
        %v604 = vmax.f32 %v588, 0.0
        %v605 = vmax.f32 %v593, 0.0
        %v606 = vmax.f32 %v596, 0.0
        %v607 = vpack.c.bf16 %v600, %v599
        %v608 = vpack.c.bf16 %v602, %v601
        %v609 = vpack.c.bf16 %v604, %v603
        %v610 = vpack.c.bf16 %v606, %v605
        %v611 = vld [vmem:[#allocation3] sm:$0xff]
        %v612 = vld [vmem:[#allocation3 + $0x8] sm:$0xff]
        %v613 = vld [vmem:[#allocation3 + $0x10] sm:$0xff]
        %v614 = vld [vmem:[#allocation3 + $0x18] sm:$0xff]
        %v615 = vld [vmem:[#allocation3 + $0x20] sm:$0xff]
        %v616 = vld [vmem:[#allocation3 + $0x28] sm:$0xff]
        %v617 = vld [vmem:[#allocation3 + $0x30] sm:$0xff]
        %v618 = vld [vmem:[#allocation3 + $0x38] sm:$0xff]
        %v619 = vld [vmem:[#allocation3 + $0x40] sm:$0xff]
        %v620 = vld [vmem:[#allocation3 + $0x48] sm:$0xff]
        %v621 = vld [vmem:[#allocation3 + $0x50] sm:$0xff]
        %v622 = vld [vmem:[#allocation3 + $0x58] sm:$0xff]
        %v623 = vld [vmem:[#allocation3 + $0x60] sm:$0xff]
        %v624 = vld [vmem:[#allocation3 + $0x68] sm:$0xff]
        %v625 = vld [vmem:[#allocation3 + $0x70] sm:$0xff]
        %v626 = vld [vmem:[#allocation3 + $0x78] sm:$0xff]
        %v627 = vld [vmem:[#allocation3 + $0x80] sm:$0xff]
        %v628 = vld [vmem:[#allocation3 + $0x88] sm:$0xff]
        %v629 = vld [vmem:[#allocation3 + $0x90] sm:$0xff]
        %v630 = vld [vmem:[#allocation3 + $0x98] sm:$0xff]
        %v631 = vld [vmem:[#allocation3 + $0xa0] sm:$0xff]
        %v632 = vld [vmem:[#allocation3 + $0xa8] sm:$0xff]
        %v633 = vld [vmem:[#allocation3 + $0xb0] sm:$0xff]
        %v634 = vld [vmem:[#allocation3 + $0xb8] sm:$0xff]
        %v635 = vld [vmem:[#allocation3 + $0xc0] sm:$0xff]
        %v636 = vld [vmem:[#allocation3 + $0xc8] sm:$0xff]
        %v637 = vld [vmem:[#allocation3 + $0xd0] sm:$0xff]
        %v638 = vld [vmem:[#allocation3 + $0xd8] sm:$0xff]
        %v639 = vld [vmem:[#allocation3 + $0xe0] sm:$0xff]
        %v640 = vld [vmem:[#allocation3 + $0xe8] sm:$0xff]
        %v641 = vld [vmem:[#allocation3 + $0xf0] sm:$0xff]
        %v642 = vld [vmem:[#allocation3 + $0xf8] sm:$0xff]
        %v643 = vld [vmem:[#allocation3 + $0x100] sm:$0xff]
        %v644 = vld [vmem:[#allocation3 + $0x108] sm:$0xff]
        %v645 = vld [vmem:[#allocation3 + $0x110] sm:$0xff]
        %v646 = vld [vmem:[#allocation3 + $0x118] sm:$0xff]
        %v647 = vld [vmem:[#allocation3 + $0x120] sm:$0xff]
        %v648 = vld [vmem:[#allocation3 + $0x128] sm:$0xff]
        %v649 = vld [vmem:[#allocation3 + $0x130] sm:$0xff]
        %v650 = vld [vmem:[#allocation3 + $0x138] sm:$0xff]
        %v651 = vld [vmem:[#allocation3 + $0x140] sm:$0xff]
        %v652 = vld [vmem:[#allocation3 + $0x148] sm:$0xff]
        %v653 = vld [vmem:[#allocation3 + $0x150] sm:$0xff]
        %v654 = vld [vmem:[#allocation3 + $0x158] sm:$0xff]
        %v655 = vld [vmem:[#allocation3 + $0x160] sm:$0xff]
        %v656 = vld [vmem:[#allocation3 + $0x168] sm:$0xff]
        %v657 = vld [vmem:[#allocation3 + $0x170] sm:$0xff]
        %v658 = vld [vmem:[#allocation3 + $0x178] sm:$0xff]
        %v659 = vld [vmem:[#allocation3 + $0x180] sm:$0xff]
        %v660 = vld [vmem:[#allocation3 + $0x188] sm:$0xff]
        %v661 = vld [vmem:[#allocation3 + $0x190] sm:$0xff]
        %v662 = vld [vmem:[#allocation3 + $0x198] sm:$0xff]
        %v663 = vld [vmem:[#allocation3 + $0x1a0] sm:$0xff]
        %v664 = vld [vmem:[#allocation3 + $0x1a8] sm:$0xff]
        %v665 = vld [vmem:[#allocation3 + $0x1b0] sm:$0xff]
        %v666 = vld [vmem:[#allocation3 + $0x1b8] sm:$0xff]
        %v667 = vld [vmem:[#allocation3 + $0x1c0] sm:$0xff]
        %v668 = vld [vmem:[#allocation3 + $0x1c8] sm:$0xff]
        %v669 = vld [vmem:[#allocation3 + $0x1d0] sm:$0xff]
        %v670 = vld [vmem:[#allocation3 + $0x1d8] sm:$0xff]
        %v671 = vld [vmem:[#allocation3 + $0x1e0] sm:$0xff]
        %v672 = vld [vmem:[#allocation3 + $0x1e8] sm:$0xff]
        %v673 = vld [vmem:[#allocation3 + $0x1f0] sm:$0xff]
        %v674 = vld [vmem:[#allocation3 + $0x1f8] sm:$0xff]
        %v675 = vld [vmem:[%s7] sm:$0xff]
        %v677 = vlaneseq
        %v678 = vshrl.u32 %v677, 7
        %v679 = vsub.s32 0, %v678
        %v680 = vrot.slane %v675, %v679
        %v681 = vlaneseq
        %v682 = vshrl.u32 %v681, 7
        %v683 = vsub.s32 1, %v682
        %v684 = vrot.slane %v675, %v683
        %v685 = vlaneseq
        %v686 = vshrl.u32 %v685, 7
        %v687 = vsub.s32 2, %v686
        %v688 = vrot.slane %v675, %v687
        %v689 = vlaneseq
        %v690 = vshrl.u32 %v689, 7
        %v691 = vsub.s32 3, %v690
        %v692 = vrot.slane %v675, %v691
        %v693 = vlaneseq
        %v694 = vshrl.u32 %v693, 7
        %v695 = vsub.s32 4, %v694
        %v696 = vrot.slane %v675, %v695
        %v697 = vlaneseq
        %v698 = vshrl.u32 %v697, 7
        %v699 = vsub.s32 5, %v698
        %v700 = vrot.slane %v675, %v699
        %v701 = vlaneseq
        %v702 = vshrl.u32 %v701, 7
        %v703 = vsub.s32 6, %v702
        %v704 = vrot.slane %v675, %v703
        %v705 = vlaneseq
        %v706 = vshrl.u32 %v705, 7
        %v707 = vsub.s32 7, %v706
        %v708 = vrot.slane %v675, %v707
        %v781 = vunpack.c.l.b16 %v611
        %v782 = vunpack.c.h.b16 %v611
        %v783 = vunpack.c.l.b16 %v612
        %v784 = vunpack.c.h.b16 %v612
        %v785 = vunpack.c.l.b16 %v613
        %v786 = vunpack.c.h.b16 %v613
        %v787 = vunpack.c.l.b16 %v614
        %v788 = vunpack.c.h.b16 %v614
        %v789 = vunpack.c.l.b16 %v615
        %v790 = vunpack.c.h.b16 %v615
        %v791 = vunpack.c.l.b16 %v616
        %v792 = vunpack.c.h.b16 %v616
        %v793 = vunpack.c.l.b16 %v617
        %v794 = vunpack.c.h.b16 %v617
        %v795 = vunpack.c.l.b16 %v618
        %v796 = vunpack.c.h.b16 %v618
        %v797 = vunpack.c.l.b16 %v619
        %v798 = vunpack.c.h.b16 %v619
        %v799 = vunpack.c.l.b16 %v620
        %v800 = vunpack.c.h.b16 %v620
        %v801 = vunpack.c.l.b16 %v621
        %v802 = vunpack.c.h.b16 %v621
        %v803 = vunpack.c.l.b16 %v622
        %v804 = vunpack.c.h.b16 %v622
        %v805 = vunpack.c.l.b16 %v623
        %v806 = vunpack.c.h.b16 %v623
        %v807 = vunpack.c.l.b16 %v624
        %v808 = vunpack.c.h.b16 %v624
        %v809 = vunpack.c.l.b16 %v625
        %v810 = vunpack.c.h.b16 %v625
        %v811 = vunpack.c.l.b16 %v626
        %v812 = vunpack.c.h.b16 %v626
        %v813 = vunpack.c.l.b16 %v627
        %v814 = vunpack.c.h.b16 %v627
        %v815 = vunpack.c.l.b16 %v628
        %v816 = vunpack.c.h.b16 %v628
        %v817 = vunpack.c.l.b16 %v629
        %v818 = vunpack.c.h.b16 %v629
        %v819 = vunpack.c.l.b16 %v630
        %v820 = vunpack.c.h.b16 %v630
        %v821 = vunpack.c.l.b16 %v631
        %v822 = vunpack.c.h.b16 %v631
        %v823 = vunpack.c.l.b16 %v632
        %v824 = vunpack.c.h.b16 %v632
        %v825 = vunpack.c.l.b16 %v633
        %v826 = vunpack.c.h.b16 %v633
        %v827 = vunpack.c.l.b16 %v634
        %v828 = vunpack.c.h.b16 %v634
        %v829 = vunpack.c.l.b16 %v635
        %v830 = vunpack.c.h.b16 %v635
        %v831 = vunpack.c.l.b16 %v636
        %v832 = vunpack.c.h.b16 %v636
        %v833 = vunpack.c.l.b16 %v637
        %v834 = vunpack.c.h.b16 %v637
        %v835 = vunpack.c.l.b16 %v638
        %v836 = vunpack.c.h.b16 %v638
        %v837 = vunpack.c.l.b16 %v639
        %v838 = vunpack.c.h.b16 %v639
        %v839 = vunpack.c.l.b16 %v640
        %v840 = vunpack.c.h.b16 %v640
        %v841 = vunpack.c.l.b16 %v641
        %v842 = vunpack.c.h.b16 %v641
        %v843 = vunpack.c.l.b16 %v642
        %v844 = vunpack.c.h.b16 %v642
        %v845 = vunpack.c.l.b16 %v643
        %v846 = vunpack.c.h.b16 %v643
        %v847 = vunpack.c.l.b16 %v644
        %v848 = vunpack.c.h.b16 %v644
        %v849 = vunpack.c.l.b16 %v645
        %v850 = vunpack.c.h.b16 %v645
        %v851 = vunpack.c.l.b16 %v646
        %v852 = vunpack.c.h.b16 %v646
        %v853 = vunpack.c.l.b16 %v647
        %v854 = vunpack.c.h.b16 %v647
        %v855 = vunpack.c.l.b16 %v648
        %v856 = vunpack.c.h.b16 %v648
        %v857 = vunpack.c.l.b16 %v649
        %v858 = vunpack.c.h.b16 %v649
        %v859 = vunpack.c.l.b16 %v650
        %v860 = vunpack.c.h.b16 %v650
        %v861 = vunpack.c.l.b16 %v651
        %v862 = vunpack.c.h.b16 %v651
        %v863 = vunpack.c.l.b16 %v652
        %v864 = vunpack.c.h.b16 %v652
        %v865 = vunpack.c.l.b16 %v653
        %v866 = vunpack.c.h.b16 %v653
        %v867 = vunpack.c.l.b16 %v654
        %v868 = vunpack.c.h.b16 %v654
        %v869 = vunpack.c.l.b16 %v655
        %v870 = vunpack.c.h.b16 %v655
        %v871 = vunpack.c.l.b16 %v656
        %v872 = vunpack.c.h.b16 %v656
        %v873 = vunpack.c.l.b16 %v657
        %v874 = vunpack.c.h.b16 %v657
        %v875 = vunpack.c.l.b16 %v658
        %v876 = vunpack.c.h.b16 %v658
        %v877 = vunpack.c.l.b16 %v659
        %v878 = vunpack.c.h.b16 %v659
        %v879 = vunpack.c.l.b16 %v660
        %v880 = vunpack.c.h.b16 %v660
        %v881 = vunpack.c.l.b16 %v661
        %v882 = vunpack.c.h.b16 %v661
        %v883 = vunpack.c.l.b16 %v662
        %v884 = vunpack.c.h.b16 %v662
        %v885 = vunpack.c.l.b16 %v663
        %v886 = vunpack.c.h.b16 %v663
        %v887 = vunpack.c.l.b16 %v664
        %v888 = vunpack.c.h.b16 %v664
        %v889 = vunpack.c.l.b16 %v665
        %v890 = vunpack.c.h.b16 %v665
        %v891 = vunpack.c.l.b16 %v666
        %v892 = vunpack.c.h.b16 %v666
        %v893 = vunpack.c.l.b16 %v667
        %v894 = vunpack.c.h.b16 %v667
        %v895 = vunpack.c.l.b16 %v668
        %v896 = vunpack.c.h.b16 %v668
        %v897 = vunpack.c.l.b16 %v669
        %v898 = vunpack.c.h.b16 %v669
        %v899 = vunpack.c.l.b16 %v670
        %v900 = vunpack.c.h.b16 %v670
        %v901 = vunpack.c.l.b16 %v671
        %v902 = vunpack.c.h.b16 %v671
        %v903 = vunpack.c.l.b16 %v672
        %v904 = vunpack.c.h.b16 %v672
        %v905 = vunpack.c.l.b16 %v673
        %v906 = vunpack.c.h.b16 %v673
        %v907 = vunpack.c.l.b16 %v674
        %v908 = vunpack.c.h.b16 %v674
        %v909 = vpack.c.b16 %v789, %v781
        %v910 = vpack.c.b16 %v790, %v782
        %v911 = vpack.c.b16 %v791, %v783
        %v912 = vpack.c.b16 %v792, %v784
        %v913 = vpack.c.b16 %v793, %v785
        %v914 = vpack.c.b16 %v794, %v786
        %v915 = vpack.c.b16 %v795, %v787
        %v916 = vpack.c.b16 %v796, %v788
        %v917 = vpack.c.b16 %v805, %v797
        %v918 = vpack.c.b16 %v806, %v798
        %v919 = vpack.c.b16 %v807, %v799
        %v920 = vpack.c.b16 %v808, %v800
        %v921 = vpack.c.b16 %v809, %v801
        %v922 = vpack.c.b16 %v810, %v802
        %v923 = vpack.c.b16 %v811, %v803
        %v924 = vpack.c.b16 %v812, %v804
        %v925 = vpack.c.b16 %v821, %v813
        %v926 = vpack.c.b16 %v822, %v814
        %v927 = vpack.c.b16 %v823, %v815
        %v928 = vpack.c.b16 %v824, %v816
        %v929 = vpack.c.b16 %v825, %v817
        %v930 = vpack.c.b16 %v826, %v818
        %v931 = vpack.c.b16 %v827, %v819
        %v932 = vpack.c.b16 %v828, %v820
        %v933 = vpack.c.b16 %v837, %v829
        %v934 = vpack.c.b16 %v838, %v830
        %v935 = vpack.c.b16 %v839, %v831
        %v936 = vpack.c.b16 %v840, %v832
        %v937 = vpack.c.b16 %v841, %v833
        %v938 = vpack.c.b16 %v842, %v834
        %v939 = vpack.c.b16 %v843, %v835
        %v940 = vpack.c.b16 %v844, %v836
        %v941 = vpack.c.b16 %v853, %v845
        %v942 = vpack.c.b16 %v854, %v846
        %v943 = vpack.c.b16 %v855, %v847
        %v944 = vpack.c.b16 %v856, %v848
        %v945 = vpack.c.b16 %v857, %v849
        %v946 = vpack.c.b16 %v858, %v850
        %v947 = vpack.c.b16 %v859, %v851
        %v948 = vpack.c.b16 %v860, %v852
        %v949 = vpack.c.b16 %v869, %v861
        %v950 = vpack.c.b16 %v870, %v862
        %v951 = vpack.c.b16 %v871, %v863
        %v952 = vpack.c.b16 %v872, %v864
        %v953 = vpack.c.b16 %v873, %v865
        %v954 = vpack.c.b16 %v874, %v866
        %v955 = vpack.c.b16 %v875, %v867
        %v956 = vpack.c.b16 %v876, %v868
        %v957 = vpack.c.b16 %v885, %v877
        %v958 = vpack.c.b16 %v886, %v878
        %v959 = vpack.c.b16 %v887, %v879
        %v960 = vpack.c.b16 %v888, %v880
        %v961 = vpack.c.b16 %v889, %v881
        %v962 = vpack.c.b16 %v890, %v882
        %v963 = vpack.c.b16 %v891, %v883
        %v964 = vpack.c.b16 %v892, %v884
        %v965 = vpack.c.b16 %v901, %v893
        %v966 = vpack.c.b16 %v902, %v894
        %v967 = vpack.c.b16 %v903, %v895
        %v968 = vpack.c.b16 %v904, %v896
        %v969 = vpack.c.b16 %v905, %v897
        %v970 = vpack.c.b16 %v906, %v898
        %v971 = vpack.c.b16 %v907, %v899
        %v972 = vpack.c.b16 %v908, %v900
        %1037 = vmatprep.subr.bf16.mxu0 %v910
        %1038 = vmatpush1.bf16.msra.mxu0 %v909
        %1039 = vmatprep.subr.bf16.mxu0 %v918
        %1040 = vmatpush1.bf16.msra.mxu0 %v917
        %1041 = vmatprep.subr.bf16.mxu0 %v926
        %1042 = vmatpush1.bf16.msra.mxu0 %v925
        %1043 = vmatprep.subr.bf16.mxu0 %v934
        %1044 = vmatpush1.bf16.msra.mxu0 %v933
        %1045 = vmatprep.subr.bf16.mxu0 %v942
        %1046 = vmatpush1.bf16.msra.mxu0 %v941
        %1047 = vmatprep.subr.bf16.mxu0 %v950
        %1048 = vmatpush1.bf16.msra.mxu0 %v949
        %1049 = vmatprep.subr.bf16.mxu0 %v958
        %1050 = vmatpush1.bf16.msra.mxu0 %v957
        %1051 = vmatprep.subr.bf16.mxu0 %v966
        %1052 = vmatpush1.bf16.msra.mxu0 %v965
        %1053 = vmatprep.subr.bf16.mxu0 0
        %1054 = vmatpush1.bf16.msra.mxu0 0
        %1055 = vmatprep.subr.bf16.mxu0 0
        %1056 = vmatpush1.bf16.msra.mxu0 0
        %1057 = vmatprep.subr.bf16.mxu0 0
        %1058 = vmatpush1.bf16.msra.mxu0 0
        %1059 = vmatprep.subr.bf16.mxu0 0
        %1060 = vmatpush1.bf16.msra.mxu0 0
        %1061 = vmatprep.subr.bf16.mxu0 0
        %1062 = vmatpush1.bf16.msra.mxu0 0
        %1063 = vmatprep.subr.bf16.mxu0 0
        %1064 = vmatpush1.bf16.msra.mxu0 0
        %1065 = vmatprep.subr.bf16.mxu0 0
        %1066 = vmatpush1.bf16.msra.mxu0 0
        %1067 = vmatprep.subr.bf16.mxu0 0
        %1068 = vmatpush1.bf16.msra.mxu0 0
        %1069 = vmatprep.mubr.bf16.mxu0 0
        %1070 = vmatmul.mubr.bf16.gmra.mrb[0].mxu0 %v607
        %v1071 = vpop.f32.mrb[0].mxu0
        %v1072 = vadd.f32 %v680, %v1071
        %v1073 = vpop.f32.mrb[0].mxu0
        %v1074 = vadd.f32 %v684, %v1073
        %v1075 = vpop.f32.mrb[0].mxu0
        %v1076 = vadd.f32 %v680, %v1075
        %v1077 = vpop.f32.mrb[0].mxu0
        %v1078 = vadd.f32 %v684, %v1077
        %1079 = vmatprep.mubr.bf16.mxu0 0
        %1080 = vmatmul.mubr.bf16.gmra.mrb[0].mxu0 %v608
        %v1081 = vpop.f32.mrb[0].mxu0
        %v1082 = vadd.f32 %v680, %v1081
        %v1083 = vpop.f32.mrb[0].mxu0
        %v1084 = vadd.f32 %v684, %v1083
        %v1085 = vpop.f32.mrb[0].mxu0
        %v1086 = vadd.f32 %v680, %v1085
        %v1087 = vpop.f32.mrb[0].mxu0
        %v1088 = vadd.f32 %v684, %v1087
        %1089 = vmatprep.mubr.bf16.mxu0 0
        %1090 = vmatmul.mubr.bf16.gmra.mrb[0].mxu0 %v609
        %v1091 = vpop.f32.mrb[0].mxu0
        %v1092 = vadd.f32 %v680, %v1091
        %v1093 = vpop.f32.mrb[0].mxu0
        %v1094 = vadd.f32 %v684, %v1093
        %v1095 = vpop.f32.mrb[0].mxu0
        %v1096 = vadd.f32 %v680, %v1095
        %v1097 = vpop.f32.mrb[0].mxu0
        %v1098 = vadd.f32 %v684, %v1097
        %1099 = vmatprep.mubr.bf16.mxu0 0
        %1100 = vmatmul.mubr.bf16.gmra.mrb[0].mxu0 %v610
        %v1101 = vpop.f32.mrb[0].mxu0
        %v1102 = vadd.f32 %v680, %v1101
        %v1103 = vpop.f32.mrb[0].mxu0
        %v1104 = vadd.f32 %v684, %v1103
        %v1105 = vpop.f32.mrb[0].mxu0
        %v1106 = vadd.f32 %v680, %v1105
        %v1107 = vpop.f32.mrb[0].mxu0
        %v1108 = vadd.f32 %v684, %v1107
        %1109 = vdwg.mxu0
        %1110 = vmatprep.subr.bf16.mxu0 %v912
        %1111 = vmatpush1.bf16.msra.mxu0 %v911
        %1112 = vmatprep.subr.bf16.mxu0 %v920
        %1113 = vmatpush1.bf16.msra.mxu0 %v919
        %1114 = vmatprep.subr.bf16.mxu0 %v928
        %1115 = vmatpush1.bf16.msra.mxu0 %v927
        %1116 = vmatprep.subr.bf16.mxu0 %v936
        %1117 = vmatpush1.bf16.msra.mxu0 %v935
        %1118 = vmatprep.subr.bf16.mxu0 %v944
        %1119 = vmatpush1.bf16.msra.mxu0 %v943
        %1120 = vmatprep.subr.bf16.mxu0 %v952
        %1121 = vmatpush1.bf16.msra.mxu0 %v951
        %1122 = vmatprep.subr.bf16.mxu0 %v960
        %1123 = vmatpush1.bf16.msra.mxu0 %v959
        %1124 = vmatprep.subr.bf16.mxu0 %v968
        %1125 = vmatpush1.bf16.msra.mxu0 %v967
        %1126 = vmatprep.subr.bf16.mxu0 0
        %1127 = vmatpush1.bf16.msra.mxu0 0
        %1128 = vmatprep.subr.bf16.mxu0 0
        %1129 = vmatpush1.bf16.msra.mxu0 0
        %1130 = vmatprep.subr.bf16.mxu0 0
        %1131 = vmatpush1.bf16.msra.mxu0 0
        %1132 = vmatprep.subr.bf16.mxu0 0
        %1133 = vmatpush1.bf16.msra.mxu0 0
        %1134 = vmatprep.subr.bf16.mxu0 0
        %1135 = vmatpush1.bf16.msra.mxu0 0
        %1136 = vmatprep.subr.bf16.mxu0 0
        %1137 = vmatpush1.bf16.msra.mxu0 0
        %1138 = vmatprep.subr.bf16.mxu0 0
        %1139 = vmatpush1.bf16.msra.mxu0 0
        %1140 = vmatprep.subr.bf16.mxu0 0
        %1141 = vmatpush1.bf16.msra.mxu0 0
        %1142 = vmatprep.mubr.bf16.mxu0 0
        %1143 = vmatmul.mubr.bf16.gmra.mrb[0].mxu0 %v607
        %v1144 = vpop.f32.mrb[0].mxu0
        %v1145 = vadd.f32 %v688, %v1144
        %v1146 = vpop.f32.mrb[0].mxu0
        %v1147 = vadd.f32 %v692, %v1146
        %v1148 = vpop.f32.mrb[0].mxu0
        %v1149 = vadd.f32 %v688, %v1148
        %v1150 = vpop.f32.mrb[0].mxu0
        %v1151 = vadd.f32 %v692, %v1150
        %1152 = vmatprep.mubr.bf16.mxu0 0
        %1153 = vmatmul.mubr.bf16.gmra.mrb[0].mxu0 %v608
        %v1154 = vpop.f32.mrb[0].mxu0
        %v1155 = vadd.f32 %v688, %v1154
        %v1156 = vpop.f32.mrb[0].mxu0
        %v1157 = vadd.f32 %v692, %v1156
        %v1158 = vpop.f32.mrb[0].mxu0
        %v1159 = vadd.f32 %v688, %v1158
        %v1160 = vpop.f32.mrb[0].mxu0
        %v1161 = vadd.f32 %v692, %v1160
        %1162 = vmatprep.mubr.bf16.mxu0 0
        %1163 = vmatmul.mubr.bf16.gmra.mrb[0].mxu0 %v609
        %v1164 = vpop.f32.mrb[0].mxu0
        %v1165 = vadd.f32 %v688, %v1164
        %v1166 = vpop.f32.mrb[0].mxu0
        %v1167 = vadd.f32 %v692, %v1166
        %v1168 = vpop.f32.mrb[0].mxu0
        %v1169 = vadd.f32 %v688, %v1168
        %v1170 = vpop.f32.mrb[0].mxu0
        %v1171 = vadd.f32 %v692, %v1170
        %1172 = vmatprep.mubr.bf16.mxu0 0
        %1173 = vmatmul.mubr.bf16.gmra.mrb[0].mxu0 %v610
        %v1174 = vpop.f32.mrb[0].mxu0
        %v1175 = vadd.f32 %v688, %v1174
        %v1176 = vpop.f32.mrb[0].mxu0
        %v1177 = vadd.f32 %v692, %v1176
        %v1178 = vpop.f32.mrb[0].mxu0
        %v1179 = vadd.f32 %v688, %v1178
        %v1180 = vpop.f32.mrb[0].mxu0
        %v1181 = vadd.f32 %v692, %v1180
        %1182 = vdwg.mxu0
        %1183 = vmatprep.subr.bf16.mxu0 %v914
        %1184 = vmatpush1.bf16.msra.mxu0 %v913
        %1185 = vmatprep.subr.bf16.mxu0 %v922
        %1186 = vmatpush1.bf16.msra.mxu0 %v921
        %1187 = vmatprep.subr.bf16.mxu0 %v930
        %1188 = vmatpush1.bf16.msra.mxu0 %v929
        %1189 = vmatprep.subr.bf16.mxu0 %v938
        %1190 = vmatpush1.bf16.msra.mxu0 %v937
        %1191 = vmatprep.subr.bf16.mxu0 %v946
        %1192 = vmatpush1.bf16.msra.mxu0 %v945
        %1193 = vmatprep.subr.bf16.mxu0 %v954
        %1194 = vmatpush1.bf16.msra.mxu0 %v953
        %1195 = vmatprep.subr.bf16.mxu0 %v962
        %1196 = vmatpush1.bf16.msra.mxu0 %v961
        %1197 = vmatprep.subr.bf16.mxu0 %v970
        %1198 = vmatpush1.bf16.msra.mxu0 %v969
        %1199 = vmatprep.subr.bf16.mxu0 0
        %1200 = vmatpush1.bf16.msra.mxu0 0
        %1201 = vmatprep.subr.bf16.mxu0 0
        %1202 = vmatpush1.bf16.msra.mxu0 0
        %1203 = vmatprep.subr.bf16.mxu0 0
        %1204 = vmatpush1.bf16.msra.mxu0 0
        %1205 = vmatprep.subr.bf16.mxu0 0
        %1206 = vmatpush1.bf16.msra.mxu0 0
        %1207 = vmatprep.subr.bf16.mxu0 0
        %1208 = vmatpush1.bf16.msra.mxu0 0
        %1209 = vmatprep.subr.bf16.mxu0 0
        %1210 = vmatpush1.bf16.msra.mxu0 0
        %1211 = vmatprep.subr.bf16.mxu0 0
        %1212 = vmatpush1.bf16.msra.mxu0 0
        %1213 = vmatprep.subr.bf16.mxu0 0
        %1214 = vmatpush1.bf16.msra.mxu0 0
        %1215 = vmatprep.mubr.bf16.mxu0 0
        %1216 = vmatmul.mubr.bf16.gmra.mrb[0].mxu0 %v607
        %v1217 = vpop.f32.mrb[0].mxu0
        %v1218 = vadd.f32 %v696, %v1217
        %v1219 = vpop.f32.mrb[0].mxu0
        %v1220 = vadd.f32 %v700, %v1219
        %v1221 = vpop.f32.mrb[0].mxu0
        %v1222 = vadd.f32 %v696, %v1221
        %v1223 = vpop.f32.mrb[0].mxu0
        %v1224 = vadd.f32 %v700, %v1223
        %1225 = vmatprep.mubr.bf16.mxu0 0
        %1226 = vmatmul.mubr.bf16.gmra.mrb[0].mxu0 %v608
        %v1227 = vpop.f32.mrb[0].mxu0
        %v1228 = vadd.f32 %v696, %v1227
        %v1229 = vpop.f32.mrb[0].mxu0
        %v1230 = vadd.f32 %v700, %v1229
        %v1231 = vpop.f32.mrb[0].mxu0
        %v1232 = vadd.f32 %v696, %v1231
        %v1233 = vpop.f32.mrb[0].mxu0
        %v1234 = vadd.f32 %v700, %v1233
        %1235 = vmatprep.mubr.bf16.mxu0 0
        %1236 = vmatmul.mubr.bf16.gmra.mrb[0].mxu0 %v609
        %v1237 = vpop.f32.mrb[0].mxu0
        %v1238 = vadd.f32 %v696, %v1237
        %v1239 = vpop.f32.mrb[0].mxu0
        %v1240 = vadd.f32 %v700, %v1239
        %v1241 = vpop.f32.mrb[0].mxu0
        %v1242 = vadd.f32 %v696, %v1241
        %v1243 = vpop.f32.mrb[0].mxu0
        %v1244 = vadd.f32 %v700, %v1243
        %1245 = vmatprep.mubr.bf16.mxu0 0
        %1246 = vmatmul.mubr.bf16.gmra.mrb[0].mxu0 %v610
        %v1247 = vpop.f32.mrb[0].mxu0
        %v1248 = vadd.f32 %v696, %v1247
        %v1249 = vpop.f32.mrb[0].mxu0
        %v1250 = vadd.f32 %v700, %v1249
        %v1251 = vpop.f32.mrb[0].mxu0
        %v1252 = vadd.f32 %v696, %v1251
        %v1253 = vpop.f32.mrb[0].mxu0
        %v1254 = vadd.f32 %v700, %v1253
        %1255 = vdwg.mxu0
        %1256 = vmatprep.subr.bf16.mxu0 %v916
        %1257 = vmatpush1.bf16.msra.mxu0 %v915
        %1258 = vmatprep.subr.bf16.mxu0 %v924
        %1259 = vmatpush1.bf16.msra.mxu0 %v923
        %1260 = vmatprep.subr.bf16.mxu0 %v932
        %1261 = vmatpush1.bf16.msra.mxu0 %v931
        %1262 = vmatprep.subr.bf16.mxu0 %v940
        %1263 = vmatpush1.bf16.msra.mxu0 %v939
        %1264 = vmatprep.subr.bf16.mxu0 %v948
        %1265 = vmatpush1.bf16.msra.mxu0 %v947
        %1266 = vmatprep.subr.bf16.mxu0 %v956
        %1267 = vmatpush1.bf16.msra.mxu0 %v955
        %1268 = vmatprep.subr.bf16.mxu0 %v964
        %1269 = vmatpush1.bf16.msra.mxu0 %v963
        %1270 = vmatprep.subr.bf16.mxu0 %v972
        %1271 = vmatpush1.bf16.msra.mxu0 %v971
        %1272 = vmatprep.subr.bf16.mxu0 0
        %1273 = vmatpush1.bf16.msra.mxu0 0
        %1274 = vmatprep.subr.bf16.mxu0 0
        %1275 = vmatpush1.bf16.msra.mxu0 0
        %1276 = vmatprep.subr.bf16.mxu0 0
        %1277 = vmatpush1.bf16.msra.mxu0 0
        %1278 = vmatprep.subr.bf16.mxu0 0
        %1279 = vmatpush1.bf16.msra.mxu0 0
        %1280 = vmatprep.subr.bf16.mxu0 0
        %1281 = vmatpush1.bf16.msra.mxu0 0
        %1282 = vmatprep.subr.bf16.mxu0 0
        %1283 = vmatpush1.bf16.msra.mxu0 0
        %1284 = vmatprep.subr.bf16.mxu0 0
        %1285 = vmatpush1.bf16.msra.mxu0 0
        %1286 = vmatprep.subr.bf16.mxu0 0
        %1287 = vmatpush1.bf16.msra.mxu0 0
        %1288 = vmatprep.mubr.bf16.mxu0 0
        %1289 = vmatmul.mubr.bf16.gmra.mrb[0].mxu0 %v607
        %v1290 = vpop.f32.mrb[0].mxu0
        %v1291 = vadd.f32 %v704, %v1290
        %v1292 = vpop.f32.mrb[0].mxu0
        %v1293 = vadd.f32 %v708, %v1292
        %v1294 = vpop.f32.mrb[0].mxu0
        %v1295 = vadd.f32 %v704, %v1294
        %v1296 = vpop.f32.mrb[0].mxu0
        %v1297 = vadd.f32 %v708, %v1296
        %1298 = vmatprep.mubr.bf16.mxu0 0
        %1299 = vmatmul.mubr.bf16.gmra.mrb[0].mxu0 %v608
        %v1300 = vpop.f32.mrb[0].mxu0
        %v1301 = vadd.f32 %v704, %v1300
        %v1302 = vpop.f32.mrb[0].mxu0
        %v1303 = vadd.f32 %v708, %v1302
        %v1304 = vpop.f32.mrb[0].mxu0
        %v1305 = vadd.f32 %v704, %v1304
        %v1306 = vpop.f32.mrb[0].mxu0
        %v1307 = vadd.f32 %v708, %v1306
        %1308 = vmatprep.mubr.bf16.mxu0 0
        %1309 = vmatmul.mubr.bf16.gmra.mrb[0].mxu0 %v609
        %v1310 = vpop.f32.mrb[0].mxu0
        %v1311 = vadd.f32 %v704, %v1310
        %v1312 = vpop.f32.mrb[0].mxu0
        %v1313 = vadd.f32 %v708, %v1312
        %v1314 = vpop.f32.mrb[0].mxu0
        %v1315 = vadd.f32 %v704, %v1314
        %v1316 = vpop.f32.mrb[0].mxu0
        %v1317 = vadd.f32 %v708, %v1316
        %1318 = vmatprep.mubr.bf16.mxu0 0
        %1319 = vmatmul.mubr.bf16.gmra.mrb[0].mxu0 %v610
        %v1320 = vpop.f32.mrb[0].mxu0
        %v1321 = vadd.f32 %v704, %v1320
        %v1322 = vpop.f32.mrb[0].mxu0
        %v1323 = vadd.f32 %v708, %v1322
        %v1324 = vpop.f32.mrb[0].mxu0
        %v1325 = vadd.f32 %v704, %v1324
        %v1326 = vpop.f32.mrb[0].mxu0
        %v1327 = vadd.f32 %v708, %v1326
        %1328 = vdwg.mxu0
        %v1329 = vmax.f32 %v1072, 0.0
        %v1330 = vmax.f32 %v1074, 0.0
        %v1331 = vmax.f32 %v1145, 0.0
        %v1332 = vmax.f32 %v1147, 0.0
        %v1333 = vmax.f32 %v1218, 0.0
        %v1334 = vmax.f32 %v1220, 0.0
        %v1335 = vmax.f32 %v1291, 0.0
        %v1336 = vmax.f32 %v1293, 0.0
        %v1337 = vmax.f32 %v1076, 0.0
        %v1338 = vmax.f32 %v1078, 0.0
        %v1339 = vmax.f32 %v1149, 0.0
        %v1340 = vmax.f32 %v1151, 0.0
        %v1341 = vmax.f32 %v1222, 0.0
        %v1342 = vmax.f32 %v1224, 0.0
        %v1343 = vmax.f32 %v1295, 0.0
        %v1344 = vmax.f32 %v1297, 0.0
        %v1345 = vmax.f32 %v1082, 0.0
        %v1346 = vmax.f32 %v1084, 0.0
        %v1347 = vmax.f32 %v1155, 0.0
        %v1348 = vmax.f32 %v1157, 0.0
        %v1349 = vmax.f32 %v1228, 0.0
        %v1350 = vmax.f32 %v1230, 0.0
        %v1351 = vmax.f32 %v1301, 0.0
        %v1352 = vmax.f32 %v1303, 0.0
        %v1353 = vmax.f32 %v1086, 0.0
        %v1354 = vmax.f32 %v1088, 0.0
        %v1355 = vmax.f32 %v1159, 0.0
        %v1356 = vmax.f32 %v1161, 0.0
        %v1357 = vmax.f32 %v1232, 0.0
        %v1358 = vmax.f32 %v1234, 0.0
        %v1359 = vmax.f32 %v1305, 0.0
        %v1360 = vmax.f32 %v1307, 0.0
        %v1361 = vmax.f32 %v1092, 0.0
        %v1362 = vmax.f32 %v1094, 0.0
        %v1363 = vmax.f32 %v1165, 0.0
        %v1364 = vmax.f32 %v1167, 0.0
        %v1365 = vmax.f32 %v1238, 0.0
        %v1366 = vmax.f32 %v1240, 0.0
        %v1367 = vmax.f32 %v1311, 0.0
        %v1368 = vmax.f32 %v1313, 0.0
        %v1369 = vmax.f32 %v1096, 0.0
        %v1370 = vmax.f32 %v1098, 0.0
        %v1371 = vmax.f32 %v1169, 0.0
        %v1372 = vmax.f32 %v1171, 0.0
        %v1373 = vmax.f32 %v1242, 0.0
        %v1374 = vmax.f32 %v1244, 0.0
        %v1375 = vmax.f32 %v1315, 0.0
        %v1376 = vmax.f32 %v1317, 0.0
        %v1377 = vmax.f32 %v1102, 0.0
        %v1378 = vmax.f32 %v1104, 0.0
        %v1379 = vmax.f32 %v1175, 0.0
        %v1380 = vmax.f32 %v1177, 0.0
        %v1381 = vmax.f32 %v1248, 0.0
        %v1382 = vmax.f32 %v1250, 0.0
        %v1383 = vmax.f32 %v1321, 0.0
        %v1384 = vmax.f32 %v1323, 0.0
        %v1385 = vmax.f32 %v1106, 0.0
        %v1386 = vmax.f32 %v1108, 0.0
        %v1387 = vmax.f32 %v1179, 0.0
        %v1388 = vmax.f32 %v1181, 0.0
        %v1389 = vmax.f32 %v1252, 0.0
        %v1390 = vmax.f32 %v1254, 0.0
        %v1391 = vmax.f32 %v1325, 0.0
        %v1392 = vmax.f32 %v1327, 0.0
        %v1393 = vmax.f32 %v1329, %v1337
        %v1394 = vmax.f32 %v1393, %v1345
        %v1395 = vmax.f32 %v1394, %v1353
        %v1396 = vmax.f32 %v1395, %v1361
        %v1397 = vmax.f32 %v1396, %v1369
        %v1398 = vmax.f32 %v1397, %v1377
        %v1399 = vmax.f32 %v1398, %v1385
        %v1400 = vrot.slane %v1399, 4
        %v1401 = vmax.f32 %v1399, %v1400
        %v1402 = vrot.slane %v1401, 2
        %v1403 = vmax.f32 %v1401, %v1402
        %v1404 = vrot.slane %v1403, 1
        %v1405 = vmax.f32 %v1403, %v1404
        %v1406 = vmax.f32 %v1330, %v1338
        %v1407 = vmax.f32 %v1406, %v1346
        %v1408 = vmax.f32 %v1407, %v1354
        %v1409 = vmax.f32 %v1408, %v1362
        %v1410 = vmax.f32 %v1409, %v1370
        %v1411 = vmax.f32 %v1410, %v1378
        %v1412 = vmax.f32 %v1411, %v1386
        %v1413 = vrot.slane %v1412, 4
        %v1414 = vmax.f32 %v1412, %v1413
        %v1415 = vrot.slane %v1414, 2
        %v1416 = vmax.f32 %v1414, %v1415
        %v1417 = vrot.slane %v1416, 1
        %v1418 = vmax.f32 %v1416, %v1417
        %v1419 = vmax.f32 %v1331, %v1339
        %v1420 = vmax.f32 %v1419, %v1347
        %v1421 = vmax.f32 %v1420, %v1355
        %v1422 = vmax.f32 %v1421, %v1363
        %v1423 = vmax.f32 %v1422, %v1371
        %v1424 = vmax.f32 %v1423, %v1379
        %v1425 = vmax.f32 %v1424, %v1387
        %v1426 = vrot.slane %v1425, 4
        %v1427 = vmax.f32 %v1425, %v1426
        %v1428 = vrot.slane %v1427, 2
        %v1429 = vmax.f32 %v1427, %v1428
        %v1430 = vrot.slane %v1429, 1
        %v1431 = vmax.f32 %v1429, %v1430
        %v1432 = vmax.f32 %v1332, %v1340
        %v1433 = vmax.f32 %v1432, %v1348
        %v1434 = vmax.f32 %v1433, %v1356
        %v1435 = vmax.f32 %v1434, %v1364
        %v1436 = vmax.f32 %v1435, %v1372
        %v1437 = vmax.f32 %v1436, %v1380
        %v1438 = vmax.f32 %v1437, %v1388
        %v1439 = vrot.slane %v1438, 4
        %v1440 = vmax.f32 %v1438, %v1439
        %v1441 = vrot.slane %v1440, 2
        %v1442 = vmax.f32 %v1440, %v1441
        %v1443 = vrot.slane %v1442, 1
        %v1444 = vmax.f32 %v1442, %v1443
        %v1445 = vmax.f32 %v1333, %v1341
        %v1446 = vmax.f32 %v1445, %v1349
        %v1447 = vmax.f32 %v1446, %v1357
        %v1448 = vmax.f32 %v1447, %v1365
        %v1449 = vmax.f32 %v1448, %v1373
        %v1450 = vmax.f32 %v1449, %v1381
        %v1451 = vmax.f32 %v1450, %v1389
        %v1452 = vrot.slane %v1451, 4
        %v1453 = vmax.f32 %v1451, %v1452
        %v1454 = vrot.slane %v1453, 2
        %v1455 = vmax.f32 %v1453, %v1454
        %v1456 = vrot.slane %v1455, 1
        %v1457 = vmax.f32 %v1455, %v1456
        %v1458 = vmax.f32 %v1334, %v1342
        %v1459 = vmax.f32 %v1458, %v1350
        %v1460 = vmax.f32 %v1459, %v1358
        %v1461 = vmax.f32 %v1460, %v1366
        %v1462 = vmax.f32 %v1461, %v1374
        %v1463 = vmax.f32 %v1462, %v1382
        %v1464 = vmax.f32 %v1463, %v1390
        %v1465 = vrot.slane %v1464, 4
        %v1466 = vmax.f32 %v1464, %v1465
        %v1467 = vrot.slane %v1466, 2
        %v1468 = vmax.f32 %v1466, %v1467
        %v1469 = vrot.slane %v1468, 1
        %v1470 = vmax.f32 %v1468, %v1469
        %v1471 = vmax.f32 %v1335, %v1343
        %v1472 = vmax.f32 %v1471, %v1351
        %v1473 = vmax.f32 %v1472, %v1359
        %v1474 = vmax.f32 %v1473, %v1367
        %v1475 = vmax.f32 %v1474, %v1375
        %v1476 = vmax.f32 %v1475, %v1383
        %v1477 = vmax.f32 %v1476, %v1391
        %v1478 = vrot.slane %v1477, 4
        %v1479 = vmax.f32 %v1477, %v1478
        %v1480 = vrot.slane %v1479, 2
        %v1481 = vmax.f32 %v1479, %v1480
        %v1482 = vrot.slane %v1481, 1
        %v1483 = vmax.f32 %v1481, %v1482
        %v1484 = vmax.f32 %v1336, %v1344
        %v1485 = vmax.f32 %v1484, %v1352
        %v1486 = vmax.f32 %v1485, %v1360
        %v1487 = vmax.f32 %v1486, %v1368
        %v1488 = vmax.f32 %v1487, %v1376
        %v1489 = vmax.f32 %v1488, %v1384
        %v1490 = vmax.f32 %v1489, %v1392
        %v1491 = vrot.slane %v1490, 4
        %v1492 = vmax.f32 %v1490, %v1491
        %v1493 = vrot.slane %v1492, 2
        %v1494 = vmax.f32 %v1492, %v1493
        %v1495 = vrot.slane %v1494, 1
        %v1496 = vmax.f32 %v1494, %v1495
        %p1497 = scmp.eq.s32.totalorder %s25, 0
        // Predicated region
        $region57: #{pointnet_cls_forward.4} parent=51 // pred_check
          %p1498 = pneg %p1497
        $region58: #{pointnet_cls_forward.4} parent=51 // pred_check_branch
          %1500 = sbr.rel (%p1498) target = $region60
        $region59: #{pointnet_cls_forward.4} parent=51 // pred_region
          %v1509 = vcombine.low %v1405, %v1418
          %v1510 = vcombine.low %v1431, %v1444
          %v1511 = vcombine.low %v1457, %v1470
          %v1512 = vcombine.low %v1483, %v1496
          %v1514 = vunpack.c.l.s4 1966171168
          %v1515 = vunpack.c.0.s8 %v1514
          %v1516 = vlaneseq
          %v1517 = vshrl.u32 %v1516, 7
          %v1518 = vsub.s32 %v1515, %v1517
          %v1519 = vrot.slane %v1509, %v1518
          %v1521 = vunpack.c.l.s4 1966171168
          %v1522 = vunpack.c.0.s8 %v1521
          %v1523 = vlaneseq
          %v1524 = vshrl.u32 %v1523, 7
          %v1525 = vsub.s32 %v1522, %v1524
          %v1526 = vrot.slane %v1510, %v1525
          %v1528 = vunpack.c.l.s4 1966171168
          %v1529 = vunpack.c.0.s8 %v1528
          %v1530 = vlaneseq
          %v1531 = vshrl.u32 %v1530, 7
          %v1532 = vsub.s32 %v1529, %v1531
          %v1533 = vrot.slane %v1511, %v1532
          %v1535 = vunpack.c.l.s4 1966171168
          %v1536 = vunpack.c.0.s8 %v1535
          %v1537 = vlaneseq
          %v1538 = vshrl.u32 %v1537, 7
          %v1539 = vsub.s32 %v1536, %v1538
          %v1540 = vrot.slane %v1512, %v1539
          %v1541 = vcombine.low %v1519, %v1526
          %v1542 = vcombine.low %v1533, %v1540
          %v1544 = vunpack.c.l.s4 1966171168
          %v1545 = vunpack.c.0.s8 %v1544
          %v1546 = vlaneseq
          %v1547 = vshrl.u32 %v1546, 7
          %v1548 = vsub.s32 %v1545, %v1547
          %v1549 = vrot.slane %v1541, %v1548
          %v1551 = vunpack.c.l.s4 1966171168
          %v1552 = vunpack.c.0.s8 %v1551
          %v1553 = vlaneseq
          %v1554 = vshrl.u32 %v1553, 7
          %v1555 = vsub.s32 %v1552, %v1554
          %v1556 = vrot.slane %v1542, %v1555
          %v1557 = vcombine.low %v1549, %v1556
          %1559 = vst [vmem:[#allocation2] sm:$0xff] %v1557
        $region60: #{pointnet_cls_forward.4} parent=51 // pred_fallthru
          _
        %p1560 = scmp.ne.s32.totalorder %s25, 0
        // Predicated region
        $region61: #{pointnet_cls_forward.4} parent=51 // pred_check
          %p1561 = pneg %p1560
        $region62: #{pointnet_cls_forward.4} parent=51 // pred_check_branch
          %1563 = sbr.rel (%p1561) target = $region64
        $region63: #{pointnet_cls_forward.4} parent=51 // pred_region
          %v1564 = vld [vmem:[#allocation2] sm:$0xff]
          %v1573 = vcombine.low %v1405, %v1418
          %v1574 = vcombine.low %v1431, %v1444
          %v1575 = vcombine.low %v1457, %v1470
          %v1576 = vcombine.low %v1483, %v1496
          %v1578 = vunpack.c.l.s4 1966171168
          %v1579 = vunpack.c.0.s8 %v1578
          %v1580 = vlaneseq
          %v1581 = vshrl.u32 %v1580, 7
          %v1582 = vsub.s32 %v1579, %v1581
          %v1583 = vrot.slane %v1573, %v1582
          %v1585 = vunpack.c.l.s4 1966171168
          %v1586 = vunpack.c.0.s8 %v1585
          %v1587 = vlaneseq
          %v1588 = vshrl.u32 %v1587, 7
          %v1589 = vsub.s32 %v1586, %v1588
          %v1590 = vrot.slane %v1574, %v1589
          %v1592 = vunpack.c.l.s4 1966171168
          %v1593 = vunpack.c.0.s8 %v1592
          %v1594 = vlaneseq
          %v1595 = vshrl.u32 %v1594, 7
          %v1596 = vsub.s32 %v1593, %v1595
          %v1597 = vrot.slane %v1575, %v1596
          %v1599 = vunpack.c.l.s4 1966171168
          %v1600 = vunpack.c.0.s8 %v1599
          %v1601 = vlaneseq
          %v1602 = vshrl.u32 %v1601, 7
          %v1603 = vsub.s32 %v1600, %v1602
          %v1604 = vrot.slane %v1576, %v1603
          %v1605 = vcombine.low %v1583, %v1590
          %v1606 = vcombine.low %v1597, %v1604
          %v1608 = vunpack.c.l.s4 1966171168
          %v1609 = vunpack.c.0.s8 %v1608
          %v1610 = vlaneseq
          %v1611 = vshrl.u32 %v1610, 7
          %v1612 = vsub.s32 %v1609, %v1611
          %v1613 = vrot.slane %v1605, %v1612
          %v1615 = vunpack.c.l.s4 1966171168
          %v1616 = vunpack.c.0.s8 %v1615
          %v1617 = vlaneseq
          %v1618 = vshrl.u32 %v1617, 7
          %v1619 = vsub.s32 %v1616, %v1618
          %v1620 = vrot.slane %v1606, %v1619
          %v1621 = vcombine.low %v1613, %v1620
          %v1623 = vmax.f32 %v1564, %v1621
          %1624 = vst [vmem:[#allocation2] sm:$0xff] %v1623
        $region64: #{pointnet_cls_forward.4} parent=51 // pred_fallthru
          _
        // Predicated region
        $region65: #{pointnet_cls_forward.4} parent=51 // pred_check
          %p1625 = pneg %p1497
        $region66: #{pointnet_cls_forward.4} parent=51 // pred_check_branch
          %1627 = sbr.rel (%p1625) target = $region68
        $region67: #{pointnet_cls_forward.4} parent=51 // pred_region
          %v1628 = vld [vmem:[#allocation2] sm:$0xff]
          %1629 = vst [vmem:[%s363] sm:$0xff] %v1628
        $region68: #{pointnet_cls_forward.4} parent=51 // pred_fallthru
          _
        %p1630 = scmp.lt.s32.totalorder %s24, 1
        %s1631 = scalar_select %p1630, %s24, 1
        %s1632 = smul.addr %s1631, 8
        %s1633 = scalar_lea.vmem %s8, %s1632
        // Predicated region
        $region69: #{pointnet_cls_forward.4} parent=51 // pred_check
          %p1634 = pneg %p230
        $region70: #{pointnet_cls_forward.4} parent=51 // pred_check_branch
          %1636 = sbr.rel (%p1634) target = $region72
        $region71: #{pointnet_cls_forward.4} parent=51 // pred_region
          _
        $region72: #{pointnet_cls_forward.4} parent=51 // pred_fallthru
          _
      $region52: #{pointnet_cls_forward.4} parent=5 // pred_fallthru
        _
      %p1637 = scmp.le.s32.totalorder 2, %s15
      // Predicated region
      $region73: #{pointnet_cls_forward.4} parent=5 // pred_check
        %p1638 = pneg %p1637
      $region74: #{pointnet_cls_forward.4} parent=5 // pred_check_branch
        %1640 = sbr.rel (%p1638) target = $region76
      $region75: #{pointnet_cls_forward.4} parent=5 // pred_region
        %s1641 = ssub.s32 %s15, 2
        // Predicated region
        $region77: #{pointnet_cls_forward.4} parent=75 // pred_check
          %p1642 = pneg %p236
        $region78: #{pointnet_cls_forward.4} parent=75 // pred_check_branch
          %1644 = sbr.rel (%p1642) target = $region80
        $region79: #{pointnet_cls_forward.4} parent=75 // pred_region
          %p1645 = scmp.lt.s32.totalorder %s26, 1
          %s1646 = scalar_select %p1645, %s26, 1
          %s1647 = smul.addr %s1646, 8
          %s1648 = scalar_lea.vmem %s8, %s1647
        $region80: #{pointnet_cls_forward.4} parent=75 // pred_fallthru
          _
      $region76: #{pointnet_cls_forward.4} parent=5 // pred_fallthru
        _
    $region6: #{pointnet_cls_forward.4} parent=1 // loop_footer
      %s19 = sadd.s32 1, %s15
    $region7: #{pointnet_cls_forward.4} parent=1 // loop_footer_branch
      %14 = sbr.rel target = $region3
    $region8: #{pointnet_cls_forward.4} parent=1 // loop_exit
      _
    %1649 = vsyncpa [#allocation4], 1
    %s1650 = scalar_lea.sflag [#allocation4], 1
    %1651 = vsyncpa %s1650, 1

// kernel: pointnet_cls_forward.5
$region0: #{pointnet_cls_forward.5}
  #allocation0 [shape = 'u32[]', space=smem, size = 0x4, offset = 0x4, fixed_abs, tag = 'smem constant byte address 0x4 - core index']
  #allocation1 [shape = 'u32[144,128]{1,0:T(1,128)}', space=vmem, size = 0x12000, scoped, tag = 'internal scratch']
  %s0 = inlined_call_operand.vmem [shape: f32[2,1024], index: 0, kind: input, shape index: {}]
  %s1 = inlined_call_operand.hbm [shape: bf16[1024,512], index: 1, kind: input, shape index: {}]
  %s2 = inlined_call_operand.vmem [shape: f32[1,512], index: 2, kind: input, shape index: {}]
  %s3 = inlined_call_operand.vmem [shape: bf16[512,256], index: 3, kind: input, shape index: {}]
  %s4 = inlined_call_operand.vmem [shape: f32[1,256], index: 4, kind: input, shape index: {}]
  %s5 = inlined_call_operand.vmem [shape: bf16[256,9], index: 5, kind: input, shape index: {}]
  %s6 = inlined_call_operand.vmem [shape: f32[1,9], index: 6, kind: input, shape index: {}]
  %s7 = inlined_call_operand.vmem [shape: f32[2,9], index: 7, kind: output, shape index: {}]
  %s8 = sld [smem:[#allocation0]]
  $region42: #{pointnet_cls_forward.5} parent=0
    _
  %s10 = ssub.s32 1, %s8
  %s11 = scalar_select 0, %s10, %s8
  $region1: #{pointnet_cls_forward.5} parent=0
    #allocation2 [shape = 'u8[1048576]{0}', space=vmem, size = 0x100000, scoped, tag = 'input window, operand 1, single buffered']
    #allocation3 [shape = 's32[1]{0}', space=sflag, size = 0x4, scoped, tag = 'scoped memory for pointnet_cls_forward.5']
    %12 = vsyncpa [#allocation3], 0
    // Predicated region
    $region2: #{pointnet_cls_forward.5} parent=1 // pred_check
      _
    $region3: #{pointnet_cls_forward.5} parent=1 // pred_check_branch
      %14 = sbr.rel (0) target = $region5
    $region4: #{pointnet_cls_forward.5} parent=1 // pred_region
      _
    $region5: #{pointnet_cls_forward.5} parent=1 // pred_fallthru
      _
    // Predicated region
    $region6: #{pointnet_cls_forward.5} parent=1 // pred_check
      _
    $region7: #{pointnet_cls_forward.5} parent=1 // pred_check_branch
      %16 = sbr.rel (0) target = $region9
    $region8: #{pointnet_cls_forward.5} parent=1 // pred_region
      %s18 = ssub.s32 32768, 32768
      %19 = vsyncadd [#allocation3], %s18
      %s20 = sshll.u32 [#allocation2], 4
      %s21 = int_to_ptr.vmem [resolvable:$true] %s20
      %26 = dma.hbm_to_vmem [thread:$0]  %s1, 32768, %s21, [#allocation3], 256, 256, 16
    $region9: #{pointnet_cls_forward.5} parent=1 // pred_fallthru
      _
    // Predicated region
    $region10: #{pointnet_cls_forward.5} parent=1 // pred_check
      _
    $region11: #{pointnet_cls_forward.5} parent=1 // pred_check_branch
      %28 = sbr.rel (0) target = $region13
    $region12: #{pointnet_cls_forward.5} parent=1 // pred_region
      _
    $region13: #{pointnet_cls_forward.5} parent=1 // pred_fallthru
      _
    // Predicated region
    $region14: #{pointnet_cls_forward.5} parent=1 // pred_check
      _
    $region15: #{pointnet_cls_forward.5} parent=1 // pred_check_branch
      %30 = sbr.rel (0) target = $region17
    $region16: #{pointnet_cls_forward.5} parent=1 // pred_region
      _
    $region17: #{pointnet_cls_forward.5} parent=1 // pred_fallthru
      _
    // Predicated region
    $region18: #{pointnet_cls_forward.5} parent=1 // pred_check
      _
    $region19: #{pointnet_cls_forward.5} parent=1 // pred_check_branch
      %32 = sbr.rel (0) target = $region21
    $region20: #{pointnet_cls_forward.5} parent=1 // pred_region
      _
    $region21: #{pointnet_cls_forward.5} parent=1 // pred_fallthru
      _
    // Predicated region
    $region22: #{pointnet_cls_forward.5} parent=1 // pred_check
      _
    $region23: #{pointnet_cls_forward.5} parent=1 // pred_check_branch
      %34 = sbr.rel (0) target = $region25
    $region24: #{pointnet_cls_forward.5} parent=1 // pred_region
      _
    $region25: #{pointnet_cls_forward.5} parent=1 // pred_fallthru
      _
    // Predicated region
    $region26: #{pointnet_cls_forward.5} parent=1 // pred_check
      _
    $region27: #{pointnet_cls_forward.5} parent=1 // pred_check_branch
      %36 = sbr.rel (0) target = $region29
    $region28: #{pointnet_cls_forward.5} parent=1 // pred_region
      _
    $region29: #{pointnet_cls_forward.5} parent=1 // pred_fallthru
      _
    // Predicated region
    $region30: #{pointnet_cls_forward.5} parent=1 // pred_check
      _
    $region31: #{pointnet_cls_forward.5} parent=1 // pred_check_branch
      %38 = sbr.rel (0) target = $region33
    $region32: #{pointnet_cls_forward.5} parent=1 // pred_region
      %39 = dma.done [#allocation3], 32768
    $region33: #{pointnet_cls_forward.5} parent=1 // pred_fallthru
      _
    %v41 = vld [vmem:[%s0] sm:$0xff]
    %v42 = vld [vmem:[%s0 + $0x8] sm:$0xff]
    %v45 = vcombine.high %v41, %v41
    %v47 = vunpack.c.l.s4 1983009808
    %v48 = vunpack.c.0.s8 %v47
    %v49 = vlaneseq
    %v50 = vshrl.u32 %v49, 7
    %v51 = vsub.s32 %v48, %v50
    %v52 = vrot.slane %v41, %v51
    %v54 = vunpack.c.l.s4 1983009808
    %v55 = vunpack.c.0.s8 %v54
    %v56 = vlaneseq
    %v57 = vshrl.u32 %v56, 7
    %v58 = vsub.s32 %v55, %v57
    %v59 = vrot.slane %v45, %v58
    %v60 = vcombine.high %v52, %v52
    %v61 = vcombine.high %v59, %v59
    %v62 = vcombine.high %v42, %v42
    %v64 = vunpack.c.l.s4 1983009808
    %v65 = vunpack.c.0.s8 %v64
    %v66 = vlaneseq
    %v67 = vshrl.u32 %v66, 7
    %v68 = vsub.s32 %v65, %v67
    %v69 = vrot.slane %v42, %v68
    %v71 = vunpack.c.l.s4 1983009808
    %v72 = vunpack.c.0.s8 %v71
    %v73 = vlaneseq
    %v74 = vshrl.u32 %v73, 7
    %v75 = vsub.s32 %v72, %v74
    %v76 = vrot.slane %v62, %v75
    %v77 = vcombine.high %v69, %v69
    %v78 = vcombine.high %v76, %v76
    %v87 = vpack.c.bf16 %v52, %v52
    %v88 = vpack.c.bf16 %v60, %v60
    %v89 = vpack.c.bf16 %v59, %v59
    %v90 = vpack.c.bf16 %v61, %v61
    %v91 = vpack.c.bf16 %v69, %v69
    %v92 = vpack.c.bf16 %v77, %v77
    %v93 = vpack.c.bf16 %v76, %v76
    %v94 = vpack.c.bf16 %v78, %v78
    %v95 = vld [vmem:[#allocation2] sm:$0xff]
    %v96 = vld [vmem:[#allocation2 + $0x8] sm:$0xff]
    %v97 = vld [vmem:[#allocation2 + $0x10] sm:$0xff]
    %v98 = vld [vmem:[#allocation2 + $0x18] sm:$0xff]
    %v99 = vld [vmem:[#allocation2 + $0x20] sm:$0xff]
    %v100 = vld [vmem:[#allocation2 + $0x28] sm:$0xff]
    %v101 = vld [vmem:[#allocation2 + $0x30] sm:$0xff]
    %v102 = vld [vmem:[#allocation2 + $0x38] sm:$0xff]
    %v103 = vld [vmem:[#allocation2 + $0x40] sm:$0xff]
    %v104 = vld [vmem:[#allocation2 + $0x48] sm:$0xff]
    %v105 = vld [vmem:[#allocation2 + $0x50] sm:$0xff]
    %v106 = vld [vmem:[#allocation2 + $0x58] sm:$0xff]
    %v107 = vld [vmem:[#allocation2 + $0x60] sm:$0xff]
    %v108 = vld [vmem:[#allocation2 + $0x68] sm:$0xff]
    %v109 = vld [vmem:[#allocation2 + $0x70] sm:$0xff]
    %v110 = vld [vmem:[#allocation2 + $0x78] sm:$0xff]
    %v111 = vld [vmem:[#allocation2 + $0x80] sm:$0xff]
    %v112 = vld [vmem:[#allocation2 + $0x88] sm:$0xff]
    %v113 = vld [vmem:[#allocation2 + $0x90] sm:$0xff]
    %v114 = vld [vmem:[#allocation2 + $0x98] sm:$0xff]
    %v115 = vld [vmem:[#allocation2 + $0xa0] sm:$0xff]
    %v116 = vld [vmem:[#allocation2 + $0xa8] sm:$0xff]
    %v117 = vld [vmem:[#allocation2 + $0xb0] sm:$0xff]
    %v118 = vld [vmem:[#allocation2 + $0xb8] sm:$0xff]
    %v119 = vld [vmem:[#allocation2 + $0xc0] sm:$0xff]
    %v120 = vld [vmem:[#allocation2 + $0xc8] sm:$0xff]
    %v121 = vld [vmem:[#allocation2 + $0xd0] sm:$0xff]
    %v122 = vld [vmem:[#allocation2 + $0xd8] sm:$0xff]
    %v123 = vld [vmem:[#allocation2 + $0xe0] sm:$0xff]
    %v124 = vld [vmem:[#allocation2 + $0xe8] sm:$0xff]
    %v125 = vld [vmem:[#allocation2 + $0xf0] sm:$0xff]
    %v126 = vld [vmem:[#allocation2 + $0xf8] sm:$0xff]
    %v127 = vld [vmem:[#allocation2 + $0x100] sm:$0xff]
    %v128 = vld [vmem:[#allocation2 + $0x108] sm:$0xff]
    %v129 = vld [vmem:[#allocation2 + $0x110] sm:$0xff]
    %v130 = vld [vmem:[#allocation2 + $0x118] sm:$0xff]
    %v131 = vld [vmem:[#allocation2 + $0x120] sm:$0xff]
    %v132 = vld [vmem:[#allocation2 + $0x128] sm:$0xff]
    %v133 = vld [vmem:[#allocation2 + $0x130] sm:$0xff]
    %v134 = vld [vmem:[#allocation2 + $0x138] sm:$0xff]
    %v135 = vld [vmem:[#allocation2 + $0x140] sm:$0xff]
    %v136 = vld [vmem:[#allocation2 + $0x148] sm:$0xff]
    %v137 = vld [vmem:[#allocation2 + $0x150] sm:$0xff]
    %v138 = vld [vmem:[#allocation2 + $0x158] sm:$0xff]
    %v139 = vld [vmem:[#allocation2 + $0x160] sm:$0xff]
    %v140 = vld [vmem:[#allocation2 + $0x168] sm:$0xff]
    %v141 = vld [vmem:[#allocation2 + $0x170] sm:$0xff]
    %v142 = vld [vmem:[#allocation2 + $0x178] sm:$0xff]
    %v143 = vld [vmem:[#allocation2 + $0x180] sm:$0xff]
    %v144 = vld [vmem:[#allocation2 + $0x188] sm:$0xff]
    %v145 = vld [vmem:[#allocation2 + $0x190] sm:$0xff]
    %v146 = vld [vmem:[#allocation2 + $0x198] sm:$0xff]
    %v147 = vld [vmem:[#allocation2 + $0x1a0] sm:$0xff]
    %v148 = vld [vmem:[#allocation2 + $0x1a8] sm:$0xff]
    %v149 = vld [vmem:[#allocation2 + $0x1b0] sm:$0xff]
    %v150 = vld [vmem:[#allocation2 + $0x1b8] sm:$0xff]
    %v151 = vld [vmem:[#allocation2 + $0x1c0] sm:$0xff]
    %v152 = vld [vmem:[#allocation2 + $0x1c8] sm:$0xff]
    %v153 = vld [vmem:[#allocation2 + $0x1d0] sm:$0xff]
    %v154 = vld [vmem:[#allocation2 + $0x1d8] sm:$0xff]
    %v155 = vld [vmem:[#allocation2 + $0x1e0] sm:$0xff]
    %v156 = vld [vmem:[#allocation2 + $0x1e8] sm:$0xff]
    %v157 = vld [vmem:[#allocation2 + $0x1f0] sm:$0xff]
    %v158 = vld [vmem:[#allocation2 + $0x1f8] sm:$0xff]
    %v159 = vld [vmem:[#allocation2 + $0x200] sm:$0xff]
    %v160 = vld [vmem:[#allocation2 + $0x208] sm:$0xff]
    %v161 = vld [vmem:[#allocation2 + $0x210] sm:$0xff]
    %v162 = vld [vmem:[#allocation2 + $0x218] sm:$0xff]
    %v163 = vld [vmem:[#allocation2 + $0x220] sm:$0xff]
    %v164 = vld [vmem:[#allocation2 + $0x228] sm:$0xff]
    %v165 = vld [vmem:[#allocation2 + $0x230] sm:$0xff]
    %v166 = vld [vmem:[#allocation2 + $0x238] sm:$0xff]
    %v167 = vld [vmem:[#allocation2 + $0x240] sm:$0xff]
    %v168 = vld [vmem:[#allocation2 + $0x248] sm:$0xff]
    %v169 = vld [vmem:[#allocation2 + $0x250] sm:$0xff]
    %v170 = vld [vmem:[#allocation2 + $0x258] sm:$0xff]
    %v171 = vld [vmem:[#allocation2 + $0x260] sm:$0xff]
    %v172 = vld [vmem:[#allocation2 + $0x268] sm:$0xff]
    %v173 = vld [vmem:[#allocation2 + $0x270] sm:$0xff]
    %v174 = vld [vmem:[#allocation2 + $0x278] sm:$0xff]
    %v175 = vld [vmem:[#allocation2 + $0x280] sm:$0xff]
    %v176 = vld [vmem:[#allocation2 + $0x288] sm:$0xff]
    %v177 = vld [vmem:[#allocation2 + $0x290] sm:$0xff]
    %v178 = vld [vmem:[#allocation2 + $0x298] sm:$0xff]
    %v179 = vld [vmem:[#allocation2 + $0x2a0] sm:$0xff]
    %v180 = vld [vmem:[#allocation2 + $0x2a8] sm:$0xff]
    %v181 = vld [vmem:[#allocation2 + $0x2b0] sm:$0xff]
    %v182 = vld [vmem:[#allocation2 + $0x2b8] sm:$0xff]
    %v183 = vld [vmem:[#allocation2 + $0x2c0] sm:$0xff]
    %v184 = vld [vmem:[#allocation2 + $0x2c8] sm:$0xff]
    %v185 = vld [vmem:[#allocation2 + $0x2d0] sm:$0xff]
    %v186 = vld [vmem:[#allocation2 + $0x2d8] sm:$0xff]
    %v187 = vld [vmem:[#allocation2 + $0x2e0] sm:$0xff]
    %v188 = vld [vmem:[#allocation2 + $0x2e8] sm:$0xff]
    %v189 = vld [vmem:[#allocation2 + $0x2f0] sm:$0xff]
    %v190 = vld [vmem:[#allocation2 + $0x2f8] sm:$0xff]
    %v191 = vld [vmem:[#allocation2 + $0x300] sm:$0xff]
    %v192 = vld [vmem:[#allocation2 + $0x308] sm:$0xff]
    %v193 = vld [vmem:[#allocation2 + $0x310] sm:$0xff]
    %v194 = vld [vmem:[#allocation2 + $0x318] sm:$0xff]
    %v195 = vld [vmem:[#allocation2 + $0x320] sm:$0xff]
    %v196 = vld [vmem:[#allocation2 + $0x328] sm:$0xff]
    %v197 = vld [vmem:[#allocation2 + $0x330] sm:$0xff]
    %v198 = vld [vmem:[#allocation2 + $0x338] sm:$0xff]
    %v199 = vld [vmem:[#allocation2 + $0x340] sm:$0xff]
    %v200 = vld [vmem:[#allocation2 + $0x348] sm:$0xff]
    %v201 = vld [vmem:[#allocation2 + $0x350] sm:$0xff]
    %v202 = vld [vmem:[#allocation2 + $0x358] sm:$0xff]
    %v203 = vld [vmem:[#allocation2 + $0x360] sm:$0xff]
    %v204 = vld [vmem:[#allocation2 + $0x368] sm:$0xff]
    %v205 = vld [vmem:[#allocation2 + $0x370] sm:$0xff]
    %v206 = vld [vmem:[#allocation2 + $0x378] sm:$0xff]
    %v207 = vld [vmem:[#allocation2 + $0x380] sm:$0xff]
    %v208 = vld [vmem:[#allocation2 + $0x388] sm:$0xff]
    %v209 = vld [vmem:[#allocation2 + $0x390] sm:$0xff]
    %v210 = vld [vmem:[#allocation2 + $0x398] sm:$0xff]
    %v211 = vld [vmem:[#allocation2 + $0x3a0] sm:$0xff]
    %v212 = vld [vmem:[#allocation2 + $0x3a8] sm:$0xff]
    %v213 = vld [vmem:[#allocation2 + $0x3b0] sm:$0xff]
    %v214 = vld [vmem:[#allocation2 + $0x3b8] sm:$0xff]
    %v215 = vld [vmem:[#allocation2 + $0x3c0] sm:$0xff]
    %v216 = vld [vmem:[#allocation2 + $0x3c8] sm:$0xff]
    %v217 = vld [vmem:[#allocation2 + $0x3d0] sm:$0xff]
    %v218 = vld [vmem:[#allocation2 + $0x3d8] sm:$0xff]
    %v219 = vld [vmem:[#allocation2 + $0x3e0] sm:$0xff]
    %v220 = vld [vmem:[#allocation2 + $0x3e8] sm:$0xff]
    %v221 = vld [vmem:[#allocation2 + $0x3f0] sm:$0xff]
    %v222 = vld [vmem:[#allocation2 + $0x3f8] sm:$0xff]
    %v223 = vld [vmem:[#allocation2 + $0x400] sm:$0xff]
    %v224 = vld [vmem:[#allocation2 + $0x408] sm:$0xff]
    %v225 = vld [vmem:[#allocation2 + $0x410] sm:$0xff]
    %v226 = vld [vmem:[#allocation2 + $0x418] sm:$0xff]
    %v227 = vld [vmem:[#allocation2 + $0x420] sm:$0xff]
    %v228 = vld [vmem:[#allocation2 + $0x428] sm:$0xff]
    %v229 = vld [vmem:[#allocation2 + $0x430] sm:$0xff]
    %v230 = vld [vmem:[#allocation2 + $0x438] sm:$0xff]
    %v231 = vld [vmem:[#allocation2 + $0x440] sm:$0xff]
    %v232 = vld [vmem:[#allocation2 + $0x448] sm:$0xff]
    %v233 = vld [vmem:[#allocation2 + $0x450] sm:$0xff]
    %v234 = vld [vmem:[#allocation2 + $0x458] sm:$0xff]
    %v235 = vld [vmem:[#allocation2 + $0x460] sm:$0xff]
    %v236 = vld [vmem:[#allocation2 + $0x468] sm:$0xff]
    %v237 = vld [vmem:[#allocation2 + $0x470] sm:$0xff]
    %v238 = vld [vmem:[#allocation2 + $0x478] sm:$0xff]
    %v239 = vld [vmem:[#allocation2 + $0x480] sm:$0xff]
    %v240 = vld [vmem:[#allocation2 + $0x488] sm:$0xff]
    %v241 = vld [vmem:[#allocation2 + $0x490] sm:$0xff]
    %v242 = vld [vmem:[#allocation2 + $0x498] sm:$0xff]
    %v243 = vld [vmem:[#allocation2 + $0x4a0] sm:$0xff]
    %v244 = vld [vmem:[#allocation2 + $0x4a8] sm:$0xff]
    %v245 = vld [vmem:[#allocation2 + $0x4b0] sm:$0xff]
    %v246 = vld [vmem:[#allocation2 + $0x4b8] sm:$0xff]
    %v247 = vld [vmem:[#allocation2 + $0x4c0] sm:$0xff]
    %v248 = vld [vmem:[#allocation2 + $0x4c8] sm:$0xff]
    %v249 = vld [vmem:[#allocation2 + $0x4d0] sm:$0xff]
    %v250 = vld [vmem:[#allocation2 + $0x4d8] sm:$0xff]
    %v251 = vld [vmem:[#allocation2 + $0x4e0] sm:$0xff]
    %v252 = vld [vmem:[#allocation2 + $0x4e8] sm:$0xff]
    %v253 = vld [vmem:[#allocation2 + $0x4f0] sm:$0xff]
    %v254 = vld [vmem:[#allocation2 + $0x4f8] sm:$0xff]
    %v255 = vld [vmem:[#allocation2 + $0x500] sm:$0xff]
    %v256 = vld [vmem:[#allocation2 + $0x508] sm:$0xff]
    %v257 = vld [vmem:[#allocation2 + $0x510] sm:$0xff]
    %v258 = vld [vmem:[#allocation2 + $0x518] sm:$0xff]
    %v259 = vld [vmem:[#allocation2 + $0x520] sm:$0xff]
    %v260 = vld [vmem:[#allocation2 + $0x528] sm:$0xff]
    %v261 = vld [vmem:[#allocation2 + $0x530] sm:$0xff]
    %v262 = vld [vmem:[#allocation2 + $0x538] sm:$0xff]
    %v263 = vld [vmem:[#allocation2 + $0x540] sm:$0xff]
    %v264 = vld [vmem:[#allocation2 + $0x548] sm:$0xff]
    %v265 = vld [vmem:[#allocation2 + $0x550] sm:$0xff]
    %v266 = vld [vmem:[#allocation2 + $0x558] sm:$0xff]
    %v267 = vld [vmem:[#allocation2 + $0x560] sm:$0xff]
    %v268 = vld [vmem:[#allocation2 + $0x568] sm:$0xff]
    %v269 = vld [vmem:[#allocation2 + $0x570] sm:$0xff]
    %v270 = vld [vmem:[#allocation2 + $0x578] sm:$0xff]
    %v271 = vld [vmem:[#allocation2 + $0x580] sm:$0xff]
    %v272 = vld [vmem:[#allocation2 + $0x588] sm:$0xff]
    %v273 = vld [vmem:[#allocation2 + $0x590] sm:$0xff]
    %v274 = vld [vmem:[#allocation2 + $0x598] sm:$0xff]
    %v275 = vld [vmem:[#allocation2 + $0x5a0] sm:$0xff]
    %v276 = vld [vmem:[#allocation2 + $0x5a8] sm:$0xff]
    %v277 = vld [vmem:[#allocation2 + $0x5b0] sm:$0xff]
    %v278 = vld [vmem:[#allocation2 + $0x5b8] sm:$0xff]
    %v279 = vld [vmem:[#allocation2 + $0x5c0] sm:$0xff]
    %v280 = vld [vmem:[#allocation2 + $0x5c8] sm:$0xff]
    %v281 = vld [vmem:[#allocation2 + $0x5d0] sm:$0xff]
    %v282 = vld [vmem:[#allocation2 + $0x5d8] sm:$0xff]
    %v283 = vld [vmem:[#allocation2 + $0x5e0] sm:$0xff]
    %v284 = vld [vmem:[#allocation2 + $0x5e8] sm:$0xff]
    %v285 = vld [vmem:[#allocation2 + $0x5f0] sm:$0xff]
    %v286 = vld [vmem:[#allocation2 + $0x5f8] sm:$0xff]
    %v287 = vld [vmem:[#allocation2 + $0x600] sm:$0xff]
    %v288 = vld [vmem:[#allocation2 + $0x608] sm:$0xff]
    %v289 = vld [vmem:[#allocation2 + $0x610] sm:$0xff]
    %v290 = vld [vmem:[#allocation2 + $0x618] sm:$0xff]
    %v291 = vld [vmem:[#allocation2 + $0x620] sm:$0xff]
    %v292 = vld [vmem:[#allocation2 + $0x628] sm:$0xff]
    %v293 = vld [vmem:[#allocation2 + $0x630] sm:$0xff]
    %v294 = vld [vmem:[#allocation2 + $0x638] sm:$0xff]
    %v295 = vld [vmem:[#allocation2 + $0x640] sm:$0xff]
    %v296 = vld [vmem:[#allocation2 + $0x648] sm:$0xff]
    %v297 = vld [vmem:[#allocation2 + $0x650] sm:$0xff]
    %v298 = vld [vmem:[#allocation2 + $0x658] sm:$0xff]
    %v299 = vld [vmem:[#allocation2 + $0x660] sm:$0xff]
    %v300 = vld [vmem:[#allocation2 + $0x668] sm:$0xff]
    %v301 = vld [vmem:[#allocation2 + $0x670] sm:$0xff]
    %v302 = vld [vmem:[#allocation2 + $0x678] sm:$0xff]
    %v303 = vld [vmem:[#allocation2 + $0x680] sm:$0xff]
    %v304 = vld [vmem:[#allocation2 + $0x688] sm:$0xff]
    %v305 = vld [vmem:[#allocation2 + $0x690] sm:$0xff]
    %v306 = vld [vmem:[#allocation2 + $0x698] sm:$0xff]
    %v307 = vld [vmem:[#allocation2 + $0x6a0] sm:$0xff]
    %v308 = vld [vmem:[#allocation2 + $0x6a8] sm:$0xff]
    %v309 = vld [vmem:[#allocation2 + $0x6b0] sm:$0xff]
    %v310 = vld [vmem:[#allocation2 + $0x6b8] sm:$0xff]
    %v311 = vld [vmem:[#allocation2 + $0x6c0] sm:$0xff]
    %v312 = vld [vmem:[#allocation2 + $0x6c8] sm:$0xff]
    %v313 = vld [vmem:[#allocation2 + $0x6d0] sm:$0xff]
    %v314 = vld [vmem:[#allocation2 + $0x6d8] sm:$0xff]
    %v315 = vld [vmem:[#allocation2 + $0x6e0] sm:$0xff]
    %v316 = vld [vmem:[#allocation2 + $0x6e8] sm:$0xff]
    %v317 = vld [vmem:[#allocation2 + $0x6f0] sm:$0xff]
    %v318 = vld [vmem:[#allocation2 + $0x6f8] sm:$0xff]
    %v319 = vld [vmem:[#allocation2 + $0x700] sm:$0xff]
    %v320 = vld [vmem:[#allocation2 + $0x708] sm:$0xff]
    %v321 = vld [vmem:[#allocation2 + $0x710] sm:$0xff]
    %v322 = vld [vmem:[#allocation2 + $0x718] sm:$0xff]
    %v323 = vld [vmem:[#allocation2 + $0x720] sm:$0xff]
    %v324 = vld [vmem:[#allocation2 + $0x728] sm:$0xff]
    %v325 = vld [vmem:[#allocation2 + $0x730] sm:$0xff]
    %v326 = vld [vmem:[#allocation2 + $0x738] sm:$0xff]
    %v327 = vld [vmem:[#allocation2 + $0x740] sm:$0xff]
    %v328 = vld [vmem:[#allocation2 + $0x748] sm:$0xff]
    %v329 = vld [vmem:[#allocation2 + $0x750] sm:$0xff]
    %v330 = vld [vmem:[#allocation2 + $0x758] sm:$0xff]
    %v331 = vld [vmem:[#allocation2 + $0x760] sm:$0xff]
    %v332 = vld [vmem:[#allocation2 + $0x768] sm:$0xff]
    %v333 = vld [vmem:[#allocation2 + $0x770] sm:$0xff]
    %v334 = vld [vmem:[#allocation2 + $0x778] sm:$0xff]
    %v335 = vld [vmem:[#allocation2 + $0x780] sm:$0xff]
    %v336 = vld [vmem:[#allocation2 + $0x788] sm:$0xff]
    %v337 = vld [vmem:[#allocation2 + $0x790] sm:$0xff]
    %v338 = vld [vmem:[#allocation2 + $0x798] sm:$0xff]
    %v339 = vld [vmem:[#allocation2 + $0x7a0] sm:$0xff]
    %v340 = vld [vmem:[#allocation2 + $0x7a8] sm:$0xff]
    %v341 = vld [vmem:[#allocation2 + $0x7b0] sm:$0xff]
    %v342 = vld [vmem:[#allocation2 + $0x7b8] sm:$0xff]
    %v343 = vld [vmem:[#allocation2 + $0x7c0] sm:$0xff]
    %v344 = vld [vmem:[#allocation2 + $0x7c8] sm:$0xff]
    %v345 = vld [vmem:[#allocation2 + $0x7d0] sm:$0xff]
    %v346 = vld [vmem:[#allocation2 + $0x7d8] sm:$0xff]
    %v347 = vld [vmem:[#allocation2 + $0x7e0] sm:$0xff]
    %v348 = vld [vmem:[#allocation2 + $0x7e8] sm:$0xff]
    %v349 = vld [vmem:[#allocation2 + $0x7f0] sm:$0xff]
    %v350 = vld [vmem:[#allocation2 + $0x7f8] sm:$0xff]
    %v351 = vld [vmem:[%s2] sm:$0xf]
    %v353 = vlaneseq
    %v354 = vshrl.u32 %v353, 7
    %v355 = vsub.s32 0, %v354
    %v356 = vrot.slane %v351, %v355
    %v357 = vlaneseq
    %v358 = vshrl.u32 %v357, 7
    %v359 = vsub.s32 1, %v358
    %v360 = vrot.slane %v351, %v359
    %v361 = vlaneseq
    %v362 = vshrl.u32 %v361, 7
    %v363 = vsub.s32 2, %v362
    %v364 = vrot.slane %v351, %v363
    %v365 = vlaneseq
    %v366 = vshrl.u32 %v365, 7
    %v367 = vsub.s32 3, %v366
    %v368 = vrot.slane %v351, %v367
    %v629 = vunpack.c.l.b16 %v95
    %v630 = vunpack.c.h.b16 %v95
    %v631 = vunpack.c.l.b16 %v96
    %v632 = vunpack.c.h.b16 %v96
    %v633 = vunpack.c.l.b16 %v97
    %v634 = vunpack.c.h.b16 %v97
    %v635 = vunpack.c.l.b16 %v98
    %v636 = vunpack.c.h.b16 %v98
    %v637 = vunpack.c.l.b16 %v99
    %v638 = vunpack.c.h.b16 %v99
    %v639 = vunpack.c.l.b16 %v100
    %v640 = vunpack.c.h.b16 %v100
    %v641 = vunpack.c.l.b16 %v101
    %v642 = vunpack.c.h.b16 %v101
    %v643 = vunpack.c.l.b16 %v102
    %v644 = vunpack.c.h.b16 %v102
    %v645 = vunpack.c.l.b16 %v103
    %v646 = vunpack.c.h.b16 %v103
    %v647 = vunpack.c.l.b16 %v104
    %v648 = vunpack.c.h.b16 %v104
    %v649 = vunpack.c.l.b16 %v105
    %v650 = vunpack.c.h.b16 %v105
    %v651 = vunpack.c.l.b16 %v106
    %v652 = vunpack.c.h.b16 %v106
    %v653 = vunpack.c.l.b16 %v107
    %v654 = vunpack.c.h.b16 %v107
    %v655 = vunpack.c.l.b16 %v108
    %v656 = vunpack.c.h.b16 %v108
    %v657 = vunpack.c.l.b16 %v109
    %v658 = vunpack.c.h.b16 %v109
    %v659 = vunpack.c.l.b16 %v110
    %v660 = vunpack.c.h.b16 %v110
    %v661 = vunpack.c.l.b16 %v111
    %v662 = vunpack.c.h.b16 %v111
    %v663 = vunpack.c.l.b16 %v112
    %v664 = vunpack.c.h.b16 %v112
    %v665 = vunpack.c.l.b16 %v113
    %v666 = vunpack.c.h.b16 %v113
    %v667 = vunpack.c.l.b16 %v114
    %v668 = vunpack.c.h.b16 %v114
    %v669 = vunpack.c.l.b16 %v115
    %v670 = vunpack.c.h.b16 %v115
    %v671 = vunpack.c.l.b16 %v116
    %v672 = vunpack.c.h.b16 %v116
    %v673 = vunpack.c.l.b16 %v117
    %v674 = vunpack.c.h.b16 %v117
    %v675 = vunpack.c.l.b16 %v118
    %v676 = vunpack.c.h.b16 %v118
    %v677 = vunpack.c.l.b16 %v119
    %v678 = vunpack.c.h.b16 %v119
    %v679 = vunpack.c.l.b16 %v120
    %v680 = vunpack.c.h.b16 %v120
    %v681 = vunpack.c.l.b16 %v121
    %v682 = vunpack.c.h.b16 %v121
    %v683 = vunpack.c.l.b16 %v122
    %v684 = vunpack.c.h.b16 %v122
    %v685 = vunpack.c.l.b16 %v123
    %v686 = vunpack.c.h.b16 %v123
    %v687 = vunpack.c.l.b16 %v124
    %v688 = vunpack.c.h.b16 %v124
    %v689 = vunpack.c.l.b16 %v125
    %v690 = vunpack.c.h.b16 %v125
    %v691 = vunpack.c.l.b16 %v126
    %v692 = vunpack.c.h.b16 %v126
    %v693 = vunpack.c.l.b16 %v127
    %v694 = vunpack.c.h.b16 %v127
    %v695 = vunpack.c.l.b16 %v128
    %v696 = vunpack.c.h.b16 %v128
    %v697 = vunpack.c.l.b16 %v129
    %v698 = vunpack.c.h.b16 %v129
    %v699 = vunpack.c.l.b16 %v130
    %v700 = vunpack.c.h.b16 %v130
    %v701 = vunpack.c.l.b16 %v131
    %v702 = vunpack.c.h.b16 %v131
    %v703 = vunpack.c.l.b16 %v132
    %v704 = vunpack.c.h.b16 %v132
    %v705 = vunpack.c.l.b16 %v133
    %v706 = vunpack.c.h.b16 %v133
    %v707 = vunpack.c.l.b16 %v134
    %v708 = vunpack.c.h.b16 %v134
    %v709 = vunpack.c.l.b16 %v135
    %v710 = vunpack.c.h.b16 %v135
    %v711 = vunpack.c.l.b16 %v136
    %v712 = vunpack.c.h.b16 %v136
    %v713 = vunpack.c.l.b16 %v137
    %v714 = vunpack.c.h.b16 %v137
    %v715 = vunpack.c.l.b16 %v138
    %v716 = vunpack.c.h.b16 %v138
    %v717 = vunpack.c.l.b16 %v139
    %v718 = vunpack.c.h.b16 %v139
    %v719 = vunpack.c.l.b16 %v140
    %v720 = vunpack.c.h.b16 %v140
    %v721 = vunpack.c.l.b16 %v141
    %v722 = vunpack.c.h.b16 %v141
    %v723 = vunpack.c.l.b16 %v142
    %v724 = vunpack.c.h.b16 %v142
    %v725 = vunpack.c.l.b16 %v143
    %v726 = vunpack.c.h.b16 %v143
    %v727 = vunpack.c.l.b16 %v144
    %v728 = vunpack.c.h.b16 %v144
    %v729 = vunpack.c.l.b16 %v145
    %v730 = vunpack.c.h.b16 %v145
    %v731 = vunpack.c.l.b16 %v146
    %v732 = vunpack.c.h.b16 %v146
    %v733 = vunpack.c.l.b16 %v147
    %v734 = vunpack.c.h.b16 %v147
    %v735 = vunpack.c.l.b16 %v148
    %v736 = vunpack.c.h.b16 %v148
    %v737 = vunpack.c.l.b16 %v149
    %v738 = vunpack.c.h.b16 %v149
    %v739 = vunpack.c.l.b16 %v150
    %v740 = vunpack.c.h.b16 %v150
    %v741 = vunpack.c.l.b16 %v151
    %v742 = vunpack.c.h.b16 %v151
    %v743 = vunpack.c.l.b16 %v152
    %v744 = vunpack.c.h.b16 %v152
    %v745 = vunpack.c.l.b16 %v153
    %v746 = vunpack.c.h.b16 %v153
    %v747 = vunpack.c.l.b16 %v154
    %v748 = vunpack.c.h.b16 %v154
    %v749 = vunpack.c.l.b16 %v155
    %v750 = vunpack.c.h.b16 %v155
    %v751 = vunpack.c.l.b16 %v156
    %v752 = vunpack.c.h.b16 %v156
    %v753 = vunpack.c.l.b16 %v157
    %v754 = vunpack.c.h.b16 %v157
    %v755 = vunpack.c.l.b16 %v158
    %v756 = vunpack.c.h.b16 %v158
    %v757 = vunpack.c.l.b16 %v159
    %v758 = vunpack.c.h.b16 %v159
    %v759 = vunpack.c.l.b16 %v160
    %v760 = vunpack.c.h.b16 %v160
    %v761 = vunpack.c.l.b16 %v161
    %v762 = vunpack.c.h.b16 %v161
    %v763 = vunpack.c.l.b16 %v162
    %v764 = vunpack.c.h.b16 %v162
    %v765 = vunpack.c.l.b16 %v163
    %v766 = vunpack.c.h.b16 %v163
    %v767 = vunpack.c.l.b16 %v164
    %v768 = vunpack.c.h.b16 %v164
    %v769 = vunpack.c.l.b16 %v165
    %v770 = vunpack.c.h.b16 %v165
    %v771 = vunpack.c.l.b16 %v166
    %v772 = vunpack.c.h.b16 %v166
    %v773 = vunpack.c.l.b16 %v167
    %v774 = vunpack.c.h.b16 %v167
    %v775 = vunpack.c.l.b16 %v168
    %v776 = vunpack.c.h.b16 %v168
    %v777 = vunpack.c.l.b16 %v169
    %v778 = vunpack.c.h.b16 %v169
    %v779 = vunpack.c.l.b16 %v170
    %v780 = vunpack.c.h.b16 %v170
    %v781 = vunpack.c.l.b16 %v171
    %v782 = vunpack.c.h.b16 %v171
    %v783 = vunpack.c.l.b16 %v172
    %v784 = vunpack.c.h.b16 %v172
    %v785 = vunpack.c.l.b16 %v173
    %v786 = vunpack.c.h.b16 %v173
    %v787 = vunpack.c.l.b16 %v174
    %v788 = vunpack.c.h.b16 %v174
    %v789 = vunpack.c.l.b16 %v175
    %v790 = vunpack.c.h.b16 %v175
    %v791 = vunpack.c.l.b16 %v176
    %v792 = vunpack.c.h.b16 %v176
    %v793 = vunpack.c.l.b16 %v177
    %v794 = vunpack.c.h.b16 %v177
    %v795 = vunpack.c.l.b16 %v178
    %v796 = vunpack.c.h.b16 %v178
    %v797 = vunpack.c.l.b16 %v179
    %v798 = vunpack.c.h.b16 %v179
    %v799 = vunpack.c.l.b16 %v180
    %v800 = vunpack.c.h.b16 %v180
    %v801 = vunpack.c.l.b16 %v181
    %v802 = vunpack.c.h.b16 %v181
    %v803 = vunpack.c.l.b16 %v182
    %v804 = vunpack.c.h.b16 %v182
    %v805 = vunpack.c.l.b16 %v183
    %v806 = vunpack.c.h.b16 %v183
    %v807 = vunpack.c.l.b16 %v184
    %v808 = vunpack.c.h.b16 %v184
    %v809 = vunpack.c.l.b16 %v185
    %v810 = vunpack.c.h.b16 %v185
    %v811 = vunpack.c.l.b16 %v186
    %v812 = vunpack.c.h.b16 %v186
    %v813 = vunpack.c.l.b16 %v187
    %v814 = vunpack.c.h.b16 %v187
    %v815 = vunpack.c.l.b16 %v188
    %v816 = vunpack.c.h.b16 %v188
    %v817 = vunpack.c.l.b16 %v189
    %v818 = vunpack.c.h.b16 %v189
    %v819 = vunpack.c.l.b16 %v190
    %v820 = vunpack.c.h.b16 %v190
    %v821 = vunpack.c.l.b16 %v191
    %v822 = vunpack.c.h.b16 %v191
    %v823 = vunpack.c.l.b16 %v192
    %v824 = vunpack.c.h.b16 %v192
    %v825 = vunpack.c.l.b16 %v193
    %v826 = vunpack.c.h.b16 %v193
    %v827 = vunpack.c.l.b16 %v194
    %v828 = vunpack.c.h.b16 %v194
    %v829 = vunpack.c.l.b16 %v195
    %v830 = vunpack.c.h.b16 %v195
    %v831 = vunpack.c.l.b16 %v196
    %v832 = vunpack.c.h.b16 %v196
    %v833 = vunpack.c.l.b16 %v197
    %v834 = vunpack.c.h.b16 %v197
    %v835 = vunpack.c.l.b16 %v198
    %v836 = vunpack.c.h.b16 %v198
    %v837 = vunpack.c.l.b16 %v199
    %v838 = vunpack.c.h.b16 %v199
    %v839 = vunpack.c.l.b16 %v200
    %v840 = vunpack.c.h.b16 %v200
    %v841 = vunpack.c.l.b16 %v201
    %v842 = vunpack.c.h.b16 %v201
    %v843 = vunpack.c.l.b16 %v202
    %v844 = vunpack.c.h.b16 %v202
    %v845 = vunpack.c.l.b16 %v203
    %v846 = vunpack.c.h.b16 %v203
    %v847 = vunpack.c.l.b16 %v204
    %v848 = vunpack.c.h.b16 %v204
    %v849 = vunpack.c.l.b16 %v205
    %v850 = vunpack.c.h.b16 %v205
    %v851 = vunpack.c.l.b16 %v206
    %v852 = vunpack.c.h.b16 %v206
    %v853 = vunpack.c.l.b16 %v207
    %v854 = vunpack.c.h.b16 %v207
    %v855 = vunpack.c.l.b16 %v208
    %v856 = vunpack.c.h.b16 %v208
    %v857 = vunpack.c.l.b16 %v209
    %v858 = vunpack.c.h.b16 %v209
    %v859 = vunpack.c.l.b16 %v210
    %v860 = vunpack.c.h.b16 %v210
    %v861 = vunpack.c.l.b16 %v211
    %v862 = vunpack.c.h.b16 %v211
    %v863 = vunpack.c.l.b16 %v212
    %v864 = vunpack.c.h.b16 %v212
    %v865 = vunpack.c.l.b16 %v213
    %v866 = vunpack.c.h.b16 %v213
    %v867 = vunpack.c.l.b16 %v214
    %v868 = vunpack.c.h.b16 %v214
    %v869 = vunpack.c.l.b16 %v215
    %v870 = vunpack.c.h.b16 %v215
    %v871 = vunpack.c.l.b16 %v216
    %v872 = vunpack.c.h.b16 %v216
    %v873 = vunpack.c.l.b16 %v217
    %v874 = vunpack.c.h.b16 %v217
    %v875 = vunpack.c.l.b16 %v218
    %v876 = vunpack.c.h.b16 %v218
    %v877 = vunpack.c.l.b16 %v219
    %v878 = vunpack.c.h.b16 %v219
    %v879 = vunpack.c.l.b16 %v220
    %v880 = vunpack.c.h.b16 %v220
    %v881 = vunpack.c.l.b16 %v221
    %v882 = vunpack.c.h.b16 %v221
    %v883 = vunpack.c.l.b16 %v222
    %v884 = vunpack.c.h.b16 %v222
    %v885 = vunpack.c.l.b16 %v223
    %v886 = vunpack.c.h.b16 %v223
    %v887 = vunpack.c.l.b16 %v224
    %v888 = vunpack.c.h.b16 %v224
    %v889 = vunpack.c.l.b16 %v225
    %v890 = vunpack.c.h.b16 %v225
    %v891 = vunpack.c.l.b16 %v226
    %v892 = vunpack.c.h.b16 %v226
    %v893 = vunpack.c.l.b16 %v227
    %v894 = vunpack.c.h.b16 %v227
    %v895 = vunpack.c.l.b16 %v228
    %v896 = vunpack.c.h.b16 %v228
    %v897 = vunpack.c.l.b16 %v229
    %v898 = vunpack.c.h.b16 %v229
    %v899 = vunpack.c.l.b16 %v230
    %v900 = vunpack.c.h.b16 %v230
    %v901 = vunpack.c.l.b16 %v231
    %v902 = vunpack.c.h.b16 %v231
    %v903 = vunpack.c.l.b16 %v232
    %v904 = vunpack.c.h.b16 %v232
    %v905 = vunpack.c.l.b16 %v233
    %v906 = vunpack.c.h.b16 %v233
    %v907 = vunpack.c.l.b16 %v234
    %v908 = vunpack.c.h.b16 %v234
    %v909 = vunpack.c.l.b16 %v235
    %v910 = vunpack.c.h.b16 %v235
    %v911 = vunpack.c.l.b16 %v236
    %v912 = vunpack.c.h.b16 %v236
    %v913 = vunpack.c.l.b16 %v237
    %v914 = vunpack.c.h.b16 %v237
    %v915 = vunpack.c.l.b16 %v238
    %v916 = vunpack.c.h.b16 %v238
    %v917 = vunpack.c.l.b16 %v239
    %v918 = vunpack.c.h.b16 %v239
    %v919 = vunpack.c.l.b16 %v240
    %v920 = vunpack.c.h.b16 %v240
    %v921 = vunpack.c.l.b16 %v241
    %v922 = vunpack.c.h.b16 %v241
    %v923 = vunpack.c.l.b16 %v242
    %v924 = vunpack.c.h.b16 %v242
    %v925 = vunpack.c.l.b16 %v243
    %v926 = vunpack.c.h.b16 %v243
    %v927 = vunpack.c.l.b16 %v244
    %v928 = vunpack.c.h.b16 %v244
    %v929 = vunpack.c.l.b16 %v245
    %v930 = vunpack.c.h.b16 %v245
    %v931 = vunpack.c.l.b16 %v246
    %v932 = vunpack.c.h.b16 %v246
    %v933 = vunpack.c.l.b16 %v247
    %v934 = vunpack.c.h.b16 %v247
    %v935 = vunpack.c.l.b16 %v248
    %v936 = vunpack.c.h.b16 %v248
    %v937 = vunpack.c.l.b16 %v249
    %v938 = vunpack.c.h.b16 %v249
    %v939 = vunpack.c.l.b16 %v250
    %v940 = vunpack.c.h.b16 %v250
    %v941 = vunpack.c.l.b16 %v251
    %v942 = vunpack.c.h.b16 %v251
    %v943 = vunpack.c.l.b16 %v252
    %v944 = vunpack.c.h.b16 %v252
    %v945 = vunpack.c.l.b16 %v253
    %v946 = vunpack.c.h.b16 %v253
    %v947 = vunpack.c.l.b16 %v254
    %v948 = vunpack.c.h.b16 %v254
    %v949 = vunpack.c.l.b16 %v255
    %v950 = vunpack.c.h.b16 %v255
    %v951 = vunpack.c.l.b16 %v256
    %v952 = vunpack.c.h.b16 %v256
    %v953 = vunpack.c.l.b16 %v257
    %v954 = vunpack.c.h.b16 %v257
    %v955 = vunpack.c.l.b16 %v258
    %v956 = vunpack.c.h.b16 %v258
    %v957 = vunpack.c.l.b16 %v259
    %v958 = vunpack.c.h.b16 %v259
    %v959 = vunpack.c.l.b16 %v260
    %v960 = vunpack.c.h.b16 %v260
    %v961 = vunpack.c.l.b16 %v261
    %v962 = vunpack.c.h.b16 %v261
    %v963 = vunpack.c.l.b16 %v262
    %v964 = vunpack.c.h.b16 %v262
    %v965 = vunpack.c.l.b16 %v263
    %v966 = vunpack.c.h.b16 %v263
    %v967 = vunpack.c.l.b16 %v264
    %v968 = vunpack.c.h.b16 %v264
    %v969 = vunpack.c.l.b16 %v265
    %v970 = vunpack.c.h.b16 %v265
    %v971 = vunpack.c.l.b16 %v266
    %v972 = vunpack.c.h.b16 %v266
    %v973 = vunpack.c.l.b16 %v267
    %v974 = vunpack.c.h.b16 %v267
    %v975 = vunpack.c.l.b16 %v268
    %v976 = vunpack.c.h.b16 %v268
    %v977 = vunpack.c.l.b16 %v269
    %v978 = vunpack.c.h.b16 %v269
    %v979 = vunpack.c.l.b16 %v270
    %v980 = vunpack.c.h.b16 %v270
    %v981 = vunpack.c.l.b16 %v271
    %v982 = vunpack.c.h.b16 %v271
    %v983 = vunpack.c.l.b16 %v272
    %v984 = vunpack.c.h.b16 %v272
    %v985 = vunpack.c.l.b16 %v273
    %v986 = vunpack.c.h.b16 %v273
    %v987 = vunpack.c.l.b16 %v274
    %v988 = vunpack.c.h.b16 %v274
    %v989 = vunpack.c.l.b16 %v275
    %v990 = vunpack.c.h.b16 %v275
    %v991 = vunpack.c.l.b16 %v276
    %v992 = vunpack.c.h.b16 %v276
    %v993 = vunpack.c.l.b16 %v277
    %v994 = vunpack.c.h.b16 %v277
    %v995 = vunpack.c.l.b16 %v278
    %v996 = vunpack.c.h.b16 %v278
    %v997 = vunpack.c.l.b16 %v279
    %v998 = vunpack.c.h.b16 %v279
    %v999 = vunpack.c.l.b16 %v280
    %v1000 = vunpack.c.h.b16 %v280
    %v1001 = vunpack.c.l.b16 %v281
    %v1002 = vunpack.c.h.b16 %v281
    %v1003 = vunpack.c.l.b16 %v282
    %v1004 = vunpack.c.h.b16 %v282
    %v1005 = vunpack.c.l.b16 %v283
    %v1006 = vunpack.c.h.b16 %v283
    %v1007 = vunpack.c.l.b16 %v284
    %v1008 = vunpack.c.h.b16 %v284
    %v1009 = vunpack.c.l.b16 %v285
    %v1010 = vunpack.c.h.b16 %v285
    %v1011 = vunpack.c.l.b16 %v286
    %v1012 = vunpack.c.h.b16 %v286
    %v1013 = vunpack.c.l.b16 %v287
    %v1014 = vunpack.c.h.b16 %v287
    %v1015 = vunpack.c.l.b16 %v288
    %v1016 = vunpack.c.h.b16 %v288
    %v1017 = vunpack.c.l.b16 %v289
    %v1018 = vunpack.c.h.b16 %v289
    %v1019 = vunpack.c.l.b16 %v290
    %v1020 = vunpack.c.h.b16 %v290
    %v1021 = vunpack.c.l.b16 %v291
    %v1022 = vunpack.c.h.b16 %v291
    %v1023 = vunpack.c.l.b16 %v292
    %v1024 = vunpack.c.h.b16 %v292
    %v1025 = vunpack.c.l.b16 %v293
    %v1026 = vunpack.c.h.b16 %v293
    %v1027 = vunpack.c.l.b16 %v294
    %v1028 = vunpack.c.h.b16 %v294
    %v1029 = vunpack.c.l.b16 %v295
    %v1030 = vunpack.c.h.b16 %v295
    %v1031 = vunpack.c.l.b16 %v296
    %v1032 = vunpack.c.h.b16 %v296
    %v1033 = vunpack.c.l.b16 %v297
    %v1034 = vunpack.c.h.b16 %v297
    %v1035 = vunpack.c.l.b16 %v298
    %v1036 = vunpack.c.h.b16 %v298
    %v1037 = vunpack.c.l.b16 %v299
    %v1038 = vunpack.c.h.b16 %v299
    %v1039 = vunpack.c.l.b16 %v300
    %v1040 = vunpack.c.h.b16 %v300
    %v1041 = vunpack.c.l.b16 %v301
    %v1042 = vunpack.c.h.b16 %v301
    %v1043 = vunpack.c.l.b16 %v302
    %v1044 = vunpack.c.h.b16 %v302
    %v1045 = vunpack.c.l.b16 %v303
    %v1046 = vunpack.c.h.b16 %v303
    %v1047 = vunpack.c.l.b16 %v304
    %v1048 = vunpack.c.h.b16 %v304
    %v1049 = vunpack.c.l.b16 %v305
    %v1050 = vunpack.c.h.b16 %v305
    %v1051 = vunpack.c.l.b16 %v306
    %v1052 = vunpack.c.h.b16 %v306
    %v1053 = vunpack.c.l.b16 %v307
    %v1054 = vunpack.c.h.b16 %v307
    %v1055 = vunpack.c.l.b16 %v308
    %v1056 = vunpack.c.h.b16 %v308
    %v1057 = vunpack.c.l.b16 %v309
    %v1058 = vunpack.c.h.b16 %v309
    %v1059 = vunpack.c.l.b16 %v310
    %v1060 = vunpack.c.h.b16 %v310
    %v1061 = vunpack.c.l.b16 %v311
    %v1062 = vunpack.c.h.b16 %v311
    %v1063 = vunpack.c.l.b16 %v312
    %v1064 = vunpack.c.h.b16 %v312
    %v1065 = vunpack.c.l.b16 %v313
    %v1066 = vunpack.c.h.b16 %v313
    %v1067 = vunpack.c.l.b16 %v314
    %v1068 = vunpack.c.h.b16 %v314
    %v1069 = vunpack.c.l.b16 %v315
    %v1070 = vunpack.c.h.b16 %v315
    %v1071 = vunpack.c.l.b16 %v316
    %v1072 = vunpack.c.h.b16 %v316
    %v1073 = vunpack.c.l.b16 %v317
    %v1074 = vunpack.c.h.b16 %v317
    %v1075 = vunpack.c.l.b16 %v318
    %v1076 = vunpack.c.h.b16 %v318
    %v1077 = vunpack.c.l.b16 %v319
    %v1078 = vunpack.c.h.b16 %v319
    %v1079 = vunpack.c.l.b16 %v320
    %v1080 = vunpack.c.h.b16 %v320
    %v1081 = vunpack.c.l.b16 %v321
    %v1082 = vunpack.c.h.b16 %v321
    %v1083 = vunpack.c.l.b16 %v322
    %v1084 = vunpack.c.h.b16 %v322
    %v1085 = vunpack.c.l.b16 %v323
    %v1086 = vunpack.c.h.b16 %v323
    %v1087 = vunpack.c.l.b16 %v324
    %v1088 = vunpack.c.h.b16 %v324
    %v1089 = vunpack.c.l.b16 %v325
    %v1090 = vunpack.c.h.b16 %v325
    %v1091 = vunpack.c.l.b16 %v326
    %v1092 = vunpack.c.h.b16 %v326
    %v1093 = vunpack.c.l.b16 %v327
    %v1094 = vunpack.c.h.b16 %v327
    %v1095 = vunpack.c.l.b16 %v328
    %v1096 = vunpack.c.h.b16 %v328
    %v1097 = vunpack.c.l.b16 %v329
    %v1098 = vunpack.c.h.b16 %v329
    %v1099 = vunpack.c.l.b16 %v330
    %v1100 = vunpack.c.h.b16 %v330
    %v1101 = vunpack.c.l.b16 %v331
    %v1102 = vunpack.c.h.b16 %v331
    %v1103 = vunpack.c.l.b16 %v332
    %v1104 = vunpack.c.h.b16 %v332
    %v1105 = vunpack.c.l.b16 %v333
    %v1106 = vunpack.c.h.b16 %v333
    %v1107 = vunpack.c.l.b16 %v334
    %v1108 = vunpack.c.h.b16 %v334
    %v1109 = vunpack.c.l.b16 %v335
    %v1110 = vunpack.c.h.b16 %v335
    %v1111 = vunpack.c.l.b16 %v336
    %v1112 = vunpack.c.h.b16 %v336
    %v1113 = vunpack.c.l.b16 %v337
    %v1114 = vunpack.c.h.b16 %v337
    %v1115 = vunpack.c.l.b16 %v338
    %v1116 = vunpack.c.h.b16 %v338
    %v1117 = vunpack.c.l.b16 %v339
    %v1118 = vunpack.c.h.b16 %v339
    %v1119 = vunpack.c.l.b16 %v340
    %v1120 = vunpack.c.h.b16 %v340
    %v1121 = vunpack.c.l.b16 %v341
    %v1122 = vunpack.c.h.b16 %v341
    %v1123 = vunpack.c.l.b16 %v342
    %v1124 = vunpack.c.h.b16 %v342
    %v1125 = vunpack.c.l.b16 %v343
    %v1126 = vunpack.c.h.b16 %v343
    %v1127 = vunpack.c.l.b16 %v344
    %v1128 = vunpack.c.h.b16 %v344
    %v1129 = vunpack.c.l.b16 %v345
    %v1130 = vunpack.c.h.b16 %v345
    %v1131 = vunpack.c.l.b16 %v346
    %v1132 = vunpack.c.h.b16 %v346
    %v1133 = vunpack.c.l.b16 %v347
    %v1134 = vunpack.c.h.b16 %v347
    %v1135 = vunpack.c.l.b16 %v348
    %v1136 = vunpack.c.h.b16 %v348
    %v1137 = vunpack.c.l.b16 %v349
    %v1138 = vunpack.c.h.b16 %v349
    %v1139 = vunpack.c.l.b16 %v350
    %v1140 = vunpack.c.h.b16 %v350
    %v1141 = vpack.c.b16 %v633, %v629
    %v1142 = vpack.c.b16 %v634, %v630
    %v1143 = vpack.c.b16 %v635, %v631
    %v1144 = vpack.c.b16 %v636, %v632
    %v1145 = vpack.c.b16 %v641, %v637
    %v1146 = vpack.c.b16 %v642, %v638
    %v1147 = vpack.c.b16 %v643, %v639
    %v1148 = vpack.c.b16 %v644, %v640
    %v1149 = vpack.c.b16 %v649, %v645
    %v1150 = vpack.c.b16 %v650, %v646
    %v1151 = vpack.c.b16 %v651, %v647
    %v1152 = vpack.c.b16 %v652, %v648
    %v1153 = vpack.c.b16 %v657, %v653
    %v1154 = vpack.c.b16 %v658, %v654
    %v1155 = vpack.c.b16 %v659, %v655
    %v1156 = vpack.c.b16 %v660, %v656
    %v1157 = vpack.c.b16 %v665, %v661
    %v1158 = vpack.c.b16 %v666, %v662
    %v1159 = vpack.c.b16 %v667, %v663
    %v1160 = vpack.c.b16 %v668, %v664
    %v1161 = vpack.c.b16 %v673, %v669
    %v1162 = vpack.c.b16 %v674, %v670
    %v1163 = vpack.c.b16 %v675, %v671
    %v1164 = vpack.c.b16 %v676, %v672
    %v1165 = vpack.c.b16 %v681, %v677
    %v1166 = vpack.c.b16 %v682, %v678
    %v1167 = vpack.c.b16 %v683, %v679
    %v1168 = vpack.c.b16 %v684, %v680
    %v1169 = vpack.c.b16 %v689, %v685
    %v1170 = vpack.c.b16 %v690, %v686
    %v1171 = vpack.c.b16 %v691, %v687
    %v1172 = vpack.c.b16 %v692, %v688
    %v1173 = vpack.c.b16 %v697, %v693
    %v1174 = vpack.c.b16 %v698, %v694
    %v1175 = vpack.c.b16 %v699, %v695
    %v1176 = vpack.c.b16 %v700, %v696
    %v1177 = vpack.c.b16 %v705, %v701
    %v1178 = vpack.c.b16 %v706, %v702
    %v1179 = vpack.c.b16 %v707, %v703
    %v1180 = vpack.c.b16 %v708, %v704
    %v1181 = vpack.c.b16 %v713, %v709
    %v1182 = vpack.c.b16 %v714, %v710
    %v1183 = vpack.c.b16 %v715, %v711
    %v1184 = vpack.c.b16 %v716, %v712
    %v1185 = vpack.c.b16 %v721, %v717
    %v1186 = vpack.c.b16 %v722, %v718
    %v1187 = vpack.c.b16 %v723, %v719
    %v1188 = vpack.c.b16 %v724, %v720
    %v1189 = vpack.c.b16 %v729, %v725
    %v1190 = vpack.c.b16 %v730, %v726
    %v1191 = vpack.c.b16 %v731, %v727
    %v1192 = vpack.c.b16 %v732, %v728
    %v1193 = vpack.c.b16 %v737, %v733
    %v1194 = vpack.c.b16 %v738, %v734
    %v1195 = vpack.c.b16 %v739, %v735
    %v1196 = vpack.c.b16 %v740, %v736
    %v1197 = vpack.c.b16 %v745, %v741
    %v1198 = vpack.c.b16 %v746, %v742
    %v1199 = vpack.c.b16 %v747, %v743
    %v1200 = vpack.c.b16 %v748, %v744
    %v1201 = vpack.c.b16 %v753, %v749
    %v1202 = vpack.c.b16 %v754, %v750
    %v1203 = vpack.c.b16 %v755, %v751
    %v1204 = vpack.c.b16 %v756, %v752
    %v1205 = vpack.c.b16 %v761, %v757
    %v1206 = vpack.c.b16 %v762, %v758
    %v1207 = vpack.c.b16 %v763, %v759
    %v1208 = vpack.c.b16 %v764, %v760
    %v1209 = vpack.c.b16 %v769, %v765
    %v1210 = vpack.c.b16 %v770, %v766
    %v1211 = vpack.c.b16 %v771, %v767
    %v1212 = vpack.c.b16 %v772, %v768
    %v1213 = vpack.c.b16 %v777, %v773
    %v1214 = vpack.c.b16 %v778, %v774
    %v1215 = vpack.c.b16 %v779, %v775
    %v1216 = vpack.c.b16 %v780, %v776
    %v1217 = vpack.c.b16 %v785, %v781
    %v1218 = vpack.c.b16 %v786, %v782
    %v1219 = vpack.c.b16 %v787, %v783
    %v1220 = vpack.c.b16 %v788, %v784
    %v1221 = vpack.c.b16 %v793, %v789
    %v1222 = vpack.c.b16 %v794, %v790
    %v1223 = vpack.c.b16 %v795, %v791
    %v1224 = vpack.c.b16 %v796, %v792
    %v1225 = vpack.c.b16 %v801, %v797
    %v1226 = vpack.c.b16 %v802, %v798
    %v1227 = vpack.c.b16 %v803, %v799
    %v1228 = vpack.c.b16 %v804, %v800
    %v1229 = vpack.c.b16 %v809, %v805
    %v1230 = vpack.c.b16 %v810, %v806
    %v1231 = vpack.c.b16 %v811, %v807
    %v1232 = vpack.c.b16 %v812, %v808
    %v1233 = vpack.c.b16 %v817, %v813
    %v1234 = vpack.c.b16 %v818, %v814
    %v1235 = vpack.c.b16 %v819, %v815
    %v1236 = vpack.c.b16 %v820, %v816
    %v1237 = vpack.c.b16 %v825, %v821
    %v1238 = vpack.c.b16 %v826, %v822
    %v1239 = vpack.c.b16 %v827, %v823
    %v1240 = vpack.c.b16 %v828, %v824
    %v1241 = vpack.c.b16 %v833, %v829
    %v1242 = vpack.c.b16 %v834, %v830
    %v1243 = vpack.c.b16 %v835, %v831
    %v1244 = vpack.c.b16 %v836, %v832
    %v1245 = vpack.c.b16 %v841, %v837
    %v1246 = vpack.c.b16 %v842, %v838
    %v1247 = vpack.c.b16 %v843, %v839
    %v1248 = vpack.c.b16 %v844, %v840
    %v1249 = vpack.c.b16 %v849, %v845
    %v1250 = vpack.c.b16 %v850, %v846
    %v1251 = vpack.c.b16 %v851, %v847
    %v1252 = vpack.c.b16 %v852, %v848
    %v1253 = vpack.c.b16 %v857, %v853
    %v1254 = vpack.c.b16 %v858, %v854
    %v1255 = vpack.c.b16 %v859, %v855
    %v1256 = vpack.c.b16 %v860, %v856
    %v1257 = vpack.c.b16 %v865, %v861
    %v1258 = vpack.c.b16 %v866, %v862
    %v1259 = vpack.c.b16 %v867, %v863
    %v1260 = vpack.c.b16 %v868, %v864
    %v1261 = vpack.c.b16 %v873, %v869
    %v1262 = vpack.c.b16 %v874, %v870
    %v1263 = vpack.c.b16 %v875, %v871
    %v1264 = vpack.c.b16 %v876, %v872
    %v1265 = vpack.c.b16 %v881, %v877
    %v1266 = vpack.c.b16 %v882, %v878
    %v1267 = vpack.c.b16 %v883, %v879
    %v1268 = vpack.c.b16 %v884, %v880
    %v1269 = vpack.c.b16 %v889, %v885
    %v1270 = vpack.c.b16 %v890, %v886
    %v1271 = vpack.c.b16 %v891, %v887
    %v1272 = vpack.c.b16 %v892, %v888
    %v1273 = vpack.c.b16 %v897, %v893
    %v1274 = vpack.c.b16 %v898, %v894
    %v1275 = vpack.c.b16 %v899, %v895
    %v1276 = vpack.c.b16 %v900, %v896
    %v1277 = vpack.c.b16 %v905, %v901
    %v1278 = vpack.c.b16 %v906, %v902
    %v1279 = vpack.c.b16 %v907, %v903
    %v1280 = vpack.c.b16 %v908, %v904
    %v1281 = vpack.c.b16 %v913, %v909
    %v1282 = vpack.c.b16 %v914, %v910
    %v1283 = vpack.c.b16 %v915, %v911
    %v1284 = vpack.c.b16 %v916, %v912
    %v1285 = vpack.c.b16 %v921, %v917
    %v1286 = vpack.c.b16 %v922, %v918
    %v1287 = vpack.c.b16 %v923, %v919
    %v1288 = vpack.c.b16 %v924, %v920
    %v1289 = vpack.c.b16 %v929, %v925
    %v1290 = vpack.c.b16 %v930, %v926
    %v1291 = vpack.c.b16 %v931, %v927
    %v1292 = vpack.c.b16 %v932, %v928
    %v1293 = vpack.c.b16 %v937, %v933
    %v1294 = vpack.c.b16 %v938, %v934
    %v1295 = vpack.c.b16 %v939, %v935
    %v1296 = vpack.c.b16 %v940, %v936
    %v1297 = vpack.c.b16 %v945, %v941
    %v1298 = vpack.c.b16 %v946, %v942
    %v1299 = vpack.c.b16 %v947, %v943
    %v1300 = vpack.c.b16 %v948, %v944
    %v1301 = vpack.c.b16 %v953, %v949
    %v1302 = vpack.c.b16 %v954, %v950
    %v1303 = vpack.c.b16 %v955, %v951
    %v1304 = vpack.c.b16 %v956, %v952
    %v1305 = vpack.c.b16 %v961, %v957
    %v1306 = vpack.c.b16 %v962, %v958
    %v1307 = vpack.c.b16 %v963, %v959
    %v1308 = vpack.c.b16 %v964, %v960
    %v1309 = vpack.c.b16 %v969, %v965
    %v1310 = vpack.c.b16 %v970, %v966
    %v1311 = vpack.c.b16 %v971, %v967
    %v1312 = vpack.c.b16 %v972, %v968
    %v1313 = vpack.c.b16 %v977, %v973
    %v1314 = vpack.c.b16 %v978, %v974
    %v1315 = vpack.c.b16 %v979, %v975
    %v1316 = vpack.c.b16 %v980, %v976
    %v1317 = vpack.c.b16 %v985, %v981
    %v1318 = vpack.c.b16 %v986, %v982
    %v1319 = vpack.c.b16 %v987, %v983
    %v1320 = vpack.c.b16 %v988, %v984
    %v1321 = vpack.c.b16 %v993, %v989
    %v1322 = vpack.c.b16 %v994, %v990
    %v1323 = vpack.c.b16 %v995, %v991
    %v1324 = vpack.c.b16 %v996, %v992
    %v1325 = vpack.c.b16 %v1001, %v997
    %v1326 = vpack.c.b16 %v1002, %v998
    %v1327 = vpack.c.b16 %v1003, %v999
    %v1328 = vpack.c.b16 %v1004, %v1000
    %v1329 = vpack.c.b16 %v1009, %v1005
    %v1330 = vpack.c.b16 %v1010, %v1006
    %v1331 = vpack.c.b16 %v1011, %v1007
    %v1332 = vpack.c.b16 %v1012, %v1008
    %v1333 = vpack.c.b16 %v1017, %v1013
    %v1334 = vpack.c.b16 %v1018, %v1014
    %v1335 = vpack.c.b16 %v1019, %v1015
    %v1336 = vpack.c.b16 %v1020, %v1016
    %v1337 = vpack.c.b16 %v1025, %v1021
    %v1338 = vpack.c.b16 %v1026, %v1022
    %v1339 = vpack.c.b16 %v1027, %v1023
    %v1340 = vpack.c.b16 %v1028, %v1024
    %v1341 = vpack.c.b16 %v1033, %v1029
    %v1342 = vpack.c.b16 %v1034, %v1030
    %v1343 = vpack.c.b16 %v1035, %v1031
    %v1344 = vpack.c.b16 %v1036, %v1032
    %v1345 = vpack.c.b16 %v1041, %v1037
    %v1346 = vpack.c.b16 %v1042, %v1038
    %v1347 = vpack.c.b16 %v1043, %v1039
    %v1348 = vpack.c.b16 %v1044, %v1040
    %v1349 = vpack.c.b16 %v1049, %v1045
    %v1350 = vpack.c.b16 %v1050, %v1046
    %v1351 = vpack.c.b16 %v1051, %v1047
    %v1352 = vpack.c.b16 %v1052, %v1048
    %v1353 = vpack.c.b16 %v1057, %v1053
    %v1354 = vpack.c.b16 %v1058, %v1054
    %v1355 = vpack.c.b16 %v1059, %v1055
    %v1356 = vpack.c.b16 %v1060, %v1056
    %v1357 = vpack.c.b16 %v1065, %v1061
    %v1358 = vpack.c.b16 %v1066, %v1062
    %v1359 = vpack.c.b16 %v1067, %v1063
    %v1360 = vpack.c.b16 %v1068, %v1064
    %v1361 = vpack.c.b16 %v1073, %v1069
    %v1362 = vpack.c.b16 %v1074, %v1070
    %v1363 = vpack.c.b16 %v1075, %v1071
    %v1364 = vpack.c.b16 %v1076, %v1072
    %v1365 = vpack.c.b16 %v1081, %v1077
    %v1366 = vpack.c.b16 %v1082, %v1078
    %v1367 = vpack.c.b16 %v1083, %v1079
    %v1368 = vpack.c.b16 %v1084, %v1080
    %v1369 = vpack.c.b16 %v1089, %v1085
    %v1370 = vpack.c.b16 %v1090, %v1086
    %v1371 = vpack.c.b16 %v1091, %v1087
    %v1372 = vpack.c.b16 %v1092, %v1088
    %v1373 = vpack.c.b16 %v1097, %v1093
    %v1374 = vpack.c.b16 %v1098, %v1094
    %v1375 = vpack.c.b16 %v1099, %v1095
    %v1376 = vpack.c.b16 %v1100, %v1096
    %v1377 = vpack.c.b16 %v1105, %v1101
    %v1378 = vpack.c.b16 %v1106, %v1102
    %v1379 = vpack.c.b16 %v1107, %v1103
    %v1380 = vpack.c.b16 %v1108, %v1104
    %v1381 = vpack.c.b16 %v1113, %v1109
    %v1382 = vpack.c.b16 %v1114, %v1110
    %v1383 = vpack.c.b16 %v1115, %v1111
    %v1384 = vpack.c.b16 %v1116, %v1112
    %v1385 = vpack.c.b16 %v1121, %v1117
    %v1386 = vpack.c.b16 %v1122, %v1118
    %v1387 = vpack.c.b16 %v1123, %v1119
    %v1388 = vpack.c.b16 %v1124, %v1120
    %v1389 = vpack.c.b16 %v1129, %v1125
    %v1390 = vpack.c.b16 %v1130, %v1126
    %v1391 = vpack.c.b16 %v1131, %v1127
    %v1392 = vpack.c.b16 %v1132, %v1128
    %v1393 = vpack.c.b16 %v1137, %v1133
    %v1394 = vpack.c.b16 %v1138, %v1134
    %v1395 = vpack.c.b16 %v1139, %v1135
    %v1396 = vpack.c.b16 %v1140, %v1136
    %1653 = vmatprep.subr.bf16.mxu0 %v1142
    %1654 = vmatpush1.bf16.msra.mxu0 %v1141
    %1655 = vmatprep.subr.bf16.mxu0 %v1146
    %1656 = vmatpush1.bf16.msra.mxu0 %v1145
    %1657 = vmatprep.subr.bf16.mxu0 %v1150
    %1658 = vmatpush1.bf16.msra.mxu0 %v1149
    %1659 = vmatprep.subr.bf16.mxu0 %v1154
    %1660 = vmatpush1.bf16.msra.mxu0 %v1153
    %1661 = vmatprep.subr.bf16.mxu0 %v1158
    %1662 = vmatpush1.bf16.msra.mxu0 %v1157
    %1663 = vmatprep.subr.bf16.mxu0 %v1162
    %1664 = vmatpush1.bf16.msra.mxu0 %v1161
    %1665 = vmatprep.subr.bf16.mxu0 %v1166
    %1666 = vmatpush1.bf16.msra.mxu0 %v1165
    %1667 = vmatprep.subr.bf16.mxu0 %v1170
    %1668 = vmatpush1.bf16.msra.mxu0 %v1169
    %1669 = vmatprep.subr.bf16.mxu0 %v1174
    %1670 = vmatpush1.bf16.msra.mxu0 %v1173
    %1671 = vmatprep.subr.bf16.mxu0 %v1178
    %1672 = vmatpush1.bf16.msra.mxu0 %v1177
    %1673 = vmatprep.subr.bf16.mxu0 %v1182
    %1674 = vmatpush1.bf16.msra.mxu0 %v1181
    %1675 = vmatprep.subr.bf16.mxu0 %v1186
    %1676 = vmatpush1.bf16.msra.mxu0 %v1185
    %1677 = vmatprep.subr.bf16.mxu0 %v1190
    %1678 = vmatpush1.bf16.msra.mxu0 %v1189
    %1679 = vmatprep.subr.bf16.mxu0 %v1194
    %1680 = vmatpush1.bf16.msra.mxu0 %v1193
    %1681 = vmatprep.subr.bf16.mxu0 %v1198
    %1682 = vmatpush1.bf16.msra.mxu0 %v1197
    %1683 = vmatprep.subr.bf16.mxu0 %v1202
    %1684 = vmatpush1.bf16.msra.mxu0 %v1201
    %1685 = vmatprep.mubr.bf16.mxu0 %v88
    %1686 = vmatmul.mubr.bf16.gmra.mrb[0].mxu0 %v87
    %v1687 = vpop.f32.mrb[0].mxu0
    %v1688 = vadd.f32 %v356, %v1687
    %v1689 = vpop.f32.mrb[0].mxu0
    %v1690 = vadd.f32 %v360, %v1689
    %v1691 = vpop.f32.mrb[0].mxu0
    %v1692 = vpop.f32.mrb[0].mxu0
    %1693 = vdwg.mxu0
    %1694 = vmatprep.subr.bf16.mxu0 %v1206
    %1695 = vmatpush1.bf16.msra.mxu0 %v1205
    %1696 = vmatprep.subr.bf16.mxu0 %v1210
    %1697 = vmatpush1.bf16.msra.mxu0 %v1209
    %1698 = vmatprep.subr.bf16.mxu0 %v1214
    %1699 = vmatpush1.bf16.msra.mxu0 %v1213
    %1700 = vmatprep.subr.bf16.mxu0 %v1218
    %1701 = vmatpush1.bf16.msra.mxu0 %v1217
    %1702 = vmatprep.subr.bf16.mxu0 %v1222
    %1703 = vmatpush1.bf16.msra.mxu0 %v1221
    %1704 = vmatprep.subr.bf16.mxu0 %v1226
    %1705 = vmatpush1.bf16.msra.mxu0 %v1225
    %1706 = vmatprep.subr.bf16.mxu0 %v1230
    %1707 = vmatpush1.bf16.msra.mxu0 %v1229
    %1708 = vmatprep.subr.bf16.mxu0 %v1234
    %1709 = vmatpush1.bf16.msra.mxu0 %v1233
    %1710 = vmatprep.subr.bf16.mxu0 %v1238
    %1711 = vmatpush1.bf16.msra.mxu0 %v1237
    %1712 = vmatprep.subr.bf16.mxu0 %v1242
    %1713 = vmatpush1.bf16.msra.mxu0 %v1241
    %1714 = vmatprep.subr.bf16.mxu0 %v1246
    %1715 = vmatpush1.bf16.msra.mxu0 %v1245
    %1716 = vmatprep.subr.bf16.mxu0 %v1250
    %1717 = vmatpush1.bf16.msra.mxu0 %v1249
    %1718 = vmatprep.subr.bf16.mxu0 %v1254
    %1719 = vmatpush1.bf16.msra.mxu0 %v1253
    %1720 = vmatprep.subr.bf16.mxu0 %v1258
    %1721 = vmatpush1.bf16.msra.mxu0 %v1257
    %1722 = vmatprep.subr.bf16.mxu0 %v1262
    %1723 = vmatpush1.bf16.msra.mxu0 %v1261
    %1724 = vmatprep.subr.bf16.mxu0 %v1266
    %1725 = vmatpush1.bf16.msra.mxu0 %v1265
    %1726 = vmatprep.mubr.bf16.mxu0 %v90
    %1727 = vmatmul.mubr.bf16.gmra.mrb[0].mxu0 %v89
    %v1728 = vpop.f32.mrb[0].mxu0
    %v1729 = vadd.f32 %v1688, %v1728
    %v1730 = vpop.f32.mrb[0].mxu0
    %v1731 = vadd.f32 %v1690, %v1730
    %v1732 = vpop.f32.mrb[0].mxu0
    %v1733 = vpop.f32.mrb[0].mxu0
    %1734 = vdwg.mxu0
    %1735 = vmatprep.subr.bf16.mxu0 %v1270
    %1736 = vmatpush1.bf16.msra.mxu0 %v1269
    %1737 = vmatprep.subr.bf16.mxu0 %v1274
    %1738 = vmatpush1.bf16.msra.mxu0 %v1273
    %1739 = vmatprep.subr.bf16.mxu0 %v1278
    %1740 = vmatpush1.bf16.msra.mxu0 %v1277
    %1741 = vmatprep.subr.bf16.mxu0 %v1282
    %1742 = vmatpush1.bf16.msra.mxu0 %v1281
    %1743 = vmatprep.subr.bf16.mxu0 %v1286
    %1744 = vmatpush1.bf16.msra.mxu0 %v1285
    %1745 = vmatprep.subr.bf16.mxu0 %v1290
    %1746 = vmatpush1.bf16.msra.mxu0 %v1289
    %1747 = vmatprep.subr.bf16.mxu0 %v1294
    %1748 = vmatpush1.bf16.msra.mxu0 %v1293
    %1749 = vmatprep.subr.bf16.mxu0 %v1298
    %1750 = vmatpush1.bf16.msra.mxu0 %v1297
    %1751 = vmatprep.subr.bf16.mxu0 %v1302
    %1752 = vmatpush1.bf16.msra.mxu0 %v1301
    %1753 = vmatprep.subr.bf16.mxu0 %v1306
    %1754 = vmatpush1.bf16.msra.mxu0 %v1305
    %1755 = vmatprep.subr.bf16.mxu0 %v1310
    %1756 = vmatpush1.bf16.msra.mxu0 %v1309
    %1757 = vmatprep.subr.bf16.mxu0 %v1314
    %1758 = vmatpush1.bf16.msra.mxu0 %v1313
    %1759 = vmatprep.subr.bf16.mxu0 %v1318
    %1760 = vmatpush1.bf16.msra.mxu0 %v1317
    %1761 = vmatprep.subr.bf16.mxu0 %v1322
    %1762 = vmatpush1.bf16.msra.mxu0 %v1321
    %1763 = vmatprep.subr.bf16.mxu0 %v1326
    %1764 = vmatpush1.bf16.msra.mxu0 %v1325
    %1765 = vmatprep.subr.bf16.mxu0 %v1330
    %1766 = vmatpush1.bf16.msra.mxu0 %v1329
    %1767 = vmatprep.mubr.bf16.mxu0 %v92
    %1768 = vmatmul.mubr.bf16.gmra.mrb[0].mxu0 %v91
    %v1769 = vpop.f32.mrb[0].mxu0
    %v1770 = vadd.f32 %v1729, %v1769
    %v1771 = vpop.f32.mrb[0].mxu0
    %v1772 = vadd.f32 %v1731, %v1771
    %v1773 = vpop.f32.mrb[0].mxu0
    %v1774 = vpop.f32.mrb[0].mxu0
    %1775 = vdwg.mxu0
    %1776 = vmatprep.subr.bf16.mxu0 %v1334
    %1777 = vmatpush1.bf16.msra.mxu0 %v1333
    %1778 = vmatprep.subr.bf16.mxu0 %v1338
    %1779 = vmatpush1.bf16.msra.mxu0 %v1337
    %1780 = vmatprep.subr.bf16.mxu0 %v1342
    %1781 = vmatpush1.bf16.msra.mxu0 %v1341
    %1782 = vmatprep.subr.bf16.mxu0 %v1346
    %1783 = vmatpush1.bf16.msra.mxu0 %v1345
    %1784 = vmatprep.subr.bf16.mxu0 %v1350
    %1785 = vmatpush1.bf16.msra.mxu0 %v1349
    %1786 = vmatprep.subr.bf16.mxu0 %v1354
    %1787 = vmatpush1.bf16.msra.mxu0 %v1353
    %1788 = vmatprep.subr.bf16.mxu0 %v1358
    %1789 = vmatpush1.bf16.msra.mxu0 %v1357
    %1790 = vmatprep.subr.bf16.mxu0 %v1362
    %1791 = vmatpush1.bf16.msra.mxu0 %v1361
    %1792 = vmatprep.subr.bf16.mxu0 %v1366
    %1793 = vmatpush1.bf16.msra.mxu0 %v1365
    %1794 = vmatprep.subr.bf16.mxu0 %v1370
    %1795 = vmatpush1.bf16.msra.mxu0 %v1369
    %1796 = vmatprep.subr.bf16.mxu0 %v1374
    %1797 = vmatpush1.bf16.msra.mxu0 %v1373
    %1798 = vmatprep.subr.bf16.mxu0 %v1378
    %1799 = vmatpush1.bf16.msra.mxu0 %v1377
    %1800 = vmatprep.subr.bf16.mxu0 %v1382
    %1801 = vmatpush1.bf16.msra.mxu0 %v1381
    %1802 = vmatprep.subr.bf16.mxu0 %v1386
    %1803 = vmatpush1.bf16.msra.mxu0 %v1385
    %1804 = vmatprep.subr.bf16.mxu0 %v1390
    %1805 = vmatpush1.bf16.msra.mxu0 %v1389
    %1806 = vmatprep.subr.bf16.mxu0 %v1394
    %1807 = vmatpush1.bf16.msra.mxu0 %v1393
    %1808 = vmatprep.mubr.bf16.mxu0 %v94
    %1809 = vmatmul.mubr.bf16.gmra.mrb[0].mxu0 %v93
    %v1810 = vpop.f32.mrb[0].mxu0
    %v1811 = vadd.f32 %v1770, %v1810
    %v1812 = vpop.f32.mrb[0].mxu0
    %v1813 = vadd.f32 %v1772, %v1812
    %v1814 = vpop.f32.mrb[0].mxu0
    %v1815 = vpop.f32.mrb[0].mxu0
    %1816 = vdwg.mxu0
    %1817 = vmatprep.subr.bf16.mxu0 %v1144
    %1818 = vmatpush1.bf16.msra.mxu0 %v1143
    %1819 = vmatprep.subr.bf16.mxu0 %v1148
    %1820 = vmatpush1.bf16.msra.mxu0 %v1147
    %1821 = vmatprep.subr.bf16.mxu0 %v1152
    %1822 = vmatpush1.bf16.msra.mxu0 %v1151
    %1823 = vmatprep.subr.bf16.mxu0 %v1156
    %1824 = vmatpush1.bf16.msra.mxu0 %v1155
    %1825 = vmatprep.subr.bf16.mxu0 %v1160
    %1826 = vmatpush1.bf16.msra.mxu0 %v1159
    %1827 = vmatprep.subr.bf16.mxu0 %v1164
    %1828 = vmatpush1.bf16.msra.mxu0 %v1163
    %1829 = vmatprep.subr.bf16.mxu0 %v1168
    %1830 = vmatpush1.bf16.msra.mxu0 %v1167
    %1831 = vmatprep.subr.bf16.mxu0 %v1172
    %1832 = vmatpush1.bf16.msra.mxu0 %v1171
    %1833 = vmatprep.subr.bf16.mxu0 %v1176
    %1834 = vmatpush1.bf16.msra.mxu0 %v1175
    %1835 = vmatprep.subr.bf16.mxu0 %v1180
    %1836 = vmatpush1.bf16.msra.mxu0 %v1179
    %1837 = vmatprep.subr.bf16.mxu0 %v1184
    %1838 = vmatpush1.bf16.msra.mxu0 %v1183
    %1839 = vmatprep.subr.bf16.mxu0 %v1188
    %1840 = vmatpush1.bf16.msra.mxu0 %v1187
    %1841 = vmatprep.subr.bf16.mxu0 %v1192
    %1842 = vmatpush1.bf16.msra.mxu0 %v1191
    %1843 = vmatprep.subr.bf16.mxu0 %v1196
    %1844 = vmatpush1.bf16.msra.mxu0 %v1195
    %1845 = vmatprep.subr.bf16.mxu0 %v1200
    %1846 = vmatpush1.bf16.msra.mxu0 %v1199
    %1847 = vmatprep.subr.bf16.mxu0 %v1204
    %1848 = vmatpush1.bf16.msra.mxu0 %v1203
    %1849 = vmatprep.mubr.bf16.mxu0 %v88
    %1850 = vmatmul.mubr.bf16.gmra.mrb[0].mxu0 %v87
    %v1851 = vpop.f32.mrb[0].mxu0
    %v1852 = vadd.f32 %v364, %v1851
    %v1853 = vpop.f32.mrb[0].mxu0
    %v1854 = vadd.f32 %v368, %v1853
    %v1855 = vpop.f32.mrb[0].mxu0
    %v1856 = vpop.f32.mrb[0].mxu0
    %1857 = vdwg.mxu0
    %1858 = vmatprep.subr.bf16.mxu0 %v1208
    %1859 = vmatpush1.bf16.msra.mxu0 %v1207
    %1860 = vmatprep.subr.bf16.mxu0 %v1212
    %1861 = vmatpush1.bf16.msra.mxu0 %v1211
    %1862 = vmatprep.subr.bf16.mxu0 %v1216
    %1863 = vmatpush1.bf16.msra.mxu0 %v1215
    %1864 = vmatprep.subr.bf16.mxu0 %v1220
    %1865 = vmatpush1.bf16.msra.mxu0 %v1219
    %1866 = vmatprep.subr.bf16.mxu0 %v1224
    %1867 = vmatpush1.bf16.msra.mxu0 %v1223
    %1868 = vmatprep.subr.bf16.mxu0 %v1228
    %1869 = vmatpush1.bf16.msra.mxu0 %v1227
    %1870 = vmatprep.subr.bf16.mxu0 %v1232
    %1871 = vmatpush1.bf16.msra.mxu0 %v1231
    %1872 = vmatprep.subr.bf16.mxu0 %v1236
    %1873 = vmatpush1.bf16.msra.mxu0 %v1235
    %1874 = vmatprep.subr.bf16.mxu0 %v1240
    %1875 = vmatpush1.bf16.msra.mxu0 %v1239
    %1876 = vmatprep.subr.bf16.mxu0 %v1244
    %1877 = vmatpush1.bf16.msra.mxu0 %v1243
    %1878 = vmatprep.subr.bf16.mxu0 %v1248
    %1879 = vmatpush1.bf16.msra.mxu0 %v1247
    %1880 = vmatprep.subr.bf16.mxu0 %v1252
    %1881 = vmatpush1.bf16.msra.mxu0 %v1251
    %1882 = vmatprep.subr.bf16.mxu0 %v1256
    %1883 = vmatpush1.bf16.msra.mxu0 %v1255
    %1884 = vmatprep.subr.bf16.mxu0 %v1260
    %1885 = vmatpush1.bf16.msra.mxu0 %v1259
    %1886 = vmatprep.subr.bf16.mxu0 %v1264
    %1887 = vmatpush1.bf16.msra.mxu0 %v1263
    %1888 = vmatprep.subr.bf16.mxu0 %v1268
    %1889 = vmatpush1.bf16.msra.mxu0 %v1267
    %1890 = vmatprep.mubr.bf16.mxu0 %v90
    %1891 = vmatmul.mubr.bf16.gmra.mrb[0].mxu0 %v89
    %v1892 = vpop.f32.mrb[0].mxu0
    %v1893 = vadd.f32 %v1852, %v1892
    %v1894 = vpop.f32.mrb[0].mxu0
    %v1895 = vadd.f32 %v1854, %v1894
    %v1896 = vpop.f32.mrb[0].mxu0
    %v1897 = vpop.f32.mrb[0].mxu0
    %1898 = vdwg.mxu0
    %1899 = vmatprep.subr.bf16.mxu0 %v1272
    %1900 = vmatpush1.bf16.msra.mxu0 %v1271
    %1901 = vmatprep.subr.bf16.mxu0 %v1276
    %1902 = vmatpush1.bf16.msra.mxu0 %v1275
    %1903 = vmatprep.subr.bf16.mxu0 %v1280
    %1904 = vmatpush1.bf16.msra.mxu0 %v1279
    %1905 = vmatprep.subr.bf16.mxu0 %v1284
    %1906 = vmatpush1.bf16.msra.mxu0 %v1283
    %1907 = vmatprep.subr.bf16.mxu0 %v1288
    %1908 = vmatpush1.bf16.msra.mxu0 %v1287
    %1909 = vmatprep.subr.bf16.mxu0 %v1292
    %1910 = vmatpush1.bf16.msra.mxu0 %v1291
    %1911 = vmatprep.subr.bf16.mxu0 %v1296
    %1912 = vmatpush1.bf16.msra.mxu0 %v1295
    %1913 = vmatprep.subr.bf16.mxu0 %v1300
    %1914 = vmatpush1.bf16.msra.mxu0 %v1299
    %1915 = vmatprep.subr.bf16.mxu0 %v1304
    %1916 = vmatpush1.bf16.msra.mxu0 %v1303
    %1917 = vmatprep.subr.bf16.mxu0 %v1308
    %1918 = vmatpush1.bf16.msra.mxu0 %v1307
    %1919 = vmatprep.subr.bf16.mxu0 %v1312
    %1920 = vmatpush1.bf16.msra.mxu0 %v1311
    %1921 = vmatprep.subr.bf16.mxu0 %v1316
    %1922 = vmatpush1.bf16.msra.mxu0 %v1315
    %1923 = vmatprep.subr.bf16.mxu0 %v1320
    %1924 = vmatpush1.bf16.msra.mxu0 %v1319
    %1925 = vmatprep.subr.bf16.mxu0 %v1324
    %1926 = vmatpush1.bf16.msra.mxu0 %v1323
    %1927 = vmatprep.subr.bf16.mxu0 %v1328
    %1928 = vmatpush1.bf16.msra.mxu0 %v1327
    %1929 = vmatprep.subr.bf16.mxu0 %v1332
    %1930 = vmatpush1.bf16.msra.mxu0 %v1331
    %1931 = vmatprep.mubr.bf16.mxu0 %v92
    %1932 = vmatmul.mubr.bf16.gmra.mrb[0].mxu0 %v91
    %v1933 = vpop.f32.mrb[0].mxu0
    %v1934 = vadd.f32 %v1893, %v1933
    %v1935 = vpop.f32.mrb[0].mxu0
    %v1936 = vadd.f32 %v1895, %v1935
    %v1937 = vpop.f32.mrb[0].mxu0
    %v1938 = vpop.f32.mrb[0].mxu0
    %1939 = vdwg.mxu0
    %1940 = vmatprep.subr.bf16.mxu0 %v1336
    %1941 = vmatpush1.bf16.msra.mxu0 %v1335
    %1942 = vmatprep.subr.bf16.mxu0 %v1340
    %1943 = vmatpush1.bf16.msra.mxu0 %v1339
    %1944 = vmatprep.subr.bf16.mxu0 %v1344
    %1945 = vmatpush1.bf16.msra.mxu0 %v1343
    %1946 = vmatprep.subr.bf16.mxu0 %v1348
    %1947 = vmatpush1.bf16.msra.mxu0 %v1347
    %1948 = vmatprep.subr.bf16.mxu0 %v1352
    %1949 = vmatpush1.bf16.msra.mxu0 %v1351
    %1950 = vmatprep.subr.bf16.mxu0 %v1356
    %1951 = vmatpush1.bf16.msra.mxu0 %v1355
    %1952 = vmatprep.subr.bf16.mxu0 %v1360
    %1953 = vmatpush1.bf16.msra.mxu0 %v1359
    %1954 = vmatprep.subr.bf16.mxu0 %v1364
    %1955 = vmatpush1.bf16.msra.mxu0 %v1363
    %1956 = vmatprep.subr.bf16.mxu0 %v1368
    %1957 = vmatpush1.bf16.msra.mxu0 %v1367
    %1958 = vmatprep.subr.bf16.mxu0 %v1372
    %1959 = vmatpush1.bf16.msra.mxu0 %v1371
    %1960 = vmatprep.subr.bf16.mxu0 %v1376
    %1961 = vmatpush1.bf16.msra.mxu0 %v1375
    %1962 = vmatprep.subr.bf16.mxu0 %v1380
    %1963 = vmatpush1.bf16.msra.mxu0 %v1379
    %1964 = vmatprep.subr.bf16.mxu0 %v1384
    %1965 = vmatpush1.bf16.msra.mxu0 %v1383
    %1966 = vmatprep.subr.bf16.mxu0 %v1388
    %1967 = vmatpush1.bf16.msra.mxu0 %v1387
    %1968 = vmatprep.subr.bf16.mxu0 %v1392
    %1969 = vmatpush1.bf16.msra.mxu0 %v1391
    %1970 = vmatprep.subr.bf16.mxu0 %v1396
    %1971 = vmatpush1.bf16.msra.mxu0 %v1395
    %1972 = vmatprep.mubr.bf16.mxu0 %v94
    %1973 = vmatmul.mubr.bf16.gmra.mrb[0].mxu0 %v93
    %v1974 = vpop.f32.mrb[0].mxu0
    %v1975 = vadd.f32 %v1934, %v1974
    %v1976 = vpop.f32.mrb[0].mxu0
    %v1977 = vadd.f32 %v1936, %v1976
    %v1978 = vpop.f32.mrb[0].mxu0
    %v1979 = vpop.f32.mrb[0].mxu0
    %1980 = vdwg.mxu0
    %v1981 = vmax.f32 %v1811, 0.0
    %v1982 = vmax.f32 %v1813, 0.0
    %v1983 = vmax.f32 %v1975, 0.0
    %v1984 = vmax.f32 %v1977, 0.0
    %v1985 = vpack.c.bf16 %v1981, %v1981
    %v1986 = vpack.c.bf16 %v1982, %v1982
    %v1987 = vpack.c.bf16 %v1983, %v1983
    %v1988 = vpack.c.bf16 %v1984, %v1984
    %v1989 = vld [vmem:[%s3] sm:$0xff]
    %v1990 = vld [vmem:[%s3 + $0x8] sm:$0xff]
    %v1991 = vld [vmem:[%s3 + $0x10] sm:$0xff]
    %v1992 = vld [vmem:[%s3 + $0x18] sm:$0xff]
    %v1993 = vld [vmem:[%s3 + $0x20] sm:$0xff]
    %v1994 = vld [vmem:[%s3 + $0x28] sm:$0xff]
    %v1995 = vld [vmem:[%s3 + $0x30] sm:$0xff]
    %v1996 = vld [vmem:[%s3 + $0x38] sm:$0xff]
    %v1997 = vld [vmem:[%s3 + $0x40] sm:$0xff]
    %v1998 = vld [vmem:[%s3 + $0x48] sm:$0xff]
    %v1999 = vld [vmem:[%s3 + $0x50] sm:$0xff]
    %v2000 = vld [vmem:[%s3 + $0x58] sm:$0xff]
    %v2001 = vld [vmem:[%s3 + $0x60] sm:$0xff]
    %v2002 = vld [vmem:[%s3 + $0x68] sm:$0xff]
    %v2003 = vld [vmem:[%s3 + $0x70] sm:$0xff]
    %v2004 = vld [vmem:[%s3 + $0x78] sm:$0xff]
    %v2005 = vld [vmem:[%s3 + $0x80] sm:$0xff]
    %v2006 = vld [vmem:[%s3 + $0x88] sm:$0xff]
    %v2007 = vld [vmem:[%s3 + $0x90] sm:$0xff]
    %v2008 = vld [vmem:[%s3 + $0x98] sm:$0xff]
    %v2009 = vld [vmem:[%s3 + $0xa0] sm:$0xff]
    %v2010 = vld [vmem:[%s3 + $0xa8] sm:$0xff]
    %v2011 = vld [vmem:[%s3 + $0xb0] sm:$0xff]
    %v2012 = vld [vmem:[%s3 + $0xb8] sm:$0xff]
    %v2013 = vld [vmem:[%s3 + $0xc0] sm:$0xff]
    %v2014 = vld [vmem:[%s3 + $0xc8] sm:$0xff]
    %v2015 = vld [vmem:[%s3 + $0xd0] sm:$0xff]
    %v2016 = vld [vmem:[%s3 + $0xd8] sm:$0xff]
    %v2017 = vld [vmem:[%s3 + $0xe0] sm:$0xff]
    %v2018 = vld [vmem:[%s3 + $0xe8] sm:$0xff]
    %v2019 = vld [vmem:[%s3 + $0xf0] sm:$0xff]
    %v2020 = vld [vmem:[%s3 + $0xf8] sm:$0xff]
    %v2021 = vld [vmem:[%s3 + $0x100] sm:$0xff]
    %v2022 = vld [vmem:[%s3 + $0x108] sm:$0xff]
    %v2023 = vld [vmem:[%s3 + $0x110] sm:$0xff]
    %v2024 = vld [vmem:[%s3 + $0x118] sm:$0xff]
    %v2025 = vld [vmem:[%s3 + $0x120] sm:$0xff]
    %v2026 = vld [vmem:[%s3 + $0x128] sm:$0xff]
    %v2027 = vld [vmem:[%s3 + $0x130] sm:$0xff]
    %v2028 = vld [vmem:[%s3 + $0x138] sm:$0xff]
    %v2029 = vld [vmem:[%s3 + $0x140] sm:$0xff]
    %v2030 = vld [vmem:[%s3 + $0x148] sm:$0xff]
    %v2031 = vld [vmem:[%s3 + $0x150] sm:$0xff]
    %v2032 = vld [vmem:[%s3 + $0x158] sm:$0xff]
    %v2033 = vld [vmem:[%s3 + $0x160] sm:$0xff]
    %v2034 = vld [vmem:[%s3 + $0x168] sm:$0xff]
    %v2035 = vld [vmem:[%s3 + $0x170] sm:$0xff]
    %v2036 = vld [vmem:[%s3 + $0x178] sm:$0xff]
    %v2037 = vld [vmem:[%s3 + $0x180] sm:$0xff]
    %v2038 = vld [vmem:[%s3 + $0x188] sm:$0xff]
    %v2039 = vld [vmem:[%s3 + $0x190] sm:$0xff]
    %v2040 = vld [vmem:[%s3 + $0x198] sm:$0xff]
    %v2041 = vld [vmem:[%s3 + $0x1a0] sm:$0xff]
    %v2042 = vld [vmem:[%s3 + $0x1a8] sm:$0xff]
    %v2043 = vld [vmem:[%s3 + $0x1b0] sm:$0xff]
    %v2044 = vld [vmem:[%s3 + $0x1b8] sm:$0xff]
    %v2045 = vld [vmem:[%s3 + $0x1c0] sm:$0xff]
    %v2046 = vld [vmem:[%s3 + $0x1c8] sm:$0xff]
    %v2047 = vld [vmem:[%s3 + $0x1d0] sm:$0xff]
    %v2048 = vld [vmem:[%s3 + $0x1d8] sm:$0xff]
    %v2049 = vld [vmem:[%s3 + $0x1e0] sm:$0xff]
    %v2050 = vld [vmem:[%s3 + $0x1e8] sm:$0xff]
    %v2051 = vld [vmem:[%s3 + $0x1f0] sm:$0xff]
    %v2052 = vld [vmem:[%s3 + $0x1f8] sm:$0xff]
    %v2053 = vld [vmem:[%s4] sm:$0x3]
    %v2055 = vlaneseq
    %v2056 = vshrl.u32 %v2055, 7
    %v2057 = vsub.s32 0, %v2056
    %v2058 = vrot.slane %v2053, %v2057
    %v2059 = vlaneseq
    %v2060 = vshrl.u32 %v2059, 7
    %v2061 = vsub.s32 1, %v2060
    %v2062 = vrot.slane %v2053, %v2061
    %v2129 = vunpack.c.l.b16 %v1989
    %v2130 = vunpack.c.h.b16 %v1989
    %v2131 = vunpack.c.l.b16 %v1990
    %v2132 = vunpack.c.h.b16 %v1990
    %v2133 = vunpack.c.l.b16 %v1991
    %v2134 = vunpack.c.h.b16 %v1991
    %v2135 = vunpack.c.l.b16 %v1992
    %v2136 = vunpack.c.h.b16 %v1992
    %v2137 = vunpack.c.l.b16 %v1993
    %v2138 = vunpack.c.h.b16 %v1993
    %v2139 = vunpack.c.l.b16 %v1994
    %v2140 = vunpack.c.h.b16 %v1994
    %v2141 = vunpack.c.l.b16 %v1995
    %v2142 = vunpack.c.h.b16 %v1995
    %v2143 = vunpack.c.l.b16 %v1996
    %v2144 = vunpack.c.h.b16 %v1996
    %v2145 = vunpack.c.l.b16 %v1997
    %v2146 = vunpack.c.h.b16 %v1997
    %v2147 = vunpack.c.l.b16 %v1998
    %v2148 = vunpack.c.h.b16 %v1998
    %v2149 = vunpack.c.l.b16 %v1999
    %v2150 = vunpack.c.h.b16 %v1999
    %v2151 = vunpack.c.l.b16 %v2000
    %v2152 = vunpack.c.h.b16 %v2000
    %v2153 = vunpack.c.l.b16 %v2001
    %v2154 = vunpack.c.h.b16 %v2001
    %v2155 = vunpack.c.l.b16 %v2002
    %v2156 = vunpack.c.h.b16 %v2002
    %v2157 = vunpack.c.l.b16 %v2003
    %v2158 = vunpack.c.h.b16 %v2003
    %v2159 = vunpack.c.l.b16 %v2004
    %v2160 = vunpack.c.h.b16 %v2004
    %v2161 = vunpack.c.l.b16 %v2005
    %v2162 = vunpack.c.h.b16 %v2005
    %v2163 = vunpack.c.l.b16 %v2006
    %v2164 = vunpack.c.h.b16 %v2006
    %v2165 = vunpack.c.l.b16 %v2007
    %v2166 = vunpack.c.h.b16 %v2007
    %v2167 = vunpack.c.l.b16 %v2008
    %v2168 = vunpack.c.h.b16 %v2008
    %v2169 = vunpack.c.l.b16 %v2009
    %v2170 = vunpack.c.h.b16 %v2009
    %v2171 = vunpack.c.l.b16 %v2010
    %v2172 = vunpack.c.h.b16 %v2010
    %v2173 = vunpack.c.l.b16 %v2011
    %v2174 = vunpack.c.h.b16 %v2011
    %v2175 = vunpack.c.l.b16 %v2012
    %v2176 = vunpack.c.h.b16 %v2012
    %v2177 = vunpack.c.l.b16 %v2013
    %v2178 = vunpack.c.h.b16 %v2013
    %v2179 = vunpack.c.l.b16 %v2014
    %v2180 = vunpack.c.h.b16 %v2014
    %v2181 = vunpack.c.l.b16 %v2015
    %v2182 = vunpack.c.h.b16 %v2015
    %v2183 = vunpack.c.l.b16 %v2016
    %v2184 = vunpack.c.h.b16 %v2016
    %v2185 = vunpack.c.l.b16 %v2017
    %v2186 = vunpack.c.h.b16 %v2017
    %v2187 = vunpack.c.l.b16 %v2018
    %v2188 = vunpack.c.h.b16 %v2018
    %v2189 = vunpack.c.l.b16 %v2019
    %v2190 = vunpack.c.h.b16 %v2019
    %v2191 = vunpack.c.l.b16 %v2020
    %v2192 = vunpack.c.h.b16 %v2020
    %v2193 = vunpack.c.l.b16 %v2021
    %v2194 = vunpack.c.h.b16 %v2021
    %v2195 = vunpack.c.l.b16 %v2022
    %v2196 = vunpack.c.h.b16 %v2022
    %v2197 = vunpack.c.l.b16 %v2023
    %v2198 = vunpack.c.h.b16 %v2023
    %v2199 = vunpack.c.l.b16 %v2024
    %v2200 = vunpack.c.h.b16 %v2024
    %v2201 = vunpack.c.l.b16 %v2025
    %v2202 = vunpack.c.h.b16 %v2025
    %v2203 = vunpack.c.l.b16 %v2026
    %v2204 = vunpack.c.h.b16 %v2026
    %v2205 = vunpack.c.l.b16 %v2027
    %v2206 = vunpack.c.h.b16 %v2027
    %v2207 = vunpack.c.l.b16 %v2028
    %v2208 = vunpack.c.h.b16 %v2028
    %v2209 = vunpack.c.l.b16 %v2029
    %v2210 = vunpack.c.h.b16 %v2029
    %v2211 = vunpack.c.l.b16 %v2030
    %v2212 = vunpack.c.h.b16 %v2030
    %v2213 = vunpack.c.l.b16 %v2031
    %v2214 = vunpack.c.h.b16 %v2031
    %v2215 = vunpack.c.l.b16 %v2032
    %v2216 = vunpack.c.h.b16 %v2032
    %v2217 = vunpack.c.l.b16 %v2033
    %v2218 = vunpack.c.h.b16 %v2033
    %v2219 = vunpack.c.l.b16 %v2034
    %v2220 = vunpack.c.h.b16 %v2034
    %v2221 = vunpack.c.l.b16 %v2035
    %v2222 = vunpack.c.h.b16 %v2035
    %v2223 = vunpack.c.l.b16 %v2036
    %v2224 = vunpack.c.h.b16 %v2036
    %v2225 = vunpack.c.l.b16 %v2037
    %v2226 = vunpack.c.h.b16 %v2037
    %v2227 = vunpack.c.l.b16 %v2038
    %v2228 = vunpack.c.h.b16 %v2038
    %v2229 = vunpack.c.l.b16 %v2039
    %v2230 = vunpack.c.h.b16 %v2039
    %v2231 = vunpack.c.l.b16 %v2040
    %v2232 = vunpack.c.h.b16 %v2040
    %v2233 = vunpack.c.l.b16 %v2041
    %v2234 = vunpack.c.h.b16 %v2041
    %v2235 = vunpack.c.l.b16 %v2042
    %v2236 = vunpack.c.h.b16 %v2042
    %v2237 = vunpack.c.l.b16 %v2043
    %v2238 = vunpack.c.h.b16 %v2043
    %v2239 = vunpack.c.l.b16 %v2044
    %v2240 = vunpack.c.h.b16 %v2044
    %v2241 = vunpack.c.l.b16 %v2045
    %v2242 = vunpack.c.h.b16 %v2045
    %v2243 = vunpack.c.l.b16 %v2046
    %v2244 = vunpack.c.h.b16 %v2046
    %v2245 = vunpack.c.l.b16 %v2047
    %v2246 = vunpack.c.h.b16 %v2047
    %v2247 = vunpack.c.l.b16 %v2048
    %v2248 = vunpack.c.h.b16 %v2048
    %v2249 = vunpack.c.l.b16 %v2049
    %v2250 = vunpack.c.h.b16 %v2049
    %v2251 = vunpack.c.l.b16 %v2050
    %v2252 = vunpack.c.h.b16 %v2050
    %v2253 = vunpack.c.l.b16 %v2051
    %v2254 = vunpack.c.h.b16 %v2051
    %v2255 = vunpack.c.l.b16 %v2052
    %v2256 = vunpack.c.h.b16 %v2052
    %v2257 = vpack.c.b16 %v2131, %v2129
    %v2258 = vpack.c.b16 %v2132, %v2130
    %v2259 = vpack.c.b16 %v2135, %v2133
    %v2260 = vpack.c.b16 %v2136, %v2134
    %v2261 = vpack.c.b16 %v2139, %v2137
    %v2262 = vpack.c.b16 %v2140, %v2138
    %v2263 = vpack.c.b16 %v2143, %v2141
    %v2264 = vpack.c.b16 %v2144, %v2142
    %v2265 = vpack.c.b16 %v2147, %v2145
    %v2266 = vpack.c.b16 %v2148, %v2146
    %v2267 = vpack.c.b16 %v2151, %v2149
    %v2268 = vpack.c.b16 %v2152, %v2150
    %v2269 = vpack.c.b16 %v2155, %v2153
    %v2270 = vpack.c.b16 %v2156, %v2154
    %v2271 = vpack.c.b16 %v2159, %v2157
    %v2272 = vpack.c.b16 %v2160, %v2158
    %v2273 = vpack.c.b16 %v2163, %v2161
    %v2274 = vpack.c.b16 %v2164, %v2162
    %v2275 = vpack.c.b16 %v2167, %v2165
    %v2276 = vpack.c.b16 %v2168, %v2166
    %v2277 = vpack.c.b16 %v2171, %v2169
    %v2278 = vpack.c.b16 %v2172, %v2170
    %v2279 = vpack.c.b16 %v2175, %v2173
    %v2280 = vpack.c.b16 %v2176, %v2174
    %v2281 = vpack.c.b16 %v2179, %v2177
    %v2282 = vpack.c.b16 %v2180, %v2178
    %v2283 = vpack.c.b16 %v2183, %v2181
    %v2284 = vpack.c.b16 %v2184, %v2182
    %v2285 = vpack.c.b16 %v2187, %v2185
    %v2286 = vpack.c.b16 %v2188, %v2186
    %v2287 = vpack.c.b16 %v2191, %v2189
    %v2288 = vpack.c.b16 %v2192, %v2190
    %v2289 = vpack.c.b16 %v2195, %v2193
    %v2290 = vpack.c.b16 %v2196, %v2194
    %v2291 = vpack.c.b16 %v2199, %v2197
    %v2292 = vpack.c.b16 %v2200, %v2198
    %v2293 = vpack.c.b16 %v2203, %v2201
    %v2294 = vpack.c.b16 %v2204, %v2202
    %v2295 = vpack.c.b16 %v2207, %v2205
    %v2296 = vpack.c.b16 %v2208, %v2206
    %v2297 = vpack.c.b16 %v2211, %v2209
    %v2298 = vpack.c.b16 %v2212, %v2210
    %v2299 = vpack.c.b16 %v2215, %v2213
    %v2300 = vpack.c.b16 %v2216, %v2214
    %v2301 = vpack.c.b16 %v2219, %v2217
    %v2302 = vpack.c.b16 %v2220, %v2218
    %v2303 = vpack.c.b16 %v2223, %v2221
    %v2304 = vpack.c.b16 %v2224, %v2222
    %v2305 = vpack.c.b16 %v2227, %v2225
    %v2306 = vpack.c.b16 %v2228, %v2226
    %v2307 = vpack.c.b16 %v2231, %v2229
    %v2308 = vpack.c.b16 %v2232, %v2230
    %v2309 = vpack.c.b16 %v2235, %v2233
    %v2310 = vpack.c.b16 %v2236, %v2234
    %v2311 = vpack.c.b16 %v2239, %v2237
    %v2312 = vpack.c.b16 %v2240, %v2238
    %v2313 = vpack.c.b16 %v2243, %v2241
    %v2314 = vpack.c.b16 %v2244, %v2242
    %v2315 = vpack.c.b16 %v2247, %v2245
    %v2316 = vpack.c.b16 %v2248, %v2246
    %v2317 = vpack.c.b16 %v2251, %v2249
    %v2318 = vpack.c.b16 %v2252, %v2250
    %v2319 = vpack.c.b16 %v2255, %v2253
    %v2320 = vpack.c.b16 %v2256, %v2254
    %2385 = vmatprep.subr.bf16.mxu0 %v2258
    %2386 = vmatpush1.bf16.msra.mxu0 %v2257
    %2387 = vmatprep.subr.bf16.mxu0 %v2260
    %2388 = vmatpush1.bf16.msra.mxu0 %v2259
    %2389 = vmatprep.subr.bf16.mxu0 %v2262
    %2390 = vmatpush1.bf16.msra.mxu0 %v2261
    %2391 = vmatprep.subr.bf16.mxu0 %v2264
    %2392 = vmatpush1.bf16.msra.mxu0 %v2263
    %2393 = vmatprep.subr.bf16.mxu0 %v2266
    %2394 = vmatpush1.bf16.msra.mxu0 %v2265
    %2395 = vmatprep.subr.bf16.mxu0 %v2268
    %2396 = vmatpush1.bf16.msra.mxu0 %v2267
    %2397 = vmatprep.subr.bf16.mxu0 %v2270
    %2398 = vmatpush1.bf16.msra.mxu0 %v2269
    %2399 = vmatprep.subr.bf16.mxu0 %v2272
    %2400 = vmatpush1.bf16.msra.mxu0 %v2271
    %2401 = vmatprep.subr.bf16.mxu0 %v2274
    %2402 = vmatpush1.bf16.msra.mxu0 %v2273
    %2403 = vmatprep.subr.bf16.mxu0 %v2276
    %2404 = vmatpush1.bf16.msra.mxu0 %v2275
    %2405 = vmatprep.subr.bf16.mxu0 %v2278
    %2406 = vmatpush1.bf16.msra.mxu0 %v2277
    %2407 = vmatprep.subr.bf16.mxu0 %v2280
    %2408 = vmatpush1.bf16.msra.mxu0 %v2279
    %2409 = vmatprep.subr.bf16.mxu0 %v2282
    %2410 = vmatpush1.bf16.msra.mxu0 %v2281
    %2411 = vmatprep.subr.bf16.mxu0 %v2284
    %2412 = vmatpush1.bf16.msra.mxu0 %v2283
    %2413 = vmatprep.subr.bf16.mxu0 %v2286
    %2414 = vmatpush1.bf16.msra.mxu0 %v2285
    %2415 = vmatprep.subr.bf16.mxu0 %v2288
    %2416 = vmatpush1.bf16.msra.mxu0 %v2287
    %2417 = vmatprep.mubr.bf16.mxu0 %v1986
    %2418 = vmatmul.mubr.bf16.gmra.mrb[0].mxu0 %v1985
    %v2419 = vpop.f32.mrb[0].mxu0
    %v2420 = vadd.f32 %v2058, %v2419
    %v2421 = vpop.f32.mrb[0].mxu0
    %v2422 = vadd.f32 %v2062, %v2421
    %v2423 = vpop.f32.mrb[0].mxu0
    %v2424 = vpop.f32.mrb[0].mxu0
    %2425 = vdwg.mxu0
    %2426 = vmatprep.subr.bf16.mxu0 %v2290
    %2427 = vmatpush1.bf16.msra.mxu0 %v2289
    %2428 = vmatprep.subr.bf16.mxu0 %v2292
    %2429 = vmatpush1.bf16.msra.mxu0 %v2291
    %2430 = vmatprep.subr.bf16.mxu0 %v2294
    %2431 = vmatpush1.bf16.msra.mxu0 %v2293
    %2432 = vmatprep.subr.bf16.mxu0 %v2296
    %2433 = vmatpush1.bf16.msra.mxu0 %v2295
    %2434 = vmatprep.subr.bf16.mxu0 %v2298
    %2435 = vmatpush1.bf16.msra.mxu0 %v2297
    %2436 = vmatprep.subr.bf16.mxu0 %v2300
    %2437 = vmatpush1.bf16.msra.mxu0 %v2299
    %2438 = vmatprep.subr.bf16.mxu0 %v2302
    %2439 = vmatpush1.bf16.msra.mxu0 %v2301
    %2440 = vmatprep.subr.bf16.mxu0 %v2304
    %2441 = vmatpush1.bf16.msra.mxu0 %v2303
    %2442 = vmatprep.subr.bf16.mxu0 %v2306
    %2443 = vmatpush1.bf16.msra.mxu0 %v2305
    %2444 = vmatprep.subr.bf16.mxu0 %v2308
    %2445 = vmatpush1.bf16.msra.mxu0 %v2307
    %2446 = vmatprep.subr.bf16.mxu0 %v2310
    %2447 = vmatpush1.bf16.msra.mxu0 %v2309
    %2448 = vmatprep.subr.bf16.mxu0 %v2312
    %2449 = vmatpush1.bf16.msra.mxu0 %v2311
    %2450 = vmatprep.subr.bf16.mxu0 %v2314
    %2451 = vmatpush1.bf16.msra.mxu0 %v2313
    %2452 = vmatprep.subr.bf16.mxu0 %v2316
    %2453 = vmatpush1.bf16.msra.mxu0 %v2315
    %2454 = vmatprep.subr.bf16.mxu0 %v2318
    %2455 = vmatpush1.bf16.msra.mxu0 %v2317
    %2456 = vmatprep.subr.bf16.mxu0 %v2320
    %2457 = vmatpush1.bf16.msra.mxu0 %v2319
    %2458 = vmatprep.mubr.bf16.mxu0 %v1988
    %2459 = vmatmul.mubr.bf16.gmra.mrb[0].mxu0 %v1987
    %v2460 = vpop.f32.mrb[0].mxu0
    %v2461 = vadd.f32 %v2420, %v2460
    %v2462 = vpop.f32.mrb[0].mxu0
    %v2463 = vadd.f32 %v2422, %v2462
    %v2464 = vpop.f32.mrb[0].mxu0
    %v2465 = vpop.f32.mrb[0].mxu0
    %2466 = vdwg.mxu0
    %v2467 = vmax.f32 %v2461, 0.0
    %v2468 = vmax.f32 %v2463, 0.0
    %v2469 = vpack.c.bf16 %v2467, %v2467
    %v2470 = vpack.c.bf16 %v2468, %v2468
    %v2471 = vld [vmem:[%s5] sm:$0xf]
    %v2472 = vld [vmem:[%s5 + $0x4] sm:$0xf]
    %v2473 = vld [vmem:[%s5 + $0x8] sm:$0xf]
    %v2474 = vld [vmem:[%s5 + $0xc] sm:$0xf]
    %v2475 = vld [vmem:[%s5 + $0x10] sm:$0xf]
    %v2476 = vld [vmem:[%s5 + $0x14] sm:$0xf]
    %v2477 = vld [vmem:[%s5 + $0x18] sm:$0xf]
    %v2478 = vld [vmem:[%s5 + $0x1c] sm:$0xf]
    %v2479 = vld [vmem:[%s5 + $0x20] sm:$0xf]
    %v2480 = vld [vmem:[%s5 + $0x24] sm:$0xf]
    %v2481 = vld [vmem:[%s5 + $0x28] sm:$0xf]
    %v2482 = vld [vmem:[%s5 + $0x2c] sm:$0xf]
    %v2483 = vld [vmem:[%s5 + $0x30] sm:$0xf]
    %v2484 = vld [vmem:[%s5 + $0x34] sm:$0xf]
    %v2485 = vld [vmem:[%s5 + $0x38] sm:$0xf]
    %v2486 = vld [vmem:[%s5 + $0x3c] sm:$0xf]
    %v2487 = vld [vmem:[%s5 + $0x40] sm:$0xf]
    %v2488 = vld [vmem:[%s5 + $0x44] sm:$0xf]
    %v2489 = vld [vmem:[%s5 + $0x48] sm:$0xf]
    %v2490 = vld [vmem:[%s5 + $0x4c] sm:$0xf]
    %v2491 = vld [vmem:[%s5 + $0x50] sm:$0xf]
    %v2492 = vld [vmem:[%s5 + $0x54] sm:$0xf]
    %v2493 = vld [vmem:[%s5 + $0x58] sm:$0xf]
    %v2494 = vld [vmem:[%s5 + $0x5c] sm:$0xf]
    %v2495 = vld [vmem:[%s5 + $0x60] sm:$0xf]
    %v2496 = vld [vmem:[%s5 + $0x64] sm:$0xf]
    %v2497 = vld [vmem:[%s5 + $0x68] sm:$0xf]
    %v2498 = vld [vmem:[%s5 + $0x6c] sm:$0xf]
    %v2499 = vld [vmem:[%s5 + $0x70] sm:$0xf]
    %v2500 = vld [vmem:[%s5 + $0x74] sm:$0xf]
    %v2501 = vld [vmem:[%s5 + $0x78] sm:$0xf]
    %v2502 = vld [vmem:[%s5 + $0x7c] sm:$0xf]
    %v2503 = vld [vmem:[%s6] sm:$0x1]
    %v2505 = vlaneseq
    %v2506 = vshrl.u32 %v2505, 7
    %v2507 = vsub.s32 0, %v2506
    %v2508 = vrot.slane %v2503, %v2507
    %v2542 = vunpack.c.l.b16 %v2471
    %v2543 = vunpack.c.l.b16 %v2472
    %v2544 = vunpack.c.l.b16 %v2473
    %v2545 = vunpack.c.l.b16 %v2474
    %v2546 = vunpack.c.l.b16 %v2475
    %v2547 = vunpack.c.l.b16 %v2476
    %v2548 = vunpack.c.l.b16 %v2477
    %v2549 = vunpack.c.l.b16 %v2478
    %v2550 = vunpack.c.l.b16 %v2479
    %v2551 = vunpack.c.l.b16 %v2480
    %v2552 = vunpack.c.l.b16 %v2481
    %v2553 = vunpack.c.l.b16 %v2482
    %v2554 = vunpack.c.l.b16 %v2483
    %v2555 = vunpack.c.l.b16 %v2484
    %v2556 = vunpack.c.l.b16 %v2485
    %v2557 = vunpack.c.l.b16 %v2486
    %v2558 = vunpack.c.l.b16 %v2487
    %v2559 = vunpack.c.l.b16 %v2488
    %v2560 = vunpack.c.l.b16 %v2489
    %v2561 = vunpack.c.l.b16 %v2490
    %v2562 = vunpack.c.l.b16 %v2491
    %v2563 = vunpack.c.l.b16 %v2492
    %v2564 = vunpack.c.l.b16 %v2493
    %v2565 = vunpack.c.l.b16 %v2494
    %v2566 = vunpack.c.l.b16 %v2495
    %v2567 = vunpack.c.l.b16 %v2496
    %v2568 = vunpack.c.l.b16 %v2497
    %v2569 = vunpack.c.l.b16 %v2498
    %v2570 = vunpack.c.l.b16 %v2499
    %v2571 = vunpack.c.l.b16 %v2500
    %v2572 = vunpack.c.l.b16 %v2501
    %v2573 = vunpack.c.l.b16 %v2502
    %v2574 = vpack.c.b16 %v2543, %v2542
    %v2575 = vpack.c.b16 %v2545, %v2544
    %v2576 = vpack.c.b16 %v2547, %v2546
    %v2577 = vpack.c.b16 %v2549, %v2548
    %v2578 = vpack.c.b16 %v2551, %v2550
    %v2579 = vpack.c.b16 %v2553, %v2552
    %v2580 = vpack.c.b16 %v2555, %v2554
    %v2581 = vpack.c.b16 %v2557, %v2556
    %v2582 = vpack.c.b16 %v2559, %v2558
    %v2583 = vpack.c.b16 %v2561, %v2560
    %v2584 = vpack.c.b16 %v2563, %v2562
    %v2585 = vpack.c.b16 %v2565, %v2564
    %v2586 = vpack.c.b16 %v2567, %v2566
    %v2587 = vpack.c.b16 %v2569, %v2568
    %v2588 = vpack.c.b16 %v2571, %v2570
    %v2589 = vpack.c.b16 %v2573, %v2572
    %2606 = vmatprep.subr.bf16.mxu0 0
    %2607 = vmatpush1.bf16.msra.mxu0 %v2574
    %2608 = vmatprep.subr.bf16.mxu0 0
    %2609 = vmatpush1.bf16.msra.mxu0 %v2575
    %2610 = vmatprep.subr.bf16.mxu0 0
    %2611 = vmatpush1.bf16.msra.mxu0 %v2576
    %2612 = vmatprep.subr.bf16.mxu0 0
    %2613 = vmatpush1.bf16.msra.mxu0 %v2577
    %2614 = vmatprep.subr.bf16.mxu0 0
    %2615 = vmatpush1.bf16.msra.mxu0 %v2578
    %2616 = vmatprep.subr.bf16.mxu0 0
    %2617 = vmatpush1.bf16.msra.mxu0 %v2579
    %2618 = vmatprep.subr.bf16.mxu0 0
    %2619 = vmatpush1.bf16.msra.mxu0 %v2580
    %2620 = vmatprep.subr.bf16.mxu0 0
    %2621 = vmatpush1.bf16.msra.mxu0 %v2581
    %2622 = vmatprep.subr.bf16.mxu0 0
    %2623 = vmatpush1.bf16.msra.mxu0 %v2582
    %2624 = vmatprep.subr.bf16.mxu0 0
    %2625 = vmatpush1.bf16.msra.mxu0 %v2583
    %2626 = vmatprep.subr.bf16.mxu0 0
    %2627 = vmatpush1.bf16.msra.mxu0 %v2584
    %2628 = vmatprep.subr.bf16.mxu0 0
    %2629 = vmatpush1.bf16.msra.mxu0 %v2585
    %2630 = vmatprep.subr.bf16.mxu0 0
    %2631 = vmatpush1.bf16.msra.mxu0 %v2586
    %2632 = vmatprep.subr.bf16.mxu0 0
    %2633 = vmatpush1.bf16.msra.mxu0 %v2587
    %2634 = vmatprep.subr.bf16.mxu0 0
    %2635 = vmatpush1.bf16.msra.mxu0 %v2588
    %2636 = vmatprep.subr.bf16.mxu0 0
    %2637 = vmatpush1.bf16.msra.mxu0 %v2589
    %2638 = vmatprep.mubr.bf16.mxu0 %v2470
    %2639 = vmatmul.mubr.bf16.gmra.mrb[0].mxu0 %v2469
    %v2640 = vpop.f32.mrb[0].mxu0
    %v2641 = vadd.f32 %v2508, %v2640
    %v2642 = vpop.f32.mrb[0].mxu0
    %v2643 = vpop.f32.mrb[0].mxu0
    %v2644 = vpop.f32.mrb[0].mxu0
    %2645 = vdwg.mxu0
    %vm2646 = vcmask 66560
    %2647 = vst.msk [vmem:[%s7] sm:$0x3] %vm2646, %v2641
    // Predicated region
    $region34: #{pointnet_cls_forward.5} parent=1 // pred_check
      _
    $region35: #{pointnet_cls_forward.5} parent=1 // pred_check_branch
      %2649 = sbr.rel (0) target = $region37
    $region36: #{pointnet_cls_forward.5} parent=1 // pred_region
      _
    $region37: #{pointnet_cls_forward.5} parent=1 // pred_fallthru
      _
    // Predicated region
    $region38: #{pointnet_cls_forward.5} parent=1 // pred_check
      _
    $region39: #{pointnet_cls_forward.5} parent=1 // pred_check_branch
      %2651 = sbr.rel (0) target = $region41
    $region40: #{pointnet_cls_forward.5} parent=1 // pred_region
      _
    $region41: #{pointnet_cls_forward.5} parent=1 // pred_fallthru
      _
    %2652 = vsyncpa [#allocation3], 1

// kernel: pointnet_cls_forward.7
$region0: #{pointnet_cls_forward.7}
  #allocation0 [shape = 'u32[]', space=smem, size = 0x4, offset = 0x4, fixed_abs, tag = 'smem constant byte address 0x4 - core index']
  #allocation1 [shape = 'u32[144,128]{1,0:T(1,128)}', space=vmem, size = 0x12000, scoped, tag = 'internal scratch']
  %s0 = inlined_call_operand.vmem [shape: f32[2,1024], index: 0, kind: input, shape index: {}]
  %s1 = inlined_call_operand.vmem [shape: bf16[1024,512], index: 1, kind: input, shape index: {}]
  %s2 = inlined_call_operand.vmem [shape: f32[1,512], index: 2, kind: input, shape index: {}]
  %s3 = inlined_call_operand.vmem [shape: bf16[512,256], index: 3, kind: input, shape index: {}]
  %s4 = inlined_call_operand.vmem [shape: f32[1,256], index: 4, kind: input, shape index: {}]
  %s5 = inlined_call_operand.vmem [shape: bf16[256,5], index: 5, kind: input, shape index: {}]
  %s6 = inlined_call_operand.vmem [shape: f32[1,5], index: 6, kind: input, shape index: {}]
  %s7 = inlined_call_operand.hbm [shape: f32[2,5], index: 7, kind: output, shape index: {}]
  %s8 = sld [smem:[#allocation0]]
  $region38: #{pointnet_cls_forward.7} parent=0
    _
  %s10 = ssub.s32 1, %s8
  %s11 = scalar_select 0, %s10, %s8
  $region1: #{pointnet_cls_forward.7} parent=0
    #allocation2 [shape = 'u8[1024]{0}', space=vmem, size = 0x400, scoped, tag = 'output window, operand 0, single buffered']
    #allocation3 [shape = 's32[1]{0}', space=sflag, size = 0x4, scoped, tag = 'scoped memory for pointnet_cls_forward.7']
    %12 = vsyncpa [#allocation3], 0
    // Predicated region
    $region2: #{pointnet_cls_forward.7} parent=1 // pred_check
      _
    $region3: #{pointnet_cls_forward.7} parent=1 // pred_check_branch
      %14 = sbr.rel (0) target = $region5
    $region4: #{pointnet_cls_forward.7} parent=1 // pred_region
      _
    $region5: #{pointnet_cls_forward.7} parent=1 // pred_fallthru
      _
    // Predicated region
    $region6: #{pointnet_cls_forward.7} parent=1 // pred_check
      _
    $region7: #{pointnet_cls_forward.7} parent=1 // pred_check_branch
      %16 = sbr.rel (0) target = $region9
    $region8: #{pointnet_cls_forward.7} parent=1 // pred_region
      _
    $region9: #{pointnet_cls_forward.7} parent=1 // pred_fallthru
      _
    // Predicated region
    $region10: #{pointnet_cls_forward.7} parent=1 // pred_check
      _
    $region11: #{pointnet_cls_forward.7} parent=1 // pred_check_branch
      %18 = sbr.rel (0) target = $region13
    $region12: #{pointnet_cls_forward.7} parent=1 // pred_region
      _
    $region13: #{pointnet_cls_forward.7} parent=1 // pred_fallthru
      _
    // Predicated region
    $region14: #{pointnet_cls_forward.7} parent=1 // pred_check
      _
    $region15: #{pointnet_cls_forward.7} parent=1 // pred_check_branch
      %20 = sbr.rel (0) target = $region17
    $region16: #{pointnet_cls_forward.7} parent=1 // pred_region
      _
    $region17: #{pointnet_cls_forward.7} parent=1 // pred_fallthru
      _
    // Predicated region
    $region18: #{pointnet_cls_forward.7} parent=1 // pred_check
      _
    $region19: #{pointnet_cls_forward.7} parent=1 // pred_check_branch
      %22 = sbr.rel (0) target = $region21
    $region20: #{pointnet_cls_forward.7} parent=1 // pred_region
      _
    $region21: #{pointnet_cls_forward.7} parent=1 // pred_fallthru
      _
    // Predicated region
    $region22: #{pointnet_cls_forward.7} parent=1 // pred_check
      _
    $region23: #{pointnet_cls_forward.7} parent=1 // pred_check_branch
      %24 = sbr.rel (0) target = $region25
    $region24: #{pointnet_cls_forward.7} parent=1 // pred_region
      _
    $region25: #{pointnet_cls_forward.7} parent=1 // pred_fallthru
      _
    // Predicated region
    $region26: #{pointnet_cls_forward.7} parent=1 // pred_check
      _
    $region27: #{pointnet_cls_forward.7} parent=1 // pred_check_branch
      %26 = sbr.rel (0) target = $region29
    $region28: #{pointnet_cls_forward.7} parent=1 // pred_region
      _
    $region29: #{pointnet_cls_forward.7} parent=1 // pred_fallthru
      _
    %v28 = vld [vmem:[%s0] sm:$0xff]
    %v29 = vld [vmem:[%s0 + $0x8] sm:$0xff]
    %v32 = vcombine.high %v28, %v28
    %v34 = vunpack.c.l.s4 1983009808
    %v35 = vunpack.c.0.s8 %v34
    %v36 = vlaneseq
    %v37 = vshrl.u32 %v36, 7
    %v38 = vsub.s32 %v35, %v37
    %v39 = vrot.slane %v28, %v38
    %v41 = vunpack.c.l.s4 1983009808
    %v42 = vunpack.c.0.s8 %v41
    %v43 = vlaneseq
    %v44 = vshrl.u32 %v43, 7
    %v45 = vsub.s32 %v42, %v44
    %v46 = vrot.slane %v32, %v45
    %v47 = vcombine.high %v39, %v39
    %v48 = vcombine.high %v46, %v46
    %v49 = vcombine.high %v29, %v29
    %v51 = vunpack.c.l.s4 1983009808
    %v52 = vunpack.c.0.s8 %v51
    %v53 = vlaneseq
    %v54 = vshrl.u32 %v53, 7
    %v55 = vsub.s32 %v52, %v54
    %v56 = vrot.slane %v29, %v55
    %v58 = vunpack.c.l.s4 1983009808
    %v59 = vunpack.c.0.s8 %v58
    %v60 = vlaneseq
    %v61 = vshrl.u32 %v60, 7
    %v62 = vsub.s32 %v59, %v61
    %v63 = vrot.slane %v49, %v62
    %v64 = vcombine.high %v56, %v56
    %v65 = vcombine.high %v63, %v63
    %v74 = vpack.c.bf16 %v39, %v39
    %v75 = vpack.c.bf16 %v47, %v47
    %v76 = vpack.c.bf16 %v46, %v46
    %v77 = vpack.c.bf16 %v48, %v48
    %v78 = vpack.c.bf16 %v56, %v56
    %v79 = vpack.c.bf16 %v64, %v64
    %v80 = vpack.c.bf16 %v63, %v63
    %v81 = vpack.c.bf16 %v65, %v65
    %v82 = vld [vmem:[%s1] sm:$0xff]
    %v83 = vld [vmem:[%s1 + $0x8] sm:$0xff]
    %v84 = vld [vmem:[%s1 + $0x10] sm:$0xff]
    %v85 = vld [vmem:[%s1 + $0x18] sm:$0xff]
    %v86 = vld [vmem:[%s1 + $0x20] sm:$0xff]
    %v87 = vld [vmem:[%s1 + $0x28] sm:$0xff]
    %v88 = vld [vmem:[%s1 + $0x30] sm:$0xff]
    %v89 = vld [vmem:[%s1 + $0x38] sm:$0xff]
    %v90 = vld [vmem:[%s1 + $0x40] sm:$0xff]
    %v91 = vld [vmem:[%s1 + $0x48] sm:$0xff]
    %v92 = vld [vmem:[%s1 + $0x50] sm:$0xff]
    %v93 = vld [vmem:[%s1 + $0x58] sm:$0xff]
    %v94 = vld [vmem:[%s1 + $0x60] sm:$0xff]
    %v95 = vld [vmem:[%s1 + $0x68] sm:$0xff]
    %v96 = vld [vmem:[%s1 + $0x70] sm:$0xff]
    %v97 = vld [vmem:[%s1 + $0x78] sm:$0xff]
    %v98 = vld [vmem:[%s1 + $0x80] sm:$0xff]
    %v99 = vld [vmem:[%s1 + $0x88] sm:$0xff]
    %v100 = vld [vmem:[%s1 + $0x90] sm:$0xff]
    %v101 = vld [vmem:[%s1 + $0x98] sm:$0xff]
    %v102 = vld [vmem:[%s1 + $0xa0] sm:$0xff]
    %v103 = vld [vmem:[%s1 + $0xa8] sm:$0xff]
    %v104 = vld [vmem:[%s1 + $0xb0] sm:$0xff]
    %v105 = vld [vmem:[%s1 + $0xb8] sm:$0xff]
    %v106 = vld [vmem:[%s1 + $0xc0] sm:$0xff]
    %v107 = vld [vmem:[%s1 + $0xc8] sm:$0xff]
    %v108 = vld [vmem:[%s1 + $0xd0] sm:$0xff]
    %v109 = vld [vmem:[%s1 + $0xd8] sm:$0xff]
    %v110 = vld [vmem:[%s1 + $0xe0] sm:$0xff]
    %v111 = vld [vmem:[%s1 + $0xe8] sm:$0xff]
    %v112 = vld [vmem:[%s1 + $0xf0] sm:$0xff]
    %v113 = vld [vmem:[%s1 + $0xf8] sm:$0xff]
    %v114 = vld [vmem:[%s1 + $0x100] sm:$0xff]
    %v115 = vld [vmem:[%s1 + $0x108] sm:$0xff]
    %v116 = vld [vmem:[%s1 + $0x110] sm:$0xff]
    %v117 = vld [vmem:[%s1 + $0x118] sm:$0xff]
    %v118 = vld [vmem:[%s1 + $0x120] sm:$0xff]
    %v119 = vld [vmem:[%s1 + $0x128] sm:$0xff]
    %v120 = vld [vmem:[%s1 + $0x130] sm:$0xff]
    %v121 = vld [vmem:[%s1 + $0x138] sm:$0xff]
    %v122 = vld [vmem:[%s1 + $0x140] sm:$0xff]
    %v123 = vld [vmem:[%s1 + $0x148] sm:$0xff]
    %v124 = vld [vmem:[%s1 + $0x150] sm:$0xff]
    %v125 = vld [vmem:[%s1 + $0x158] sm:$0xff]
    %v126 = vld [vmem:[%s1 + $0x160] sm:$0xff]
    %v127 = vld [vmem:[%s1 + $0x168] sm:$0xff]
    %v128 = vld [vmem:[%s1 + $0x170] sm:$0xff]
    %v129 = vld [vmem:[%s1 + $0x178] sm:$0xff]
    %v130 = vld [vmem:[%s1 + $0x180] sm:$0xff]
    %v131 = vld [vmem:[%s1 + $0x188] sm:$0xff]
    %v132 = vld [vmem:[%s1 + $0x190] sm:$0xff]
    %v133 = vld [vmem:[%s1 + $0x198] sm:$0xff]
    %v134 = vld [vmem:[%s1 + $0x1a0] sm:$0xff]
    %v135 = vld [vmem:[%s1 + $0x1a8] sm:$0xff]
    %v136 = vld [vmem:[%s1 + $0x1b0] sm:$0xff]
    %v137 = vld [vmem:[%s1 + $0x1b8] sm:$0xff]
    %v138 = vld [vmem:[%s1 + $0x1c0] sm:$0xff]
    %v139 = vld [vmem:[%s1 + $0x1c8] sm:$0xff]
    %v140 = vld [vmem:[%s1 + $0x1d0] sm:$0xff]
    %v141 = vld [vmem:[%s1 + $0x1d8] sm:$0xff]
    %v142 = vld [vmem:[%s1 + $0x1e0] sm:$0xff]
    %v143 = vld [vmem:[%s1 + $0x1e8] sm:$0xff]
    %v144 = vld [vmem:[%s1 + $0x1f0] sm:$0xff]
    %v145 = vld [vmem:[%s1 + $0x1f8] sm:$0xff]
    %v146 = vld [vmem:[%s1 + $0x200] sm:$0xff]
    %v147 = vld [vmem:[%s1 + $0x208] sm:$0xff]
    %v148 = vld [vmem:[%s1 + $0x210] sm:$0xff]
    %v149 = vld [vmem:[%s1 + $0x218] sm:$0xff]
    %v150 = vld [vmem:[%s1 + $0x220] sm:$0xff]
    %v151 = vld [vmem:[%s1 + $0x228] sm:$0xff]
    %v152 = vld [vmem:[%s1 + $0x230] sm:$0xff]
    %v153 = vld [vmem:[%s1 + $0x238] sm:$0xff]
    %v154 = vld [vmem:[%s1 + $0x240] sm:$0xff]
    %v155 = vld [vmem:[%s1 + $0x248] sm:$0xff]
    %v156 = vld [vmem:[%s1 + $0x250] sm:$0xff]
    %v157 = vld [vmem:[%s1 + $0x258] sm:$0xff]
    %v158 = vld [vmem:[%s1 + $0x260] sm:$0xff]
    %v159 = vld [vmem:[%s1 + $0x268] sm:$0xff]
    %v160 = vld [vmem:[%s1 + $0x270] sm:$0xff]
    %v161 = vld [vmem:[%s1 + $0x278] sm:$0xff]
    %v162 = vld [vmem:[%s1 + $0x280] sm:$0xff]
    %v163 = vld [vmem:[%s1 + $0x288] sm:$0xff]
    %v164 = vld [vmem:[%s1 + $0x290] sm:$0xff]
    %v165 = vld [vmem:[%s1 + $0x298] sm:$0xff]
    %v166 = vld [vmem:[%s1 + $0x2a0] sm:$0xff]
    %v167 = vld [vmem:[%s1 + $0x2a8] sm:$0xff]
    %v168 = vld [vmem:[%s1 + $0x2b0] sm:$0xff]
    %v169 = vld [vmem:[%s1 + $0x2b8] sm:$0xff]
    %v170 = vld [vmem:[%s1 + $0x2c0] sm:$0xff]
    %v171 = vld [vmem:[%s1 + $0x2c8] sm:$0xff]
    %v172 = vld [vmem:[%s1 + $0x2d0] sm:$0xff]
    %v173 = vld [vmem:[%s1 + $0x2d8] sm:$0xff]
    %v174 = vld [vmem:[%s1 + $0x2e0] sm:$0xff]
    %v175 = vld [vmem:[%s1 + $0x2e8] sm:$0xff]
    %v176 = vld [vmem:[%s1 + $0x2f0] sm:$0xff]
    %v177 = vld [vmem:[%s1 + $0x2f8] sm:$0xff]
    %v178 = vld [vmem:[%s1 + $0x300] sm:$0xff]
    %v179 = vld [vmem:[%s1 + $0x308] sm:$0xff]
    %v180 = vld [vmem:[%s1 + $0x310] sm:$0xff]
    %v181 = vld [vmem:[%s1 + $0x318] sm:$0xff]
    %v182 = vld [vmem:[%s1 + $0x320] sm:$0xff]
    %v183 = vld [vmem:[%s1 + $0x328] sm:$0xff]
    %v184 = vld [vmem:[%s1 + $0x330] sm:$0xff]
    %v185 = vld [vmem:[%s1 + $0x338] sm:$0xff]
    %v186 = vld [vmem:[%s1 + $0x340] sm:$0xff]
    %v187 = vld [vmem:[%s1 + $0x348] sm:$0xff]
    %v188 = vld [vmem:[%s1 + $0x350] sm:$0xff]
    %v189 = vld [vmem:[%s1 + $0x358] sm:$0xff]
    %v190 = vld [vmem:[%s1 + $0x360] sm:$0xff]
    %v191 = vld [vmem:[%s1 + $0x368] sm:$0xff]
    %v192 = vld [vmem:[%s1 + $0x370] sm:$0xff]
    %v193 = vld [vmem:[%s1 + $0x378] sm:$0xff]
    %v194 = vld [vmem:[%s1 + $0x380] sm:$0xff]
    %v195 = vld [vmem:[%s1 + $0x388] sm:$0xff]
    %v196 = vld [vmem:[%s1 + $0x390] sm:$0xff]
    %v197 = vld [vmem:[%s1 + $0x398] sm:$0xff]
    %v198 = vld [vmem:[%s1 + $0x3a0] sm:$0xff]
    %v199 = vld [vmem:[%s1 + $0x3a8] sm:$0xff]
    %v200 = vld [vmem:[%s1 + $0x3b0] sm:$0xff]
    %v201 = vld [vmem:[%s1 + $0x3b8] sm:$0xff]
    %v202 = vld [vmem:[%s1 + $0x3c0] sm:$0xff]
    %v203 = vld [vmem:[%s1 + $0x3c8] sm:$0xff]
    %v204 = vld [vmem:[%s1 + $0x3d0] sm:$0xff]
    %v205 = vld [vmem:[%s1 + $0x3d8] sm:$0xff]
    %v206 = vld [vmem:[%s1 + $0x3e0] sm:$0xff]
    %v207 = vld [vmem:[%s1 + $0x3e8] sm:$0xff]
    %v208 = vld [vmem:[%s1 + $0x3f0] sm:$0xff]
    %v209 = vld [vmem:[%s1 + $0x3f8] sm:$0xff]
    %v210 = vld [vmem:[%s1 + $0x400] sm:$0xff]
    %v211 = vld [vmem:[%s1 + $0x408] sm:$0xff]
    %v212 = vld [vmem:[%s1 + $0x410] sm:$0xff]
    %v213 = vld [vmem:[%s1 + $0x418] sm:$0xff]
    %v214 = vld [vmem:[%s1 + $0x420] sm:$0xff]
    %v215 = vld [vmem:[%s1 + $0x428] sm:$0xff]
    %v216 = vld [vmem:[%s1 + $0x430] sm:$0xff]
    %v217 = vld [vmem:[%s1 + $0x438] sm:$0xff]
    %v218 = vld [vmem:[%s1 + $0x440] sm:$0xff]
    %v219 = vld [vmem:[%s1 + $0x448] sm:$0xff]
    %v220 = vld [vmem:[%s1 + $0x450] sm:$0xff]
    %v221 = vld [vmem:[%s1 + $0x458] sm:$0xff]
    %v222 = vld [vmem:[%s1 + $0x460] sm:$0xff]
    %v223 = vld [vmem:[%s1 + $0x468] sm:$0xff]
    %v224 = vld [vmem:[%s1 + $0x470] sm:$0xff]
    %v225 = vld [vmem:[%s1 + $0x478] sm:$0xff]
    %v226 = vld [vmem:[%s1 + $0x480] sm:$0xff]
    %v227 = vld [vmem:[%s1 + $0x488] sm:$0xff]
    %v228 = vld [vmem:[%s1 + $0x490] sm:$0xff]
    %v229 = vld [vmem:[%s1 + $0x498] sm:$0xff]
    %v230 = vld [vmem:[%s1 + $0x4a0] sm:$0xff]
    %v231 = vld [vmem:[%s1 + $0x4a8] sm:$0xff]
    %v232 = vld [vmem:[%s1 + $0x4b0] sm:$0xff]
    %v233 = vld [vmem:[%s1 + $0x4b8] sm:$0xff]
    %v234 = vld [vmem:[%s1 + $0x4c0] sm:$0xff]
    %v235 = vld [vmem:[%s1 + $0x4c8] sm:$0xff]
    %v236 = vld [vmem:[%s1 + $0x4d0] sm:$0xff]
    %v237 = vld [vmem:[%s1 + $0x4d8] sm:$0xff]
    %v238 = vld [vmem:[%s1 + $0x4e0] sm:$0xff]
    %v239 = vld [vmem:[%s1 + $0x4e8] sm:$0xff]
    %v240 = vld [vmem:[%s1 + $0x4f0] sm:$0xff]
    %v241 = vld [vmem:[%s1 + $0x4f8] sm:$0xff]
    %v242 = vld [vmem:[%s1 + $0x500] sm:$0xff]
    %v243 = vld [vmem:[%s1 + $0x508] sm:$0xff]
    %v244 = vld [vmem:[%s1 + $0x510] sm:$0xff]
    %v245 = vld [vmem:[%s1 + $0x518] sm:$0xff]
    %v246 = vld [vmem:[%s1 + $0x520] sm:$0xff]
    %v247 = vld [vmem:[%s1 + $0x528] sm:$0xff]
    %v248 = vld [vmem:[%s1 + $0x530] sm:$0xff]
    %v249 = vld [vmem:[%s1 + $0x538] sm:$0xff]
    %v250 = vld [vmem:[%s1 + $0x540] sm:$0xff]
    %v251 = vld [vmem:[%s1 + $0x548] sm:$0xff]
    %v252 = vld [vmem:[%s1 + $0x550] sm:$0xff]
    %v253 = vld [vmem:[%s1 + $0x558] sm:$0xff]
    %v254 = vld [vmem:[%s1 + $0x560] sm:$0xff]
    %v255 = vld [vmem:[%s1 + $0x568] sm:$0xff]
    %v256 = vld [vmem:[%s1 + $0x570] sm:$0xff]
    %v257 = vld [vmem:[%s1 + $0x578] sm:$0xff]
    %v258 = vld [vmem:[%s1 + $0x580] sm:$0xff]
    %v259 = vld [vmem:[%s1 + $0x588] sm:$0xff]
    %v260 = vld [vmem:[%s1 + $0x590] sm:$0xff]
    %v261 = vld [vmem:[%s1 + $0x598] sm:$0xff]
    %v262 = vld [vmem:[%s1 + $0x5a0] sm:$0xff]
    %v263 = vld [vmem:[%s1 + $0x5a8] sm:$0xff]
    %v264 = vld [vmem:[%s1 + $0x5b0] sm:$0xff]
    %v265 = vld [vmem:[%s1 + $0x5b8] sm:$0xff]
    %v266 = vld [vmem:[%s1 + $0x5c0] sm:$0xff]
    %v267 = vld [vmem:[%s1 + $0x5c8] sm:$0xff]
    %v268 = vld [vmem:[%s1 + $0x5d0] sm:$0xff]
    %v269 = vld [vmem:[%s1 + $0x5d8] sm:$0xff]
    %v270 = vld [vmem:[%s1 + $0x5e0] sm:$0xff]
    %v271 = vld [vmem:[%s1 + $0x5e8] sm:$0xff]
    %v272 = vld [vmem:[%s1 + $0x5f0] sm:$0xff]
    %v273 = vld [vmem:[%s1 + $0x5f8] sm:$0xff]
    %v274 = vld [vmem:[%s1 + $0x600] sm:$0xff]
    %v275 = vld [vmem:[%s1 + $0x608] sm:$0xff]
    %v276 = vld [vmem:[%s1 + $0x610] sm:$0xff]
    %v277 = vld [vmem:[%s1 + $0x618] sm:$0xff]
    %v278 = vld [vmem:[%s1 + $0x620] sm:$0xff]
    %v279 = vld [vmem:[%s1 + $0x628] sm:$0xff]
    %v280 = vld [vmem:[%s1 + $0x630] sm:$0xff]
    %v281 = vld [vmem:[%s1 + $0x638] sm:$0xff]
    %v282 = vld [vmem:[%s1 + $0x640] sm:$0xff]
    %v283 = vld [vmem:[%s1 + $0x648] sm:$0xff]
    %v284 = vld [vmem:[%s1 + $0x650] sm:$0xff]
    %v285 = vld [vmem:[%s1 + $0x658] sm:$0xff]
    %v286 = vld [vmem:[%s1 + $0x660] sm:$0xff]
    %v287 = vld [vmem:[%s1 + $0x668] sm:$0xff]
    %v288 = vld [vmem:[%s1 + $0x670] sm:$0xff]
    %v289 = vld [vmem:[%s1 + $0x678] sm:$0xff]
    %v290 = vld [vmem:[%s1 + $0x680] sm:$0xff]
    %v291 = vld [vmem:[%s1 + $0x688] sm:$0xff]
    %v292 = vld [vmem:[%s1 + $0x690] sm:$0xff]
    %v293 = vld [vmem:[%s1 + $0x698] sm:$0xff]
    %v294 = vld [vmem:[%s1 + $0x6a0] sm:$0xff]
    %v295 = vld [vmem:[%s1 + $0x6a8] sm:$0xff]
    %v296 = vld [vmem:[%s1 + $0x6b0] sm:$0xff]
    %v297 = vld [vmem:[%s1 + $0x6b8] sm:$0xff]
    %v298 = vld [vmem:[%s1 + $0x6c0] sm:$0xff]
    %v299 = vld [vmem:[%s1 + $0x6c8] sm:$0xff]
    %v300 = vld [vmem:[%s1 + $0x6d0] sm:$0xff]
    %v301 = vld [vmem:[%s1 + $0x6d8] sm:$0xff]
    %v302 = vld [vmem:[%s1 + $0x6e0] sm:$0xff]
    %v303 = vld [vmem:[%s1 + $0x6e8] sm:$0xff]
    %v304 = vld [vmem:[%s1 + $0x6f0] sm:$0xff]
    %v305 = vld [vmem:[%s1 + $0x6f8] sm:$0xff]
    %v306 = vld [vmem:[%s1 + $0x700] sm:$0xff]
    %v307 = vld [vmem:[%s1 + $0x708] sm:$0xff]
    %v308 = vld [vmem:[%s1 + $0x710] sm:$0xff]
    %v309 = vld [vmem:[%s1 + $0x718] sm:$0xff]
    %v310 = vld [vmem:[%s1 + $0x720] sm:$0xff]
    %v311 = vld [vmem:[%s1 + $0x728] sm:$0xff]
    %v312 = vld [vmem:[%s1 + $0x730] sm:$0xff]
    %v313 = vld [vmem:[%s1 + $0x738] sm:$0xff]
    %v314 = vld [vmem:[%s1 + $0x740] sm:$0xff]
    %v315 = vld [vmem:[%s1 + $0x748] sm:$0xff]
    %v316 = vld [vmem:[%s1 + $0x750] sm:$0xff]
    %v317 = vld [vmem:[%s1 + $0x758] sm:$0xff]
    %v318 = vld [vmem:[%s1 + $0x760] sm:$0xff]
    %v319 = vld [vmem:[%s1 + $0x768] sm:$0xff]
    %v320 = vld [vmem:[%s1 + $0x770] sm:$0xff]
    %v321 = vld [vmem:[%s1 + $0x778] sm:$0xff]
    %v322 = vld [vmem:[%s1 + $0x780] sm:$0xff]
    %v323 = vld [vmem:[%s1 + $0x788] sm:$0xff]
    %v324 = vld [vmem:[%s1 + $0x790] sm:$0xff]
    %v325 = vld [vmem:[%s1 + $0x798] sm:$0xff]
    %v326 = vld [vmem:[%s1 + $0x7a0] sm:$0xff]
    %v327 = vld [vmem:[%s1 + $0x7a8] sm:$0xff]
    %v328 = vld [vmem:[%s1 + $0x7b0] sm:$0xff]
    %v329 = vld [vmem:[%s1 + $0x7b8] sm:$0xff]
    %v330 = vld [vmem:[%s1 + $0x7c0] sm:$0xff]
    %v331 = vld [vmem:[%s1 + $0x7c8] sm:$0xff]
    %v332 = vld [vmem:[%s1 + $0x7d0] sm:$0xff]
    %v333 = vld [vmem:[%s1 + $0x7d8] sm:$0xff]
    %v334 = vld [vmem:[%s1 + $0x7e0] sm:$0xff]
    %v335 = vld [vmem:[%s1 + $0x7e8] sm:$0xff]
    %v336 = vld [vmem:[%s1 + $0x7f0] sm:$0xff]
    %v337 = vld [vmem:[%s1 + $0x7f8] sm:$0xff]
    %v338 = vld [vmem:[%s2] sm:$0xf]
    %v340 = vlaneseq
    %v341 = vshrl.u32 %v340, 7
    %v342 = vsub.s32 0, %v341
    %v343 = vrot.slane %v338, %v342
    %v344 = vlaneseq
    %v345 = vshrl.u32 %v344, 7
    %v346 = vsub.s32 1, %v345
    %v347 = vrot.slane %v338, %v346
    %v348 = vlaneseq
    %v349 = vshrl.u32 %v348, 7
    %v350 = vsub.s32 2, %v349
    %v351 = vrot.slane %v338, %v350
    %v352 = vlaneseq
    %v353 = vshrl.u32 %v352, 7
    %v354 = vsub.s32 3, %v353
    %v355 = vrot.slane %v338, %v354
    %v616 = vunpack.c.l.b16 %v82
    %v617 = vunpack.c.h.b16 %v82
    %v618 = vunpack.c.l.b16 %v83
    %v619 = vunpack.c.h.b16 %v83
    %v620 = vunpack.c.l.b16 %v84
    %v621 = vunpack.c.h.b16 %v84
    %v622 = vunpack.c.l.b16 %v85
    %v623 = vunpack.c.h.b16 %v85
    %v624 = vunpack.c.l.b16 %v86
    %v625 = vunpack.c.h.b16 %v86
    %v626 = vunpack.c.l.b16 %v87
    %v627 = vunpack.c.h.b16 %v87
    %v628 = vunpack.c.l.b16 %v88
    %v629 = vunpack.c.h.b16 %v88
    %v630 = vunpack.c.l.b16 %v89
    %v631 = vunpack.c.h.b16 %v89
    %v632 = vunpack.c.l.b16 %v90
    %v633 = vunpack.c.h.b16 %v90
    %v634 = vunpack.c.l.b16 %v91
    %v635 = vunpack.c.h.b16 %v91
    %v636 = vunpack.c.l.b16 %v92
    %v637 = vunpack.c.h.b16 %v92
    %v638 = vunpack.c.l.b16 %v93
    %v639 = vunpack.c.h.b16 %v93
    %v640 = vunpack.c.l.b16 %v94
    %v641 = vunpack.c.h.b16 %v94
    %v642 = vunpack.c.l.b16 %v95
    %v643 = vunpack.c.h.b16 %v95
    %v644 = vunpack.c.l.b16 %v96
    %v645 = vunpack.c.h.b16 %v96
    %v646 = vunpack.c.l.b16 %v97
    %v647 = vunpack.c.h.b16 %v97
    %v648 = vunpack.c.l.b16 %v98
    %v649 = vunpack.c.h.b16 %v98
    %v650 = vunpack.c.l.b16 %v99
    %v651 = vunpack.c.h.b16 %v99
    %v652 = vunpack.c.l.b16 %v100
    %v653 = vunpack.c.h.b16 %v100
    %v654 = vunpack.c.l.b16 %v101
    %v655 = vunpack.c.h.b16 %v101
    %v656 = vunpack.c.l.b16 %v102
    %v657 = vunpack.c.h.b16 %v102
    %v658 = vunpack.c.l.b16 %v103
    %v659 = vunpack.c.h.b16 %v103
    %v660 = vunpack.c.l.b16 %v104
    %v661 = vunpack.c.h.b16 %v104
    %v662 = vunpack.c.l.b16 %v105
    %v663 = vunpack.c.h.b16 %v105
    %v664 = vunpack.c.l.b16 %v106
    %v665 = vunpack.c.h.b16 %v106
    %v666 = vunpack.c.l.b16 %v107
    %v667 = vunpack.c.h.b16 %v107
    %v668 = vunpack.c.l.b16 %v108
    %v669 = vunpack.c.h.b16 %v108
    %v670 = vunpack.c.l.b16 %v109
    %v671 = vunpack.c.h.b16 %v109
    %v672 = vunpack.c.l.b16 %v110
    %v673 = vunpack.c.h.b16 %v110
    %v674 = vunpack.c.l.b16 %v111
    %v675 = vunpack.c.h.b16 %v111
    %v676 = vunpack.c.l.b16 %v112
    %v677 = vunpack.c.h.b16 %v112
    %v678 = vunpack.c.l.b16 %v113
    %v679 = vunpack.c.h.b16 %v113
    %v680 = vunpack.c.l.b16 %v114
    %v681 = vunpack.c.h.b16 %v114
    %v682 = vunpack.c.l.b16 %v115
    %v683 = vunpack.c.h.b16 %v115
    %v684 = vunpack.c.l.b16 %v116
    %v685 = vunpack.c.h.b16 %v116
    %v686 = vunpack.c.l.b16 %v117
    %v687 = vunpack.c.h.b16 %v117
    %v688 = vunpack.c.l.b16 %v118
    %v689 = vunpack.c.h.b16 %v118
    %v690 = vunpack.c.l.b16 %v119
    %v691 = vunpack.c.h.b16 %v119
    %v692 = vunpack.c.l.b16 %v120
    %v693 = vunpack.c.h.b16 %v120
    %v694 = vunpack.c.l.b16 %v121
    %v695 = vunpack.c.h.b16 %v121
    %v696 = vunpack.c.l.b16 %v122
    %v697 = vunpack.c.h.b16 %v122
    %v698 = vunpack.c.l.b16 %v123
    %v699 = vunpack.c.h.b16 %v123
    %v700 = vunpack.c.l.b16 %v124
    %v701 = vunpack.c.h.b16 %v124
    %v702 = vunpack.c.l.b16 %v125
    %v703 = vunpack.c.h.b16 %v125
    %v704 = vunpack.c.l.b16 %v126
    %v705 = vunpack.c.h.b16 %v126
    %v706 = vunpack.c.l.b16 %v127
    %v707 = vunpack.c.h.b16 %v127
    %v708 = vunpack.c.l.b16 %v128
    %v709 = vunpack.c.h.b16 %v128
    %v710 = vunpack.c.l.b16 %v129
    %v711 = vunpack.c.h.b16 %v129
    %v712 = vunpack.c.l.b16 %v130
    %v713 = vunpack.c.h.b16 %v130
    %v714 = vunpack.c.l.b16 %v131
    %v715 = vunpack.c.h.b16 %v131
    %v716 = vunpack.c.l.b16 %v132
    %v717 = vunpack.c.h.b16 %v132
    %v718 = vunpack.c.l.b16 %v133
    %v719 = vunpack.c.h.b16 %v133
    %v720 = vunpack.c.l.b16 %v134
    %v721 = vunpack.c.h.b16 %v134
    %v722 = vunpack.c.l.b16 %v135
    %v723 = vunpack.c.h.b16 %v135
    %v724 = vunpack.c.l.b16 %v136
    %v725 = vunpack.c.h.b16 %v136
    %v726 = vunpack.c.l.b16 %v137
    %v727 = vunpack.c.h.b16 %v137
    %v728 = vunpack.c.l.b16 %v138
    %v729 = vunpack.c.h.b16 %v138
    %v730 = vunpack.c.l.b16 %v139
    %v731 = vunpack.c.h.b16 %v139
    %v732 = vunpack.c.l.b16 %v140
    %v733 = vunpack.c.h.b16 %v140
    %v734 = vunpack.c.l.b16 %v141
    %v735 = vunpack.c.h.b16 %v141
    %v736 = vunpack.c.l.b16 %v142
    %v737 = vunpack.c.h.b16 %v142
    %v738 = vunpack.c.l.b16 %v143
    %v739 = vunpack.c.h.b16 %v143
    %v740 = vunpack.c.l.b16 %v144
    %v741 = vunpack.c.h.b16 %v144
    %v742 = vunpack.c.l.b16 %v145
    %v743 = vunpack.c.h.b16 %v145
    %v744 = vunpack.c.l.b16 %v146
    %v745 = vunpack.c.h.b16 %v146
    %v746 = vunpack.c.l.b16 %v147
    %v747 = vunpack.c.h.b16 %v147
    %v748 = vunpack.c.l.b16 %v148
    %v749 = vunpack.c.h.b16 %v148
    %v750 = vunpack.c.l.b16 %v149
    %v751 = vunpack.c.h.b16 %v149
    %v752 = vunpack.c.l.b16 %v150
    %v753 = vunpack.c.h.b16 %v150
    %v754 = vunpack.c.l.b16 %v151
    %v755 = vunpack.c.h.b16 %v151
    %v756 = vunpack.c.l.b16 %v152
    %v757 = vunpack.c.h.b16 %v152
    %v758 = vunpack.c.l.b16 %v153
    %v759 = vunpack.c.h.b16 %v153
    %v760 = vunpack.c.l.b16 %v154
    %v761 = vunpack.c.h.b16 %v154
    %v762 = vunpack.c.l.b16 %v155
    %v763 = vunpack.c.h.b16 %v155
    %v764 = vunpack.c.l.b16 %v156
    %v765 = vunpack.c.h.b16 %v156
    %v766 = vunpack.c.l.b16 %v157
    %v767 = vunpack.c.h.b16 %v157
    %v768 = vunpack.c.l.b16 %v158
    %v769 = vunpack.c.h.b16 %v158
    %v770 = vunpack.c.l.b16 %v159
    %v771 = vunpack.c.h.b16 %v159
    %v772 = vunpack.c.l.b16 %v160
    %v773 = vunpack.c.h.b16 %v160
    %v774 = vunpack.c.l.b16 %v161
    %v775 = vunpack.c.h.b16 %v161
    %v776 = vunpack.c.l.b16 %v162
    %v777 = vunpack.c.h.b16 %v162
    %v778 = vunpack.c.l.b16 %v163
    %v779 = vunpack.c.h.b16 %v163
    %v780 = vunpack.c.l.b16 %v164
    %v781 = vunpack.c.h.b16 %v164
    %v782 = vunpack.c.l.b16 %v165
    %v783 = vunpack.c.h.b16 %v165
    %v784 = vunpack.c.l.b16 %v166
    %v785 = vunpack.c.h.b16 %v166
    %v786 = vunpack.c.l.b16 %v167
    %v787 = vunpack.c.h.b16 %v167
    %v788 = vunpack.c.l.b16 %v168
    %v789 = vunpack.c.h.b16 %v168
    %v790 = vunpack.c.l.b16 %v169
    %v791 = vunpack.c.h.b16 %v169
    %v792 = vunpack.c.l.b16 %v170
    %v793 = vunpack.c.h.b16 %v170
    %v794 = vunpack.c.l.b16 %v171
    %v795 = vunpack.c.h.b16 %v171
    %v796 = vunpack.c.l.b16 %v172
    %v797 = vunpack.c.h.b16 %v172
    %v798 = vunpack.c.l.b16 %v173
    %v799 = vunpack.c.h.b16 %v173
    %v800 = vunpack.c.l.b16 %v174
    %v801 = vunpack.c.h.b16 %v174
    %v802 = vunpack.c.l.b16 %v175
    %v803 = vunpack.c.h.b16 %v175
    %v804 = vunpack.c.l.b16 %v176
    %v805 = vunpack.c.h.b16 %v176
    %v806 = vunpack.c.l.b16 %v177
    %v807 = vunpack.c.h.b16 %v177
    %v808 = vunpack.c.l.b16 %v178
    %v809 = vunpack.c.h.b16 %v178
    %v810 = vunpack.c.l.b16 %v179
    %v811 = vunpack.c.h.b16 %v179
    %v812 = vunpack.c.l.b16 %v180
    %v813 = vunpack.c.h.b16 %v180
    %v814 = vunpack.c.l.b16 %v181
    %v815 = vunpack.c.h.b16 %v181
    %v816 = vunpack.c.l.b16 %v182
    %v817 = vunpack.c.h.b16 %v182
    %v818 = vunpack.c.l.b16 %v183
    %v819 = vunpack.c.h.b16 %v183
    %v820 = vunpack.c.l.b16 %v184
    %v821 = vunpack.c.h.b16 %v184
    %v822 = vunpack.c.l.b16 %v185
    %v823 = vunpack.c.h.b16 %v185
    %v824 = vunpack.c.l.b16 %v186
    %v825 = vunpack.c.h.b16 %v186
    %v826 = vunpack.c.l.b16 %v187
    %v827 = vunpack.c.h.b16 %v187
    %v828 = vunpack.c.l.b16 %v188
    %v829 = vunpack.c.h.b16 %v188
    %v830 = vunpack.c.l.b16 %v189
    %v831 = vunpack.c.h.b16 %v189
    %v832 = vunpack.c.l.b16 %v190
    %v833 = vunpack.c.h.b16 %v190
    %v834 = vunpack.c.l.b16 %v191
    %v835 = vunpack.c.h.b16 %v191
    %v836 = vunpack.c.l.b16 %v192
    %v837 = vunpack.c.h.b16 %v192
    %v838 = vunpack.c.l.b16 %v193
    %v839 = vunpack.c.h.b16 %v193
    %v840 = vunpack.c.l.b16 %v194
    %v841 = vunpack.c.h.b16 %v194
    %v842 = vunpack.c.l.b16 %v195
    %v843 = vunpack.c.h.b16 %v195
    %v844 = vunpack.c.l.b16 %v196
    %v845 = vunpack.c.h.b16 %v196
    %v846 = vunpack.c.l.b16 %v197
    %v847 = vunpack.c.h.b16 %v197
    %v848 = vunpack.c.l.b16 %v198
    %v849 = vunpack.c.h.b16 %v198
    %v850 = vunpack.c.l.b16 %v199
    %v851 = vunpack.c.h.b16 %v199
    %v852 = vunpack.c.l.b16 %v200
    %v853 = vunpack.c.h.b16 %v200
    %v854 = vunpack.c.l.b16 %v201
    %v855 = vunpack.c.h.b16 %v201
    %v856 = vunpack.c.l.b16 %v202
    %v857 = vunpack.c.h.b16 %v202
    %v858 = vunpack.c.l.b16 %v203
    %v859 = vunpack.c.h.b16 %v203
    %v860 = vunpack.c.l.b16 %v204
    %v861 = vunpack.c.h.b16 %v204
    %v862 = vunpack.c.l.b16 %v205
    %v863 = vunpack.c.h.b16 %v205
    %v864 = vunpack.c.l.b16 %v206
    %v865 = vunpack.c.h.b16 %v206
    %v866 = vunpack.c.l.b16 %v207
    %v867 = vunpack.c.h.b16 %v207
    %v868 = vunpack.c.l.b16 %v208
    %v869 = vunpack.c.h.b16 %v208
    %v870 = vunpack.c.l.b16 %v209
    %v871 = vunpack.c.h.b16 %v209
    %v872 = vunpack.c.l.b16 %v210
    %v873 = vunpack.c.h.b16 %v210
    %v874 = vunpack.c.l.b16 %v211
    %v875 = vunpack.c.h.b16 %v211
    %v876 = vunpack.c.l.b16 %v212
    %v877 = vunpack.c.h.b16 %v212
    %v878 = vunpack.c.l.b16 %v213
    %v879 = vunpack.c.h.b16 %v213
    %v880 = vunpack.c.l.b16 %v214
    %v881 = vunpack.c.h.b16 %v214
    %v882 = vunpack.c.l.b16 %v215
    %v883 = vunpack.c.h.b16 %v215
    %v884 = vunpack.c.l.b16 %v216
    %v885 = vunpack.c.h.b16 %v216
    %v886 = vunpack.c.l.b16 %v217
    %v887 = vunpack.c.h.b16 %v217
    %v888 = vunpack.c.l.b16 %v218
    %v889 = vunpack.c.h.b16 %v218
    %v890 = vunpack.c.l.b16 %v219
    %v891 = vunpack.c.h.b16 %v219
    %v892 = vunpack.c.l.b16 %v220
    %v893 = vunpack.c.h.b16 %v220
    %v894 = vunpack.c.l.b16 %v221
    %v895 = vunpack.c.h.b16 %v221
    %v896 = vunpack.c.l.b16 %v222
    %v897 = vunpack.c.h.b16 %v222
    %v898 = vunpack.c.l.b16 %v223
    %v899 = vunpack.c.h.b16 %v223
    %v900 = vunpack.c.l.b16 %v224
    %v901 = vunpack.c.h.b16 %v224
    %v902 = vunpack.c.l.b16 %v225
    %v903 = vunpack.c.h.b16 %v225
    %v904 = vunpack.c.l.b16 %v226
    %v905 = vunpack.c.h.b16 %v226
    %v906 = vunpack.c.l.b16 %v227
    %v907 = vunpack.c.h.b16 %v227
    %v908 = vunpack.c.l.b16 %v228
    %v909 = vunpack.c.h.b16 %v228
    %v910 = vunpack.c.l.b16 %v229
    %v911 = vunpack.c.h.b16 %v229
    %v912 = vunpack.c.l.b16 %v230
    %v913 = vunpack.c.h.b16 %v230
    %v914 = vunpack.c.l.b16 %v231
    %v915 = vunpack.c.h.b16 %v231
    %v916 = vunpack.c.l.b16 %v232
    %v917 = vunpack.c.h.b16 %v232
    %v918 = vunpack.c.l.b16 %v233
    %v919 = vunpack.c.h.b16 %v233
    %v920 = vunpack.c.l.b16 %v234
    %v921 = vunpack.c.h.b16 %v234
    %v922 = vunpack.c.l.b16 %v235
    %v923 = vunpack.c.h.b16 %v235
    %v924 = vunpack.c.l.b16 %v236
    %v925 = vunpack.c.h.b16 %v236
    %v926 = vunpack.c.l.b16 %v237
    %v927 = vunpack.c.h.b16 %v237
    %v928 = vunpack.c.l.b16 %v238
    %v929 = vunpack.c.h.b16 %v238
    %v930 = vunpack.c.l.b16 %v239
    %v931 = vunpack.c.h.b16 %v239
    %v932 = vunpack.c.l.b16 %v240
    %v933 = vunpack.c.h.b16 %v240
    %v934 = vunpack.c.l.b16 %v241
    %v935 = vunpack.c.h.b16 %v241
    %v936 = vunpack.c.l.b16 %v242
    %v937 = vunpack.c.h.b16 %v242
    %v938 = vunpack.c.l.b16 %v243
    %v939 = vunpack.c.h.b16 %v243
    %v940 = vunpack.c.l.b16 %v244
    %v941 = vunpack.c.h.b16 %v244
    %v942 = vunpack.c.l.b16 %v245
    %v943 = vunpack.c.h.b16 %v245
    %v944 = vunpack.c.l.b16 %v246
    %v945 = vunpack.c.h.b16 %v246
    %v946 = vunpack.c.l.b16 %v247
    %v947 = vunpack.c.h.b16 %v247
    %v948 = vunpack.c.l.b16 %v248
    %v949 = vunpack.c.h.b16 %v248
    %v950 = vunpack.c.l.b16 %v249
    %v951 = vunpack.c.h.b16 %v249
    %v952 = vunpack.c.l.b16 %v250
    %v953 = vunpack.c.h.b16 %v250
    %v954 = vunpack.c.l.b16 %v251
    %v955 = vunpack.c.h.b16 %v251
    %v956 = vunpack.c.l.b16 %v252
    %v957 = vunpack.c.h.b16 %v252
    %v958 = vunpack.c.l.b16 %v253
    %v959 = vunpack.c.h.b16 %v253
    %v960 = vunpack.c.l.b16 %v254
    %v961 = vunpack.c.h.b16 %v254
    %v962 = vunpack.c.l.b16 %v255
    %v963 = vunpack.c.h.b16 %v255
    %v964 = vunpack.c.l.b16 %v256
    %v965 = vunpack.c.h.b16 %v256
    %v966 = vunpack.c.l.b16 %v257
    %v967 = vunpack.c.h.b16 %v257
    %v968 = vunpack.c.l.b16 %v258
    %v969 = vunpack.c.h.b16 %v258
    %v970 = vunpack.c.l.b16 %v259
    %v971 = vunpack.c.h.b16 %v259
    %v972 = vunpack.c.l.b16 %v260
    %v973 = vunpack.c.h.b16 %v260
    %v974 = vunpack.c.l.b16 %v261
    %v975 = vunpack.c.h.b16 %v261
    %v976 = vunpack.c.l.b16 %v262
    %v977 = vunpack.c.h.b16 %v262
    %v978 = vunpack.c.l.b16 %v263
    %v979 = vunpack.c.h.b16 %v263
    %v980 = vunpack.c.l.b16 %v264
    %v981 = vunpack.c.h.b16 %v264
    %v982 = vunpack.c.l.b16 %v265
    %v983 = vunpack.c.h.b16 %v265
    %v984 = vunpack.c.l.b16 %v266
    %v985 = vunpack.c.h.b16 %v266
    %v986 = vunpack.c.l.b16 %v267
    %v987 = vunpack.c.h.b16 %v267
    %v988 = vunpack.c.l.b16 %v268
    %v989 = vunpack.c.h.b16 %v268
    %v990 = vunpack.c.l.b16 %v269
    %v991 = vunpack.c.h.b16 %v269
    %v992 = vunpack.c.l.b16 %v270
    %v993 = vunpack.c.h.b16 %v270
    %v994 = vunpack.c.l.b16 %v271
    %v995 = vunpack.c.h.b16 %v271
    %v996 = vunpack.c.l.b16 %v272
    %v997 = vunpack.c.h.b16 %v272
    %v998 = vunpack.c.l.b16 %v273
    %v999 = vunpack.c.h.b16 %v273
    %v1000 = vunpack.c.l.b16 %v274
    %v1001 = vunpack.c.h.b16 %v274
    %v1002 = vunpack.c.l.b16 %v275
    %v1003 = vunpack.c.h.b16 %v275
    %v1004 = vunpack.c.l.b16 %v276
    %v1005 = vunpack.c.h.b16 %v276
    %v1006 = vunpack.c.l.b16 %v277
    %v1007 = vunpack.c.h.b16 %v277
    %v1008 = vunpack.c.l.b16 %v278
    %v1009 = vunpack.c.h.b16 %v278
    %v1010 = vunpack.c.l.b16 %v279
    %v1011 = vunpack.c.h.b16 %v279
    %v1012 = vunpack.c.l.b16 %v280
    %v1013 = vunpack.c.h.b16 %v280
    %v1014 = vunpack.c.l.b16 %v281
    %v1015 = vunpack.c.h.b16 %v281
    %v1016 = vunpack.c.l.b16 %v282
    %v1017 = vunpack.c.h.b16 %v282
    %v1018 = vunpack.c.l.b16 %v283
    %v1019 = vunpack.c.h.b16 %v283
    %v1020 = vunpack.c.l.b16 %v284
    %v1021 = vunpack.c.h.b16 %v284
    %v1022 = vunpack.c.l.b16 %v285
    %v1023 = vunpack.c.h.b16 %v285
    %v1024 = vunpack.c.l.b16 %v286
    %v1025 = vunpack.c.h.b16 %v286
    %v1026 = vunpack.c.l.b16 %v287
    %v1027 = vunpack.c.h.b16 %v287
    %v1028 = vunpack.c.l.b16 %v288
    %v1029 = vunpack.c.h.b16 %v288
    %v1030 = vunpack.c.l.b16 %v289
    %v1031 = vunpack.c.h.b16 %v289
    %v1032 = vunpack.c.l.b16 %v290
    %v1033 = vunpack.c.h.b16 %v290
    %v1034 = vunpack.c.l.b16 %v291
    %v1035 = vunpack.c.h.b16 %v291
    %v1036 = vunpack.c.l.b16 %v292
    %v1037 = vunpack.c.h.b16 %v292
    %v1038 = vunpack.c.l.b16 %v293
    %v1039 = vunpack.c.h.b16 %v293
    %v1040 = vunpack.c.l.b16 %v294
    %v1041 = vunpack.c.h.b16 %v294
    %v1042 = vunpack.c.l.b16 %v295
    %v1043 = vunpack.c.h.b16 %v295
    %v1044 = vunpack.c.l.b16 %v296
    %v1045 = vunpack.c.h.b16 %v296
    %v1046 = vunpack.c.l.b16 %v297
    %v1047 = vunpack.c.h.b16 %v297
    %v1048 = vunpack.c.l.b16 %v298
    %v1049 = vunpack.c.h.b16 %v298
    %v1050 = vunpack.c.l.b16 %v299
    %v1051 = vunpack.c.h.b16 %v299
    %v1052 = vunpack.c.l.b16 %v300
    %v1053 = vunpack.c.h.b16 %v300
    %v1054 = vunpack.c.l.b16 %v301
    %v1055 = vunpack.c.h.b16 %v301
    %v1056 = vunpack.c.l.b16 %v302
    %v1057 = vunpack.c.h.b16 %v302
    %v1058 = vunpack.c.l.b16 %v303
    %v1059 = vunpack.c.h.b16 %v303
    %v1060 = vunpack.c.l.b16 %v304
    %v1061 = vunpack.c.h.b16 %v304
    %v1062 = vunpack.c.l.b16 %v305
    %v1063 = vunpack.c.h.b16 %v305
    %v1064 = vunpack.c.l.b16 %v306
    %v1065 = vunpack.c.h.b16 %v306
    %v1066 = vunpack.c.l.b16 %v307
    %v1067 = vunpack.c.h.b16 %v307
    %v1068 = vunpack.c.l.b16 %v308
    %v1069 = vunpack.c.h.b16 %v308
    %v1070 = vunpack.c.l.b16 %v309
    %v1071 = vunpack.c.h.b16 %v309
    %v1072 = vunpack.c.l.b16 %v310
    %v1073 = vunpack.c.h.b16 %v310
    %v1074 = vunpack.c.l.b16 %v311
    %v1075 = vunpack.c.h.b16 %v311
    %v1076 = vunpack.c.l.b16 %v312
    %v1077 = vunpack.c.h.b16 %v312
    %v1078 = vunpack.c.l.b16 %v313
    %v1079 = vunpack.c.h.b16 %v313
    %v1080 = vunpack.c.l.b16 %v314
    %v1081 = vunpack.c.h.b16 %v314
    %v1082 = vunpack.c.l.b16 %v315
    %v1083 = vunpack.c.h.b16 %v315
    %v1084 = vunpack.c.l.b16 %v316
    %v1085 = vunpack.c.h.b16 %v316
    %v1086 = vunpack.c.l.b16 %v317
    %v1087 = vunpack.c.h.b16 %v317
    %v1088 = vunpack.c.l.b16 %v318
    %v1089 = vunpack.c.h.b16 %v318
    %v1090 = vunpack.c.l.b16 %v319
    %v1091 = vunpack.c.h.b16 %v319
    %v1092 = vunpack.c.l.b16 %v320
    %v1093 = vunpack.c.h.b16 %v320
    %v1094 = vunpack.c.l.b16 %v321
    %v1095 = vunpack.c.h.b16 %v321
    %v1096 = vunpack.c.l.b16 %v322
    %v1097 = vunpack.c.h.b16 %v322
    %v1098 = vunpack.c.l.b16 %v323
    %v1099 = vunpack.c.h.b16 %v323
    %v1100 = vunpack.c.l.b16 %v324
    %v1101 = vunpack.c.h.b16 %v324
    %v1102 = vunpack.c.l.b16 %v325
    %v1103 = vunpack.c.h.b16 %v325
    %v1104 = vunpack.c.l.b16 %v326
    %v1105 = vunpack.c.h.b16 %v326
    %v1106 = vunpack.c.l.b16 %v327
    %v1107 = vunpack.c.h.b16 %v327
    %v1108 = vunpack.c.l.b16 %v328
    %v1109 = vunpack.c.h.b16 %v328
    %v1110 = vunpack.c.l.b16 %v329
    %v1111 = vunpack.c.h.b16 %v329
    %v1112 = vunpack.c.l.b16 %v330
    %v1113 = vunpack.c.h.b16 %v330
    %v1114 = vunpack.c.l.b16 %v331
    %v1115 = vunpack.c.h.b16 %v331
    %v1116 = vunpack.c.l.b16 %v332
    %v1117 = vunpack.c.h.b16 %v332
    %v1118 = vunpack.c.l.b16 %v333
    %v1119 = vunpack.c.h.b16 %v333
    %v1120 = vunpack.c.l.b16 %v334
    %v1121 = vunpack.c.h.b16 %v334
    %v1122 = vunpack.c.l.b16 %v335
    %v1123 = vunpack.c.h.b16 %v335
    %v1124 = vunpack.c.l.b16 %v336
    %v1125 = vunpack.c.h.b16 %v336
    %v1126 = vunpack.c.l.b16 %v337
    %v1127 = vunpack.c.h.b16 %v337
    %v1128 = vpack.c.b16 %v620, %v616
    %v1129 = vpack.c.b16 %v621, %v617
    %v1130 = vpack.c.b16 %v622, %v618
    %v1131 = vpack.c.b16 %v623, %v619
    %v1132 = vpack.c.b16 %v628, %v624
    %v1133 = vpack.c.b16 %v629, %v625
    %v1134 = vpack.c.b16 %v630, %v626
    %v1135 = vpack.c.b16 %v631, %v627
    %v1136 = vpack.c.b16 %v636, %v632
    %v1137 = vpack.c.b16 %v637, %v633
    %v1138 = vpack.c.b16 %v638, %v634
    %v1139 = vpack.c.b16 %v639, %v635
    %v1140 = vpack.c.b16 %v644, %v640
    %v1141 = vpack.c.b16 %v645, %v641
    %v1142 = vpack.c.b16 %v646, %v642
    %v1143 = vpack.c.b16 %v647, %v643
    %v1144 = vpack.c.b16 %v652, %v648
    %v1145 = vpack.c.b16 %v653, %v649
    %v1146 = vpack.c.b16 %v654, %v650
    %v1147 = vpack.c.b16 %v655, %v651
    %v1148 = vpack.c.b16 %v660, %v656
    %v1149 = vpack.c.b16 %v661, %v657
    %v1150 = vpack.c.b16 %v662, %v658
    %v1151 = vpack.c.b16 %v663, %v659
    %v1152 = vpack.c.b16 %v668, %v664
    %v1153 = vpack.c.b16 %v669, %v665
    %v1154 = vpack.c.b16 %v670, %v666
    %v1155 = vpack.c.b16 %v671, %v667
    %v1156 = vpack.c.b16 %v676, %v672
    %v1157 = vpack.c.b16 %v677, %v673
    %v1158 = vpack.c.b16 %v678, %v674
    %v1159 = vpack.c.b16 %v679, %v675
    %v1160 = vpack.c.b16 %v684, %v680
    %v1161 = vpack.c.b16 %v685, %v681
    %v1162 = vpack.c.b16 %v686, %v682
    %v1163 = vpack.c.b16 %v687, %v683
    %v1164 = vpack.c.b16 %v692, %v688
    %v1165 = vpack.c.b16 %v693, %v689
    %v1166 = vpack.c.b16 %v694, %v690
    %v1167 = vpack.c.b16 %v695, %v691
    %v1168 = vpack.c.b16 %v700, %v696
    %v1169 = vpack.c.b16 %v701, %v697
    %v1170 = vpack.c.b16 %v702, %v698
    %v1171 = vpack.c.b16 %v703, %v699
    %v1172 = vpack.c.b16 %v708, %v704
    %v1173 = vpack.c.b16 %v709, %v705
    %v1174 = vpack.c.b16 %v710, %v706
    %v1175 = vpack.c.b16 %v711, %v707
    %v1176 = vpack.c.b16 %v716, %v712
    %v1177 = vpack.c.b16 %v717, %v713
    %v1178 = vpack.c.b16 %v718, %v714
    %v1179 = vpack.c.b16 %v719, %v715
    %v1180 = vpack.c.b16 %v724, %v720
    %v1181 = vpack.c.b16 %v725, %v721
    %v1182 = vpack.c.b16 %v726, %v722
    %v1183 = vpack.c.b16 %v727, %v723
    %v1184 = vpack.c.b16 %v732, %v728
    %v1185 = vpack.c.b16 %v733, %v729
    %v1186 = vpack.c.b16 %v734, %v730
    %v1187 = vpack.c.b16 %v735, %v731
    %v1188 = vpack.c.b16 %v740, %v736
    %v1189 = vpack.c.b16 %v741, %v737
    %v1190 = vpack.c.b16 %v742, %v738
    %v1191 = vpack.c.b16 %v743, %v739
    %v1192 = vpack.c.b16 %v748, %v744
    %v1193 = vpack.c.b16 %v749, %v745
    %v1194 = vpack.c.b16 %v750, %v746
    %v1195 = vpack.c.b16 %v751, %v747
    %v1196 = vpack.c.b16 %v756, %v752
    %v1197 = vpack.c.b16 %v757, %v753
    %v1198 = vpack.c.b16 %v758, %v754
    %v1199 = vpack.c.b16 %v759, %v755
    %v1200 = vpack.c.b16 %v764, %v760
    %v1201 = vpack.c.b16 %v765, %v761
    %v1202 = vpack.c.b16 %v766, %v762
    %v1203 = vpack.c.b16 %v767, %v763
    %v1204 = vpack.c.b16 %v772, %v768
    %v1205 = vpack.c.b16 %v773, %v769
    %v1206 = vpack.c.b16 %v774, %v770
    %v1207 = vpack.c.b16 %v775, %v771
    %v1208 = vpack.c.b16 %v780, %v776
    %v1209 = vpack.c.b16 %v781, %v777
    %v1210 = vpack.c.b16 %v782, %v778
    %v1211 = vpack.c.b16 %v783, %v779
    %v1212 = vpack.c.b16 %v788, %v784
    %v1213 = vpack.c.b16 %v789, %v785
    %v1214 = vpack.c.b16 %v790, %v786
    %v1215 = vpack.c.b16 %v791, %v787
    %v1216 = vpack.c.b16 %v796, %v792
    %v1217 = vpack.c.b16 %v797, %v793
    %v1218 = vpack.c.b16 %v798, %v794
    %v1219 = vpack.c.b16 %v799, %v795
    %v1220 = vpack.c.b16 %v804, %v800
    %v1221 = vpack.c.b16 %v805, %v801
    %v1222 = vpack.c.b16 %v806, %v802
    %v1223 = vpack.c.b16 %v807, %v803
    %v1224 = vpack.c.b16 %v812, %v808
    %v1225 = vpack.c.b16 %v813, %v809
    %v1226 = vpack.c.b16 %v814, %v810
    %v1227 = vpack.c.b16 %v815, %v811
    %v1228 = vpack.c.b16 %v820, %v816
    %v1229 = vpack.c.b16 %v821, %v817
    %v1230 = vpack.c.b16 %v822, %v818
    %v1231 = vpack.c.b16 %v823, %v819
    %v1232 = vpack.c.b16 %v828, %v824
    %v1233 = vpack.c.b16 %v829, %v825
    %v1234 = vpack.c.b16 %v830, %v826
    %v1235 = vpack.c.b16 %v831, %v827
    %v1236 = vpack.c.b16 %v836, %v832
    %v1237 = vpack.c.b16 %v837, %v833
    %v1238 = vpack.c.b16 %v838, %v834
    %v1239 = vpack.c.b16 %v839, %v835
    %v1240 = vpack.c.b16 %v844, %v840
    %v1241 = vpack.c.b16 %v845, %v841
    %v1242 = vpack.c.b16 %v846, %v842
    %v1243 = vpack.c.b16 %v847, %v843
    %v1244 = vpack.c.b16 %v852, %v848
    %v1245 = vpack.c.b16 %v853, %v849
    %v1246 = vpack.c.b16 %v854, %v850
    %v1247 = vpack.c.b16 %v855, %v851
    %v1248 = vpack.c.b16 %v860, %v856
    %v1249 = vpack.c.b16 %v861, %v857
    %v1250 = vpack.c.b16 %v862, %v858
    %v1251 = vpack.c.b16 %v863, %v859
    %v1252 = vpack.c.b16 %v868, %v864
    %v1253 = vpack.c.b16 %v869, %v865
    %v1254 = vpack.c.b16 %v870, %v866
    %v1255 = vpack.c.b16 %v871, %v867
    %v1256 = vpack.c.b16 %v876, %v872
    %v1257 = vpack.c.b16 %v877, %v873
    %v1258 = vpack.c.b16 %v878, %v874
    %v1259 = vpack.c.b16 %v879, %v875
    %v1260 = vpack.c.b16 %v884, %v880
    %v1261 = vpack.c.b16 %v885, %v881
    %v1262 = vpack.c.b16 %v886, %v882
    %v1263 = vpack.c.b16 %v887, %v883
    %v1264 = vpack.c.b16 %v892, %v888
    %v1265 = vpack.c.b16 %v893, %v889
    %v1266 = vpack.c.b16 %v894, %v890
    %v1267 = vpack.c.b16 %v895, %v891
    %v1268 = vpack.c.b16 %v900, %v896
    %v1269 = vpack.c.b16 %v901, %v897
    %v1270 = vpack.c.b16 %v902, %v898
    %v1271 = vpack.c.b16 %v903, %v899
    %v1272 = vpack.c.b16 %v908, %v904
    %v1273 = vpack.c.b16 %v909, %v905
    %v1274 = vpack.c.b16 %v910, %v906
    %v1275 = vpack.c.b16 %v911, %v907
    %v1276 = vpack.c.b16 %v916, %v912
    %v1277 = vpack.c.b16 %v917, %v913
    %v1278 = vpack.c.b16 %v918, %v914
    %v1279 = vpack.c.b16 %v919, %v915
    %v1280 = vpack.c.b16 %v924, %v920
    %v1281 = vpack.c.b16 %v925, %v921
    %v1282 = vpack.c.b16 %v926, %v922
    %v1283 = vpack.c.b16 %v927, %v923
    %v1284 = vpack.c.b16 %v932, %v928
    %v1285 = vpack.c.b16 %v933, %v929
    %v1286 = vpack.c.b16 %v934, %v930
    %v1287 = vpack.c.b16 %v935, %v931
    %v1288 = vpack.c.b16 %v940, %v936
    %v1289 = vpack.c.b16 %v941, %v937
    %v1290 = vpack.c.b16 %v942, %v938
    %v1291 = vpack.c.b16 %v943, %v939
    %v1292 = vpack.c.b16 %v948, %v944
    %v1293 = vpack.c.b16 %v949, %v945
    %v1294 = vpack.c.b16 %v950, %v946
    %v1295 = vpack.c.b16 %v951, %v947
    %v1296 = vpack.c.b16 %v956, %v952
    %v1297 = vpack.c.b16 %v957, %v953
    %v1298 = vpack.c.b16 %v958, %v954
    %v1299 = vpack.c.b16 %v959, %v955
    %v1300 = vpack.c.b16 %v964, %v960
    %v1301 = vpack.c.b16 %v965, %v961
    %v1302 = vpack.c.b16 %v966, %v962
    %v1303 = vpack.c.b16 %v967, %v963
    %v1304 = vpack.c.b16 %v972, %v968
    %v1305 = vpack.c.b16 %v973, %v969
    %v1306 = vpack.c.b16 %v974, %v970
    %v1307 = vpack.c.b16 %v975, %v971
    %v1308 = vpack.c.b16 %v980, %v976
    %v1309 = vpack.c.b16 %v981, %v977
    %v1310 = vpack.c.b16 %v982, %v978
    %v1311 = vpack.c.b16 %v983, %v979
    %v1312 = vpack.c.b16 %v988, %v984
    %v1313 = vpack.c.b16 %v989, %v985
    %v1314 = vpack.c.b16 %v990, %v986
    %v1315 = vpack.c.b16 %v991, %v987
    %v1316 = vpack.c.b16 %v996, %v992
    %v1317 = vpack.c.b16 %v997, %v993
    %v1318 = vpack.c.b16 %v998, %v994
    %v1319 = vpack.c.b16 %v999, %v995
    %v1320 = vpack.c.b16 %v1004, %v1000
    %v1321 = vpack.c.b16 %v1005, %v1001
    %v1322 = vpack.c.b16 %v1006, %v1002
    %v1323 = vpack.c.b16 %v1007, %v1003
    %v1324 = vpack.c.b16 %v1012, %v1008
    %v1325 = vpack.c.b16 %v1013, %v1009
    %v1326 = vpack.c.b16 %v1014, %v1010
    %v1327 = vpack.c.b16 %v1015, %v1011
    %v1328 = vpack.c.b16 %v1020, %v1016
    %v1329 = vpack.c.b16 %v1021, %v1017
    %v1330 = vpack.c.b16 %v1022, %v1018
    %v1331 = vpack.c.b16 %v1023, %v1019
    %v1332 = vpack.c.b16 %v1028, %v1024
    %v1333 = vpack.c.b16 %v1029, %v1025
    %v1334 = vpack.c.b16 %v1030, %v1026
    %v1335 = vpack.c.b16 %v1031, %v1027
    %v1336 = vpack.c.b16 %v1036, %v1032
    %v1337 = vpack.c.b16 %v1037, %v1033
    %v1338 = vpack.c.b16 %v1038, %v1034
    %v1339 = vpack.c.b16 %v1039, %v1035
    %v1340 = vpack.c.b16 %v1044, %v1040
    %v1341 = vpack.c.b16 %v1045, %v1041
    %v1342 = vpack.c.b16 %v1046, %v1042
    %v1343 = vpack.c.b16 %v1047, %v1043
    %v1344 = vpack.c.b16 %v1052, %v1048
    %v1345 = vpack.c.b16 %v1053, %v1049
    %v1346 = vpack.c.b16 %v1054, %v1050
    %v1347 = vpack.c.b16 %v1055, %v1051
    %v1348 = vpack.c.b16 %v1060, %v1056
    %v1349 = vpack.c.b16 %v1061, %v1057
    %v1350 = vpack.c.b16 %v1062, %v1058
    %v1351 = vpack.c.b16 %v1063, %v1059
    %v1352 = vpack.c.b16 %v1068, %v1064
    %v1353 = vpack.c.b16 %v1069, %v1065
    %v1354 = vpack.c.b16 %v1070, %v1066
    %v1355 = vpack.c.b16 %v1071, %v1067
    %v1356 = vpack.c.b16 %v1076, %v1072
    %v1357 = vpack.c.b16 %v1077, %v1073
    %v1358 = vpack.c.b16 %v1078, %v1074
    %v1359 = vpack.c.b16 %v1079, %v1075
    %v1360 = vpack.c.b16 %v1084, %v1080
    %v1361 = vpack.c.b16 %v1085, %v1081
    %v1362 = vpack.c.b16 %v1086, %v1082
    %v1363 = vpack.c.b16 %v1087, %v1083
    %v1364 = vpack.c.b16 %v1092, %v1088
    %v1365 = vpack.c.b16 %v1093, %v1089
    %v1366 = vpack.c.b16 %v1094, %v1090
    %v1367 = vpack.c.b16 %v1095, %v1091
    %v1368 = vpack.c.b16 %v1100, %v1096
    %v1369 = vpack.c.b16 %v1101, %v1097
    %v1370 = vpack.c.b16 %v1102, %v1098
    %v1371 = vpack.c.b16 %v1103, %v1099
    %v1372 = vpack.c.b16 %v1108, %v1104
    %v1373 = vpack.c.b16 %v1109, %v1105
    %v1374 = vpack.c.b16 %v1110, %v1106
    %v1375 = vpack.c.b16 %v1111, %v1107
    %v1376 = vpack.c.b16 %v1116, %v1112
    %v1377 = vpack.c.b16 %v1117, %v1113
    %v1378 = vpack.c.b16 %v1118, %v1114
    %v1379 = vpack.c.b16 %v1119, %v1115
    %v1380 = vpack.c.b16 %v1124, %v1120
    %v1381 = vpack.c.b16 %v1125, %v1121
    %v1382 = vpack.c.b16 %v1126, %v1122
    %v1383 = vpack.c.b16 %v1127, %v1123
    %1640 = vmatprep.subr.bf16.mxu0 %v1129
    %1641 = vmatpush1.bf16.msra.mxu0 %v1128
    %1642 = vmatprep.subr.bf16.mxu0 %v1133
    %1643 = vmatpush1.bf16.msra.mxu0 %v1132
    %1644 = vmatprep.subr.bf16.mxu0 %v1137
    %1645 = vmatpush1.bf16.msra.mxu0 %v1136
    %1646 = vmatprep.subr.bf16.mxu0 %v1141
    %1647 = vmatpush1.bf16.msra.mxu0 %v1140
    %1648 = vmatprep.subr.bf16.mxu0 %v1145
    %1649 = vmatpush1.bf16.msra.mxu0 %v1144
    %1650 = vmatprep.subr.bf16.mxu0 %v1149
    %1651 = vmatpush1.bf16.msra.mxu0 %v1148
    %1652 = vmatprep.subr.bf16.mxu0 %v1153
    %1653 = vmatpush1.bf16.msra.mxu0 %v1152
    %1654 = vmatprep.subr.bf16.mxu0 %v1157
    %1655 = vmatpush1.bf16.msra.mxu0 %v1156
    %1656 = vmatprep.subr.bf16.mxu0 %v1161
    %1657 = vmatpush1.bf16.msra.mxu0 %v1160
    %1658 = vmatprep.subr.bf16.mxu0 %v1165
    %1659 = vmatpush1.bf16.msra.mxu0 %v1164
    %1660 = vmatprep.subr.bf16.mxu0 %v1169
    %1661 = vmatpush1.bf16.msra.mxu0 %v1168
    %1662 = vmatprep.subr.bf16.mxu0 %v1173
    %1663 = vmatpush1.bf16.msra.mxu0 %v1172
    %1664 = vmatprep.subr.bf16.mxu0 %v1177
    %1665 = vmatpush1.bf16.msra.mxu0 %v1176
    %1666 = vmatprep.subr.bf16.mxu0 %v1181
    %1667 = vmatpush1.bf16.msra.mxu0 %v1180
    %1668 = vmatprep.subr.bf16.mxu0 %v1185
    %1669 = vmatpush1.bf16.msra.mxu0 %v1184
    %1670 = vmatprep.subr.bf16.mxu0 %v1189
    %1671 = vmatpush1.bf16.msra.mxu0 %v1188
    %1672 = vmatprep.mubr.bf16.mxu0 %v75
    %1673 = vmatmul.mubr.bf16.gmra.mrb[0].mxu0 %v74
    %v1674 = vpop.f32.mrb[0].mxu0
    %v1675 = vadd.f32 %v343, %v1674
    %v1676 = vpop.f32.mrb[0].mxu0
    %v1677 = vadd.f32 %v347, %v1676
    %v1678 = vpop.f32.mrb[0].mxu0
    %v1679 = vpop.f32.mrb[0].mxu0
    %1680 = vdwg.mxu0
    %1681 = vmatprep.subr.bf16.mxu0 %v1193
    %1682 = vmatpush1.bf16.msra.mxu0 %v1192
    %1683 = vmatprep.subr.bf16.mxu0 %v1197
    %1684 = vmatpush1.bf16.msra.mxu0 %v1196
    %1685 = vmatprep.subr.bf16.mxu0 %v1201
    %1686 = vmatpush1.bf16.msra.mxu0 %v1200
    %1687 = vmatprep.subr.bf16.mxu0 %v1205
    %1688 = vmatpush1.bf16.msra.mxu0 %v1204
    %1689 = vmatprep.subr.bf16.mxu0 %v1209
    %1690 = vmatpush1.bf16.msra.mxu0 %v1208
    %1691 = vmatprep.subr.bf16.mxu0 %v1213
    %1692 = vmatpush1.bf16.msra.mxu0 %v1212
    %1693 = vmatprep.subr.bf16.mxu0 %v1217
    %1694 = vmatpush1.bf16.msra.mxu0 %v1216
    %1695 = vmatprep.subr.bf16.mxu0 %v1221
    %1696 = vmatpush1.bf16.msra.mxu0 %v1220
    %1697 = vmatprep.subr.bf16.mxu0 %v1225
    %1698 = vmatpush1.bf16.msra.mxu0 %v1224
    %1699 = vmatprep.subr.bf16.mxu0 %v1229
    %1700 = vmatpush1.bf16.msra.mxu0 %v1228
    %1701 = vmatprep.subr.bf16.mxu0 %v1233
    %1702 = vmatpush1.bf16.msra.mxu0 %v1232
    %1703 = vmatprep.subr.bf16.mxu0 %v1237
    %1704 = vmatpush1.bf16.msra.mxu0 %v1236
    %1705 = vmatprep.subr.bf16.mxu0 %v1241
    %1706 = vmatpush1.bf16.msra.mxu0 %v1240
    %1707 = vmatprep.subr.bf16.mxu0 %v1245
    %1708 = vmatpush1.bf16.msra.mxu0 %v1244
    %1709 = vmatprep.subr.bf16.mxu0 %v1249
    %1710 = vmatpush1.bf16.msra.mxu0 %v1248
    %1711 = vmatprep.subr.bf16.mxu0 %v1253
    %1712 = vmatpush1.bf16.msra.mxu0 %v1252
    %1713 = vmatprep.mubr.bf16.mxu0 %v77
    %1714 = vmatmul.mubr.bf16.gmra.mrb[0].mxu0 %v76
    %v1715 = vpop.f32.mrb[0].mxu0
    %v1716 = vadd.f32 %v1675, %v1715
    %v1717 = vpop.f32.mrb[0].mxu0
    %v1718 = vadd.f32 %v1677, %v1717
    %v1719 = vpop.f32.mrb[0].mxu0
    %v1720 = vpop.f32.mrb[0].mxu0
    %1721 = vdwg.mxu0
    %1722 = vmatprep.subr.bf16.mxu0 %v1257
    %1723 = vmatpush1.bf16.msra.mxu0 %v1256
    %1724 = vmatprep.subr.bf16.mxu0 %v1261
    %1725 = vmatpush1.bf16.msra.mxu0 %v1260
    %1726 = vmatprep.subr.bf16.mxu0 %v1265
    %1727 = vmatpush1.bf16.msra.mxu0 %v1264
    %1728 = vmatprep.subr.bf16.mxu0 %v1269
    %1729 = vmatpush1.bf16.msra.mxu0 %v1268
    %1730 = vmatprep.subr.bf16.mxu0 %v1273
    %1731 = vmatpush1.bf16.msra.mxu0 %v1272
    %1732 = vmatprep.subr.bf16.mxu0 %v1277
    %1733 = vmatpush1.bf16.msra.mxu0 %v1276
    %1734 = vmatprep.subr.bf16.mxu0 %v1281
    %1735 = vmatpush1.bf16.msra.mxu0 %v1280
    %1736 = vmatprep.subr.bf16.mxu0 %v1285
    %1737 = vmatpush1.bf16.msra.mxu0 %v1284
    %1738 = vmatprep.subr.bf16.mxu0 %v1289
    %1739 = vmatpush1.bf16.msra.mxu0 %v1288
    %1740 = vmatprep.subr.bf16.mxu0 %v1293
    %1741 = vmatpush1.bf16.msra.mxu0 %v1292
    %1742 = vmatprep.subr.bf16.mxu0 %v1297
    %1743 = vmatpush1.bf16.msra.mxu0 %v1296
    %1744 = vmatprep.subr.bf16.mxu0 %v1301
    %1745 = vmatpush1.bf16.msra.mxu0 %v1300
    %1746 = vmatprep.subr.bf16.mxu0 %v1305
    %1747 = vmatpush1.bf16.msra.mxu0 %v1304
    %1748 = vmatprep.subr.bf16.mxu0 %v1309
    %1749 = vmatpush1.bf16.msra.mxu0 %v1308
    %1750 = vmatprep.subr.bf16.mxu0 %v1313
    %1751 = vmatpush1.bf16.msra.mxu0 %v1312
    %1752 = vmatprep.subr.bf16.mxu0 %v1317
    %1753 = vmatpush1.bf16.msra.mxu0 %v1316
    %1754 = vmatprep.mubr.bf16.mxu0 %v79
    %1755 = vmatmul.mubr.bf16.gmra.mrb[0].mxu0 %v78
    %v1756 = vpop.f32.mrb[0].mxu0
    %v1757 = vadd.f32 %v1716, %v1756
    %v1758 = vpop.f32.mrb[0].mxu0
    %v1759 = vadd.f32 %v1718, %v1758
    %v1760 = vpop.f32.mrb[0].mxu0
    %v1761 = vpop.f32.mrb[0].mxu0
    %1762 = vdwg.mxu0
    %1763 = vmatprep.subr.bf16.mxu0 %v1321
    %1764 = vmatpush1.bf16.msra.mxu0 %v1320
    %1765 = vmatprep.subr.bf16.mxu0 %v1325
    %1766 = vmatpush1.bf16.msra.mxu0 %v1324
    %1767 = vmatprep.subr.bf16.mxu0 %v1329
    %1768 = vmatpush1.bf16.msra.mxu0 %v1328
    %1769 = vmatprep.subr.bf16.mxu0 %v1333
    %1770 = vmatpush1.bf16.msra.mxu0 %v1332
    %1771 = vmatprep.subr.bf16.mxu0 %v1337
    %1772 = vmatpush1.bf16.msra.mxu0 %v1336
    %1773 = vmatprep.subr.bf16.mxu0 %v1341
    %1774 = vmatpush1.bf16.msra.mxu0 %v1340
    %1775 = vmatprep.subr.bf16.mxu0 %v1345
    %1776 = vmatpush1.bf16.msra.mxu0 %v1344
    %1777 = vmatprep.subr.bf16.mxu0 %v1349
    %1778 = vmatpush1.bf16.msra.mxu0 %v1348
    %1779 = vmatprep.subr.bf16.mxu0 %v1353
    %1780 = vmatpush1.bf16.msra.mxu0 %v1352
    %1781 = vmatprep.subr.bf16.mxu0 %v1357
    %1782 = vmatpush1.bf16.msra.mxu0 %v1356
    %1783 = vmatprep.subr.bf16.mxu0 %v1361
    %1784 = vmatpush1.bf16.msra.mxu0 %v1360
    %1785 = vmatprep.subr.bf16.mxu0 %v1365
    %1786 = vmatpush1.bf16.msra.mxu0 %v1364
    %1787 = vmatprep.subr.bf16.mxu0 %v1369
    %1788 = vmatpush1.bf16.msra.mxu0 %v1368
    %1789 = vmatprep.subr.bf16.mxu0 %v1373
    %1790 = vmatpush1.bf16.msra.mxu0 %v1372
    %1791 = vmatprep.subr.bf16.mxu0 %v1377
    %1792 = vmatpush1.bf16.msra.mxu0 %v1376
    %1793 = vmatprep.subr.bf16.mxu0 %v1381
    %1794 = vmatpush1.bf16.msra.mxu0 %v1380
    %1795 = vmatprep.mubr.bf16.mxu0 %v81
    %1796 = vmatmul.mubr.bf16.gmra.mrb[0].mxu0 %v80
    %v1797 = vpop.f32.mrb[0].mxu0
    %v1798 = vadd.f32 %v1757, %v1797
    %v1799 = vpop.f32.mrb[0].mxu0
    %v1800 = vadd.f32 %v1759, %v1799
    %v1801 = vpop.f32.mrb[0].mxu0
    %v1802 = vpop.f32.mrb[0].mxu0
    %1803 = vdwg.mxu0
    %1804 = vmatprep.subr.bf16.mxu0 %v1131
    %1805 = vmatpush1.bf16.msra.mxu0 %v1130
    %1806 = vmatprep.subr.bf16.mxu0 %v1135
    %1807 = vmatpush1.bf16.msra.mxu0 %v1134
    %1808 = vmatprep.subr.bf16.mxu0 %v1139
    %1809 = vmatpush1.bf16.msra.mxu0 %v1138
    %1810 = vmatprep.subr.bf16.mxu0 %v1143
    %1811 = vmatpush1.bf16.msra.mxu0 %v1142
    %1812 = vmatprep.subr.bf16.mxu0 %v1147
    %1813 = vmatpush1.bf16.msra.mxu0 %v1146
    %1814 = vmatprep.subr.bf16.mxu0 %v1151
    %1815 = vmatpush1.bf16.msra.mxu0 %v1150
    %1816 = vmatprep.subr.bf16.mxu0 %v1155
    %1817 = vmatpush1.bf16.msra.mxu0 %v1154
    %1818 = vmatprep.subr.bf16.mxu0 %v1159
    %1819 = vmatpush1.bf16.msra.mxu0 %v1158
    %1820 = vmatprep.subr.bf16.mxu0 %v1163
    %1821 = vmatpush1.bf16.msra.mxu0 %v1162
    %1822 = vmatprep.subr.bf16.mxu0 %v1167
    %1823 = vmatpush1.bf16.msra.mxu0 %v1166
    %1824 = vmatprep.subr.bf16.mxu0 %v1171
    %1825 = vmatpush1.bf16.msra.mxu0 %v1170
    %1826 = vmatprep.subr.bf16.mxu0 %v1175
    %1827 = vmatpush1.bf16.msra.mxu0 %v1174
    %1828 = vmatprep.subr.bf16.mxu0 %v1179
    %1829 = vmatpush1.bf16.msra.mxu0 %v1178
    %1830 = vmatprep.subr.bf16.mxu0 %v1183
    %1831 = vmatpush1.bf16.msra.mxu0 %v1182
    %1832 = vmatprep.subr.bf16.mxu0 %v1187
    %1833 = vmatpush1.bf16.msra.mxu0 %v1186
    %1834 = vmatprep.subr.bf16.mxu0 %v1191
    %1835 = vmatpush1.bf16.msra.mxu0 %v1190
    %1836 = vmatprep.mubr.bf16.mxu0 %v75
    %1837 = vmatmul.mubr.bf16.gmra.mrb[0].mxu0 %v74
    %v1838 = vpop.f32.mrb[0].mxu0
    %v1839 = vadd.f32 %v351, %v1838
    %v1840 = vpop.f32.mrb[0].mxu0
    %v1841 = vadd.f32 %v355, %v1840
    %v1842 = vpop.f32.mrb[0].mxu0
    %v1843 = vpop.f32.mrb[0].mxu0
    %1844 = vdwg.mxu0
    %1845 = vmatprep.subr.bf16.mxu0 %v1195
    %1846 = vmatpush1.bf16.msra.mxu0 %v1194
    %1847 = vmatprep.subr.bf16.mxu0 %v1199
    %1848 = vmatpush1.bf16.msra.mxu0 %v1198
    %1849 = vmatprep.subr.bf16.mxu0 %v1203
    %1850 = vmatpush1.bf16.msra.mxu0 %v1202
    %1851 = vmatprep.subr.bf16.mxu0 %v1207
    %1852 = vmatpush1.bf16.msra.mxu0 %v1206
    %1853 = vmatprep.subr.bf16.mxu0 %v1211
    %1854 = vmatpush1.bf16.msra.mxu0 %v1210
    %1855 = vmatprep.subr.bf16.mxu0 %v1215
    %1856 = vmatpush1.bf16.msra.mxu0 %v1214
    %1857 = vmatprep.subr.bf16.mxu0 %v1219
    %1858 = vmatpush1.bf16.msra.mxu0 %v1218
    %1859 = vmatprep.subr.bf16.mxu0 %v1223
    %1860 = vmatpush1.bf16.msra.mxu0 %v1222
    %1861 = vmatprep.subr.bf16.mxu0 %v1227
    %1862 = vmatpush1.bf16.msra.mxu0 %v1226
    %1863 = vmatprep.subr.bf16.mxu0 %v1231
    %1864 = vmatpush1.bf16.msra.mxu0 %v1230
    %1865 = vmatprep.subr.bf16.mxu0 %v1235
    %1866 = vmatpush1.bf16.msra.mxu0 %v1234
    %1867 = vmatprep.subr.bf16.mxu0 %v1239
    %1868 = vmatpush1.bf16.msra.mxu0 %v1238
    %1869 = vmatprep.subr.bf16.mxu0 %v1243
    %1870 = vmatpush1.bf16.msra.mxu0 %v1242
    %1871 = vmatprep.subr.bf16.mxu0 %v1247
    %1872 = vmatpush1.bf16.msra.mxu0 %v1246
    %1873 = vmatprep.subr.bf16.mxu0 %v1251
    %1874 = vmatpush1.bf16.msra.mxu0 %v1250
    %1875 = vmatprep.subr.bf16.mxu0 %v1255
    %1876 = vmatpush1.bf16.msra.mxu0 %v1254
    %1877 = vmatprep.mubr.bf16.mxu0 %v77
    %1878 = vmatmul.mubr.bf16.gmra.mrb[0].mxu0 %v76
    %v1879 = vpop.f32.mrb[0].mxu0
    %v1880 = vadd.f32 %v1839, %v1879
    %v1881 = vpop.f32.mrb[0].mxu0
    %v1882 = vadd.f32 %v1841, %v1881
    %v1883 = vpop.f32.mrb[0].mxu0
    %v1884 = vpop.f32.mrb[0].mxu0
    %1885 = vdwg.mxu0
    %1886 = vmatprep.subr.bf16.mxu0 %v1259
    %1887 = vmatpush1.bf16.msra.mxu0 %v1258
    %1888 = vmatprep.subr.bf16.mxu0 %v1263
    %1889 = vmatpush1.bf16.msra.mxu0 %v1262
    %1890 = vmatprep.subr.bf16.mxu0 %v1267
    %1891 = vmatpush1.bf16.msra.mxu0 %v1266
    %1892 = vmatprep.subr.bf16.mxu0 %v1271
    %1893 = vmatpush1.bf16.msra.mxu0 %v1270
    %1894 = vmatprep.subr.bf16.mxu0 %v1275
    %1895 = vmatpush1.bf16.msra.mxu0 %v1274
    %1896 = vmatprep.subr.bf16.mxu0 %v1279
    %1897 = vmatpush1.bf16.msra.mxu0 %v1278
    %1898 = vmatprep.subr.bf16.mxu0 %v1283
    %1899 = vmatpush1.bf16.msra.mxu0 %v1282
    %1900 = vmatprep.subr.bf16.mxu0 %v1287
    %1901 = vmatpush1.bf16.msra.mxu0 %v1286
    %1902 = vmatprep.subr.bf16.mxu0 %v1291
    %1903 = vmatpush1.bf16.msra.mxu0 %v1290
    %1904 = vmatprep.subr.bf16.mxu0 %v1295
    %1905 = vmatpush1.bf16.msra.mxu0 %v1294
    %1906 = vmatprep.subr.bf16.mxu0 %v1299
    %1907 = vmatpush1.bf16.msra.mxu0 %v1298
    %1908 = vmatprep.subr.bf16.mxu0 %v1303
    %1909 = vmatpush1.bf16.msra.mxu0 %v1302
    %1910 = vmatprep.subr.bf16.mxu0 %v1307
    %1911 = vmatpush1.bf16.msra.mxu0 %v1306
    %1912 = vmatprep.subr.bf16.mxu0 %v1311
    %1913 = vmatpush1.bf16.msra.mxu0 %v1310
    %1914 = vmatprep.subr.bf16.mxu0 %v1315
    %1915 = vmatpush1.bf16.msra.mxu0 %v1314
    %1916 = vmatprep.subr.bf16.mxu0 %v1319
    %1917 = vmatpush1.bf16.msra.mxu0 %v1318
    %1918 = vmatprep.mubr.bf16.mxu0 %v79
    %1919 = vmatmul.mubr.bf16.gmra.mrb[0].mxu0 %v78
    %v1920 = vpop.f32.mrb[0].mxu0
    %v1921 = vadd.f32 %v1880, %v1920
    %v1922 = vpop.f32.mrb[0].mxu0
    %v1923 = vadd.f32 %v1882, %v1922
    %v1924 = vpop.f32.mrb[0].mxu0
    %v1925 = vpop.f32.mrb[0].mxu0
    %1926 = vdwg.mxu0
    %1927 = vmatprep.subr.bf16.mxu0 %v1323
    %1928 = vmatpush1.bf16.msra.mxu0 %v1322
    %1929 = vmatprep.subr.bf16.mxu0 %v1327
    %1930 = vmatpush1.bf16.msra.mxu0 %v1326
    %1931 = vmatprep.subr.bf16.mxu0 %v1331
    %1932 = vmatpush1.bf16.msra.mxu0 %v1330
    %1933 = vmatprep.subr.bf16.mxu0 %v1335
    %1934 = vmatpush1.bf16.msra.mxu0 %v1334
    %1935 = vmatprep.subr.bf16.mxu0 %v1339
    %1936 = vmatpush1.bf16.msra.mxu0 %v1338
    %1937 = vmatprep.subr.bf16.mxu0 %v1343
    %1938 = vmatpush1.bf16.msra.mxu0 %v1342
    %1939 = vmatprep.subr.bf16.mxu0 %v1347
    %1940 = vmatpush1.bf16.msra.mxu0 %v1346
    %1941 = vmatprep.subr.bf16.mxu0 %v1351
    %1942 = vmatpush1.bf16.msra.mxu0 %v1350
    %1943 = vmatprep.subr.bf16.mxu0 %v1355
    %1944 = vmatpush1.bf16.msra.mxu0 %v1354
    %1945 = vmatprep.subr.bf16.mxu0 %v1359
    %1946 = vmatpush1.bf16.msra.mxu0 %v1358
    %1947 = vmatprep.subr.bf16.mxu0 %v1363
    %1948 = vmatpush1.bf16.msra.mxu0 %v1362
    %1949 = vmatprep.subr.bf16.mxu0 %v1367
    %1950 = vmatpush1.bf16.msra.mxu0 %v1366
    %1951 = vmatprep.subr.bf16.mxu0 %v1371
    %1952 = vmatpush1.bf16.msra.mxu0 %v1370
    %1953 = vmatprep.subr.bf16.mxu0 %v1375
    %1954 = vmatpush1.bf16.msra.mxu0 %v1374
    %1955 = vmatprep.subr.bf16.mxu0 %v1379
    %1956 = vmatpush1.bf16.msra.mxu0 %v1378
    %1957 = vmatprep.subr.bf16.mxu0 %v1383
    %1958 = vmatpush1.bf16.msra.mxu0 %v1382
    %1959 = vmatprep.mubr.bf16.mxu0 %v81
    %1960 = vmatmul.mubr.bf16.gmra.mrb[0].mxu0 %v80
    %v1961 = vpop.f32.mrb[0].mxu0
    %v1962 = vadd.f32 %v1921, %v1961
    %v1963 = vpop.f32.mrb[0].mxu0
    %v1964 = vadd.f32 %v1923, %v1963
    %v1965 = vpop.f32.mrb[0].mxu0
    %v1966 = vpop.f32.mrb[0].mxu0
    %1967 = vdwg.mxu0
    %v1968 = vmax.f32 %v1798, 0.0
    %v1969 = vmax.f32 %v1800, 0.0
    %v1970 = vmax.f32 %v1962, 0.0
    %v1971 = vmax.f32 %v1964, 0.0
    %v1972 = vpack.c.bf16 %v1968, %v1968
    %v1973 = vpack.c.bf16 %v1969, %v1969
    %v1974 = vpack.c.bf16 %v1970, %v1970
    %v1975 = vpack.c.bf16 %v1971, %v1971
    %v1976 = vld [vmem:[%s3] sm:$0xff]
    %v1977 = vld [vmem:[%s3 + $0x8] sm:$0xff]
    %v1978 = vld [vmem:[%s3 + $0x10] sm:$0xff]
    %v1979 = vld [vmem:[%s3 + $0x18] sm:$0xff]
    %v1980 = vld [vmem:[%s3 + $0x20] sm:$0xff]
    %v1981 = vld [vmem:[%s3 + $0x28] sm:$0xff]
    %v1982 = vld [vmem:[%s3 + $0x30] sm:$0xff]
    %v1983 = vld [vmem:[%s3 + $0x38] sm:$0xff]
    %v1984 = vld [vmem:[%s3 + $0x40] sm:$0xff]
    %v1985 = vld [vmem:[%s3 + $0x48] sm:$0xff]
    %v1986 = vld [vmem:[%s3 + $0x50] sm:$0xff]
    %v1987 = vld [vmem:[%s3 + $0x58] sm:$0xff]
    %v1988 = vld [vmem:[%s3 + $0x60] sm:$0xff]
    %v1989 = vld [vmem:[%s3 + $0x68] sm:$0xff]
    %v1990 = vld [vmem:[%s3 + $0x70] sm:$0xff]
    %v1991 = vld [vmem:[%s3 + $0x78] sm:$0xff]
    %v1992 = vld [vmem:[%s3 + $0x80] sm:$0xff]
    %v1993 = vld [vmem:[%s3 + $0x88] sm:$0xff]
    %v1994 = vld [vmem:[%s3 + $0x90] sm:$0xff]
    %v1995 = vld [vmem:[%s3 + $0x98] sm:$0xff]
    %v1996 = vld [vmem:[%s3 + $0xa0] sm:$0xff]
    %v1997 = vld [vmem:[%s3 + $0xa8] sm:$0xff]
    %v1998 = vld [vmem:[%s3 + $0xb0] sm:$0xff]
    %v1999 = vld [vmem:[%s3 + $0xb8] sm:$0xff]
    %v2000 = vld [vmem:[%s3 + $0xc0] sm:$0xff]
    %v2001 = vld [vmem:[%s3 + $0xc8] sm:$0xff]
    %v2002 = vld [vmem:[%s3 + $0xd0] sm:$0xff]
    %v2003 = vld [vmem:[%s3 + $0xd8] sm:$0xff]
    %v2004 = vld [vmem:[%s3 + $0xe0] sm:$0xff]
    %v2005 = vld [vmem:[%s3 + $0xe8] sm:$0xff]
    %v2006 = vld [vmem:[%s3 + $0xf0] sm:$0xff]
    %v2007 = vld [vmem:[%s3 + $0xf8] sm:$0xff]
    %v2008 = vld [vmem:[%s3 + $0x100] sm:$0xff]
    %v2009 = vld [vmem:[%s3 + $0x108] sm:$0xff]
    %v2010 = vld [vmem:[%s3 + $0x110] sm:$0xff]
    %v2011 = vld [vmem:[%s3 + $0x118] sm:$0xff]
    %v2012 = vld [vmem:[%s3 + $0x120] sm:$0xff]
    %v2013 = vld [vmem:[%s3 + $0x128] sm:$0xff]
    %v2014 = vld [vmem:[%s3 + $0x130] sm:$0xff]
    %v2015 = vld [vmem:[%s3 + $0x138] sm:$0xff]
    %v2016 = vld [vmem:[%s3 + $0x140] sm:$0xff]
    %v2017 = vld [vmem:[%s3 + $0x148] sm:$0xff]
    %v2018 = vld [vmem:[%s3 + $0x150] sm:$0xff]
    %v2019 = vld [vmem:[%s3 + $0x158] sm:$0xff]
    %v2020 = vld [vmem:[%s3 + $0x160] sm:$0xff]
    %v2021 = vld [vmem:[%s3 + $0x168] sm:$0xff]
    %v2022 = vld [vmem:[%s3 + $0x170] sm:$0xff]
    %v2023 = vld [vmem:[%s3 + $0x178] sm:$0xff]
    %v2024 = vld [vmem:[%s3 + $0x180] sm:$0xff]
    %v2025 = vld [vmem:[%s3 + $0x188] sm:$0xff]
    %v2026 = vld [vmem:[%s3 + $0x190] sm:$0xff]
    %v2027 = vld [vmem:[%s3 + $0x198] sm:$0xff]
    %v2028 = vld [vmem:[%s3 + $0x1a0] sm:$0xff]
    %v2029 = vld [vmem:[%s3 + $0x1a8] sm:$0xff]
    %v2030 = vld [vmem:[%s3 + $0x1b0] sm:$0xff]
    %v2031 = vld [vmem:[%s3 + $0x1b8] sm:$0xff]
    %v2032 = vld [vmem:[%s3 + $0x1c0] sm:$0xff]
    %v2033 = vld [vmem:[%s3 + $0x1c8] sm:$0xff]
    %v2034 = vld [vmem:[%s3 + $0x1d0] sm:$0xff]
    %v2035 = vld [vmem:[%s3 + $0x1d8] sm:$0xff]
    %v2036 = vld [vmem:[%s3 + $0x1e0] sm:$0xff]
    %v2037 = vld [vmem:[%s3 + $0x1e8] sm:$0xff]
    %v2038 = vld [vmem:[%s3 + $0x1f0] sm:$0xff]
    %v2039 = vld [vmem:[%s3 + $0x1f8] sm:$0xff]
    %v2040 = vld [vmem:[%s4] sm:$0x3]
    %v2042 = vlaneseq
    %v2043 = vshrl.u32 %v2042, 7
    %v2044 = vsub.s32 0, %v2043
    %v2045 = vrot.slane %v2040, %v2044
    %v2046 = vlaneseq
    %v2047 = vshrl.u32 %v2046, 7
    %v2048 = vsub.s32 1, %v2047
    %v2049 = vrot.slane %v2040, %v2048
    %v2116 = vunpack.c.l.b16 %v1976
    %v2117 = vunpack.c.h.b16 %v1976
    %v2118 = vunpack.c.l.b16 %v1977
    %v2119 = vunpack.c.h.b16 %v1977
    %v2120 = vunpack.c.l.b16 %v1978
    %v2121 = vunpack.c.h.b16 %v1978
    %v2122 = vunpack.c.l.b16 %v1979
    %v2123 = vunpack.c.h.b16 %v1979
    %v2124 = vunpack.c.l.b16 %v1980
    %v2125 = vunpack.c.h.b16 %v1980
    %v2126 = vunpack.c.l.b16 %v1981
    %v2127 = vunpack.c.h.b16 %v1981
    %v2128 = vunpack.c.l.b16 %v1982
    %v2129 = vunpack.c.h.b16 %v1982
    %v2130 = vunpack.c.l.b16 %v1983
    %v2131 = vunpack.c.h.b16 %v1983
    %v2132 = vunpack.c.l.b16 %v1984
    %v2133 = vunpack.c.h.b16 %v1984
    %v2134 = vunpack.c.l.b16 %v1985
    %v2135 = vunpack.c.h.b16 %v1985
    %v2136 = vunpack.c.l.b16 %v1986
    %v2137 = vunpack.c.h.b16 %v1986
    %v2138 = vunpack.c.l.b16 %v1987
    %v2139 = vunpack.c.h.b16 %v1987
    %v2140 = vunpack.c.l.b16 %v1988
    %v2141 = vunpack.c.h.b16 %v1988
    %v2142 = vunpack.c.l.b16 %v1989
    %v2143 = vunpack.c.h.b16 %v1989
    %v2144 = vunpack.c.l.b16 %v1990
    %v2145 = vunpack.c.h.b16 %v1990
    %v2146 = vunpack.c.l.b16 %v1991
    %v2147 = vunpack.c.h.b16 %v1991
    %v2148 = vunpack.c.l.b16 %v1992
    %v2149 = vunpack.c.h.b16 %v1992
    %v2150 = vunpack.c.l.b16 %v1993
    %v2151 = vunpack.c.h.b16 %v1993
    %v2152 = vunpack.c.l.b16 %v1994
    %v2153 = vunpack.c.h.b16 %v1994
    %v2154 = vunpack.c.l.b16 %v1995
    %v2155 = vunpack.c.h.b16 %v1995
    %v2156 = vunpack.c.l.b16 %v1996
    %v2157 = vunpack.c.h.b16 %v1996
    %v2158 = vunpack.c.l.b16 %v1997
    %v2159 = vunpack.c.h.b16 %v1997
    %v2160 = vunpack.c.l.b16 %v1998
    %v2161 = vunpack.c.h.b16 %v1998
    %v2162 = vunpack.c.l.b16 %v1999
    %v2163 = vunpack.c.h.b16 %v1999
    %v2164 = vunpack.c.l.b16 %v2000
    %v2165 = vunpack.c.h.b16 %v2000
    %v2166 = vunpack.c.l.b16 %v2001
    %v2167 = vunpack.c.h.b16 %v2001
    %v2168 = vunpack.c.l.b16 %v2002
    %v2169 = vunpack.c.h.b16 %v2002
    %v2170 = vunpack.c.l.b16 %v2003
    %v2171 = vunpack.c.h.b16 %v2003
    %v2172 = vunpack.c.l.b16 %v2004
    %v2173 = vunpack.c.h.b16 %v2004
    %v2174 = vunpack.c.l.b16 %v2005
    %v2175 = vunpack.c.h.b16 %v2005
    %v2176 = vunpack.c.l.b16 %v2006
    %v2177 = vunpack.c.h.b16 %v2006
    %v2178 = vunpack.c.l.b16 %v2007
    %v2179 = vunpack.c.h.b16 %v2007
    %v2180 = vunpack.c.l.b16 %v2008
    %v2181 = vunpack.c.h.b16 %v2008
    %v2182 = vunpack.c.l.b16 %v2009
    %v2183 = vunpack.c.h.b16 %v2009
    %v2184 = vunpack.c.l.b16 %v2010
    %v2185 = vunpack.c.h.b16 %v2010
    %v2186 = vunpack.c.l.b16 %v2011
    %v2187 = vunpack.c.h.b16 %v2011
    %v2188 = vunpack.c.l.b16 %v2012
    %v2189 = vunpack.c.h.b16 %v2012
    %v2190 = vunpack.c.l.b16 %v2013
    %v2191 = vunpack.c.h.b16 %v2013
    %v2192 = vunpack.c.l.b16 %v2014
    %v2193 = vunpack.c.h.b16 %v2014
    %v2194 = vunpack.c.l.b16 %v2015
    %v2195 = vunpack.c.h.b16 %v2015
    %v2196 = vunpack.c.l.b16 %v2016
    %v2197 = vunpack.c.h.b16 %v2016
    %v2198 = vunpack.c.l.b16 %v2017
    %v2199 = vunpack.c.h.b16 %v2017
    %v2200 = vunpack.c.l.b16 %v2018
    %v2201 = vunpack.c.h.b16 %v2018
    %v2202 = vunpack.c.l.b16 %v2019
    %v2203 = vunpack.c.h.b16 %v2019
    %v2204 = vunpack.c.l.b16 %v2020
    %v2205 = vunpack.c.h.b16 %v2020
    %v2206 = vunpack.c.l.b16 %v2021
    %v2207 = vunpack.c.h.b16 %v2021
    %v2208 = vunpack.c.l.b16 %v2022
    %v2209 = vunpack.c.h.b16 %v2022
    %v2210 = vunpack.c.l.b16 %v2023
    %v2211 = vunpack.c.h.b16 %v2023
    %v2212 = vunpack.c.l.b16 %v2024
    %v2213 = vunpack.c.h.b16 %v2024
    %v2214 = vunpack.c.l.b16 %v2025
    %v2215 = vunpack.c.h.b16 %v2025
    %v2216 = vunpack.c.l.b16 %v2026
    %v2217 = vunpack.c.h.b16 %v2026
    %v2218 = vunpack.c.l.b16 %v2027
    %v2219 = vunpack.c.h.b16 %v2027
    %v2220 = vunpack.c.l.b16 %v2028
    %v2221 = vunpack.c.h.b16 %v2028
    %v2222 = vunpack.c.l.b16 %v2029
    %v2223 = vunpack.c.h.b16 %v2029
    %v2224 = vunpack.c.l.b16 %v2030
    %v2225 = vunpack.c.h.b16 %v2030
    %v2226 = vunpack.c.l.b16 %v2031
    %v2227 = vunpack.c.h.b16 %v2031
    %v2228 = vunpack.c.l.b16 %v2032
    %v2229 = vunpack.c.h.b16 %v2032
    %v2230 = vunpack.c.l.b16 %v2033
    %v2231 = vunpack.c.h.b16 %v2033
    %v2232 = vunpack.c.l.b16 %v2034
    %v2233 = vunpack.c.h.b16 %v2034
    %v2234 = vunpack.c.l.b16 %v2035
    %v2235 = vunpack.c.h.b16 %v2035
    %v2236 = vunpack.c.l.b16 %v2036
    %v2237 = vunpack.c.h.b16 %v2036
    %v2238 = vunpack.c.l.b16 %v2037
    %v2239 = vunpack.c.h.b16 %v2037
    %v2240 = vunpack.c.l.b16 %v2038
    %v2241 = vunpack.c.h.b16 %v2038
    %v2242 = vunpack.c.l.b16 %v2039
    %v2243 = vunpack.c.h.b16 %v2039
    %v2244 = vpack.c.b16 %v2118, %v2116
    %v2245 = vpack.c.b16 %v2119, %v2117
    %v2246 = vpack.c.b16 %v2122, %v2120
    %v2247 = vpack.c.b16 %v2123, %v2121
    %v2248 = vpack.c.b16 %v2126, %v2124
    %v2249 = vpack.c.b16 %v2127, %v2125
    %v2250 = vpack.c.b16 %v2130, %v2128
    %v2251 = vpack.c.b16 %v2131, %v2129
    %v2252 = vpack.c.b16 %v2134, %v2132
    %v2253 = vpack.c.b16 %v2135, %v2133
    %v2254 = vpack.c.b16 %v2138, %v2136
    %v2255 = vpack.c.b16 %v2139, %v2137
    %v2256 = vpack.c.b16 %v2142, %v2140
    %v2257 = vpack.c.b16 %v2143, %v2141
    %v2258 = vpack.c.b16 %v2146, %v2144
    %v2259 = vpack.c.b16 %v2147, %v2145
    %v2260 = vpack.c.b16 %v2150, %v2148
    %v2261 = vpack.c.b16 %v2151, %v2149
    %v2262 = vpack.c.b16 %v2154, %v2152
    %v2263 = vpack.c.b16 %v2155, %v2153
    %v2264 = vpack.c.b16 %v2158, %v2156
    %v2265 = vpack.c.b16 %v2159, %v2157
    %v2266 = vpack.c.b16 %v2162, %v2160
    %v2267 = vpack.c.b16 %v2163, %v2161
    %v2268 = vpack.c.b16 %v2166, %v2164
    %v2269 = vpack.c.b16 %v2167, %v2165
    %v2270 = vpack.c.b16 %v2170, %v2168
    %v2271 = vpack.c.b16 %v2171, %v2169
    %v2272 = vpack.c.b16 %v2174, %v2172
    %v2273 = vpack.c.b16 %v2175, %v2173
    %v2274 = vpack.c.b16 %v2178, %v2176
    %v2275 = vpack.c.b16 %v2179, %v2177
    %v2276 = vpack.c.b16 %v2182, %v2180
    %v2277 = vpack.c.b16 %v2183, %v2181
    %v2278 = vpack.c.b16 %v2186, %v2184
    %v2279 = vpack.c.b16 %v2187, %v2185
    %v2280 = vpack.c.b16 %v2190, %v2188
    %v2281 = vpack.c.b16 %v2191, %v2189
    %v2282 = vpack.c.b16 %v2194, %v2192
    %v2283 = vpack.c.b16 %v2195, %v2193
    %v2284 = vpack.c.b16 %v2198, %v2196
    %v2285 = vpack.c.b16 %v2199, %v2197
    %v2286 = vpack.c.b16 %v2202, %v2200
    %v2287 = vpack.c.b16 %v2203, %v2201
    %v2288 = vpack.c.b16 %v2206, %v2204
    %v2289 = vpack.c.b16 %v2207, %v2205
    %v2290 = vpack.c.b16 %v2210, %v2208
    %v2291 = vpack.c.b16 %v2211, %v2209
    %v2292 = vpack.c.b16 %v2214, %v2212
    %v2293 = vpack.c.b16 %v2215, %v2213
    %v2294 = vpack.c.b16 %v2218, %v2216
    %v2295 = vpack.c.b16 %v2219, %v2217
    %v2296 = vpack.c.b16 %v2222, %v2220
    %v2297 = vpack.c.b16 %v2223, %v2221
    %v2298 = vpack.c.b16 %v2226, %v2224
    %v2299 = vpack.c.b16 %v2227, %v2225
    %v2300 = vpack.c.b16 %v2230, %v2228
    %v2301 = vpack.c.b16 %v2231, %v2229
    %v2302 = vpack.c.b16 %v2234, %v2232
    %v2303 = vpack.c.b16 %v2235, %v2233
    %v2304 = vpack.c.b16 %v2238, %v2236
    %v2305 = vpack.c.b16 %v2239, %v2237
    %v2306 = vpack.c.b16 %v2242, %v2240
    %v2307 = vpack.c.b16 %v2243, %v2241
    %2372 = vmatprep.subr.bf16.mxu0 %v2245
    %2373 = vmatpush1.bf16.msra.mxu0 %v2244
    %2374 = vmatprep.subr.bf16.mxu0 %v2247
    %2375 = vmatpush1.bf16.msra.mxu0 %v2246
    %2376 = vmatprep.subr.bf16.mxu0 %v2249
    %2377 = vmatpush1.bf16.msra.mxu0 %v2248
    %2378 = vmatprep.subr.bf16.mxu0 %v2251
    %2379 = vmatpush1.bf16.msra.mxu0 %v2250
    %2380 = vmatprep.subr.bf16.mxu0 %v2253
    %2381 = vmatpush1.bf16.msra.mxu0 %v2252
    %2382 = vmatprep.subr.bf16.mxu0 %v2255
    %2383 = vmatpush1.bf16.msra.mxu0 %v2254
    %2384 = vmatprep.subr.bf16.mxu0 %v2257
    %2385 = vmatpush1.bf16.msra.mxu0 %v2256
    %2386 = vmatprep.subr.bf16.mxu0 %v2259
    %2387 = vmatpush1.bf16.msra.mxu0 %v2258
    %2388 = vmatprep.subr.bf16.mxu0 %v2261
    %2389 = vmatpush1.bf16.msra.mxu0 %v2260
    %2390 = vmatprep.subr.bf16.mxu0 %v2263
    %2391 = vmatpush1.bf16.msra.mxu0 %v2262
    %2392 = vmatprep.subr.bf16.mxu0 %v2265
    %2393 = vmatpush1.bf16.msra.mxu0 %v2264
    %2394 = vmatprep.subr.bf16.mxu0 %v2267
    %2395 = vmatpush1.bf16.msra.mxu0 %v2266
    %2396 = vmatprep.subr.bf16.mxu0 %v2269
    %2397 = vmatpush1.bf16.msra.mxu0 %v2268
    %2398 = vmatprep.subr.bf16.mxu0 %v2271
    %2399 = vmatpush1.bf16.msra.mxu0 %v2270
    %2400 = vmatprep.subr.bf16.mxu0 %v2273
    %2401 = vmatpush1.bf16.msra.mxu0 %v2272
    %2402 = vmatprep.subr.bf16.mxu0 %v2275
    %2403 = vmatpush1.bf16.msra.mxu0 %v2274
    %2404 = vmatprep.mubr.bf16.mxu0 %v1973
    %2405 = vmatmul.mubr.bf16.gmra.mrb[0].mxu0 %v1972
    %v2406 = vpop.f32.mrb[0].mxu0
    %v2407 = vadd.f32 %v2045, %v2406
    %v2408 = vpop.f32.mrb[0].mxu0
    %v2409 = vadd.f32 %v2049, %v2408
    %v2410 = vpop.f32.mrb[0].mxu0
    %v2411 = vpop.f32.mrb[0].mxu0
    %2412 = vdwg.mxu0
    %2413 = vmatprep.subr.bf16.mxu0 %v2277
    %2414 = vmatpush1.bf16.msra.mxu0 %v2276
    %2415 = vmatprep.subr.bf16.mxu0 %v2279
    %2416 = vmatpush1.bf16.msra.mxu0 %v2278
    %2417 = vmatprep.subr.bf16.mxu0 %v2281
    %2418 = vmatpush1.bf16.msra.mxu0 %v2280
    %2419 = vmatprep.subr.bf16.mxu0 %v2283
    %2420 = vmatpush1.bf16.msra.mxu0 %v2282
    %2421 = vmatprep.subr.bf16.mxu0 %v2285
    %2422 = vmatpush1.bf16.msra.mxu0 %v2284
    %2423 = vmatprep.subr.bf16.mxu0 %v2287
    %2424 = vmatpush1.bf16.msra.mxu0 %v2286
    %2425 = vmatprep.subr.bf16.mxu0 %v2289
    %2426 = vmatpush1.bf16.msra.mxu0 %v2288
    %2427 = vmatprep.subr.bf16.mxu0 %v2291
    %2428 = vmatpush1.bf16.msra.mxu0 %v2290
    %2429 = vmatprep.subr.bf16.mxu0 %v2293
    %2430 = vmatpush1.bf16.msra.mxu0 %v2292
    %2431 = vmatprep.subr.bf16.mxu0 %v2295
    %2432 = vmatpush1.bf16.msra.mxu0 %v2294
    %2433 = vmatprep.subr.bf16.mxu0 %v2297
    %2434 = vmatpush1.bf16.msra.mxu0 %v2296
    %2435 = vmatprep.subr.bf16.mxu0 %v2299
    %2436 = vmatpush1.bf16.msra.mxu0 %v2298
    %2437 = vmatprep.subr.bf16.mxu0 %v2301
    %2438 = vmatpush1.bf16.msra.mxu0 %v2300
    %2439 = vmatprep.subr.bf16.mxu0 %v2303
    %2440 = vmatpush1.bf16.msra.mxu0 %v2302
    %2441 = vmatprep.subr.bf16.mxu0 %v2305
    %2442 = vmatpush1.bf16.msra.mxu0 %v2304
    %2443 = vmatprep.subr.bf16.mxu0 %v2307
    %2444 = vmatpush1.bf16.msra.mxu0 %v2306
    %2445 = vmatprep.mubr.bf16.mxu0 %v1975
    %2446 = vmatmul.mubr.bf16.gmra.mrb[0].mxu0 %v1974
    %v2447 = vpop.f32.mrb[0].mxu0
    %v2448 = vadd.f32 %v2407, %v2447
    %v2449 = vpop.f32.mrb[0].mxu0
    %v2450 = vadd.f32 %v2409, %v2449
    %v2451 = vpop.f32.mrb[0].mxu0
    %v2452 = vpop.f32.mrb[0].mxu0
    %2453 = vdwg.mxu0
    %v2454 = vmax.f32 %v2448, 0.0
    %v2455 = vmax.f32 %v2450, 0.0
    %v2456 = vpack.c.bf16 %v2454, %v2454
    %v2457 = vpack.c.bf16 %v2455, %v2455
    %v2458 = vld [vmem:[%s5] sm:$0xf]
    %v2459 = vld [vmem:[%s5 + $0x4] sm:$0xf]
    %v2460 = vld [vmem:[%s5 + $0x8] sm:$0xf]
    %v2461 = vld [vmem:[%s5 + $0xc] sm:$0xf]
    %v2462 = vld [vmem:[%s5 + $0x10] sm:$0xf]
    %v2463 = vld [vmem:[%s5 + $0x14] sm:$0xf]
    %v2464 = vld [vmem:[%s5 + $0x18] sm:$0xf]
    %v2465 = vld [vmem:[%s5 + $0x1c] sm:$0xf]
    %v2466 = vld [vmem:[%s5 + $0x20] sm:$0xf]
    %v2467 = vld [vmem:[%s5 + $0x24] sm:$0xf]
    %v2468 = vld [vmem:[%s5 + $0x28] sm:$0xf]
    %v2469 = vld [vmem:[%s5 + $0x2c] sm:$0xf]
    %v2470 = vld [vmem:[%s5 + $0x30] sm:$0xf]
    %v2471 = vld [vmem:[%s5 + $0x34] sm:$0xf]
    %v2472 = vld [vmem:[%s5 + $0x38] sm:$0xf]
    %v2473 = vld [vmem:[%s5 + $0x3c] sm:$0xf]
    %v2474 = vld [vmem:[%s5 + $0x40] sm:$0xf]
    %v2475 = vld [vmem:[%s5 + $0x44] sm:$0xf]
    %v2476 = vld [vmem:[%s5 + $0x48] sm:$0xf]
    %v2477 = vld [vmem:[%s5 + $0x4c] sm:$0xf]
    %v2478 = vld [vmem:[%s5 + $0x50] sm:$0xf]
    %v2479 = vld [vmem:[%s5 + $0x54] sm:$0xf]
    %v2480 = vld [vmem:[%s5 + $0x58] sm:$0xf]
    %v2481 = vld [vmem:[%s5 + $0x5c] sm:$0xf]
    %v2482 = vld [vmem:[%s5 + $0x60] sm:$0xf]
    %v2483 = vld [vmem:[%s5 + $0x64] sm:$0xf]
    %v2484 = vld [vmem:[%s5 + $0x68] sm:$0xf]
    %v2485 = vld [vmem:[%s5 + $0x6c] sm:$0xf]
    %v2486 = vld [vmem:[%s5 + $0x70] sm:$0xf]
    %v2487 = vld [vmem:[%s5 + $0x74] sm:$0xf]
    %v2488 = vld [vmem:[%s5 + $0x78] sm:$0xf]
    %v2489 = vld [vmem:[%s5 + $0x7c] sm:$0xf]
    %v2490 = vld [vmem:[%s6] sm:$0x1]
    %v2492 = vlaneseq
    %v2493 = vshrl.u32 %v2492, 7
    %v2494 = vsub.s32 0, %v2493
    %v2495 = vrot.slane %v2490, %v2494
    %v2529 = vunpack.c.l.b16 %v2458
    %v2530 = vunpack.c.l.b16 %v2459
    %v2531 = vunpack.c.l.b16 %v2460
    %v2532 = vunpack.c.l.b16 %v2461
    %v2533 = vunpack.c.l.b16 %v2462
    %v2534 = vunpack.c.l.b16 %v2463
    %v2535 = vunpack.c.l.b16 %v2464
    %v2536 = vunpack.c.l.b16 %v2465
    %v2537 = vunpack.c.l.b16 %v2466
    %v2538 = vunpack.c.l.b16 %v2467
    %v2539 = vunpack.c.l.b16 %v2468
    %v2540 = vunpack.c.l.b16 %v2469
    %v2541 = vunpack.c.l.b16 %v2470
    %v2542 = vunpack.c.l.b16 %v2471
    %v2543 = vunpack.c.l.b16 %v2472
    %v2544 = vunpack.c.l.b16 %v2473
    %v2545 = vunpack.c.l.b16 %v2474
    %v2546 = vunpack.c.l.b16 %v2475
    %v2547 = vunpack.c.l.b16 %v2476
    %v2548 = vunpack.c.l.b16 %v2477
    %v2549 = vunpack.c.l.b16 %v2478
    %v2550 = vunpack.c.l.b16 %v2479
    %v2551 = vunpack.c.l.b16 %v2480
    %v2552 = vunpack.c.l.b16 %v2481
    %v2553 = vunpack.c.l.b16 %v2482
    %v2554 = vunpack.c.l.b16 %v2483
    %v2555 = vunpack.c.l.b16 %v2484
    %v2556 = vunpack.c.l.b16 %v2485
    %v2557 = vunpack.c.l.b16 %v2486
    %v2558 = vunpack.c.l.b16 %v2487
    %v2559 = vunpack.c.l.b16 %v2488
    %v2560 = vunpack.c.l.b16 %v2489
    %v2561 = vpack.c.b16 %v2530, %v2529
    %v2562 = vpack.c.b16 %v2532, %v2531
    %v2563 = vpack.c.b16 %v2534, %v2533
    %v2564 = vpack.c.b16 %v2536, %v2535
    %v2565 = vpack.c.b16 %v2538, %v2537
    %v2566 = vpack.c.b16 %v2540, %v2539
    %v2567 = vpack.c.b16 %v2542, %v2541
    %v2568 = vpack.c.b16 %v2544, %v2543
    %v2569 = vpack.c.b16 %v2546, %v2545
    %v2570 = vpack.c.b16 %v2548, %v2547
    %v2571 = vpack.c.b16 %v2550, %v2549
    %v2572 = vpack.c.b16 %v2552, %v2551
    %v2573 = vpack.c.b16 %v2554, %v2553
    %v2574 = vpack.c.b16 %v2556, %v2555
    %v2575 = vpack.c.b16 %v2558, %v2557
    %v2576 = vpack.c.b16 %v2560, %v2559
    %2593 = vmatprep.subr.bf16.mxu0 0
    %2594 = vmatpush1.bf16.msra.mxu0 %v2561
    %2595 = vmatprep.subr.bf16.mxu0 0
    %2596 = vmatpush1.bf16.msra.mxu0 %v2562
    %2597 = vmatprep.subr.bf16.mxu0 0
    %2598 = vmatpush1.bf16.msra.mxu0 %v2563
    %2599 = vmatprep.subr.bf16.mxu0 0
    %2600 = vmatpush1.bf16.msra.mxu0 %v2564
    %2601 = vmatprep.subr.bf16.mxu0 0
    %2602 = vmatpush1.bf16.msra.mxu0 %v2565
    %2603 = vmatprep.subr.bf16.mxu0 0
    %2604 = vmatpush1.bf16.msra.mxu0 %v2566
    %2605 = vmatprep.subr.bf16.mxu0 0
    %2606 = vmatpush1.bf16.msra.mxu0 %v2567
    %2607 = vmatprep.subr.bf16.mxu0 0
    %2608 = vmatpush1.bf16.msra.mxu0 %v2568
    %2609 = vmatprep.subr.bf16.mxu0 0
    %2610 = vmatpush1.bf16.msra.mxu0 %v2569
    %2611 = vmatprep.subr.bf16.mxu0 0
    %2612 = vmatpush1.bf16.msra.mxu0 %v2570
    %2613 = vmatprep.subr.bf16.mxu0 0
    %2614 = vmatpush1.bf16.msra.mxu0 %v2571
    %2615 = vmatprep.subr.bf16.mxu0 0
    %2616 = vmatpush1.bf16.msra.mxu0 %v2572
    %2617 = vmatprep.subr.bf16.mxu0 0
    %2618 = vmatpush1.bf16.msra.mxu0 %v2573
    %2619 = vmatprep.subr.bf16.mxu0 0
    %2620 = vmatpush1.bf16.msra.mxu0 %v2574
    %2621 = vmatprep.subr.bf16.mxu0 0
    %2622 = vmatpush1.bf16.msra.mxu0 %v2575
    %2623 = vmatprep.subr.bf16.mxu0 0
    %2624 = vmatpush1.bf16.msra.mxu0 %v2576
    %2625 = vmatprep.mubr.bf16.mxu0 %v2457
    %2626 = vmatmul.mubr.bf16.gmra.mrb[0].mxu0 %v2456
    %v2627 = vpop.f32.mrb[0].mxu0
    %v2628 = vadd.f32 %v2495, %v2627
    %v2629 = vpop.f32.mrb[0].mxu0
    %v2630 = vpop.f32.mrb[0].mxu0
    %v2631 = vpop.f32.mrb[0].mxu0
    %2632 = vdwg.mxu0
    %vm2633 = vcmask 33792
    %2634 = vst.msk [vmem:[#allocation2] sm:$0x3] %vm2633, %v2628
    // Predicated region
    $region30: #{pointnet_cls_forward.7} parent=1 // pred_check
      _
    $region31: #{pointnet_cls_forward.7} parent=1 // pred_check_branch
      %2636 = sbr.rel (0) target = $region33
    $region32: #{pointnet_cls_forward.7} parent=1 // pred_region
      %s2638 = ssub.s32 32, 32
      %2639 = vsyncadd [#allocation3], %s2638
      %s2641 = sshll.u32 [#allocation2], 4
      %s2642 = int_to_ptr.vmem [resolvable:$true] %s2641
      %2644 = dma.vmem_to_hbm [thread:$0]  %s2642, 32, %s7, [#allocation3]
    $region33: #{pointnet_cls_forward.7} parent=1 // pred_fallthru
      _
    // Predicated region
    $region34: #{pointnet_cls_forward.7} parent=1 // pred_check
      _
    $region35: #{pointnet_cls_forward.7} parent=1 // pred_check_branch
      %2646 = sbr.rel (0) target = $region37
    $region36: #{pointnet_cls_forward.7} parent=1 // pred_region
      %2647 = dma.done [#allocation3], 32
    $region37: #{pointnet_cls_forward.7} parent=1 // pred_fallthru
      _
    %2648 = vsyncpa [#allocation3], 1

</llo_original>
